<compile_context>
chip_gen: v7x
topology: tpu7x:2x2x1
jax: 0.10.0
libtpu: 0.0.40
codegen_flags: <defaults>
</compile_context>

<pallas_src>
import functools

import jax
import jax.numpy as jnp
from jax.experimental import pallas as pl
from jax.experimental.pallas import tpu as pltpu

LANE = 128  # TPU lane width; channel dims are zero-padded to a multiple of this.


def _round_up(x, m):
    return (x + m - 1) // m * m


def _fold_bn(gamma, beta, mean, var, eps=1e-5):
    scale = gamma / jnp.sqrt(var + eps)
    bias = beta - mean * scale
    return scale, bias


def _pad_to(a, shape):
    pads = [(0, t - s) for s, t in zip(a.shape, shape)]
    return jnp.pad(a, pads)


def _bottleneck_kernel(W, Wp, x_ref, w1_ref, b1_ref, w2_ref, b2_ref,
                       w3_ref, b3_ref, o_ref, pad_ref):
    # Layout (all lane-dense; channels padded to multiples of 128):
    #   x_ref   : (H*Wp, Cin_p)  f32. Row q = y*Wp + x; cols x in [W, Wp) are zero junk.
    #   w1_ref  : (Cin_p, Cmid_p)      conv1 1x1 weights, bn1 scale folded (compute dtype)
    #   w2_ref  : (9, Cmid_p, Cmid_p)  conv2 3x3 per-tap weights, bn2 folded
    #   w3_ref  : (Cmid_p, Cout_p)     conv3 1x1 weights, bn3 folded
    #   b*_ref  : (1, C)               folded BN biases, float32
    #   o_ref   : (H*Wp, Cout_p)       output slab (same row layout as x)
    #   pad_ref : ((H+3)*Wp, Cmid_p)   flattened zero-padded conv2 input raster,
    #                                  compute dtype.  h1 pixel (y, x) lives at flat
    #                                  index (y+1)*Wp + (x+1); borders are zero.
    HWa = x_ref.shape[0]
    Cmid_p = w1_ref.shape[1]
    NP = pad_ref.shape[0]
    cdt = w1_ref.dtype  # MXU input dtype (f32 or bf16); accumulation is always f32

    x = x_ref[...]                                            # (HWa, Cin_p) f32

    # --- conv1 (1x1) + bn1 + relu: one MXU matmul, f32 accumulation -----------
    h1 = jnp.dot(x.astype(cdt), w1_ref[...], preferred_element_type=jnp.float32)
    h1 = jnp.maximum(h1 + b1_ref[...], 0.0)                   # (HWa, Cmid_p) f32

    # Zero the junk columns (x >= W) so that, once copied into the raster, they act
    # as conv2's spatial zero padding (VPU select instead of strided border stores).
    col = jax.lax.broadcasted_iota(jnp.int32, (HWa, Cmid_p), 0) % Wp
    h1 = jnp.where(col < W, h1, 0.0)

    # --- build the flattened zero-padded raster --------------------------------
    # Re-zero the (small, contiguous) top / bottom strips every step so the scratch
    # is correct even when the "parallel" grid axis is split across TensorCores.
    top = Wp + 1
    tail = top + HWa
    pad_ref[0:top, :] = jnp.zeros((top, Cmid_p), pad_ref.dtype)
    pad_ref[tail:NP, :] = jnp.zeros((NP - tail, Cmid_p), pad_ref.dtype)
    pad_ref[top:tail, :] = h1.astype(pad_ref.dtype)           # single contiguous store

    # --- conv2 (3x3, stride 1, pad 1) + bn2 + relu ------------------------------
    # Nine accumulating MXU matmuls over contiguous row-offset slices of the raster.
    # Output row q = y*Wp + x reads raster rows q + dy*Wp + dx (dy,dx in {0,1,2});
    # junk columns produce garbage that is discarded in the wrapper.
    acc = None
    for dy in range(3):
        for dx in range(3):
            off = dy * Wp + dx
            tap = pad_ref[off:off + HWa, :]                   # (HWa, Cmid_p) contiguous
            p = jnp.dot(tap, w2_ref[dy * 3 + dx],
                        preferred_element_type=jnp.float32)
            acc = p if acc is None else acc + p
    h2 = jnp.maximum(acc + b2_ref[...], 0.0)                  # (HWa, Cmid_p) f32

    # --- conv3 (1x1, expansion=4) + bn3 -----------------------------------------
    h3 = jnp.dot(h2.astype(cdt), w3_ref[...], preferred_element_type=jnp.float32)
    h3 = h3 + b3_ref[...]                                     # (HWa, Cout_p) f32

    # --- residual add (identity kept in f32) + relu -----------------------------
    o_ref[...] = jnp.maximum(h3 + x, 0.0).astype(o_ref.dtype)


def bottleneck_block(x_nchw, w1_oihw, bn1, w2_oihw, bn2, w3_oihw, bn3,
                     *, eps=1e-5, compute_dtype=jnp.bfloat16,
                     out_dtype=jnp.float32):
    """Fused ResNet bottleneck block (stride=1, identity_downsample=None).

    x_nchw: (N, Cin, H, W) float32, PyTorch layout. Conv weights in PyTorch OIHW
    layout (bias=False). bn* = (gamma, beta, running_mean, running_var).
    compute_dtype: MXU input dtype (bf16 recommended on all generations); the
    residual branch and all accumulation stay float32.  Returns (N, Cout, H, W)
    in out_dtype with Cout == Cin.
    """
    N, Cin, H, W = x_nchw.shape
    Cmid = w1_oihw.shape[0]
    Cout = w3_oihw.shape[0]
    assert Cout == Cin, "identity_downsample=None requires Cin == 4*Cmid"

    Wp = _round_up(W + 2, 8)          # padded row width (spatial pad + 8-alignment)
    HWa = H * Wp
    NP = (H + 3) * Wp                 # raster rows (+1 row of slack for junk-col taps)

    Cin_p = _round_up(Cin, LANE)
    Cmid_p = _round_up(Cmid, LANE)
    Cout_p = _round_up(Cout, LANE)

    # ---- fold eval-mode BatchNorm into the conv weights / a single bias --------
    s1, b1 = _fold_bn(*bn1, eps)
    s2, b2 = _fold_bn(*bn2, eps)
    s3, b3 = _fold_bn(*bn3, eps)

    w1 = jnp.transpose(w1_oihw[:, :, 0, 0], (1, 0)) * s1[None, :]        # (Cin, Cmid)
    w2 = jnp.transpose(w2_oihw, (2, 3, 1, 0)) * s2[None, None, None, :]  # (3,3,I,O)
    w3 = jnp.transpose(w3_oihw[:, :, 0, 0], (1, 0)) * s3[None, :]        # (Cmid, Cout)

    w1_p = _pad_to(w1, (Cin_p, Cmid_p)).astype(compute_dtype)
    w2_p = _pad_to(w2.reshape(9, Cmid, Cmid), (9, Cmid_p, Cmid_p)).astype(compute_dtype)
    w3_p = _pad_to(w3, (Cmid_p, Cout_p)).astype(compute_dtype)
    b1_p = _pad_to(b1.reshape(1, Cmid), (1, Cmid_p)).astype(jnp.float32)
    b2_p = _pad_to(b2.reshape(1, Cmid), (1, Cmid_p)).astype(jnp.float32)
    b3_p = _pad_to(b3.reshape(1, Cout), (1, Cout_p)).astype(jnp.float32)

    # NCHW -> NHWC -> pad W to Wp and C to Cin_p -> (N, H*Wp, Cin_p) f32 slabs.
    x_nhwc = jnp.transpose(x_nchw, (0, 2, 3, 1))
    x_p = jnp.pad(x_nhwc, ((0, 0), (0, 0), (0, Wp - W), (0, Cin_p - Cin)))
    x_p = x_p.reshape(N, HWa, Cin_p).astype(jnp.float32)      # residual kept in f32

    # ---- VMEM budget: per-generation capacity, including f32 intermediates -----
    cs = jnp.dtype(compute_dtype).itemsize
    os_ = jnp.dtype(out_dtype).itemsize
    est = (2 * HWa * Cin_p * 4                                 # x block (double-buffered)
           + 2 * HWa * Cout_p * os_                            # out block
           + 2 * (Cin_p * Cmid_p + 9 * Cmid_p * Cmid_p + Cmid_p * Cout_p) * cs
           + 2 * (2 * Cmid_p + Cout_p) * 4                     # biases
           + NP * Cmid_p * cs                                  # padded raster scratch
           + HWa * (2 * Cmid_p + Cout_p + Cin_p) * 4)          # h1 / h2-acc / h3 / x f32
    try:
        vmem_cap = int(pltpu.get_tpu_info().vmem_capacity_bytes)
    except Exception:
        vmem_cap = 64 * 1024 * 1024
    vmem_limit = int(min(0.8 * vmem_cap, max(32 * 1024 * 1024, 2.0 * est)))

    full = lambda shape: pl.BlockSpec(shape, lambda n: (0,) * len(shape))

    out_p = pl.pallas_call(
        functools.partial(_bottleneck_kernel, W, Wp),
        out_shape=jax.ShapeDtypeStruct((N, HWa, Cout_p), out_dtype),
        grid=(N,),
        in_specs=[
            pl.BlockSpec((None, HWa, Cin_p), lambda n: (n, 0, 0)),   # x (per image)
            full((Cin_p, Cmid_p)), full((1, Cmid_p)),                # conv1 / bn1
            full((9, Cmid_p, Cmid_p)), full((1, Cmid_p)),            # conv2 / bn2
            full((Cmid_p, Cout_p)), full((1, Cout_p)),               # conv3 / bn3
        ],
        out_specs=pl.BlockSpec((None, HWa, Cout_p), lambda n: (n, 0, 0)),
        scratch_shapes=[
            pltpu.VMEM((NP, Cmid_p), compute_dtype),                 # padded raster
        ],
        compiler_params=pltpu.CompilerParams(
            dimension_semantics=("parallel",),
            vmem_limit_bytes=vmem_limit),
    )(x_p, w1_p, b1_p, w2_p, b2_p, w3_p, b3_p)

    # Strip spatial-junk columns and channel padding, back to PyTorch NCHW layout.
    out = out_p.reshape(N, H, Wp, Cout_p)[:, :, :W, :Cout]
    return jnp.transpose(out, (0, 3, 1, 2))


def _reference_nchw(x_nchw, w1_oihw, bn1, w2_oihw, bn2, w3_oihw, bn3, eps=1e-5):
    """Plain-JAX eval-mode reference with the same semantics as the PyTorch block."""
    def bn(h, params):
        gamma, beta, mean, var = params
        s = gamma / jnp.sqrt(var + eps)
        return (h - mean) * s + beta

    x = jnp.transpose(x_nchw, (0, 2, 3, 1))                       # NHWC
    h = jnp.einsum('nhwc,dc->nhwd', x, w1_oihw[:, :, 0, 0])
    h = jnp.maximum(bn(h, bn1), 0.0)
    h = jax.lax.conv_general_dilated(
        h, jnp.transpose(w2_oihw, (2, 3, 1, 0)), window_strides=(1, 1),
        padding='SAME', dimension_numbers=('NHWC', 'HWIO', 'NHWC'))
    h = jnp.maximum(bn(h, bn2), 0.0)
    h = jnp.einsum('nhwc,dc->nhwd', h, w3_oihw[:, :, 0, 0])
    h = bn(h, bn3)
    h = jnp.maximum(h + x, 0.0)
    return jnp.transpose(h, (0, 3, 1, 2))                         # back to NCHW


if __name__ == "__main__":
    # Small shapes consistent with the module: batch=2, intermediate_channels=4,
    # expansion=4 => in/out channels 16, spatial 16x16, stride=1, no downsample.
    N, H, W = 2, 16, 16
    Cmid, expansion = 4, 4
    Cin = Cout = Cmid * expansion

    key = jax.random.PRNGKey(0)
    ks = jax.random.split(key, 8)

    x_nchw = jax.random.normal(ks[0], (N, Cin, H, W), jnp.float32)   # PyTorch layout

    # PyTorch-layout conv weights (OIHW, bias=False as in the module).
    w1 = 0.2 * jax.random.normal(ks[1], (Cmid, Cin, 1, 1), jnp.float32)
    w2 = 0.2 * jax.random.normal(ks[2], (Cmid, Cmid, 3, 3), jnp.float32)
    w3 = 0.2 * jax.random.normal(ks[3], (Cout, Cmid, 1, 1), jnp.float32)

    def bn_params(k, c):
        k1, k2, k3, k4 = jax.random.split(k, 4)
        gamma = 1.0 + 0.1 * jax.random.normal(k1, (c,), jnp.float32)
        beta = 0.1 * jax.random.normal(k2, (c,), jnp.float32)
        mean = 0.1 * jax.random.normal(k3, (c,), jnp.float32)
        var = jax.random.uniform(k4, (c,), jnp.float32, 0.5, 1.5)
        return gamma, beta, mean, var

    bn1 = bn_params(ks[4], Cmid)
    bn2 = bn_params(ks[5], Cmid)
    bn3 = bn_params(ks[6], Cout)

    ref = _reference_nchw(x_nchw, w1, bn1, w2, bn2, w3, bn3)

    # f32 MXU inputs: tightly comparable with the f32 reference.
    out = bottleneck_block(x_nchw, w1, bn1, w2, bn2, w3, bn3,
                           compute_dtype=jnp.float32, out_dtype=jnp.float32)
    out = jax.block_until_ready(out)
    assert out.shape == (N, Cout, H, W)
    assert jnp.allclose(out, ref, atol=1e-3, rtol=1e-3), "f32 kernel mismatch vs reference"

    # bf16 MXU inputs, f32 residual/accumulation, bf16 output (recommended mode).
    out_bf16 = bottleneck_block(x_nchw, w1, bn1, w2, bn2, w3, bn3,
                                compute_dtype=jnp.bfloat16, out_dtype=jnp.bfloat16)
    out_bf16 = jax.block_until_ready(out_bf16)
    assert jnp.allclose(out_bf16.astype(jnp.float32), ref,
                        atol=2e-1, rtol=2e-1), "bf16 kernel mismatch vs reference"

    print("KERNEL_OK")
</pallas_src>

<mosaic_0001>
module attributes {stable_mosaic.version = 11 : i64} {
  func.func @_bottleneck_kernel(%arg0: i32, %arg1: memref<1x384x128xf32, #tpu.memory_space<vmem>>, %arg2: memref<128x128xf32, #tpu.memory_space<vmem>>, %arg3: memref<1x128xf32, #tpu.memory_space<vmem>>, %arg4: memref<9x128x128xf32, #tpu.memory_space<vmem>>, %arg5: memref<1x128xf32, #tpu.memory_space<vmem>>, %arg6: memref<128x128xf32, #tpu.memory_space<vmem>>, %arg7: memref<1x128xf32, #tpu.memory_space<vmem>>, %arg8: memref<1x384x128xf32, #tpu.memory_space<vmem>>, %arg9: memref<456x128xf32, #tpu.memory_space<vmem>>) attributes {dimension_semantics = [#tpu.dimension_semantics<parallel>], iteration_bounds = array<i64: 2>, scalar_prefetch = 0 : i64, scratch_operands = 1 : i64, tpu.core_type = #tpu.core_type<tc>, window_params = [{transform_indices = @transform_0, window_bounds = array<i64: 1, 384, 128>}, {pipeline_mode = #tpu.pipeline_mode<synchronous>, transform_indices = @transform_1, window_bounds = array<i64: 128, 128>}, {pipeline_mode = #tpu.pipeline_mode<synchronous>, transform_indices = @transform_2, window_bounds = array<i64: 1, 128>}, {pipeline_mode = #tpu.pipeline_mode<synchronous>, transform_indices = @transform_3, window_bounds = array<i64: 9, 128, 128>}, {pipeline_mode = #tpu.pipeline_mode<synchronous>, transform_indices = @transform_4, window_bounds = array<i64: 1, 128>}, {pipeline_mode = #tpu.pipeline_mode<synchronous>, transform_indices = @transform_5, window_bounds = array<i64: 128, 128>}, {pipeline_mode = #tpu.pipeline_mode<synchronous>, transform_indices = @transform_6, window_bounds = array<i64: 1, 128>}, {transform_indices = @transform_7, window_bounds = array<i64: 1, 384, 128>}]} {
    %c0 = arith.constant 0 : index
    %c0_0 = arith.constant 0 : index
    %c0_1 = arith.constant 0 : index
    %0 = vector.load %arg1[%c0, %c0_0, %c0_1] : memref<1x384x128xf32, #tpu.memory_space<vmem>>, vector<1x384x128xf32>
    %1 = vector.shape_cast %0 : vector<1x384x128xf32> to vector<384x128xf32>
    %c0_2 = arith.constant 0 : index
    %c0_3 = arith.constant 0 : index
    %2 = vector.load %arg2[%c0_2, %c0_3] : memref<128x128xf32, #tpu.memory_space<vmem>>, vector<128x128xf32>
    %cst = arith.constant dense<0.000000e+00> : vector<384x128xf32>
    %3 = tpu.matmul %1, %2, %cst {dimension_numbers = #tpu.dot_dimension_numbers<[1], [0], [0], [1], [0, 0, 1, 1], [], []>} : vector<384x128xf32>, vector<128x128xf32>, vector<384x128xf32> -> vector<384x128xf32>
    %c0_4 = arith.constant 0 : index
    %c0_5 = arith.constant 0 : index
    %4 = vector.load %arg3[%c0_4, %c0_5] : memref<1x128xf32, #tpu.memory_space<vmem>>, vector<1x128xf32>
    %5 = vector.broadcast %4 : vector<1x128xf32> to vector<384x128xf32>
    %6 = arith.addf %3, %5 : vector<384x128xf32>
    %cst_6 = arith.constant 0.000000e+00 : f32
    %7 = vector.broadcast %cst_6 : f32 to vector<384x128xf32>
    %8 = arith.maximumf %6, %7 : vector<384x128xf32>
    %9 = tpu.iota {dimensions = array<i32: 0>} : vector<384x128xi32>
    %c24_i32 = arith.constant 24 : i32
    %c0_i32 = arith.constant 0 : i32
    %10 = arith.cmpi eq, %c24_i32, %c0_i32 : i32
    %c1_i32 = arith.constant 1 : i32
    %11 = arith.select %10, %c1_i32, %c24_i32 : i32
    %12 = vector.broadcast %11 : i32 to vector<384x128xi32>
    %13 = arith.remsi %9, %12 : vector<384x128xi32>
    %c0_i32_7 = arith.constant 0 : i32
    %14 = vector.broadcast %c0_i32_7 : i32 to vector<384x128xi32>
    %15 = arith.cmpi ne, %13, %14 : vector<384x128xi32>
    %c0_i32_8 = arith.constant 0 : i32
    %16 = vector.broadcast %c0_i32_8 : i32 to vector<384x128xi32>
    %17 = arith.cmpi slt, %13, %16 : vector<384x128xi32>
    %c0_i32_9 = arith.constant 0 : i32
    %18 = arith.cmpi slt, %11, %c0_i32_9 : i32
    %19 = vector.broadcast %18 : i1 to vector<384x128xi1>
    %20 = vector.broadcast %19 : vector<384x128xi1> to vector<384x128xi1>
    %21 = arith.xori %17, %20 : vector<384x128xi1>
    %22 = arith.andi %21, %15 : vector<384x128xi1>
    %23 = vector.broadcast %11 : i32 to vector<384x128xi32>
    %24 = arith.addi %13, %23 : vector<384x128xi32>
    %25 = arith.select %22, %24, %13 : vector<384x128xi1>, vector<384x128xi32>
    %c16_i32 = arith.constant 16 : i32
    %26 = vector.broadcast %c16_i32 : i32 to vector<384x128xi32>
    %27 = arith.cmpi slt, %25, %26 : vector<384x128xi32>
    %cst_10 = arith.constant 0.000000e+00 : f32
    %28 = vector.broadcast %cst_10 : f32 to vector<384x128xf32>
    %29 = arith.select %27, %8, %28 : vector<384x128xi1>, vector<384x128xf32>
    %cst_11 = arith.constant 0.000000e+00 : f32
    %30 = vector.broadcast %cst_11 : f32 to vector<25x128xf32>
    %c0_12 = arith.constant 0 : index
    %c0_13 = arith.constant 0 : index
    %31 = vector.load %arg9[%c0_12, %c0_13] : memref<456x128xf32, #tpu.memory_space<vmem>>, vector<25x128xf32>
    tpu.vector_store %arg9[%c0_12, %c0_13], %30 {strides = array<i32>} : memref<456x128xf32, #tpu.memory_space<vmem>>, vector<25x128xf32>,
    %cst_14 = arith.constant 0.000000e+00 : f32
    %32 = vector.broadcast %cst_14 : f32 to vector<47x128xf32>
    %c409 = arith.constant 409 : index
    %c0_15 = arith.constant 0 : index
    %33 = vector.load %arg9[%c409, %c0_15] : memref<456x128xf32, #tpu.memory_space<vmem>>, vector<47x128xf32>
    tpu.vector_store %arg9[%c409, %c0_15], %32 {strides = array<i32>} : memref<456x128xf32, #tpu.memory_space<vmem>>, vector<47x128xf32>,
    %c25 = arith.constant 25 : index
    %c0_16 = arith.constant 0 : index
    %34 = vector.load %arg9[%c25, %c0_16] : memref<456x128xf32, #tpu.memory_space<vmem>>, vector<384x128xf32>
    tpu.vector_store %arg9[%c25, %c0_16], %29 {strides = array<i32>} : memref<456x128xf32, #tpu.memory_space<vmem>>, vector<384x128xf32>,
    %c0_17 = arith.constant 0 : index
    %c0_18 = arith.constant 0 : index
    %35 = vector.load %arg9[%c0_17, %c0_18] : memref<456x128xf32, #tpu.memory_space<vmem>>, vector<384x128xf32>
    %c0_19 = arith.constant 0 : index
    %c0_20 = arith.constant 0 : index
    %c0_21 = arith.constant 0 : index
    %36 = vector.load %arg4[%c0_19, %c0_20, %c0_21] : memref<9x128x128xf32, #tpu.memory_space<vmem>>, vector<1x128x128xf32>
    %37 = vector.shape_cast %36 : vector<1x128x128xf32> to vector<128x128xf32>
    %cst_22 = arith.constant dense<0.000000e+00> : vector<384x128xf32>
    %38 = tpu.matmul %35, %37, %cst_22 {dimension_numbers = #tpu.dot_dimension_numbers<[1], [0], [0], [1], [0, 0, 1, 1], [], []>} : vector<384x128xf32>, vector<128x128xf32>, vector<384x128xf32> -> vector<384x128xf32>
    %c1 = arith.constant 1 : index
    %c0_23 = arith.constant 0 : index
    %39 = vector.load %arg9[%c1, %c0_23] : memref<456x128xf32, #tpu.memory_space<vmem>>, vector<384x128xf32>
    %c1_24 = arith.constant 1 : index
    %c0_25 = arith.constant 0 : index
    %c0_26 = arith.constant 0 : index
    %40 = vector.load %arg4[%c1_24, %c0_25, %c0_26] : memref<9x128x128xf32, #tpu.memory_space<vmem>>, vector<1x128x128xf32>
    %41 = vector.shape_cast %40 : vector<1x128x128xf32> to vector<128x128xf32>
    %cst_27 = arith.constant dense<0.000000e+00> : vector<384x128xf32>
    %42 = tpu.matmul %39, %41, %cst_27 {dimension_numbers = #tpu.dot_dimension_numbers<[1], [0], [0], [1], [0, 0, 1, 1], [], []>} : vector<384x128xf32>, vector<128x128xf32>, vector<384x128xf32> -> vector<384x128xf32>
    %43 = arith.addf %38, %42 : vector<384x128xf32>
    %c2 = arith.constant 2 : index
    %c0_28 = arith.constant 0 : index
    %44 = vector.load %arg9[%c2, %c0_28] : memref<456x128xf32, #tpu.memory_space<vmem>>, vector<384x128xf32>
    %c2_29 = arith.constant 2 : index
    %c0_30 = arith.constant 0 : index
    %c0_31 = arith.constant 0 : index
    %45 = vector.load %arg4[%c2_29, %c0_30, %c0_31] : memref<9x128x128xf32, #tpu.memory_space<vmem>>, vector<1x128x128xf32>
    %46 = vector.shape_cast %45 : vector<1x128x128xf32> to vector<128x128xf32>
    %cst_32 = arith.constant dense<0.000000e+00> : vector<384x128xf32>
    %47 = tpu.matmul %44, %46, %cst_32 {dimension_numbers = #tpu.dot_dimension_numbers<[1], [0], [0], [1], [0, 0, 1, 1], [], []>} : vector<384x128xf32>, vector<128x128xf32>, vector<384x128xf32> -> vector<384x128xf32>
    %48 = arith.addf %43, %47 : vector<384x128xf32>
    %c24 = arith.constant 24 : index
    %c0_33 = arith.constant 0 : index
    %49 = vector.load %arg9[%c24, %c0_33] : memref<456x128xf32, #tpu.memory_space<vmem>>, vector<384x128xf32>
    %c3 = arith.constant 3 : index
    %c0_34 = arith.constant 0 : index
    %c0_35 = arith.constant 0 : index
    %50 = vector.load %arg4[%c3, %c0_34, %c0_35] : memref<9x128x128xf32, #tpu.memory_space<vmem>>, vector<1x128x128xf32>
    %51 = vector.shape_cast %50 : vector<1x128x128xf32> to vector<128x128xf32>
    %cst_36 = arith.constant dense<0.000000e+00> : vector<384x128xf32>
    %52 = tpu.matmul %49, %51, %cst_36 {dimension_numbers = #tpu.dot_dimension_numbers<[1], [0], [0], [1], [0, 0, 1, 1], [], []>} : vector<384x128xf32>, vector<128x128xf32>, vector<384x128xf32> -> vector<384x128xf32>
    %53 = arith.addf %48, %52 : vector<384x128xf32>
    %c25_37 = arith.constant 25 : index
    %c0_38 = arith.constant 0 : index
    %54 = vector.load %arg9[%c25_37, %c0_38] : memref<456x128xf32, #tpu.memory_space<vmem>>, vector<384x128xf32>
    %c4 = arith.constant 4 : index
    %c0_39 = arith.constant 0 : index
    %c0_40 = arith.constant 0 : index
    %55 = vector.load %arg4[%c4, %c0_39, %c0_40] : memref<9x128x128xf32, #tpu.memory_space<vmem>>, vector<1x128x128xf32>
    %56 = vector.shape_cast %55 : vector<1x128x128xf32> to vector<128x128xf32>
    %cst_41 = arith.constant dense<0.000000e+00> : vector<384x128xf32>
    %57 = tpu.matmul %54, %56, %cst_41 {dimension_numbers = #tpu.dot_dimension_numbers<[1], [0], [0], [1], [0, 0, 1, 1], [], []>} : vector<384x128xf32>, vector<128x128xf32>, vector<384x128xf32> -> vector<384x128xf32>
    %58 = arith.addf %53, %57 : vector<384x128xf32>
    %c26 = arith.constant 26 : index
    %c0_42 = arith.constant 0 : index
    %59 = vector.load %arg9[%c26, %c0_42] : memref<456x128xf32, #tpu.memory_space<vmem>>, vector<384x128xf32>
    %c5 = arith.constant 5 : index
    %c0_43 = arith.constant 0 : index
    %c0_44 = arith.constant 0 : index
    %60 = vector.load %arg4[%c5, %c0_43, %c0_44] : memref<9x128x128xf32, #tpu.memory_space<vmem>>, vector<1x128x128xf32>
    %61 = vector.shape_cast %60 : vector<1x128x128xf32> to vector<128x128xf32>
    %cst_45 = arith.constant dense<0.000000e+00> : vector<384x128xf32>
    %62 = tpu.matmul %59, %61, %cst_45 {dimension_numbers = #tpu.dot_dimension_numbers<[1], [0], [0], [1], [0, 0, 1, 1], [], []>} : vector<384x128xf32>, vector<128x128xf32>, vector<384x128xf32> -> vector<384x128xf32>
    %63 = arith.addf %58, %62 : vector<384x128xf32>
    %c48 = arith.constant 48 : index
    %c0_46 = arith.constant 0 : index
    %64 = vector.load %arg9[%c48, %c0_46] : memref<456x128xf32, #tpu.memory_space<vmem>>, vector<384x128xf32>
    %c6 = arith.constant 6 : index
    %c0_47 = arith.constant 0 : index
    %c0_48 = arith.constant 0 : index
    %65 = vector.load %arg4[%c6, %c0_47, %c0_48] : memref<9x128x128xf32, #tpu.memory_space<vmem>>, vector<1x128x128xf32>
    %66 = vector.shape_cast %65 : vector<1x128x128xf32> to vector<128x128xf32>
    %cst_49 = arith.constant dense<0.000000e+00> : vector<384x128xf32>
    %67 = tpu.matmul %64, %66, %cst_49 {dimension_numbers = #tpu.dot_dimension_numbers<[1], [0], [0], [1], [0, 0, 1, 1], [], []>} : vector<384x128xf32>, vector<128x128xf32>, vector<384x128xf32> -> vector<384x128xf32>
    %68 = arith.addf %63, %67 : vector<384x128xf32>
    %c49 = arith.constant 49 : index
    %c0_50 = arith.constant 0 : index
    %69 = vector.load %arg9[%c49, %c0_50] : memref<456x128xf32, #tpu.memory_space<vmem>>, vector<384x128xf32>
    %c7 = arith.constant 7 : index
    %c0_51 = arith.constant 0 : index
    %c0_52 = arith.constant 0 : index
    %70 = vector.load %arg4[%c7, %c0_51, %c0_52] : memref<9x128x128xf32, #tpu.memory_space<vmem>>, vector<1x128x128xf32>
    %71 = vector.shape_cast %70 : vector<1x128x128xf32> to vector<128x128xf32>
    %cst_53 = arith.constant dense<0.000000e+00> : vector<384x128xf32>
    %72 = tpu.matmul %69, %71, %cst_53 {dimension_numbers = #tpu.dot_dimension_numbers<[1], [0], [0], [1], [0, 0, 1, 1], [], []>} : vector<384x128xf32>, vector<128x128xf32>, vector<384x128xf32> -> vector<384x128xf32>
    %73 = arith.addf %68, %72 : vector<384x128xf32>
    %c50 = arith.constant 50 : index
    %c0_54 = arith.constant 0 : index
    %74 = vector.load %arg9[%c50, %c0_54] : memref<456x128xf32, #tpu.memory_space<vmem>>, vector<384x128xf32>
    %c8 = arith.constant 8 : index
    %c0_55 = arith.constant 0 : index
    %c0_56 = arith.constant 0 : index
    %75 = vector.load %arg4[%c8, %c0_55, %c0_56] : memref<9x128x128xf32, #tpu.memory_space<vmem>>, vector<1x128x128xf32>
    %76 = vector.shape_cast %75 : vector<1x128x128xf32> to vector<128x128xf32>
    %cst_57 = arith.constant dense<0.000000e+00> : vector<384x128xf32>
    %77 = tpu.matmul %74, %76, %cst_57 {dimension_numbers = #tpu.dot_dimension_numbers<[1], [0], [0], [1], [0, 0, 1, 1], [], []>} : vector<384x128xf32>, vector<128x128xf32>, vector<384x128xf32> -> vector<384x128xf32>
    %78 = arith.addf %73, %77 : vector<384x128xf32>
    %c0_58 = arith.constant 0 : index
    %c0_59 = arith.constant 0 : index
    %79 = vector.load %arg5[%c0_58, %c0_59] : memref<1x128xf32, #tpu.memory_space<vmem>>, vector<1x128xf32>
    %80 = vector.broadcast %79 : vector<1x128xf32> to vector<384x128xf32>
    %81 = arith.addf %78, %80 : vector<384x128xf32>
    %cst_60 = arith.constant 0.000000e+00 : f32
    %82 = vector.broadcast %cst_60 : f32 to vector<384x128xf32>
    %83 = arith.maximumf %81, %82 : vector<384x128xf32>
    %c0_61 = arith.constant 0 : index
    %c0_62 = arith.constant 0 : index
    %84 = vector.load %arg6[%c0_61, %c0_62] : memref<128x128xf32, #tpu.memory_space<vmem>>, vector<128x128xf32>
    %cst_63 = arith.constant dense<0.000000e+00> : vector<384x128xf32>
    %85 = tpu.matmul %83, %84, %cst_63 {dimension_numbers = #tpu.dot_dimension_numbers<[1], [0], [0], [1], [0, 0, 1, 1], [], []>} : vector<384x128xf32>, vector<128x128xf32>, vector<384x128xf32> -> vector<384x128xf32>
    %c0_64 = arith.constant 0 : index
    %c0_65 = arith.constant 0 : index
    %86 = vector.load %arg7[%c0_64, %c0_65] : memref<1x128xf32, #tpu.memory_space<vmem>>, vector<1x128xf32>
    %87 = vector.broadcast %86 : vector<1x128xf32> to vector<384x128xf32>
    %88 = arith.addf %85, %87 : vector<384x128xf32>
    %89 = arith.addf %88, %1 : vector<384x128xf32>
    %cst_66 = arith.constant 0.000000e+00 : f32
    %90 = vector.broadcast %cst_66 : f32 to vector<384x128xf32>
    %91 = arith.maximumf %89, %90 : vector<384x128xf32>
    %c0_67 = arith.constant 0 : index
    %c0_68 = arith.constant 0 : index
    %c0_69 = arith.constant 0 : index
    %92 = vector.load %arg8[%c0_67, %c0_68, %c0_69] : memref<1x384x128xf32, #tpu.memory_space<vmem>>, vector<1x384x128xf32>
    %93 = vector.shape_cast %92 : vector<1x384x128xf32> to vector<384x128xf32>
    %94 = vector.shape_cast %91 : vector<384x128xf32> to vector<1x384x128xf32>
    tpu.vector_store %arg8[%c0_67, %c0_68, %c0_69], %94 {strides = array<i32>} : memref<1x384x128xf32, #tpu.memory_space<vmem>>, vector<1x384x128xf32>,
    return
  }
  func.func @transform_0(%arg0: i32) -> (i32, i32, i32) {
    %c0_i32 = arith.constant 0 : i32
    %c0_i32_0 = arith.constant 0 : i32
    %c0_i32_1 = arith.constant 0 : i32
    return %arg0, %c0_i32, %c0_i32_0 : i32, i32, i32
  }
  func.func @transform_1(%arg0: i32) -> (i32, i32) {
    %c0_i32 = arith.constant 0 : i32
    %c0_i32_0 = arith.constant 0 : i32
    %c0_i32_1 = arith.constant 0 : i32
    return %c0_i32, %c0_i32_0 : i32, i32
  }
  func.func @transform_2(%arg0: i32) -> (i32, i32) {
    %c0_i32 = arith.constant 0 : i32
    %c0_i32_0 = arith.constant 0 : i32
    %c0_i32_1 = arith.constant 0 : i32
    return %c0_i32, %c0_i32_0 : i32, i32
  }
  func.func @transform_3(%arg0: i32) -> (i32, i32, i32) {
    %c0_i32 = arith.constant 0 : i32
    %c0_i32_0 = arith.constant 0 : i32
    %c0_i32_1 = arith.constant 0 : i32
    %c0_i32_2 = arith.constant 0 : i32
    return %c0_i32, %c0_i32_0, %c0_i32_1 : i32, i32, i32
  }
  func.func @transform_4(%arg0: i32) -> (i32, i32) {
    %c0_i32 = arith.constant 0 : i32
    %c0_i32_0 = arith.constant 0 : i32
    %c0_i32_1 = arith.constant 0 : i32
    return %c0_i32, %c0_i32_0 : i32, i32
  }
  func.func @transform_5(%arg0: i32) -> (i32, i32) {
    %c0_i32 = arith.constant 0 : i32
    %c0_i32_0 = arith.constant 0 : i32
    %c0_i32_1 = arith.constant 0 : i32
    return %c0_i32, %c0_i32_0 : i32, i32
  }
  func.func @transform_6(%arg0: i32) -> (i32, i32) {
    %c0_i32 = arith.constant 0 : i32
    %c0_i32_0 = arith.constant 0 : i32
    %c0_i32_1 = arith.constant 0 : i32
    return %c0_i32, %c0_i32_0 : i32, i32
  }
  func.func @transform_7(%arg0: i32) -> (i32, i32, i32) {
    %c0_i32 = arith.constant 0 : i32
    %c0_i32_0 = arith.constant 0 : i32
    %c0_i32_1 = arith.constant 0 : i32
    return %arg0, %c0_i32, %c0_i32_0 : i32, i32, i32
  }
}

</mosaic_0001>

<llo_original>
// kernel: tpu_custom_call.1
$region0: #{tpu_custom_call.1}
  #allocation0 [shape = 'u32[]', space=smem, size = 0x4, offset = 0x4, fixed_abs, tag = 'smem constant byte address 0x4 - core index']
  #allocation1 [shape = 'u32[144,128]{1,0:T(1,128)}', space=vmem, size = 0x12000, scoped, tag = 'internal scratch']
  #allocation2 [shape = 'f32[456,128]{1,0:T(8,128)}', space=vmem, size = 0x39000, scoped, tag = 'scratch operand']
  %s0 = inlined_call_operand.hbm [shape: f32[2,384,128], index: 0, kind: input, shape index: {}]
  %s1 = inlined_call_operand.hbm [shape: f32[128,128], index: 1, kind: input, shape index: {}]
  %s2 = inlined_call_operand.vmem [shape: f32[1,128], index: 2, kind: input, shape index: {}]
  %s3 = inlined_call_operand.hbm [shape: f32[9,128,128], index: 3, kind: input, shape index: {}]
  %s4 = inlined_call_operand.vmem [shape: f32[1,128], index: 4, kind: input, shape index: {}]
  %s5 = inlined_call_operand.hbm [shape: f32[128,128], index: 5, kind: input, shape index: {}]
  %s6 = inlined_call_operand.vmem [shape: f32[1,128], index: 6, kind: input, shape index: {}]
  %s7 = inlined_call_operand.hbm [shape: f32[2,384,128], index: 7, kind: output, shape index: {}]
  %s8 = sld [smem:[#allocation0]]
  $region77: #{tpu_custom_call.1} parent=0
    _
  %s10 = ssub.s32 1, %s8
  %s11 = scalar_select 0, %s10, %s8
  $region1: #{tpu_custom_call.1} parent=0
    #allocation3 [shape = 'u8[393216]{0}', space=vmem, size = 0x60000, scoped, tag = 'input window, operand 0']
    #allocation4 [shape = 's32[2]{0}', space=sflag, size = 0x8, scoped, tag = 'scoped memory for tpu_custom_call.1']
    #allocation5 [shape = 's32[2]{0}', space=sflag, size = 0x8, scoped, tag = 'scoped memory for tpu_custom_call.1']
    #allocation6 [shape = 'u8[65536]{0}', space=vmem, size = 0x10000, scoped, tag = 'input window, operand 1, single buffered']
    #allocation7 [shape = 's32[1]{0}', space=sflag, size = 0x4, scoped, tag = 'scoped memory for tpu_custom_call.1']
    #allocation8 [shape = 'u8[589824]{0}', space=vmem, size = 0x90000, scoped, tag = 'input window, operand 3, single buffered']
    #allocation9 [shape = 'u8[65536]{0}', space=vmem, size = 0x10000, scoped, tag = 'input window, operand 5, single buffered']
    #allocation10 [shape = 's32[1]{0}', space=sflag, size = 0x4, scoped, tag = 'scoped memory for tpu_custom_call.1']
    #allocation11 [shape = 'u8[393216]{0}', space=vmem, size = 0x60000, scoped, tag = 'output window, operand 0']
    %12 = vsyncpa [#allocation4], 0
    %s13 = scalar_lea.sflag [#allocation4], 1
    %14 = vsyncpa %s13, 0
    %15 = vsyncpa [#allocation7], 0
    %16 = vsyncpa [#allocation10], 0
    %17 = vsyncpa [#allocation5], 0
    %s18 = scalar_lea.sflag [#allocation5], 1
    %19 = vsyncpa %s18, 0
    loop: start=0, step=1, limit=4
    $region2: #{tpu_custom_call.1} parent=1 // loop_pre_header
      _
    $region3: #{tpu_custom_call.1} parent=1 // loop_header
      %s21 = sphi 0, %s25
      %p22 = scmp.ge.s32.totalorder %s21, 4
      %s31 = sphi 0, %s33
      %s34 = sphi 0, %s31
      %s35 = sphi 0, %s34
      %s51 = sphi 0, %s35
      %s55 = sphi 0, %s55
      %s57 = sphi 0, %s55
      %s58 = sphi 0, %s57
      %s72 = sphi 0, %s58
      %s76 = sphi 0, %s76
      %s78 = sphi 0, %s76
      %s79 = sphi 0, %s78
      %s93 = sphi 0, %s79
      %s97 = sphi 0, %s97
      %s99 = sphi 0, %s97
      %s100 = sphi 0, %s99
      %s114 = sphi 0, %s100
      %s118 = sphi 0, %s118
      %s120 = sphi 0, %s118
      %s121 = sphi 0, %s120
      %s135 = sphi 0, %s121
      %s139 = sphi 0, %s139
      %s141 = sphi 0, %s139
      %s142 = sphi 0, %s141
      %s156 = sphi 0, %s142
      %s160 = sphi 0, %s160
      %s162 = sphi 0, %s160
      %s163 = sphi 0, %s162
      %s177 = sphi 0, %s163
      %s183 = sphi 0, %s185
      %s186 = sphi 0, %s183
      %s187 = sphi 0, %s186
      %s203 = sphi 0, %s187
    $region4: #{tpu_custom_call.1} parent=1 // loop_header_branch
      %24 = sbr.rel (%p22) target = $region8
    $region5: #{tpu_custom_call.1} parent=1 // loop_body
      %s26 = ssub.s32 %s21, 1
      %s27 = ssub.s32 %s21, 2
      %s28 = sadd.s32 %s21, 1
      %s29 = ssub.s32 %s21, %s28
      %p30 = scmp.eq.s32.totalorder %s29, 0
      %s32 = sadd.s32 %s31, 1
      %s33 = scalar_select %p30, %s31, %s32
      %p36 = pneg %p30
      %p37 = scmp.eq.s32.totalorder %s21, 1
      %p38 = por %p36, %p37
      %p39 = scmp.ne.s32.totalorder %s31, %s34
      %p40 = scmp.eq.s32.totalorder %s21, 0
      %p41 = por %p39, %p40
      %p42 = scmp.ne.s32.totalorder %s31, %s34
      %p43 = scmp.eq.s32.totalorder %s26, 1
      %p44 = por %p42, %p43
      %p45 = scmp.ne.s32.totalorder %s34, %s35
      %p46 = scmp.eq.s32.totalorder %s26, 0
      %p47 = por %p45, %p46
      %p48 = scmp.ne.s32.totalorder %s34, %s35
      %p49 = scmp.eq.s32.totalorder %s27, 1
      %p50 = por %p48, %p49
      %p52 = scmp.ne.s32.totalorder %s35, %s51
      %p53 = scmp.eq.s32.totalorder %s27, 0
      %p54 = por %p52, %p53
      %s56 = sadd.s32 %s55, 1
      %p59 = scmp.eq.s32.totalorder %s21, 1
      %p60 = scmp.ne.s32.totalorder %s55, %s57
      %p61 = scmp.eq.s32.totalorder %s21, 0
      %p62 = por %p60, %p61
      %p63 = scmp.ne.s32.totalorder %s55, %s57
      %p64 = scmp.eq.s32.totalorder %s26, 1
      %p65 = por %p63, %p64
      %p66 = scmp.ne.s32.totalorder %s57, %s58
      %p67 = scmp.eq.s32.totalorder %s26, 0
      %p68 = por %p66, %p67
      %p69 = scmp.ne.s32.totalorder %s57, %s58
      %p70 = scmp.eq.s32.totalorder %s27, 1
      %p71 = por %p69, %p70
      %p73 = scmp.ne.s32.totalorder %s58, %s72
      %p74 = scmp.eq.s32.totalorder %s27, 0
      %p75 = por %p73, %p74
      %s77 = sadd.s32 %s76, 1
      %p80 = scmp.eq.s32.totalorder %s21, 1
      %p81 = scmp.ne.s32.totalorder %s76, %s78
      %p82 = scmp.eq.s32.totalorder %s21, 0
      %p83 = por %p81, %p82
      %p84 = scmp.ne.s32.totalorder %s76, %s78
      %p85 = scmp.eq.s32.totalorder %s26, 1
      %p86 = por %p84, %p85
      %p87 = scmp.ne.s32.totalorder %s78, %s79
      %p88 = scmp.eq.s32.totalorder %s26, 0
      %p89 = por %p87, %p88
      %p90 = scmp.ne.s32.totalorder %s78, %s79
      %p91 = scmp.eq.s32.totalorder %s27, 1
      %p92 = por %p90, %p91
      %p94 = scmp.ne.s32.totalorder %s79, %s93
      %p95 = scmp.eq.s32.totalorder %s27, 0
      %p96 = por %p94, %p95
      %s98 = sadd.s32 %s97, 1
      %p101 = scmp.eq.s32.totalorder %s21, 1
      %p102 = scmp.ne.s32.totalorder %s97, %s99
      %p103 = scmp.eq.s32.totalorder %s21, 0
      %p104 = por %p102, %p103
      %p105 = scmp.ne.s32.totalorder %s97, %s99
      %p106 = scmp.eq.s32.totalorder %s26, 1
      %p107 = por %p105, %p106
      %p108 = scmp.ne.s32.totalorder %s99, %s100
      %p109 = scmp.eq.s32.totalorder %s26, 0
      %p110 = por %p108, %p109
      %p111 = scmp.ne.s32.totalorder %s99, %s100
      %p112 = scmp.eq.s32.totalorder %s27, 1
      %p113 = por %p111, %p112
      %p115 = scmp.ne.s32.totalorder %s100, %s114
      %p116 = scmp.eq.s32.totalorder %s27, 0
      %p117 = por %p115, %p116
      %s119 = sadd.s32 %s118, 1
      %p122 = scmp.eq.s32.totalorder %s21, 1
      %p123 = scmp.ne.s32.totalorder %s118, %s120
      %p124 = scmp.eq.s32.totalorder %s21, 0
      %p125 = por %p123, %p124
      %p126 = scmp.ne.s32.totalorder %s118, %s120
      %p127 = scmp.eq.s32.totalorder %s26, 1
      %p128 = por %p126, %p127
      %p129 = scmp.ne.s32.totalorder %s120, %s121
      %p130 = scmp.eq.s32.totalorder %s26, 0
      %p131 = por %p129, %p130
      %p132 = scmp.ne.s32.totalorder %s120, %s121
      %p133 = scmp.eq.s32.totalorder %s27, 1
      %p134 = por %p132, %p133
      %p136 = scmp.ne.s32.totalorder %s121, %s135
      %p137 = scmp.eq.s32.totalorder %s27, 0
      %p138 = por %p136, %p137
      %s140 = sadd.s32 %s139, 1
      %p143 = scmp.eq.s32.totalorder %s21, 1
      %p144 = scmp.ne.s32.totalorder %s139, %s141
      %p145 = scmp.eq.s32.totalorder %s21, 0
      %p146 = por %p144, %p145
      %p147 = scmp.ne.s32.totalorder %s139, %s141
      %p148 = scmp.eq.s32.totalorder %s26, 1
      %p149 = por %p147, %p148
      %p150 = scmp.ne.s32.totalorder %s141, %s142
      %p151 = scmp.eq.s32.totalorder %s26, 0
      %p152 = por %p150, %p151
      %p153 = scmp.ne.s32.totalorder %s141, %s142
      %p154 = scmp.eq.s32.totalorder %s27, 1
      %p155 = por %p153, %p154
      %p157 = scmp.ne.s32.totalorder %s142, %s156
      %p158 = scmp.eq.s32.totalorder %s27, 0
      %p159 = por %p157, %p158
      %s161 = sadd.s32 %s160, 1
      %p164 = scmp.eq.s32.totalorder %s21, 1
      %p165 = scmp.ne.s32.totalorder %s160, %s162
      %p166 = scmp.eq.s32.totalorder %s21, 0
      %p167 = por %p165, %p166
      %p168 = scmp.ne.s32.totalorder %s160, %s162
      %p169 = scmp.eq.s32.totalorder %s26, 1
      %p170 = por %p168, %p169
      %p171 = scmp.ne.s32.totalorder %s162, %s163
      %p172 = scmp.eq.s32.totalorder %s26, 0
      %p173 = por %p171, %p172
      %p174 = scmp.ne.s32.totalorder %s162, %s163
      %p175 = scmp.eq.s32.totalorder %s27, 1
      %p176 = por %p174, %p175
      %p178 = scmp.ne.s32.totalorder %s163, %s177
      %p179 = scmp.eq.s32.totalorder %s27, 0
      %p180 = por %p178, %p179
      %s181 = ssub.s32 %s21, %s28
      %p182 = scmp.eq.s32.totalorder %s181, 0
      %s184 = sadd.s32 %s183, 1
      %s185 = scalar_select %p182, %s183, %s184
      %p188 = pneg %p182
      %p189 = scmp.eq.s32.totalorder %s21, 1
      %p190 = por %p188, %p189
      %p191 = scmp.ne.s32.totalorder %s183, %s186
      %p192 = scmp.eq.s32.totalorder %s21, 0
      %p193 = por %p191, %p192
      %p194 = scmp.ne.s32.totalorder %s183, %s186
      %p195 = scmp.eq.s32.totalorder %s26, 1
      %p196 = por %p194, %p195
      %p197 = scmp.ne.s32.totalorder %s186, %s187
      %p198 = scmp.eq.s32.totalorder %s26, 0
      %p199 = por %p197, %p198
      %p200 = scmp.ne.s32.totalorder %s186, %s187
      %p201 = scmp.eq.s32.totalorder %s27, 1
      %p202 = por %p200, %p201
      %p204 = scmp.ne.s32.totalorder %s187, %s203
      %p205 = scmp.eq.s32.totalorder %s27, 0
      %p206 = por %p204, %p205
      %p207 = scmp.le.s32.totalorder 1, %s21
      %p208 = scmp.lt.s32.totalorder %s21, 3
      %p209 = pnand %p207, %p208
      %p210 = pneg %p209
      // Predicated region
      $region9: #{tpu_custom_call.1} parent=5 // pred_check
        _
      $region10: #{tpu_custom_call.1} parent=5 // pred_check_branch
        %212 = sbr.rel (%p209) target = $region12
      $region11: #{tpu_custom_call.1} parent=5 // pred_region
        %s213 = ssub.s32 %s21, 1
        // Predicated region
        $region13: #{tpu_custom_call.1} parent=11 // pred_check
          %p214 = pneg %p68
        $region14: #{tpu_custom_call.1} parent=11 // pred_check_branch
          %216 = sbr.rel (%p214) target = $region16
        $region15: #{tpu_custom_call.1} parent=11 // pred_region
          %s218 = ssub.s32 2048, 2048
          %219 = vsyncadd [#allocation7], %s218
          %s220 = sshll.u32 [#allocation6], 4
          %s221 = int_to_ptr.vmem [resolvable:$true] %s220
          %226 = dma.hbm_to_vmem [thread:$0]  %s1, 2048, %s221, [#allocation7], 128, 128, 8
        $region16: #{tpu_custom_call.1} parent=11 // pred_fallthru
          _
        // Predicated region
        $region17: #{tpu_custom_call.1} parent=11 // pred_check
          %p227 = pneg %p89
        $region18: #{tpu_custom_call.1} parent=11 // pred_check_branch
          %229 = sbr.rel (%p227) target = $region20
        $region19: #{tpu_custom_call.1} parent=11 // pred_region
          _
        $region20: #{tpu_custom_call.1} parent=11 // pred_fallthru
          _
        // Predicated region
        $region21: #{tpu_custom_call.1} parent=11 // pred_check
          %p230 = pneg %p110
        $region22: #{tpu_custom_call.1} parent=11 // pred_check_branch
          %232 = sbr.rel (%p230) target = $region24
        $region23: #{tpu_custom_call.1} parent=11 // pred_region
          %s234 = ssub.s32 18432, 18432
          %235 = vsyncadd [#allocation7], %s234
          %s236 = sshll.u32 [#allocation8], 4
          %s237 = int_to_ptr.vmem [resolvable:$true] %s236
          %242 = dma.hbm_to_vmem [thread:$0]  %s3, 18432, %s237, [#allocation7], 128, 128, 8
        $region24: #{tpu_custom_call.1} parent=11 // pred_fallthru
          _
        // Predicated region
        $region25: #{tpu_custom_call.1} parent=11 // pred_check
          %p243 = pneg %p131
        $region26: #{tpu_custom_call.1} parent=11 // pred_check_branch
          %245 = sbr.rel (%p243) target = $region28
        $region27: #{tpu_custom_call.1} parent=11 // pred_region
          _
        $region28: #{tpu_custom_call.1} parent=11 // pred_fallthru
          _
        // Predicated region
        $region29: #{tpu_custom_call.1} parent=11 // pred_check
          %p246 = pneg %p152
        $region30: #{tpu_custom_call.1} parent=11 // pred_check_branch
          %248 = sbr.rel (%p246) target = $region32
        $region31: #{tpu_custom_call.1} parent=11 // pred_region
          %s250 = ssub.s32 2048, 2048
          %251 = vsyncadd [#allocation10], %s250
          %s252 = sshll.u32 [#allocation9], 4
          %s253 = int_to_ptr.vmem [resolvable:$true] %s252
          %258 = dma.hbm_to_vmem [thread:$0]  %s5, 2048, %s253, [#allocation10], 128, 128, 8
        $region32: #{tpu_custom_call.1} parent=11 // pred_fallthru
          _
        // Predicated region
        $region33: #{tpu_custom_call.1} parent=11 // pred_check
          %p259 = pneg %p173
        $region34: #{tpu_custom_call.1} parent=11 // pred_check_branch
          %261 = sbr.rel (%p259) target = $region36
        $region35: #{tpu_custom_call.1} parent=11 // pred_region
          _
        $region36: #{tpu_custom_call.1} parent=11 // pred_fallthru
          _
      $region12: #{tpu_custom_call.1} parent=5 // pred_fallthru
        _
      %p262 = scmp.lt.s32.totalorder %s21, 2
      // Predicated region
      $region37: #{tpu_custom_call.1} parent=5 // pred_check
        %p263 = pneg %p262
      $region38: #{tpu_custom_call.1} parent=5 // pred_check_branch
        %265 = sbr.rel (%p263) target = $region40
      $region39: #{tpu_custom_call.1} parent=5 // pred_region
        // Predicated region
        $region41: #{tpu_custom_call.1} parent=39 // pred_check
          %p266 = pneg %p41
        $region42: #{tpu_custom_call.1} parent=39 // pred_check_branch
          %268 = sbr.rel (%p266) target = $region44
        $region43: #{tpu_custom_call.1} parent=39 // pred_region
          %s269 = sand.u32 %s31, 1
          %s270 = scalar_lea.sflag [#allocation4], %s269
          %s271 = sand.u32 %s31, 1
          %s272 = smul.addr %s271, 384
          %s273 = scalar_lea.vmem [#allocation3], %s272
          %s275 = ssub.s32 6144, 6144
          %276 = vsyncadd %s270, %s275
          %s277 = smul.addr %s21, 48
          %s278 = smul.addr %s277, 128
          %s279 = scalar_lea.hbm %s0, %s278
          %s280 = sshll.u32 %s273, 4
          %s281 = int_to_ptr.vmem [resolvable:$true] %s280
          %286 = dma.hbm_to_vmem [thread:$0]  %s279, 6144, %s281, %s270, 128, 128, 8
        $region44: #{tpu_custom_call.1} parent=39 // pred_fallthru
          _
      $region40: #{tpu_custom_call.1} parent=5 // pred_fallthru
        _
      %p287 = scmp.le.s32.totalorder 1, %s21
      %p288 = scmp.lt.s32.totalorder %s21, 3
      %p289 = pnand %p287, %p288
      %p290 = pneg %p289
      // Predicated region
      $region45: #{tpu_custom_call.1} parent=5 // pred_check
        _
      $region46: #{tpu_custom_call.1} parent=5 // pred_check_branch
        %292 = sbr.rel (%p289) target = $region48
      $region47: #{tpu_custom_call.1} parent=5 // pred_region
        %s293 = ssub.s32 %s21, 1
        %s294 = sand.u32 %s34, 1
        %s295 = scalar_lea.sflag [#allocation4], %s294
        %s296 = sand.u32 %s34, 1
        %s297 = smul.addr %s296, 384
        %s298 = scalar_lea.vmem [#allocation3], %s297
        // Predicated region
        $region49: #{tpu_custom_call.1} parent=47 // pred_check
          %p299 = pneg %p47
        $region50: #{tpu_custom_call.1} parent=47 // pred_check_branch
          %301 = sbr.rel (%p299) target = $region52
        $region51: #{tpu_custom_call.1} parent=47 // pred_region
          %302 = dma.done %s295, 6144
        $region52: #{tpu_custom_call.1} parent=47 // pred_fallthru
          _
        // Predicated region
        $region53: #{tpu_custom_call.1} parent=47 // pred_check
          %p303 = pneg %p68
        $region54: #{tpu_custom_call.1} parent=47 // pred_check_branch
          %305 = sbr.rel (%p303) target = $region56
        $region55: #{tpu_custom_call.1} parent=47 // pred_region
          %306 = dma.done [#allocation7], 2048
        $region56: #{tpu_custom_call.1} parent=47 // pred_fallthru
          _
        // Predicated region
        $region57: #{tpu_custom_call.1} parent=47 // pred_check
          %p307 = pneg %p110
        $region58: #{tpu_custom_call.1} parent=47 // pred_check_branch
          %309 = sbr.rel (%p307) target = $region60
        $region59: #{tpu_custom_call.1} parent=47 // pred_region
          %310 = dma.done [#allocation7], 18432
        $region60: #{tpu_custom_call.1} parent=47 // pred_fallthru
          _
        // Predicated region
        $region61: #{tpu_custom_call.1} parent=47 // pred_check
          %p311 = pneg %p152
        $region62: #{tpu_custom_call.1} parent=47 // pred_check_branch
          %313 = sbr.rel (%p311) target = $region64
        $region63: #{tpu_custom_call.1} parent=47 // pred_region
          %314 = dma.done [#allocation10], 2048
        $region64: #{tpu_custom_call.1} parent=47 // pred_fallthru
          _
        %s315 = sand.u32 %s34, 1
        %s316 = scalar_lea.sflag [#allocation4], %s315
        %s317 = sand.u32 %s34, 1
        %s318 = smul.addr %s317, 384
        %s319 = scalar_lea.vmem [#allocation3], %s318
        %p320 = pneg %p47
        %p321 = pneg %p44
        %p322 = pneg %p68
        %p323 = pneg %p65
        %p324 = pneg %p89
        %p325 = pneg %p86
        %p326 = pneg %p110
        %p327 = pneg %p107
        %p328 = pneg %p131
        %p329 = pneg %p128
        %p330 = pneg %p152
        %p331 = pneg %p149
        %p332 = pneg %p173
        %p333 = pneg %p170
        %p334 = pneg %p199
        %p335 = pneg %p196
        %s336 = sand.u32 %s186, 1
        %s337 = scalar_lea.sflag [#allocation5], %s336
        %s338 = sand.u32 %s186, 1
        %s339 = smul.addr %s338, 384
        %s340 = scalar_lea.vmem [#allocation11], %s339
        %v341 = vld [vmem:[%s298] sm:$0xff]
        %v342 = vld [vmem:[%s298 + $0x8] sm:$0xff]
        %v343 = vld [vmem:[%s298 + $0x10] sm:$0xff]
        %v344 = vld [vmem:[%s298 + $0x18] sm:$0xff]
        %v345 = vld [vmem:[%s298 + $0x20] sm:$0xff]
        %v346 = vld [vmem:[%s298 + $0x28] sm:$0xff]
        %v347 = vld [vmem:[%s298 + $0x30] sm:$0xff]
        %v348 = vld [vmem:[%s298 + $0x38] sm:$0xff]
        %v349 = vld [vmem:[%s298 + $0x40] sm:$0xff]
        %v350 = vld [vmem:[%s298 + $0x48] sm:$0xff]
        %v351 = vld [vmem:[%s298 + $0x50] sm:$0xff]
        %v352 = vld [vmem:[%s298 + $0x58] sm:$0xff]
        %v353 = vld [vmem:[%s298 + $0x60] sm:$0xff]
        %v354 = vld [vmem:[%s298 + $0x68] sm:$0xff]
        %v355 = vld [vmem:[%s298 + $0x70] sm:$0xff]
        %v356 = vld [vmem:[%s298 + $0x78] sm:$0xff]
        %v357 = vld [vmem:[%s298 + $0x80] sm:$0xff]
        %v358 = vld [vmem:[%s298 + $0x88] sm:$0xff]
        %v359 = vld [vmem:[%s298 + $0x90] sm:$0xff]
        %v360 = vld [vmem:[%s298 + $0x98] sm:$0xff]
        %v361 = vld [vmem:[%s298 + $0xa0] sm:$0xff]
        %v362 = vld [vmem:[%s298 + $0xa8] sm:$0xff]
        %v363 = vld [vmem:[%s298 + $0xb0] sm:$0xff]
        %v364 = vld [vmem:[%s298 + $0xb8] sm:$0xff]
        %v365 = vld [vmem:[%s298 + $0xc0] sm:$0xff]
        %v366 = vld [vmem:[%s298 + $0xc8] sm:$0xff]
        %v367 = vld [vmem:[%s298 + $0xd0] sm:$0xff]
        %v368 = vld [vmem:[%s298 + $0xd8] sm:$0xff]
        %v369 = vld [vmem:[%s298 + $0xe0] sm:$0xff]
        %v370 = vld [vmem:[%s298 + $0xe8] sm:$0xff]
        %v371 = vld [vmem:[%s298 + $0xf0] sm:$0xff]
        %v372 = vld [vmem:[%s298 + $0xf8] sm:$0xff]
        %v373 = vld [vmem:[%s298 + $0x100] sm:$0xff]
        %v374 = vld [vmem:[%s298 + $0x108] sm:$0xff]
        %v375 = vld [vmem:[%s298 + $0x110] sm:$0xff]
        %v376 = vld [vmem:[%s298 + $0x118] sm:$0xff]
        %v377 = vld [vmem:[%s298 + $0x120] sm:$0xff]
        %v378 = vld [vmem:[%s298 + $0x128] sm:$0xff]
        %v379 = vld [vmem:[%s298 + $0x130] sm:$0xff]
        %v380 = vld [vmem:[%s298 + $0x138] sm:$0xff]
        %v381 = vld [vmem:[%s298 + $0x140] sm:$0xff]
        %v382 = vld [vmem:[%s298 + $0x148] sm:$0xff]
        %v383 = vld [vmem:[%s298 + $0x150] sm:$0xff]
        %v384 = vld [vmem:[%s298 + $0x158] sm:$0xff]
        %v385 = vld [vmem:[%s298 + $0x160] sm:$0xff]
        %v386 = vld [vmem:[%s298 + $0x168] sm:$0xff]
        %v387 = vld [vmem:[%s298 + $0x170] sm:$0xff]
        %v388 = vld [vmem:[%s298 + $0x178] sm:$0xff]
        %v389 = vld [vmem:[#allocation6] sm:$0xff]
        %v390 = vld [vmem:[#allocation6 + $0x8] sm:$0xff]
        %v391 = vld [vmem:[#allocation6 + $0x10] sm:$0xff]
        %v392 = vld [vmem:[#allocation6 + $0x18] sm:$0xff]
        %v393 = vld [vmem:[#allocation6 + $0x20] sm:$0xff]
        %v394 = vld [vmem:[#allocation6 + $0x28] sm:$0xff]
        %v395 = vld [vmem:[#allocation6 + $0x30] sm:$0xff]
        %v396 = vld [vmem:[#allocation6 + $0x38] sm:$0xff]
        %v397 = vld [vmem:[#allocation6 + $0x40] sm:$0xff]
        %v398 = vld [vmem:[#allocation6 + $0x48] sm:$0xff]
        %v399 = vld [vmem:[#allocation6 + $0x50] sm:$0xff]
        %v400 = vld [vmem:[#allocation6 + $0x58] sm:$0xff]
        %v401 = vld [vmem:[#allocation6 + $0x60] sm:$0xff]
        %v402 = vld [vmem:[#allocation6 + $0x68] sm:$0xff]
        %v403 = vld [vmem:[#allocation6 + $0x70] sm:$0xff]
        %v404 = vld [vmem:[#allocation6 + $0x78] sm:$0xff]
        %v405 = vld [vmem:[%s2] sm:$0x1]
        %v407 = vlaneseq
        %v408 = vshrl.u32 %v407, 7
        %v409 = vsub.s32 0, %v408
        %v410 = vrot.slane %v405, %v409
        %412 = vmatprep.subr.mxu0 0.0
        %413 = vmatpush1.msra.mxu0 %v389
        %414 = vmatprep.subr.mxu0 0.0
        %415 = vmatpush1.msra.mxu0 %v390
        %416 = vmatprep.subr.mxu0 0.0
        %417 = vmatpush1.msra.mxu0 %v391
        %418 = vmatprep.subr.mxu0 0.0
        %419 = vmatpush1.msra.mxu0 %v392
        %420 = vmatprep.subr.mxu0 0.0
        %421 = vmatpush1.msra.mxu0 %v393
        %422 = vmatprep.subr.mxu0 0.0
        %423 = vmatpush1.msra.mxu0 %v394
        %424 = vmatprep.subr.mxu0 0.0
        %425 = vmatpush1.msra.mxu0 %v395
        %426 = vmatprep.subr.mxu0 0.0
        %427 = vmatpush1.msra.mxu0 %v396
        %428 = vmatprep.subr.mxu0 0.0
        %429 = vmatpush1.msra.mxu0 %v397
        %430 = vmatprep.subr.mxu0 0.0
        %431 = vmatpush1.msra.mxu0 %v398
        %432 = vmatprep.subr.mxu0 0.0
        %433 = vmatpush1.msra.mxu0 %v399
        %434 = vmatprep.subr.mxu0 0.0
        %435 = vmatpush1.msra.mxu0 %v400
        %436 = vmatprep.subr.mxu0 0.0
        %437 = vmatpush1.msra.mxu0 %v401
        %438 = vmatprep.subr.mxu0 0.0
        %439 = vmatpush1.msra.mxu0 %v402
        %440 = vmatprep.subr.mxu0 0.0
        %441 = vmatpush1.msra.mxu0 %v403
        %442 = vmatprep.subr.mxu0 0.0
        %443 = vmatpush1.msra.mxu0 %v404
        %444 = vmatprep.subr.mxu0 0.0
        %445 = vmatpush1.msra.mxu0 0.0
        %446 = vmatprep.subr.mxu0 0.0
        %447 = vmatpush1.msra.mxu0 0.0
        %448 = vmatprep.subr.mxu0 0.0
        %449 = vmatpush1.msra.mxu0 0.0
        %450 = vmatprep.subr.mxu0 0.0
        %451 = vmatpush1.msra.mxu0 0.0
        %452 = vmatprep.subr.mxu0 0.0
        %453 = vmatpush1.msra.mxu0 0.0
        %454 = vmatprep.subr.mxu0 0.0
        %455 = vmatpush1.msra.mxu0 0.0
        %456 = vmatprep.subr.mxu0 0.0
        %457 = vmatpush1.msra.mxu0 0.0
        %458 = vmatprep.subr.mxu0 0.0
        %459 = vmatpush1.msra.mxu0 0.0
        %460 = vmatprep.subr.mxu0 0.0
        %461 = vmatpush1.msra.mxu0 0.0
        %462 = vmatprep.subr.mxu0 0.0
        %463 = vmatpush1.msra.mxu0 0.0
        %464 = vmatprep.subr.mxu0 0.0
        %465 = vmatpush1.msra.mxu0 0.0
        %466 = vmatprep.subr.mxu0 0.0
        %467 = vmatpush1.msra.mxu0 0.0
        %468 = vmatprep.subr.mxu0 0.0
        %469 = vmatpush1.msra.mxu0 0.0
        %470 = vmatprep.subr.mxu0 0.0
        %471 = vmatpush1.msra.mxu0 0.0
        %472 = vmatprep.subr.mxu0 0.0
        %473 = vmatpush1.msra.mxu0 0.0
        %474 = vmatprep.subr.mxu0 0.0
        %475 = vmatpush1.msra.mxu0 0.0
        %476 = vmatprep.mubr.f32.mxu0 0.0
        %477 = vmatmul.mubr.f32.gmra.mrb[0].mxu0 %v341
        %v478 = vpop.f32.mrb[0].mxu0
        %v479 = vadd.f32 %v410, %v478
        %v480 = vpop.f32.mrb[0].mxu0
        %481 = vmatprep.mubr.f32.mxu0 0.0
        %482 = vmatmul.mubr.f32.gmra.mrb[0].mxu0 %v342
        %v483 = vpop.f32.mrb[0].mxu0
        %v484 = vadd.f32 %v410, %v483
        %v485 = vpop.f32.mrb[0].mxu0
        %486 = vmatprep.mubr.f32.mxu0 0.0
        %487 = vmatmul.mubr.f32.gmra.mrb[0].mxu0 %v343
        %v488 = vpop.f32.mrb[0].mxu0
        %v489 = vadd.f32 %v410, %v488
        %v490 = vpop.f32.mrb[0].mxu0
        %491 = vmatprep.mubr.f32.mxu0 0.0
        %492 = vmatmul.mubr.f32.gmra.mrb[0].mxu0 %v344
        %v493 = vpop.f32.mrb[0].mxu0
        %v494 = vadd.f32 %v410, %v493
        %v495 = vpop.f32.mrb[0].mxu0
        %496 = vmatprep.mubr.f32.mxu0 0.0
        %497 = vmatmul.mubr.f32.gmra.mrb[0].mxu0 %v345
        %v498 = vpop.f32.mrb[0].mxu0
        %v499 = vadd.f32 %v410, %v498
        %v500 = vpop.f32.mrb[0].mxu0
        %501 = vmatprep.mubr.f32.mxu0 0.0
        %502 = vmatmul.mubr.f32.gmra.mrb[0].mxu0 %v346
        %v503 = vpop.f32.mrb[0].mxu0
        %v504 = vadd.f32 %v410, %v503
        %v505 = vpop.f32.mrb[0].mxu0
        %506 = vmatprep.mubr.f32.mxu0 0.0
        %507 = vmatmul.mubr.f32.gmra.mrb[0].mxu0 %v347
        %v508 = vpop.f32.mrb[0].mxu0
        %v509 = vadd.f32 %v410, %v508
        %v510 = vpop.f32.mrb[0].mxu0
        %511 = vmatprep.mubr.f32.mxu0 0.0
        %512 = vmatmul.mubr.f32.gmra.mrb[0].mxu0 %v348
        %v513 = vpop.f32.mrb[0].mxu0
        %v514 = vadd.f32 %v410, %v513
        %v515 = vpop.f32.mrb[0].mxu0
        %516 = vmatprep.mubr.f32.mxu0 0.0
        %517 = vmatmul.mubr.f32.gmra.mrb[0].mxu0 %v349
        %v518 = vpop.f32.mrb[0].mxu0
        %v519 = vadd.f32 %v410, %v518
        %v520 = vpop.f32.mrb[0].mxu0
        %521 = vmatprep.mubr.f32.mxu0 0.0
        %522 = vmatmul.mubr.f32.gmra.mrb[0].mxu0 %v350
        %v523 = vpop.f32.mrb[0].mxu0
        %v524 = vadd.f32 %v410, %v523
        %v525 = vpop.f32.mrb[0].mxu0
        %526 = vmatprep.mubr.f32.mxu0 0.0
        %527 = vmatmul.mubr.f32.gmra.mrb[0].mxu0 %v351
        %v528 = vpop.f32.mrb[0].mxu0
        %v529 = vadd.f32 %v410, %v528
        %v530 = vpop.f32.mrb[0].mxu0
        %531 = vmatprep.mubr.f32.mxu0 0.0
        %532 = vmatmul.mubr.f32.gmra.mrb[0].mxu0 %v352
        %v533 = vpop.f32.mrb[0].mxu0
        %v534 = vadd.f32 %v410, %v533
        %v535 = vpop.f32.mrb[0].mxu0
        %536 = vmatprep.mubr.f32.mxu0 0.0
        %537 = vmatmul.mubr.f32.gmra.mrb[0].mxu0 %v353
        %v538 = vpop.f32.mrb[0].mxu0
        %v539 = vadd.f32 %v410, %v538
        %v540 = vpop.f32.mrb[0].mxu0
        %541 = vmatprep.mubr.f32.mxu0 0.0
        %542 = vmatmul.mubr.f32.gmra.mrb[0].mxu0 %v354
        %v543 = vpop.f32.mrb[0].mxu0
        %v544 = vadd.f32 %v410, %v543
        %v545 = vpop.f32.mrb[0].mxu0
        %546 = vmatprep.mubr.f32.mxu0 0.0
        %547 = vmatmul.mubr.f32.gmra.mrb[0].mxu0 %v355
        %v548 = vpop.f32.mrb[0].mxu0
        %v549 = vadd.f32 %v410, %v548
        %v550 = vpop.f32.mrb[0].mxu0
        %551 = vmatprep.mubr.f32.mxu0 0.0
        %552 = vmatmul.mubr.f32.gmra.mrb[0].mxu0 %v356
        %v553 = vpop.f32.mrb[0].mxu0
        %v554 = vadd.f32 %v410, %v553
        %v555 = vpop.f32.mrb[0].mxu0
        %556 = vmatprep.mubr.f32.mxu0 0.0
        %557 = vmatmul.mubr.f32.gmra.mrb[0].mxu0 %v357
        %v558 = vpop.f32.mrb[0].mxu0
        %v559 = vadd.f32 %v410, %v558
        %v560 = vpop.f32.mrb[0].mxu0
        %561 = vmatprep.mubr.f32.mxu0 0.0
        %562 = vmatmul.mubr.f32.gmra.mrb[0].mxu0 %v358
        %v563 = vpop.f32.mrb[0].mxu0
        %v564 = vadd.f32 %v410, %v563
        %v565 = vpop.f32.mrb[0].mxu0
        %566 = vmatprep.mubr.f32.mxu0 0.0
        %567 = vmatmul.mubr.f32.gmra.mrb[0].mxu0 %v359
        %v568 = vpop.f32.mrb[0].mxu0
        %v569 = vadd.f32 %v410, %v568
        %v570 = vpop.f32.mrb[0].mxu0
        %571 = vmatprep.mubr.f32.mxu0 0.0
        %572 = vmatmul.mubr.f32.gmra.mrb[0].mxu0 %v360
        %v573 = vpop.f32.mrb[0].mxu0
        %v574 = vadd.f32 %v410, %v573
        %v575 = vpop.f32.mrb[0].mxu0
        %576 = vmatprep.mubr.f32.mxu0 0.0
        %577 = vmatmul.mubr.f32.gmra.mrb[0].mxu0 %v361
        %v578 = vpop.f32.mrb[0].mxu0
        %v579 = vadd.f32 %v410, %v578
        %v580 = vpop.f32.mrb[0].mxu0
        %581 = vmatprep.mubr.f32.mxu0 0.0
        %582 = vmatmul.mubr.f32.gmra.mrb[0].mxu0 %v362
        %v583 = vpop.f32.mrb[0].mxu0
        %v584 = vadd.f32 %v410, %v583
        %v585 = vpop.f32.mrb[0].mxu0
        %586 = vmatprep.mubr.f32.mxu0 0.0
        %587 = vmatmul.mubr.f32.gmra.mrb[0].mxu0 %v363
        %v588 = vpop.f32.mrb[0].mxu0
        %v589 = vadd.f32 %v410, %v588
        %v590 = vpop.f32.mrb[0].mxu0
        %591 = vmatprep.mubr.f32.mxu0 0.0
        %592 = vmatmul.mubr.f32.gmra.mrb[0].mxu0 %v364
        %v593 = vpop.f32.mrb[0].mxu0
        %v594 = vadd.f32 %v410, %v593
        %v595 = vpop.f32.mrb[0].mxu0
        %596 = vmatprep.mubr.f32.mxu0 0.0
        %597 = vmatmul.mubr.f32.gmra.mrb[0].mxu0 %v365
        %v598 = vpop.f32.mrb[0].mxu0
        %v599 = vadd.f32 %v410, %v598
        %v600 = vpop.f32.mrb[0].mxu0
        %601 = vmatprep.mubr.f32.mxu0 0.0
        %602 = vmatmul.mubr.f32.gmra.mrb[0].mxu0 %v366
        %v603 = vpop.f32.mrb[0].mxu0
        %v604 = vadd.f32 %v410, %v603
        %v605 = vpop.f32.mrb[0].mxu0
        %606 = vmatprep.mubr.f32.mxu0 0.0
        %607 = vmatmul.mubr.f32.gmra.mrb[0].mxu0 %v367
        %v608 = vpop.f32.mrb[0].mxu0
        %v609 = vadd.f32 %v410, %v608
        %v610 = vpop.f32.mrb[0].mxu0
        %611 = vmatprep.mubr.f32.mxu0 0.0
        %612 = vmatmul.mubr.f32.gmra.mrb[0].mxu0 %v368
        %v613 = vpop.f32.mrb[0].mxu0
        %v614 = vadd.f32 %v410, %v613
        %v615 = vpop.f32.mrb[0].mxu0
        %616 = vmatprep.mubr.f32.mxu0 0.0
        %617 = vmatmul.mubr.f32.gmra.mrb[0].mxu0 %v369
        %v618 = vpop.f32.mrb[0].mxu0
        %v619 = vadd.f32 %v410, %v618
        %v620 = vpop.f32.mrb[0].mxu0
        %621 = vmatprep.mubr.f32.mxu0 0.0
        %622 = vmatmul.mubr.f32.gmra.mrb[0].mxu0 %v370
        %v623 = vpop.f32.mrb[0].mxu0
        %v624 = vadd.f32 %v410, %v623
        %v625 = vpop.f32.mrb[0].mxu0
        %626 = vmatprep.mubr.f32.mxu0 0.0
        %627 = vmatmul.mubr.f32.gmra.mrb[0].mxu0 %v371
        %v628 = vpop.f32.mrb[0].mxu0
        %v629 = vadd.f32 %v410, %v628
        %v630 = vpop.f32.mrb[0].mxu0
        %631 = vmatprep.mubr.f32.mxu0 0.0
        %632 = vmatmul.mubr.f32.gmra.mrb[0].mxu0 %v372
        %v633 = vpop.f32.mrb[0].mxu0
        %v634 = vadd.f32 %v410, %v633
        %v635 = vpop.f32.mrb[0].mxu0
        %636 = vmatprep.mubr.f32.mxu0 0.0
        %637 = vmatmul.mubr.f32.gmra.mrb[0].mxu0 %v373
        %v638 = vpop.f32.mrb[0].mxu0
        %v639 = vadd.f32 %v410, %v638
        %v640 = vpop.f32.mrb[0].mxu0
        %641 = vmatprep.mubr.f32.mxu0 0.0
        %642 = vmatmul.mubr.f32.gmra.mrb[0].mxu0 %v374
        %v643 = vpop.f32.mrb[0].mxu0
        %v644 = vadd.f32 %v410, %v643
        %v645 = vpop.f32.mrb[0].mxu0
        %646 = vmatprep.mubr.f32.mxu0 0.0
        %647 = vmatmul.mubr.f32.gmra.mrb[0].mxu0 %v375
        %v648 = vpop.f32.mrb[0].mxu0
        %v649 = vadd.f32 %v410, %v648
        %v650 = vpop.f32.mrb[0].mxu0
        %651 = vmatprep.mubr.f32.mxu0 0.0
        %652 = vmatmul.mubr.f32.gmra.mrb[0].mxu0 %v376
        %v653 = vpop.f32.mrb[0].mxu0
        %v654 = vadd.f32 %v410, %v653
        %v655 = vpop.f32.mrb[0].mxu0
        %656 = vmatprep.mubr.f32.mxu0 0.0
        %657 = vmatmul.mubr.f32.gmra.mrb[0].mxu0 %v377
        %v658 = vpop.f32.mrb[0].mxu0
        %v659 = vadd.f32 %v410, %v658
        %v660 = vpop.f32.mrb[0].mxu0
        %661 = vmatprep.mubr.f32.mxu0 0.0
        %662 = vmatmul.mubr.f32.gmra.mrb[0].mxu0 %v378
        %v663 = vpop.f32.mrb[0].mxu0
        %v664 = vadd.f32 %v410, %v663
        %v665 = vpop.f32.mrb[0].mxu0
        %666 = vmatprep.mubr.f32.mxu0 0.0
        %667 = vmatmul.mubr.f32.gmra.mrb[0].mxu0 %v379
        %v668 = vpop.f32.mrb[0].mxu0
        %v669 = vadd.f32 %v410, %v668
        %v670 = vpop.f32.mrb[0].mxu0
        %671 = vmatprep.mubr.f32.mxu0 0.0
        %672 = vmatmul.mubr.f32.gmra.mrb[0].mxu0 %v380
        %v673 = vpop.f32.mrb[0].mxu0
        %v674 = vadd.f32 %v410, %v673
        %v675 = vpop.f32.mrb[0].mxu0
        %676 = vmatprep.mubr.f32.mxu0 0.0
        %677 = vmatmul.mubr.f32.gmra.mrb[0].mxu0 %v381
        %v678 = vpop.f32.mrb[0].mxu0
        %v679 = vadd.f32 %v410, %v678
        %v680 = vpop.f32.mrb[0].mxu0
        %681 = vmatprep.mubr.f32.mxu0 0.0
        %682 = vmatmul.mubr.f32.gmra.mrb[0].mxu0 %v382
        %v683 = vpop.f32.mrb[0].mxu0
        %v684 = vadd.f32 %v410, %v683
        %v685 = vpop.f32.mrb[0].mxu0
        %686 = vmatprep.mubr.f32.mxu0 0.0
        %687 = vmatmul.mubr.f32.gmra.mrb[0].mxu0 %v383
        %v688 = vpop.f32.mrb[0].mxu0
        %v689 = vadd.f32 %v410, %v688
        %v690 = vpop.f32.mrb[0].mxu0
        %691 = vmatprep.mubr.f32.mxu0 0.0
        %692 = vmatmul.mubr.f32.gmra.mrb[0].mxu0 %v384
        %v693 = vpop.f32.mrb[0].mxu0
        %v694 = vadd.f32 %v410, %v693
        %v695 = vpop.f32.mrb[0].mxu0
        %696 = vmatprep.mubr.f32.mxu0 0.0
        %697 = vmatmul.mubr.f32.gmra.mrb[0].mxu0 %v385
        %v698 = vpop.f32.mrb[0].mxu0
        %v699 = vadd.f32 %v410, %v698
        %v700 = vpop.f32.mrb[0].mxu0
        %701 = vmatprep.mubr.f32.mxu0 0.0
        %702 = vmatmul.mubr.f32.gmra.mrb[0].mxu0 %v386
        %v703 = vpop.f32.mrb[0].mxu0
        %v704 = vadd.f32 %v410, %v703
        %v705 = vpop.f32.mrb[0].mxu0
        %706 = vmatprep.mubr.f32.mxu0 0.0
        %707 = vmatmul.mubr.f32.gmra.mrb[0].mxu0 %v387
        %v708 = vpop.f32.mrb[0].mxu0
        %v709 = vadd.f32 %v410, %v708
        %v710 = vpop.f32.mrb[0].mxu0
        %711 = vmatprep.mubr.f32.mxu0 0.0
        %712 = vmatmul.mubr.f32.gmra.mrb[0].mxu0 %v388
        %v713 = vpop.f32.mrb[0].mxu0
        %v714 = vadd.f32 %v410, %v713
        %v715 = vpop.f32.mrb[0].mxu0
        %716 = vdwg.mxu0
        %v717 = vmax.f32 %v479, 0.0
        %v718 = vmax.f32 %v484, 0.0
        %v719 = vmax.f32 %v489, 0.0
        %v720 = vmax.f32 %v494, 0.0
        %v721 = vmax.f32 %v499, 0.0
        %v722 = vmax.f32 %v504, 0.0
        %v723 = vmax.f32 %v509, 0.0
        %v724 = vmax.f32 %v514, 0.0
        %v725 = vmax.f32 %v519, 0.0
        %v726 = vmax.f32 %v524, 0.0
        %v727 = vmax.f32 %v529, 0.0
        %v728 = vmax.f32 %v534, 0.0
        %v729 = vmax.f32 %v539, 0.0
        %v730 = vmax.f32 %v544, 0.0
        %v731 = vmax.f32 %v549, 0.0
        %v732 = vmax.f32 %v554, 0.0
        %v733 = vmax.f32 %v559, 0.0
        %v734 = vmax.f32 %v564, 0.0
        %v735 = vmax.f32 %v569, 0.0
        %v736 = vmax.f32 %v574, 0.0
        %v737 = vmax.f32 %v579, 0.0
        %v738 = vmax.f32 %v584, 0.0
        %v739 = vmax.f32 %v589, 0.0
        %v740 = vmax.f32 %v594, 0.0
        %v741 = vmax.f32 %v599, 0.0
        %v742 = vmax.f32 %v604, 0.0
        %v743 = vmax.f32 %v609, 0.0
        %v744 = vmax.f32 %v614, 0.0
        %v745 = vmax.f32 %v619, 0.0
        %v746 = vmax.f32 %v624, 0.0
        %v747 = vmax.f32 %v629, 0.0
        %v748 = vmax.f32 %v634, 0.0
        %v749 = vmax.f32 %v639, 0.0
        %v750 = vmax.f32 %v644, 0.0
        %v751 = vmax.f32 %v649, 0.0
        %v752 = vmax.f32 %v654, 0.0
        %v753 = vmax.f32 %v659, 0.0
        %v754 = vmax.f32 %v664, 0.0
        %v755 = vmax.f32 %v669, 0.0
        %v756 = vmax.f32 %v674, 0.0
        %v757 = vmax.f32 %v679, 0.0
        %v758 = vmax.f32 %v684, 0.0
        %v759 = vmax.f32 %v689, 0.0
        %v760 = vmax.f32 %v694, 0.0
        %v761 = vmax.f32 %v699, 0.0
        %v762 = vmax.f32 %v704, 0.0
        %v763 = vmax.f32 %v709, 0.0
        %v764 = vmax.f32 %v714, 0.0
        %v765 = vlaneseq
        %v766 = vshrl.u32 %v765, 7
        %v767 = vadd.s32 %v766, 8
        %v768 = vadd.s32 %v766, 16
        %v769 = vadd.s32 %v766, 24
        %v770 = vadd.s32 %v766, 32
        %v771 = vadd.s32 %v766, 40
        %v772 = vadd.s32 %v766, 48
        %v773 = vadd.s32 %v766, 56
        %v774 = vadd.s32 %v766, 64
        %v775 = vadd.s32 %v766, 72
        %v776 = vadd.s32 %v766, 80
        %v777 = vadd.s32 %v766, 88
        %v778 = vadd.s32 %v766, 96
        %v779 = vadd.s32 %v766, 104
        %v780 = vadd.s32 %v766, 112
        %v781 = vadd.s32 %v766, 120
        %v782 = vadd.s32 %v766, 128
        %v783 = vadd.s32 %v766, 136
        %v784 = vadd.s32 %v766, 144
        %v785 = vadd.s32 %v766, 152
        %v786 = vadd.s32 %v766, 160
        %v787 = vadd.s32 %v766, 168
        %v788 = vadd.s32 %v766, 176
        %v789 = vadd.s32 %v766, 184
        %v790 = vadd.s32 %v766, 192
        %v791 = vadd.s32 %v766, 200
        %v792 = vadd.s32 %v766, 208
        %v793 = vadd.s32 %v766, 216
        %v794 = vadd.s32 %v766, 224
        %v795 = vadd.s32 %v766, 232
        %v796 = vadd.s32 %v766, 240
        %v797 = vadd.s32 %v766, 248
        %v798 = vadd.s32 %v766, 256
        %v799 = vadd.s32 %v766, 264
        %v800 = vadd.s32 %v766, 272
        %v801 = vadd.s32 %v766, 280
        %v802 = vadd.s32 %v766, 288
        %v803 = vadd.s32 %v766, 296
        %v804 = vadd.s32 %v766, 304
        %v805 = vadd.s32 %v766, 312
        %v806 = vadd.s32 %v766, 320
        %v807 = vadd.s32 %v766, 328
        %v808 = vadd.s32 %v766, 336
        %v809 = vadd.s32 %v766, 344
        %v810 = vadd.s32 %v766, 352
        %v811 = vadd.s32 %v766, 360
        %v812 = vadd.s32 %v766, 368
        %v813 = vadd.s32 %v766, 376
        %vm814 = vcmp.lt.s32.totalorder %v766, 0
        %v815 = vsub.s32 0, %v766
        %v816 = vsel %vm814, %v815, %v766
        %v817 = vmul.u32.u64.compose %v816, 2863311531
        %v818 = vextract.low.u32 %v817
        %v819 = vextract.high.u32 %v817
        %v820 = vshrl.u32 %v819, 4
        %v821 = vmul.u32 %v820, 24
        %v822 = vsub.s32 %v816, %v821
        %v823 = vsub.s32 0, %v822
        %v824 = vsel %vm814, %v823, %v822
        %vm825 = vcmp.lt.s32.totalorder %v767, 0
        %v826 = vsub.s32 0, %v767
        %v827 = vsel %vm825, %v826, %v767
        %v828 = vmul.u32.u64.compose %v827, 2863311531
        %v829 = vextract.low.u32 %v828
        %v830 = vextract.high.u32 %v828
        %v831 = vshrl.u32 %v830, 4
        %v832 = vmul.u32 %v831, 24
        %v833 = vsub.s32 %v827, %v832
        %v834 = vsub.s32 0, %v833
        %v835 = vsel %vm825, %v834, %v833
        %vm836 = vcmp.lt.s32.totalorder %v768, 0
        %v837 = vsub.s32 0, %v768
        %v838 = vsel %vm836, %v837, %v768
        %v839 = vmul.u32.u64.compose %v838, 2863311531
        %v840 = vextract.low.u32 %v839
        %v841 = vextract.high.u32 %v839
        %v842 = vshrl.u32 %v841, 4
        %v843 = vmul.u32 %v842, 24
        %v844 = vsub.s32 %v838, %v843
        %v845 = vsub.s32 0, %v844
        %v846 = vsel %vm836, %v845, %v844
        %vm847 = vcmp.lt.s32.totalorder %v769, 0
        %v848 = vsub.s32 0, %v769
        %v849 = vsel %vm847, %v848, %v769
        %v850 = vmul.u32.u64.compose %v849, 2863311531
        %v851 = vextract.low.u32 %v850
        %v852 = vextract.high.u32 %v850
        %v853 = vshrl.u32 %v852, 4
        %v854 = vmul.u32 %v853, 24
        %v855 = vsub.s32 %v849, %v854
        %v856 = vsub.s32 0, %v855
        %v857 = vsel %vm847, %v856, %v855
        %vm858 = vcmp.lt.s32.totalorder %v770, 0
        %v859 = vsub.s32 0, %v770
        %v860 = vsel %vm858, %v859, %v770
        %v861 = vmul.u32.u64.compose %v860, 2863311531
        %v862 = vextract.low.u32 %v861
        %v863 = vextract.high.u32 %v861
        %v864 = vshrl.u32 %v863, 4
        %v865 = vmul.u32 %v864, 24
        %v866 = vsub.s32 %v860, %v865
        %v867 = vsub.s32 0, %v866
        %v868 = vsel %vm858, %v867, %v866
        %vm869 = vcmp.lt.s32.totalorder %v771, 0
        %v870 = vsub.s32 0, %v771
        %v871 = vsel %vm869, %v870, %v771
        %v872 = vmul.u32.u64.compose %v871, 2863311531
        %v873 = vextract.low.u32 %v872
        %v874 = vextract.high.u32 %v872
        %v875 = vshrl.u32 %v874, 4
        %v876 = vmul.u32 %v875, 24
        %v877 = vsub.s32 %v871, %v876
        %v878 = vsub.s32 0, %v877
        %v879 = vsel %vm869, %v878, %v877
        %vm880 = vcmp.lt.s32.totalorder %v772, 0
        %v881 = vsub.s32 0, %v772
        %v882 = vsel %vm880, %v881, %v772
        %v883 = vmul.u32.u64.compose %v882, 2863311531
        %v884 = vextract.low.u32 %v883
        %v885 = vextract.high.u32 %v883
        %v886 = vshrl.u32 %v885, 4
        %v887 = vmul.u32 %v886, 24
        %v888 = vsub.s32 %v882, %v887
        %v889 = vsub.s32 0, %v888
        %v890 = vsel %vm880, %v889, %v888
        %vm891 = vcmp.lt.s32.totalorder %v773, 0
        %v892 = vsub.s32 0, %v773
        %v893 = vsel %vm891, %v892, %v773
        %v894 = vmul.u32.u64.compose %v893, 2863311531
        %v895 = vextract.low.u32 %v894
        %v896 = vextract.high.u32 %v894
        %v897 = vshrl.u32 %v896, 4
        %v898 = vmul.u32 %v897, 24
        %v899 = vsub.s32 %v893, %v898
        %v900 = vsub.s32 0, %v899
        %v901 = vsel %vm891, %v900, %v899
        %vm902 = vcmp.lt.s32.totalorder %v774, 0
        %v903 = vsub.s32 0, %v774
        %v904 = vsel %vm902, %v903, %v774
        %v905 = vmul.u32.u64.compose %v904, 2863311531
        %v906 = vextract.low.u32 %v905
        %v907 = vextract.high.u32 %v905
        %v908 = vshrl.u32 %v907, 4
        %v909 = vmul.u32 %v908, 24
        %v910 = vsub.s32 %v904, %v909
        %v911 = vsub.s32 0, %v910
        %v912 = vsel %vm902, %v911, %v910
        %vm913 = vcmp.lt.s32.totalorder %v775, 0
        %v914 = vsub.s32 0, %v775
        %v915 = vsel %vm913, %v914, %v775
        %v916 = vmul.u32.u64.compose %v915, 2863311531
        %v917 = vextract.low.u32 %v916
        %v918 = vextract.high.u32 %v916
        %v919 = vshrl.u32 %v918, 4
        %v920 = vmul.u32 %v919, 24
        %v921 = vsub.s32 %v915, %v920
        %v922 = vsub.s32 0, %v921
        %v923 = vsel %vm913, %v922, %v921
        %vm924 = vcmp.lt.s32.totalorder %v776, 0
        %v925 = vsub.s32 0, %v776
        %v926 = vsel %vm924, %v925, %v776
        %v927 = vmul.u32.u64.compose %v926, 2863311531
        %v928 = vextract.low.u32 %v927
        %v929 = vextract.high.u32 %v927
        %v930 = vshrl.u32 %v929, 4
        %v931 = vmul.u32 %v930, 24
        %v932 = vsub.s32 %v926, %v931
        %v933 = vsub.s32 0, %v932
        %v934 = vsel %vm924, %v933, %v932
        %vm935 = vcmp.lt.s32.totalorder %v777, 0
        %v936 = vsub.s32 0, %v777
        %v937 = vsel %vm935, %v936, %v777
        %v938 = vmul.u32.u64.compose %v937, 2863311531
        %v939 = vextract.low.u32 %v938
        %v940 = vextract.high.u32 %v938
        %v941 = vshrl.u32 %v940, 4
        %v942 = vmul.u32 %v941, 24
        %v943 = vsub.s32 %v937, %v942
        %v944 = vsub.s32 0, %v943
        %v945 = vsel %vm935, %v944, %v943
        %vm946 = vcmp.lt.s32.totalorder %v778, 0
        %v947 = vsub.s32 0, %v778
        %v948 = vsel %vm946, %v947, %v778
        %v949 = vmul.u32.u64.compose %v948, 2863311531
        %v950 = vextract.low.u32 %v949
        %v951 = vextract.high.u32 %v949
        %v952 = vshrl.u32 %v951, 4
        %v953 = vmul.u32 %v952, 24
        %v954 = vsub.s32 %v948, %v953
        %v955 = vsub.s32 0, %v954
        %v956 = vsel %vm946, %v955, %v954
        %vm957 = vcmp.lt.s32.totalorder %v779, 0
        %v958 = vsub.s32 0, %v779
        %v959 = vsel %vm957, %v958, %v779
        %v960 = vmul.u32.u64.compose %v959, 2863311531
        %v961 = vextract.low.u32 %v960
        %v962 = vextract.high.u32 %v960
        %v963 = vshrl.u32 %v962, 4
        %v964 = vmul.u32 %v963, 24
        %v965 = vsub.s32 %v959, %v964
        %v966 = vsub.s32 0, %v965
        %v967 = vsel %vm957, %v966, %v965
        %vm968 = vcmp.lt.s32.totalorder %v780, 0
        %v969 = vsub.s32 0, %v780
        %v970 = vsel %vm968, %v969, %v780
        %v971 = vmul.u32.u64.compose %v970, 2863311531
        %v972 = vextract.low.u32 %v971
        %v973 = vextract.high.u32 %v971
        %v974 = vshrl.u32 %v973, 4
        %v975 = vmul.u32 %v974, 24
        %v976 = vsub.s32 %v970, %v975
        %v977 = vsub.s32 0, %v976
        %v978 = vsel %vm968, %v977, %v976
        %vm979 = vcmp.lt.s32.totalorder %v781, 0
        %v980 = vsub.s32 0, %v781
        %v981 = vsel %vm979, %v980, %v781
        %v982 = vmul.u32.u64.compose %v981, 2863311531
        %v983 = vextract.low.u32 %v982
        %v984 = vextract.high.u32 %v982
        %v985 = vshrl.u32 %v984, 4
        %v986 = vmul.u32 %v985, 24
        %v987 = vsub.s32 %v981, %v986
        %v988 = vsub.s32 0, %v987
        %v989 = vsel %vm979, %v988, %v987
        %vm990 = vcmp.lt.s32.totalorder %v782, 0
        %v991 = vsub.s32 0, %v782
        %v992 = vsel %vm990, %v991, %v782
        %v993 = vmul.u32.u64.compose %v992, 2863311531
        %v994 = vextract.low.u32 %v993
        %v995 = vextract.high.u32 %v993
        %v996 = vshrl.u32 %v995, 4
        %v997 = vmul.u32 %v996, 24
        %v998 = vsub.s32 %v992, %v997
        %v999 = vsub.s32 0, %v998
        %v1000 = vsel %vm990, %v999, %v998
        %vm1001 = vcmp.lt.s32.totalorder %v783, 0
        %v1002 = vsub.s32 0, %v783
        %v1003 = vsel %vm1001, %v1002, %v783
        %v1004 = vmul.u32.u64.compose %v1003, 2863311531
        %v1005 = vextract.low.u32 %v1004
        %v1006 = vextract.high.u32 %v1004
        %v1007 = vshrl.u32 %v1006, 4
        %v1008 = vmul.u32 %v1007, 24
        %v1009 = vsub.s32 %v1003, %v1008
        %v1010 = vsub.s32 0, %v1009
        %v1011 = vsel %vm1001, %v1010, %v1009
        %vm1012 = vcmp.lt.s32.totalorder %v784, 0
        %v1013 = vsub.s32 0, %v784
        %v1014 = vsel %vm1012, %v1013, %v784
        %v1015 = vmul.u32.u64.compose %v1014, 2863311531
        %v1016 = vextract.low.u32 %v1015
        %v1017 = vextract.high.u32 %v1015
        %v1018 = vshrl.u32 %v1017, 4
        %v1019 = vmul.u32 %v1018, 24
        %v1020 = vsub.s32 %v1014, %v1019
        %v1021 = vsub.s32 0, %v1020
        %v1022 = vsel %vm1012, %v1021, %v1020
        %vm1023 = vcmp.lt.s32.totalorder %v785, 0
        %v1024 = vsub.s32 0, %v785
        %v1025 = vsel %vm1023, %v1024, %v785
        %v1026 = vmul.u32.u64.compose %v1025, 2863311531
        %v1027 = vextract.low.u32 %v1026
        %v1028 = vextract.high.u32 %v1026
        %v1029 = vshrl.u32 %v1028, 4
        %v1030 = vmul.u32 %v1029, 24
        %v1031 = vsub.s32 %v1025, %v1030
        %v1032 = vsub.s32 0, %v1031
        %v1033 = vsel %vm1023, %v1032, %v1031
        %vm1034 = vcmp.lt.s32.totalorder %v786, 0
        %v1035 = vsub.s32 0, %v786
        %v1036 = vsel %vm1034, %v1035, %v786
        %v1037 = vmul.u32.u64.compose %v1036, 2863311531
        %v1038 = vextract.low.u32 %v1037
        %v1039 = vextract.high.u32 %v1037
        %v1040 = vshrl.u32 %v1039, 4
        %v1041 = vmul.u32 %v1040, 24
        %v1042 = vsub.s32 %v1036, %v1041
        %v1043 = vsub.s32 0, %v1042
        %v1044 = vsel %vm1034, %v1043, %v1042
        %vm1045 = vcmp.lt.s32.totalorder %v787, 0
        %v1046 = vsub.s32 0, %v787
        %v1047 = vsel %vm1045, %v1046, %v787
        %v1048 = vmul.u32.u64.compose %v1047, 2863311531
        %v1049 = vextract.low.u32 %v1048
        %v1050 = vextract.high.u32 %v1048
        %v1051 = vshrl.u32 %v1050, 4
        %v1052 = vmul.u32 %v1051, 24
        %v1053 = vsub.s32 %v1047, %v1052
        %v1054 = vsub.s32 0, %v1053
        %v1055 = vsel %vm1045, %v1054, %v1053
        %vm1056 = vcmp.lt.s32.totalorder %v788, 0
        %v1057 = vsub.s32 0, %v788
        %v1058 = vsel %vm1056, %v1057, %v788
        %v1059 = vmul.u32.u64.compose %v1058, 2863311531
        %v1060 = vextract.low.u32 %v1059
        %v1061 = vextract.high.u32 %v1059
        %v1062 = vshrl.u32 %v1061, 4
        %v1063 = vmul.u32 %v1062, 24
        %v1064 = vsub.s32 %v1058, %v1063
        %v1065 = vsub.s32 0, %v1064
        %v1066 = vsel %vm1056, %v1065, %v1064
        %vm1067 = vcmp.lt.s32.totalorder %v789, 0
        %v1068 = vsub.s32 0, %v789
        %v1069 = vsel %vm1067, %v1068, %v789
        %v1070 = vmul.u32.u64.compose %v1069, 2863311531
        %v1071 = vextract.low.u32 %v1070
        %v1072 = vextract.high.u32 %v1070
        %v1073 = vshrl.u32 %v1072, 4
        %v1074 = vmul.u32 %v1073, 24
        %v1075 = vsub.s32 %v1069, %v1074
        %v1076 = vsub.s32 0, %v1075
        %v1077 = vsel %vm1067, %v1076, %v1075
        %vm1078 = vcmp.lt.s32.totalorder %v790, 0
        %v1079 = vsub.s32 0, %v790
        %v1080 = vsel %vm1078, %v1079, %v790
        %v1081 = vmul.u32.u64.compose %v1080, 2863311531
        %v1082 = vextract.low.u32 %v1081
        %v1083 = vextract.high.u32 %v1081
        %v1084 = vshrl.u32 %v1083, 4
        %v1085 = vmul.u32 %v1084, 24
        %v1086 = vsub.s32 %v1080, %v1085
        %v1087 = vsub.s32 0, %v1086
        %v1088 = vsel %vm1078, %v1087, %v1086
        %vm1089 = vcmp.lt.s32.totalorder %v791, 0
        %v1090 = vsub.s32 0, %v791
        %v1091 = vsel %vm1089, %v1090, %v791
        %v1092 = vmul.u32.u64.compose %v1091, 2863311531
        %v1093 = vextract.low.u32 %v1092
        %v1094 = vextract.high.u32 %v1092
        %v1095 = vshrl.u32 %v1094, 4
        %v1096 = vmul.u32 %v1095, 24
        %v1097 = vsub.s32 %v1091, %v1096
        %v1098 = vsub.s32 0, %v1097
        %v1099 = vsel %vm1089, %v1098, %v1097
        %vm1100 = vcmp.lt.s32.totalorder %v792, 0
        %v1101 = vsub.s32 0, %v792
        %v1102 = vsel %vm1100, %v1101, %v792
        %v1103 = vmul.u32.u64.compose %v1102, 2863311531
        %v1104 = vextract.low.u32 %v1103
        %v1105 = vextract.high.u32 %v1103
        %v1106 = vshrl.u32 %v1105, 4
        %v1107 = vmul.u32 %v1106, 24
        %v1108 = vsub.s32 %v1102, %v1107
        %v1109 = vsub.s32 0, %v1108
        %v1110 = vsel %vm1100, %v1109, %v1108
        %vm1111 = vcmp.lt.s32.totalorder %v793, 0
        %v1112 = vsub.s32 0, %v793
        %v1113 = vsel %vm1111, %v1112, %v793
        %v1114 = vmul.u32.u64.compose %v1113, 2863311531
        %v1115 = vextract.low.u32 %v1114
        %v1116 = vextract.high.u32 %v1114
        %v1117 = vshrl.u32 %v1116, 4
        %v1118 = vmul.u32 %v1117, 24
        %v1119 = vsub.s32 %v1113, %v1118
        %v1120 = vsub.s32 0, %v1119
        %v1121 = vsel %vm1111, %v1120, %v1119
        %vm1122 = vcmp.lt.s32.totalorder %v794, 0
        %v1123 = vsub.s32 0, %v794
        %v1124 = vsel %vm1122, %v1123, %v794
        %v1125 = vmul.u32.u64.compose %v1124, 2863311531
        %v1126 = vextract.low.u32 %v1125
        %v1127 = vextract.high.u32 %v1125
        %v1128 = vshrl.u32 %v1127, 4
        %v1129 = vmul.u32 %v1128, 24
        %v1130 = vsub.s32 %v1124, %v1129
        %v1131 = vsub.s32 0, %v1130
        %v1132 = vsel %vm1122, %v1131, %v1130
        %vm1133 = vcmp.lt.s32.totalorder %v795, 0
        %v1134 = vsub.s32 0, %v795
        %v1135 = vsel %vm1133, %v1134, %v795
        %v1136 = vmul.u32.u64.compose %v1135, 2863311531
        %v1137 = vextract.low.u32 %v1136
        %v1138 = vextract.high.u32 %v1136
        %v1139 = vshrl.u32 %v1138, 4
        %v1140 = vmul.u32 %v1139, 24
        %v1141 = vsub.s32 %v1135, %v1140
        %v1142 = vsub.s32 0, %v1141
        %v1143 = vsel %vm1133, %v1142, %v1141
        %vm1144 = vcmp.lt.s32.totalorder %v796, 0
        %v1145 = vsub.s32 0, %v796
        %v1146 = vsel %vm1144, %v1145, %v796
        %v1147 = vmul.u32.u64.compose %v1146, 2863311531
        %v1148 = vextract.low.u32 %v1147
        %v1149 = vextract.high.u32 %v1147
        %v1150 = vshrl.u32 %v1149, 4
        %v1151 = vmul.u32 %v1150, 24
        %v1152 = vsub.s32 %v1146, %v1151
        %v1153 = vsub.s32 0, %v1152
        %v1154 = vsel %vm1144, %v1153, %v1152
        %vm1155 = vcmp.lt.s32.totalorder %v797, 0
        %v1156 = vsub.s32 0, %v797
        %v1157 = vsel %vm1155, %v1156, %v797
        %v1158 = vmul.u32.u64.compose %v1157, 2863311531
        %v1159 = vextract.low.u32 %v1158
        %v1160 = vextract.high.u32 %v1158
        %v1161 = vshrl.u32 %v1160, 4
        %v1162 = vmul.u32 %v1161, 24
        %v1163 = vsub.s32 %v1157, %v1162
        %v1164 = vsub.s32 0, %v1163
        %v1165 = vsel %vm1155, %v1164, %v1163
        %vm1166 = vcmp.lt.s32.totalorder %v798, 0
        %v1167 = vsub.s32 0, %v798
        %v1168 = vsel %vm1166, %v1167, %v798
        %v1169 = vmul.u32.u64.compose %v1168, 2863311531
        %v1170 = vextract.low.u32 %v1169
        %v1171 = vextract.high.u32 %v1169
        %v1172 = vshrl.u32 %v1171, 4
        %v1173 = vmul.u32 %v1172, 24
        %v1174 = vsub.s32 %v1168, %v1173
        %v1175 = vsub.s32 0, %v1174
        %v1176 = vsel %vm1166, %v1175, %v1174
        %vm1177 = vcmp.lt.s32.totalorder %v799, 0
        %v1178 = vsub.s32 0, %v799
        %v1179 = vsel %vm1177, %v1178, %v799
        %v1180 = vmul.u32.u64.compose %v1179, 2863311531
        %v1181 = vextract.low.u32 %v1180
        %v1182 = vextract.high.u32 %v1180
        %v1183 = vshrl.u32 %v1182, 4
        %v1184 = vmul.u32 %v1183, 24
        %v1185 = vsub.s32 %v1179, %v1184
        %v1186 = vsub.s32 0, %v1185
        %v1187 = vsel %vm1177, %v1186, %v1185
        %vm1188 = vcmp.lt.s32.totalorder %v800, 0
        %v1189 = vsub.s32 0, %v800
        %v1190 = vsel %vm1188, %v1189, %v800
        %v1191 = vmul.u32.u64.compose %v1190, 2863311531
        %v1192 = vextract.low.u32 %v1191
        %v1193 = vextract.high.u32 %v1191
        %v1194 = vshrl.u32 %v1193, 4
        %v1195 = vmul.u32 %v1194, 24
        %v1196 = vsub.s32 %v1190, %v1195
        %v1197 = vsub.s32 0, %v1196
        %v1198 = vsel %vm1188, %v1197, %v1196
        %vm1199 = vcmp.lt.s32.totalorder %v801, 0
        %v1200 = vsub.s32 0, %v801
        %v1201 = vsel %vm1199, %v1200, %v801
        %v1202 = vmul.u32.u64.compose %v1201, 2863311531
        %v1203 = vextract.low.u32 %v1202
        %v1204 = vextract.high.u32 %v1202
        %v1205 = vshrl.u32 %v1204, 4
        %v1206 = vmul.u32 %v1205, 24
        %v1207 = vsub.s32 %v1201, %v1206
        %v1208 = vsub.s32 0, %v1207
        %v1209 = vsel %vm1199, %v1208, %v1207
        %vm1210 = vcmp.lt.s32.totalorder %v802, 0
        %v1211 = vsub.s32 0, %v802
        %v1212 = vsel %vm1210, %v1211, %v802
        %v1213 = vmul.u32.u64.compose %v1212, 2863311531
        %v1214 = vextract.low.u32 %v1213
        %v1215 = vextract.high.u32 %v1213
        %v1216 = vshrl.u32 %v1215, 4
        %v1217 = vmul.u32 %v1216, 24
        %v1218 = vsub.s32 %v1212, %v1217
        %v1219 = vsub.s32 0, %v1218
        %v1220 = vsel %vm1210, %v1219, %v1218
        %vm1221 = vcmp.lt.s32.totalorder %v803, 0
        %v1222 = vsub.s32 0, %v803
        %v1223 = vsel %vm1221, %v1222, %v803
        %v1224 = vmul.u32.u64.compose %v1223, 2863311531
        %v1225 = vextract.low.u32 %v1224
        %v1226 = vextract.high.u32 %v1224
        %v1227 = vshrl.u32 %v1226, 4
        %v1228 = vmul.u32 %v1227, 24
        %v1229 = vsub.s32 %v1223, %v1228
        %v1230 = vsub.s32 0, %v1229
        %v1231 = vsel %vm1221, %v1230, %v1229
        %vm1232 = vcmp.lt.s32.totalorder %v804, 0
        %v1233 = vsub.s32 0, %v804
        %v1234 = vsel %vm1232, %v1233, %v804
        %v1235 = vmul.u32.u64.compose %v1234, 2863311531
        %v1236 = vextract.low.u32 %v1235
        %v1237 = vextract.high.u32 %v1235
        %v1238 = vshrl.u32 %v1237, 4
        %v1239 = vmul.u32 %v1238, 24
        %v1240 = vsub.s32 %v1234, %v1239
        %v1241 = vsub.s32 0, %v1240
        %v1242 = vsel %vm1232, %v1241, %v1240
        %vm1243 = vcmp.lt.s32.totalorder %v805, 0
        %v1244 = vsub.s32 0, %v805
        %v1245 = vsel %vm1243, %v1244, %v805
        %v1246 = vmul.u32.u64.compose %v1245, 2863311531
        %v1247 = vextract.low.u32 %v1246
        %v1248 = vextract.high.u32 %v1246
        %v1249 = vshrl.u32 %v1248, 4
        %v1250 = vmul.u32 %v1249, 24
        %v1251 = vsub.s32 %v1245, %v1250
        %v1252 = vsub.s32 0, %v1251
        %v1253 = vsel %vm1243, %v1252, %v1251
        %vm1254 = vcmp.lt.s32.totalorder %v806, 0
        %v1255 = vsub.s32 0, %v806
        %v1256 = vsel %vm1254, %v1255, %v806
        %v1257 = vmul.u32.u64.compose %v1256, 2863311531
        %v1258 = vextract.low.u32 %v1257
        %v1259 = vextract.high.u32 %v1257
        %v1260 = vshrl.u32 %v1259, 4
        %v1261 = vmul.u32 %v1260, 24
        %v1262 = vsub.s32 %v1256, %v1261
        %v1263 = vsub.s32 0, %v1262
        %v1264 = vsel %vm1254, %v1263, %v1262
        %vm1265 = vcmp.lt.s32.totalorder %v807, 0
        %v1266 = vsub.s32 0, %v807
        %v1267 = vsel %vm1265, %v1266, %v807
        %v1268 = vmul.u32.u64.compose %v1267, 2863311531
        %v1269 = vextract.low.u32 %v1268
        %v1270 = vextract.high.u32 %v1268
        %v1271 = vshrl.u32 %v1270, 4
        %v1272 = vmul.u32 %v1271, 24
        %v1273 = vsub.s32 %v1267, %v1272
        %v1274 = vsub.s32 0, %v1273
        %v1275 = vsel %vm1265, %v1274, %v1273
        %vm1276 = vcmp.lt.s32.totalorder %v808, 0
        %v1277 = vsub.s32 0, %v808
        %v1278 = vsel %vm1276, %v1277, %v808
        %v1279 = vmul.u32.u64.compose %v1278, 2863311531
        %v1280 = vextract.low.u32 %v1279
        %v1281 = vextract.high.u32 %v1279
        %v1282 = vshrl.u32 %v1281, 4
        %v1283 = vmul.u32 %v1282, 24
        %v1284 = vsub.s32 %v1278, %v1283
        %v1285 = vsub.s32 0, %v1284
        %v1286 = vsel %vm1276, %v1285, %v1284
        %vm1287 = vcmp.lt.s32.totalorder %v809, 0
        %v1288 = vsub.s32 0, %v809
        %v1289 = vsel %vm1287, %v1288, %v809
        %v1290 = vmul.u32.u64.compose %v1289, 2863311531
        %v1291 = vextract.low.u32 %v1290
        %v1292 = vextract.high.u32 %v1290
        %v1293 = vshrl.u32 %v1292, 4
        %v1294 = vmul.u32 %v1293, 24
        %v1295 = vsub.s32 %v1289, %v1294
        %v1296 = vsub.s32 0, %v1295
        %v1297 = vsel %vm1287, %v1296, %v1295
        %vm1298 = vcmp.lt.s32.totalorder %v810, 0
        %v1299 = vsub.s32 0, %v810
        %v1300 = vsel %vm1298, %v1299, %v810
        %v1301 = vmul.u32.u64.compose %v1300, 2863311531
        %v1302 = vextract.low.u32 %v1301
        %v1303 = vextract.high.u32 %v1301
        %v1304 = vshrl.u32 %v1303, 4
        %v1305 = vmul.u32 %v1304, 24
        %v1306 = vsub.s32 %v1300, %v1305
        %v1307 = vsub.s32 0, %v1306
        %v1308 = vsel %vm1298, %v1307, %v1306
        %vm1309 = vcmp.lt.s32.totalorder %v811, 0
        %v1310 = vsub.s32 0, %v811
        %v1311 = vsel %vm1309, %v1310, %v811
        %v1312 = vmul.u32.u64.compose %v1311, 2863311531
        %v1313 = vextract.low.u32 %v1312
        %v1314 = vextract.high.u32 %v1312
        %v1315 = vshrl.u32 %v1314, 4
        %v1316 = vmul.u32 %v1315, 24
        %v1317 = vsub.s32 %v1311, %v1316
        %v1318 = vsub.s32 0, %v1317
        %v1319 = vsel %vm1309, %v1318, %v1317
        %vm1320 = vcmp.lt.s32.totalorder %v812, 0
        %v1321 = vsub.s32 0, %v812
        %v1322 = vsel %vm1320, %v1321, %v812
        %v1323 = vmul.u32.u64.compose %v1322, 2863311531
        %v1324 = vextract.low.u32 %v1323
        %v1325 = vextract.high.u32 %v1323
        %v1326 = vshrl.u32 %v1325, 4
        %v1327 = vmul.u32 %v1326, 24
        %v1328 = vsub.s32 %v1322, %v1327
        %v1329 = vsub.s32 0, %v1328
        %v1330 = vsel %vm1320, %v1329, %v1328
        %vm1331 = vcmp.lt.s32.totalorder %v813, 0
        %v1332 = vsub.s32 0, %v813
        %v1333 = vsel %vm1331, %v1332, %v813
        %v1334 = vmul.u32.u64.compose %v1333, 2863311531
        %v1335 = vextract.low.u32 %v1334
        %v1336 = vextract.high.u32 %v1334
        %v1337 = vshrl.u32 %v1336, 4
        %v1338 = vmul.u32 %v1337, 24
        %v1339 = vsub.s32 %v1333, %v1338
        %v1340 = vsub.s32 0, %v1339
        %v1341 = vsel %vm1331, %v1340, %v1339
        %vm1342 = vcmp.ne.s32.totalorder %v824, 0
        %vm1343 = vcmp.ne.s32.totalorder %v835, 0
        %vm1344 = vcmp.ne.s32.totalorder %v846, 0
        %vm1345 = vcmp.ne.s32.totalorder %v857, 0
        %vm1346 = vcmp.ne.s32.totalorder %v868, 0
        %vm1347 = vcmp.ne.s32.totalorder %v879, 0
        %vm1348 = vcmp.ne.s32.totalorder %v890, 0
        %vm1349 = vcmp.ne.s32.totalorder %v901, 0
        %vm1350 = vcmp.ne.s32.totalorder %v912, 0
        %vm1351 = vcmp.ne.s32.totalorder %v923, 0
        %vm1352 = vcmp.ne.s32.totalorder %v934, 0
        %vm1353 = vcmp.ne.s32.totalorder %v945, 0
        %vm1354 = vcmp.ne.s32.totalorder %v956, 0
        %vm1355 = vcmp.ne.s32.totalorder %v967, 0
        %vm1356 = vcmp.ne.s32.totalorder %v978, 0
        %vm1357 = vcmp.ne.s32.totalorder %v989, 0
        %vm1358 = vcmp.ne.s32.totalorder %v1000, 0
        %vm1359 = vcmp.ne.s32.totalorder %v1011, 0
        %vm1360 = vcmp.ne.s32.totalorder %v1022, 0
        %vm1361 = vcmp.ne.s32.totalorder %v1033, 0
        %vm1362 = vcmp.ne.s32.totalorder %v1044, 0
        %vm1363 = vcmp.ne.s32.totalorder %v1055, 0
        %vm1364 = vcmp.ne.s32.totalorder %v1066, 0
        %vm1365 = vcmp.ne.s32.totalorder %v1077, 0
        %vm1366 = vcmp.ne.s32.totalorder %v1088, 0
        %vm1367 = vcmp.ne.s32.totalorder %v1099, 0
        %vm1368 = vcmp.ne.s32.totalorder %v1110, 0
        %vm1369 = vcmp.ne.s32.totalorder %v1121, 0
        %vm1370 = vcmp.ne.s32.totalorder %v1132, 0
        %vm1371 = vcmp.ne.s32.totalorder %v1143, 0
        %vm1372 = vcmp.ne.s32.totalorder %v1154, 0
        %vm1373 = vcmp.ne.s32.totalorder %v1165, 0
        %vm1374 = vcmp.ne.s32.totalorder %v1176, 0
        %vm1375 = vcmp.ne.s32.totalorder %v1187, 0
        %vm1376 = vcmp.ne.s32.totalorder %v1198, 0
        %vm1377 = vcmp.ne.s32.totalorder %v1209, 0
        %vm1378 = vcmp.ne.s32.totalorder %v1220, 0
        %vm1379 = vcmp.ne.s32.totalorder %v1231, 0
        %vm1380 = vcmp.ne.s32.totalorder %v1242, 0
        %vm1381 = vcmp.ne.s32.totalorder %v1253, 0
        %vm1382 = vcmp.ne.s32.totalorder %v1264, 0
        %vm1383 = vcmp.ne.s32.totalorder %v1275, 0
        %vm1384 = vcmp.ne.s32.totalorder %v1286, 0
        %vm1385 = vcmp.ne.s32.totalorder %v1297, 0
        %vm1386 = vcmp.ne.s32.totalorder %v1308, 0
        %vm1387 = vcmp.ne.s32.totalorder %v1319, 0
        %vm1388 = vcmp.ne.s32.totalorder %v1330, 0
        %vm1389 = vcmp.ne.s32.totalorder %v1341, 0
        %vm1390 = vcmp.lt.s32.totalorder %v824, 0
        %vm1391 = vcmp.lt.s32.totalorder %v835, 0
        %vm1392 = vcmp.lt.s32.totalorder %v846, 0
        %vm1393 = vcmp.lt.s32.totalorder %v857, 0
        %vm1394 = vcmp.lt.s32.totalorder %v868, 0
        %vm1395 = vcmp.lt.s32.totalorder %v879, 0
        %vm1396 = vcmp.lt.s32.totalorder %v890, 0
        %vm1397 = vcmp.lt.s32.totalorder %v901, 0
        %vm1398 = vcmp.lt.s32.totalorder %v912, 0
        %vm1399 = vcmp.lt.s32.totalorder %v923, 0
        %vm1400 = vcmp.lt.s32.totalorder %v934, 0
        %vm1401 = vcmp.lt.s32.totalorder %v945, 0
        %vm1402 = vcmp.lt.s32.totalorder %v956, 0
        %vm1403 = vcmp.lt.s32.totalorder %v967, 0
        %vm1404 = vcmp.lt.s32.totalorder %v978, 0
        %vm1405 = vcmp.lt.s32.totalorder %v989, 0
        %vm1406 = vcmp.lt.s32.totalorder %v1000, 0
        %vm1407 = vcmp.lt.s32.totalorder %v1011, 0
        %vm1408 = vcmp.lt.s32.totalorder %v1022, 0
        %vm1409 = vcmp.lt.s32.totalorder %v1033, 0
        %vm1410 = vcmp.lt.s32.totalorder %v1044, 0
        %vm1411 = vcmp.lt.s32.totalorder %v1055, 0
        %vm1412 = vcmp.lt.s32.totalorder %v1066, 0
        %vm1413 = vcmp.lt.s32.totalorder %v1077, 0
        %vm1414 = vcmp.lt.s32.totalorder %v1088, 0
        %vm1415 = vcmp.lt.s32.totalorder %v1099, 0
        %vm1416 = vcmp.lt.s32.totalorder %v1110, 0
        %vm1417 = vcmp.lt.s32.totalorder %v1121, 0
        %vm1418 = vcmp.lt.s32.totalorder %v1132, 0
        %vm1419 = vcmp.lt.s32.totalorder %v1143, 0
        %vm1420 = vcmp.lt.s32.totalorder %v1154, 0
        %vm1421 = vcmp.lt.s32.totalorder %v1165, 0
        %vm1422 = vcmp.lt.s32.totalorder %v1176, 0
        %vm1423 = vcmp.lt.s32.totalorder %v1187, 0
        %vm1424 = vcmp.lt.s32.totalorder %v1198, 0
        %vm1425 = vcmp.lt.s32.totalorder %v1209, 0
        %vm1426 = vcmp.lt.s32.totalorder %v1220, 0
        %vm1427 = vcmp.lt.s32.totalorder %v1231, 0
        %vm1428 = vcmp.lt.s32.totalorder %v1242, 0
        %vm1429 = vcmp.lt.s32.totalorder %v1253, 0
        %vm1430 = vcmp.lt.s32.totalorder %v1264, 0
        %vm1431 = vcmp.lt.s32.totalorder %v1275, 0
        %vm1432 = vcmp.lt.s32.totalorder %v1286, 0
        %vm1433 = vcmp.lt.s32.totalorder %v1297, 0
        %vm1434 = vcmp.lt.s32.totalorder %v1308, 0
        %vm1435 = vcmp.lt.s32.totalorder %v1319, 0
        %vm1436 = vcmp.lt.s32.totalorder %v1330, 0
        %vm1437 = vcmp.lt.s32.totalorder %v1341, 0
        %vm1438 = vmand %vm1390, %vm1342
        %vm1439 = vmand %vm1391, %vm1343
        %vm1440 = vmand %vm1392, %vm1344
        %vm1441 = vmand %vm1393, %vm1345
        %vm1442 = vmand %vm1394, %vm1346
        %vm1443 = vmand %vm1395, %vm1347
        %vm1444 = vmand %vm1396, %vm1348
        %vm1445 = vmand %vm1397, %vm1349
        %vm1446 = vmand %vm1398, %vm1350
        %vm1447 = vmand %vm1399, %vm1351
        %vm1448 = vmand %vm1400, %vm1352
        %vm1449 = vmand %vm1401, %vm1353
        %vm1450 = vmand %vm1402, %vm1354
        %vm1451 = vmand %vm1403, %vm1355
        %vm1452 = vmand %vm1404, %vm1356
        %vm1453 = vmand %vm1405, %vm1357
        %vm1454 = vmand %vm1406, %vm1358
        %vm1455 = vmand %vm1407, %vm1359
        %vm1456 = vmand %vm1408, %vm1360
        %vm1457 = vmand %vm1409, %vm1361
        %vm1458 = vmand %vm1410, %vm1362
        %vm1459 = vmand %vm1411, %vm1363
        %vm1460 = vmand %vm1412, %vm1364
        %vm1461 = vmand %vm1413, %vm1365
        %vm1462 = vmand %vm1414, %vm1366
        %vm1463 = vmand %vm1415, %vm1367
        %vm1464 = vmand %vm1416, %vm1368
        %vm1465 = vmand %vm1417, %vm1369
        %vm1466 = vmand %vm1418, %vm1370
        %vm1467 = vmand %vm1419, %vm1371
        %vm1468 = vmand %vm1420, %vm1372
        %vm1469 = vmand %vm1421, %vm1373
        %vm1470 = vmand %vm1422, %vm1374
        %vm1471 = vmand %vm1423, %vm1375
        %vm1472 = vmand %vm1424, %vm1376
        %vm1473 = vmand %vm1425, %vm1377
        %vm1474 = vmand %vm1426, %vm1378
        %vm1475 = vmand %vm1427, %vm1379
        %vm1476 = vmand %vm1428, %vm1380
        %vm1477 = vmand %vm1429, %vm1381
        %vm1478 = vmand %vm1430, %vm1382
        %vm1479 = vmand %vm1431, %vm1383
        %vm1480 = vmand %vm1432, %vm1384
        %vm1481 = vmand %vm1433, %vm1385
        %vm1482 = vmand %vm1434, %vm1386
        %vm1483 = vmand %vm1435, %vm1387
        %vm1484 = vmand %vm1436, %vm1388
        %vm1485 = vmand %vm1437, %vm1389
        %v1486 = vadd.s32 %v824, 24
        %v1487 = vadd.s32 %v835, 24
        %v1488 = vadd.s32 %v846, 24
        %v1489 = vadd.s32 %v857, 24
        %v1490 = vadd.s32 %v868, 24
        %v1491 = vadd.s32 %v879, 24
        %v1492 = vadd.s32 %v890, 24
        %v1493 = vadd.s32 %v901, 24
        %v1494 = vadd.s32 %v912, 24
        %v1495 = vadd.s32 %v923, 24
        %v1496 = vadd.s32 %v934, 24
        %v1497 = vadd.s32 %v945, 24
        %v1498 = vadd.s32 %v956, 24
        %v1499 = vadd.s32 %v967, 24
        %v1500 = vadd.s32 %v978, 24
        %v1501 = vadd.s32 %v989, 24
        %v1502 = vadd.s32 %v1000, 24
        %v1503 = vadd.s32 %v1011, 24
        %v1504 = vadd.s32 %v1022, 24
        %v1505 = vadd.s32 %v1033, 24
        %v1506 = vadd.s32 %v1044, 24
        %v1507 = vadd.s32 %v1055, 24
        %v1508 = vadd.s32 %v1066, 24
        %v1509 = vadd.s32 %v1077, 24
        %v1510 = vadd.s32 %v1088, 24
        %v1511 = vadd.s32 %v1099, 24
        %v1512 = vadd.s32 %v1110, 24
        %v1513 = vadd.s32 %v1121, 24
        %v1514 = vadd.s32 %v1132, 24
        %v1515 = vadd.s32 %v1143, 24
        %v1516 = vadd.s32 %v1154, 24
        %v1517 = vadd.s32 %v1165, 24
        %v1518 = vadd.s32 %v1176, 24
        %v1519 = vadd.s32 %v1187, 24
        %v1520 = vadd.s32 %v1198, 24
        %v1521 = vadd.s32 %v1209, 24
        %v1522 = vadd.s32 %v1220, 24
        %v1523 = vadd.s32 %v1231, 24
        %v1524 = vadd.s32 %v1242, 24
        %v1525 = vadd.s32 %v1253, 24
        %v1526 = vadd.s32 %v1264, 24
        %v1527 = vadd.s32 %v1275, 24
        %v1528 = vadd.s32 %v1286, 24
        %v1529 = vadd.s32 %v1297, 24
        %v1530 = vadd.s32 %v1308, 24
        %v1531 = vadd.s32 %v1319, 24
        %v1532 = vadd.s32 %v1330, 24
        %v1533 = vadd.s32 %v1341, 24
        %v1534 = vsel %vm1438, %v1486, %v824
        %v1535 = vsel %vm1439, %v1487, %v835
        %v1536 = vsel %vm1440, %v1488, %v846
        %v1537 = vsel %vm1441, %v1489, %v857
        %v1538 = vsel %vm1442, %v1490, %v868
        %v1539 = vsel %vm1443, %v1491, %v879
        %v1540 = vsel %vm1444, %v1492, %v890
        %v1541 = vsel %vm1445, %v1493, %v901
        %v1542 = vsel %vm1446, %v1494, %v912
        %v1543 = vsel %vm1447, %v1495, %v923
        %v1544 = vsel %vm1448, %v1496, %v934
        %v1545 = vsel %vm1449, %v1497, %v945
        %v1546 = vsel %vm1450, %v1498, %v956
        %v1547 = vsel %vm1451, %v1499, %v967
        %v1548 = vsel %vm1452, %v1500, %v978
        %v1549 = vsel %vm1453, %v1501, %v989
        %v1550 = vsel %vm1454, %v1502, %v1000
        %v1551 = vsel %vm1455, %v1503, %v1011
        %v1552 = vsel %vm1456, %v1504, %v1022
        %v1553 = vsel %vm1457, %v1505, %v1033
        %v1554 = vsel %vm1458, %v1506, %v1044
        %v1555 = vsel %vm1459, %v1507, %v1055
        %v1556 = vsel %vm1460, %v1508, %v1066
        %v1557 = vsel %vm1461, %v1509, %v1077
        %v1558 = vsel %vm1462, %v1510, %v1088
        %v1559 = vsel %vm1463, %v1511, %v1099
        %v1560 = vsel %vm1464, %v1512, %v1110
        %v1561 = vsel %vm1465, %v1513, %v1121
        %v1562 = vsel %vm1466, %v1514, %v1132
        %v1563 = vsel %vm1467, %v1515, %v1143
        %v1564 = vsel %vm1468, %v1516, %v1154
        %v1565 = vsel %vm1469, %v1517, %v1165
        %v1566 = vsel %vm1470, %v1518, %v1176
        %v1567 = vsel %vm1471, %v1519, %v1187
        %v1568 = vsel %vm1472, %v1520, %v1198
        %v1569 = vsel %vm1473, %v1521, %v1209
        %v1570 = vsel %vm1474, %v1522, %v1220
        %v1571 = vsel %vm1475, %v1523, %v1231
        %v1572 = vsel %vm1476, %v1524, %v1242
        %v1573 = vsel %vm1477, %v1525, %v1253
        %v1574 = vsel %vm1478, %v1526, %v1264
        %v1575 = vsel %vm1479, %v1527, %v1275
        %v1576 = vsel %vm1480, %v1528, %v1286
        %v1577 = vsel %vm1481, %v1529, %v1297
        %v1578 = vsel %vm1482, %v1530, %v1308
        %v1579 = vsel %vm1483, %v1531, %v1319
        %v1580 = vsel %vm1484, %v1532, %v1330
        %v1581 = vsel %vm1485, %v1533, %v1341
        %vm1582 = vcmp.lt.s32.totalorder %v1534, 16
        %vm1583 = vcmp.lt.s32.totalorder %v1535, 16
        %vm1584 = vcmp.lt.s32.totalorder %v1536, 16
        %vm1585 = vcmp.lt.s32.totalorder %v1537, 16
        %vm1586 = vcmp.lt.s32.totalorder %v1538, 16
        %vm1587 = vcmp.lt.s32.totalorder %v1539, 16
        %vm1588 = vcmp.lt.s32.totalorder %v1540, 16
        %vm1589 = vcmp.lt.s32.totalorder %v1541, 16
        %vm1590 = vcmp.lt.s32.totalorder %v1542, 16
        %vm1591 = vcmp.lt.s32.totalorder %v1543, 16
        %vm1592 = vcmp.lt.s32.totalorder %v1544, 16
        %vm1593 = vcmp.lt.s32.totalorder %v1545, 16
        %vm1594 = vcmp.lt.s32.totalorder %v1546, 16
        %vm1595 = vcmp.lt.s32.totalorder %v1547, 16
        %vm1596 = vcmp.lt.s32.totalorder %v1548, 16
        %vm1597 = vcmp.lt.s32.totalorder %v1549, 16
        %vm1598 = vcmp.lt.s32.totalorder %v1550, 16
        %vm1599 = vcmp.lt.s32.totalorder %v1551, 16
        %vm1600 = vcmp.lt.s32.totalorder %v1552, 16
        %vm1601 = vcmp.lt.s32.totalorder %v1553, 16
        %vm1602 = vcmp.lt.s32.totalorder %v1554, 16
        %vm1603 = vcmp.lt.s32.totalorder %v1555, 16
        %vm1604 = vcmp.lt.s32.totalorder %v1556, 16
        %vm1605 = vcmp.lt.s32.totalorder %v1557, 16
        %vm1606 = vcmp.lt.s32.totalorder %v1558, 16
        %vm1607 = vcmp.lt.s32.totalorder %v1559, 16
        %vm1608 = vcmp.lt.s32.totalorder %v1560, 16
        %vm1609 = vcmp.lt.s32.totalorder %v1561, 16
        %vm1610 = vcmp.lt.s32.totalorder %v1562, 16
        %vm1611 = vcmp.lt.s32.totalorder %v1563, 16
        %vm1612 = vcmp.lt.s32.totalorder %v1564, 16
        %vm1613 = vcmp.lt.s32.totalorder %v1565, 16
        %vm1614 = vcmp.lt.s32.totalorder %v1566, 16
        %vm1615 = vcmp.lt.s32.totalorder %v1567, 16
        %vm1616 = vcmp.lt.s32.totalorder %v1568, 16
        %vm1617 = vcmp.lt.s32.totalorder %v1569, 16
        %vm1618 = vcmp.lt.s32.totalorder %v1570, 16
        %vm1619 = vcmp.lt.s32.totalorder %v1571, 16
        %vm1620 = vcmp.lt.s32.totalorder %v1572, 16
        %vm1621 = vcmp.lt.s32.totalorder %v1573, 16
        %vm1622 = vcmp.lt.s32.totalorder %v1574, 16
        %vm1623 = vcmp.lt.s32.totalorder %v1575, 16
        %vm1624 = vcmp.lt.s32.totalorder %v1576, 16
        %vm1625 = vcmp.lt.s32.totalorder %v1577, 16
        %vm1626 = vcmp.lt.s32.totalorder %v1578, 16
        %vm1627 = vcmp.lt.s32.totalorder %v1579, 16
        %vm1628 = vcmp.lt.s32.totalorder %v1580, 16
        %vm1629 = vcmp.lt.s32.totalorder %v1581, 16
        %v1630 = vsel %vm1582, %v717, 0.0
        %v1631 = vsel %vm1583, %v718, 0.0
        %v1632 = vsel %vm1584, %v719, 0.0
        %v1633 = vsel %vm1585, %v720, 0.0
        %v1634 = vsel %vm1586, %v721, 0.0
        %v1635 = vsel %vm1587, %v722, 0.0
        %v1636 = vsel %vm1588, %v723, 0.0
        %v1637 = vsel %vm1589, %v724, 0.0
        %v1638 = vsel %vm1590, %v725, 0.0
        %v1639 = vsel %vm1591, %v726, 0.0
        %v1640 = vsel %vm1592, %v727, 0.0
        %v1641 = vsel %vm1593, %v728, 0.0
        %v1642 = vsel %vm1594, %v729, 0.0
        %v1643 = vsel %vm1595, %v730, 0.0
        %v1644 = vsel %vm1596, %v731, 0.0
        %v1645 = vsel %vm1597, %v732, 0.0
        %v1646 = vsel %vm1598, %v733, 0.0
        %v1647 = vsel %vm1599, %v734, 0.0
        %v1648 = vsel %vm1600, %v735, 0.0
        %v1649 = vsel %vm1601, %v736, 0.0
        %v1650 = vsel %vm1602, %v737, 0.0
        %v1651 = vsel %vm1603, %v738, 0.0
        %v1652 = vsel %vm1604, %v739, 0.0
        %v1653 = vsel %vm1605, %v740, 0.0
        %v1654 = vsel %vm1606, %v741, 0.0
        %v1655 = vsel %vm1607, %v742, 0.0
        %v1656 = vsel %vm1608, %v743, 0.0
        %v1657 = vsel %vm1609, %v744, 0.0
        %v1658 = vsel %vm1610, %v745, 0.0
        %v1659 = vsel %vm1611, %v746, 0.0
        %v1660 = vsel %vm1612, %v747, 0.0
        %v1661 = vsel %vm1613, %v748, 0.0
        %v1662 = vsel %vm1614, %v749, 0.0
        %v1663 = vsel %vm1615, %v750, 0.0
        %v1664 = vsel %vm1616, %v751, 0.0
        %v1665 = vsel %vm1617, %v752, 0.0
        %v1666 = vsel %vm1618, %v753, 0.0
        %v1667 = vsel %vm1619, %v754, 0.0
        %v1668 = vsel %vm1620, %v755, 0.0
        %v1669 = vsel %vm1621, %v756, 0.0
        %v1670 = vsel %vm1622, %v757, 0.0
        %v1671 = vsel %vm1623, %v758, 0.0
        %v1672 = vsel %vm1624, %v759, 0.0
        %v1673 = vsel %vm1625, %v760, 0.0
        %v1674 = vsel %vm1626, %v761, 0.0
        %v1675 = vsel %vm1627, %v762, 0.0
        %v1676 = vsel %vm1628, %v763, 0.0
        %v1677 = vsel %vm1629, %v764, 0.0
        %1678 = vst [vmem:[#allocation2] sm:$0xff] 0.0
        %1679 = vst [vmem:[#allocation2 + $0x8] sm:$0xff] 0.0
        %1680 = vst [vmem:[#allocation2 + $0x10] sm:$0xff] 0.0
        %1681 = vst [vmem:[#allocation2 + $0x18] sm:$0x1] 0.0
        %1682 = vst [vmem:[#allocation2 + $0x199] sm:$0xff] 0.0
        %1683 = vst [vmem:[#allocation2 + $0x1a1] sm:$0xff] 0.0
        %1684 = vst [vmem:[#allocation2 + $0x1a9] sm:$0xff] 0.0
        %1685 = vst [vmem:[#allocation2 + $0x1b1] sm:$0xff] 0.0
        %1686 = vst [vmem:[#allocation2 + $0x1b9] sm:$0xff] 0.0
        %1687 = vst [vmem:[#allocation2 + $0x1c1] sm:$0x7f] 0.0
        %1688 = vst [vmem:[#allocation2 + $0x19] sm:$0xff] %v1630
        %1689 = vst [vmem:[#allocation2 + $0x21] sm:$0xff] %v1631
        %1690 = vst [vmem:[#allocation2 + $0x29] sm:$0xff] %v1632
        %1691 = vst [vmem:[#allocation2 + $0x31] sm:$0xff] %v1633
        %1692 = vst [vmem:[#allocation2 + $0x39] sm:$0xff] %v1634
        %1693 = vst [vmem:[#allocation2 + $0x41] sm:$0xff] %v1635
        %1694 = vst [vmem:[#allocation2 + $0x49] sm:$0xff] %v1636
        %1695 = vst [vmem:[#allocation2 + $0x51] sm:$0xff] %v1637
        %1696 = vst [vmem:[#allocation2 + $0x59] sm:$0xff] %v1638
        %1697 = vst [vmem:[#allocation2 + $0x61] sm:$0xff] %v1639
        %1698 = vst [vmem:[#allocation2 + $0x69] sm:$0xff] %v1640
        %1699 = vst [vmem:[#allocation2 + $0x71] sm:$0xff] %v1641
        %1700 = vst [vmem:[#allocation2 + $0x79] sm:$0xff] %v1642
        %1701 = vst [vmem:[#allocation2 + $0x81] sm:$0xff] %v1643
        %1702 = vst [vmem:[#allocation2 + $0x89] sm:$0xff] %v1644
        %1703 = vst [vmem:[#allocation2 + $0x91] sm:$0xff] %v1645
        %1704 = vst [vmem:[#allocation2 + $0x99] sm:$0xff] %v1646
        %1705 = vst [vmem:[#allocation2 + $0xa1] sm:$0xff] %v1647
        %1706 = vst [vmem:[#allocation2 + $0xa9] sm:$0xff] %v1648
        %1707 = vst [vmem:[#allocation2 + $0xb1] sm:$0xff] %v1649
        %1708 = vst [vmem:[#allocation2 + $0xb9] sm:$0xff] %v1650
        %1709 = vst [vmem:[#allocation2 + $0xc1] sm:$0xff] %v1651
        %1710 = vst [vmem:[#allocation2 + $0xc9] sm:$0xff] %v1652
        %1711 = vst [vmem:[#allocation2 + $0xd1] sm:$0xff] %v1653
        %1712 = vst [vmem:[#allocation2 + $0xd9] sm:$0xff] %v1654
        %1713 = vst [vmem:[#allocation2 + $0xe1] sm:$0xff] %v1655
        %1714 = vst [vmem:[#allocation2 + $0xe9] sm:$0xff] %v1656
        %1715 = vst [vmem:[#allocation2 + $0xf1] sm:$0xff] %v1657
        %1716 = vst [vmem:[#allocation2 + $0xf9] sm:$0xff] %v1658
        %1717 = vst [vmem:[#allocation2 + $0x101] sm:$0xff] %v1659
        %1718 = vst [vmem:[#allocation2 + $0x109] sm:$0xff] %v1660
        %1719 = vst [vmem:[#allocation2 + $0x111] sm:$0xff] %v1661
        %1720 = vst [vmem:[#allocation2 + $0x119] sm:$0xff] %v1662
        %1721 = vst [vmem:[#allocation2 + $0x121] sm:$0xff] %v1663
        %1722 = vst [vmem:[#allocation2 + $0x129] sm:$0xff] %v1664
        %1723 = vst [vmem:[#allocation2 + $0x131] sm:$0xff] %v1665
        %1724 = vst [vmem:[#allocation2 + $0x139] sm:$0xff] %v1666
        %1725 = vst [vmem:[#allocation2 + $0x141] sm:$0xff] %v1667
        %1726 = vst [vmem:[#allocation2 + $0x149] sm:$0xff] %v1668
        %1727 = vst [vmem:[#allocation2 + $0x151] sm:$0xff] %v1669
        %1728 = vst [vmem:[#allocation2 + $0x159] sm:$0xff] %v1670
        %1729 = vst [vmem:[#allocation2 + $0x161] sm:$0xff] %v1671
        %1730 = vst [vmem:[#allocation2 + $0x169] sm:$0xff] %v1672
        %1731 = vst [vmem:[#allocation2 + $0x171] sm:$0xff] %v1673
        %1732 = vst [vmem:[#allocation2 + $0x179] sm:$0xff] %v1674
        %1733 = vst [vmem:[#allocation2 + $0x181] sm:$0xff] %v1675
        %1734 = vst [vmem:[#allocation2 + $0x189] sm:$0xff] %v1676
        %1735 = vst [vmem:[#allocation2 + $0x191] sm:$0xff] %v1677
        %v1736 = vld [vmem:[#allocation2] sm:$0xff]
        %v1737 = vld [vmem:[#allocation2 + $0x8] sm:$0xff]
        %v1738 = vld [vmem:[#allocation2 + $0x10] sm:$0xff]
        %v1739 = vld [vmem:[#allocation2 + $0x18] sm:$0xff]
        %v1740 = vld [vmem:[#allocation2 + $0x20] sm:$0xff]
        %v1741 = vld [vmem:[#allocation2 + $0x28] sm:$0xff]
        %v1742 = vld [vmem:[#allocation2 + $0x30] sm:$0xff]
        %v1743 = vld [vmem:[#allocation2 + $0x38] sm:$0xff]
        %v1744 = vld [vmem:[#allocation2 + $0x40] sm:$0xff]
        %v1745 = vld [vmem:[#allocation2 + $0x48] sm:$0xff]
        %v1746 = vld [vmem:[#allocation2 + $0x50] sm:$0xff]
        %v1747 = vld [vmem:[#allocation2 + $0x58] sm:$0xff]
        %v1748 = vld [vmem:[#allocation2 + $0x60] sm:$0xff]
        %v1749 = vld [vmem:[#allocation2 + $0x68] sm:$0xff]
        %v1750 = vld [vmem:[#allocation2 + $0x70] sm:$0xff]
        %v1751 = vld [vmem:[#allocation2 + $0x78] sm:$0xff]
        %v1752 = vld [vmem:[#allocation2 + $0x80] sm:$0xff]
        %v1753 = vld [vmem:[#allocation2 + $0x88] sm:$0xff]
        %v1754 = vld [vmem:[#allocation2 + $0x90] sm:$0xff]
        %v1755 = vld [vmem:[#allocation2 + $0x98] sm:$0xff]
        %v1756 = vld [vmem:[#allocation2 + $0xa0] sm:$0xff]
        %v1757 = vld [vmem:[#allocation2 + $0xa8] sm:$0xff]
        %v1758 = vld [vmem:[#allocation2 + $0xb0] sm:$0xff]
        %v1759 = vld [vmem:[#allocation2 + $0xb8] sm:$0xff]
        %v1760 = vld [vmem:[#allocation2 + $0xc0] sm:$0xff]
        %v1761 = vld [vmem:[#allocation2 + $0xc8] sm:$0xff]
        %v1762 = vld [vmem:[#allocation2 + $0xd0] sm:$0xff]
        %v1763 = vld [vmem:[#allocation2 + $0xd8] sm:$0xff]
        %v1764 = vld [vmem:[#allocation2 + $0xe0] sm:$0xff]
        %v1765 = vld [vmem:[#allocation2 + $0xe8] sm:$0xff]
        %v1766 = vld [vmem:[#allocation2 + $0xf0] sm:$0xff]
        %v1767 = vld [vmem:[#allocation2 + $0xf8] sm:$0xff]
        %v1768 = vld [vmem:[#allocation2 + $0x100] sm:$0xff]
        %v1769 = vld [vmem:[#allocation2 + $0x108] sm:$0xff]
        %v1770 = vld [vmem:[#allocation2 + $0x110] sm:$0xff]
        %v1771 = vld [vmem:[#allocation2 + $0x118] sm:$0xff]
        %v1772 = vld [vmem:[#allocation2 + $0x120] sm:$0xff]
        %v1773 = vld [vmem:[#allocation2 + $0x128] sm:$0xff]
        %v1774 = vld [vmem:[#allocation2 + $0x130] sm:$0xff]
        %v1775 = vld [vmem:[#allocation2 + $0x138] sm:$0xff]
        %v1776 = vld [vmem:[#allocation2 + $0x140] sm:$0xff]
        %v1777 = vld [vmem:[#allocation2 + $0x148] sm:$0xff]
        %v1778 = vld [vmem:[#allocation2 + $0x150] sm:$0xff]
        %v1779 = vld [vmem:[#allocation2 + $0x158] sm:$0xff]
        %v1780 = vld [vmem:[#allocation2 + $0x160] sm:$0xff]
        %v1781 = vld [vmem:[#allocation2 + $0x168] sm:$0xff]
        %v1782 = vld [vmem:[#allocation2 + $0x170] sm:$0xff]
        %v1783 = vld [vmem:[#allocation2 + $0x178] sm:$0xff]
        %v1784 = vld [vmem:[#allocation8] sm:$0xff]
        %v1785 = vld [vmem:[#allocation8 + $0x8] sm:$0xff]
        %v1786 = vld [vmem:[#allocation8 + $0x10] sm:$0xff]
        %v1787 = vld [vmem:[#allocation8 + $0x18] sm:$0xff]
        %v1788 = vld [vmem:[#allocation8 + $0x20] sm:$0xff]
        %v1789 = vld [vmem:[#allocation8 + $0x28] sm:$0xff]
        %v1790 = vld [vmem:[#allocation8 + $0x30] sm:$0xff]
        %v1791 = vld [vmem:[#allocation8 + $0x38] sm:$0xff]
        %v1792 = vld [vmem:[#allocation8 + $0x40] sm:$0xff]
        %v1793 = vld [vmem:[#allocation8 + $0x48] sm:$0xff]
        %v1794 = vld [vmem:[#allocation8 + $0x50] sm:$0xff]
        %v1795 = vld [vmem:[#allocation8 + $0x58] sm:$0xff]
        %v1796 = vld [vmem:[#allocation8 + $0x60] sm:$0xff]
        %v1797 = vld [vmem:[#allocation8 + $0x68] sm:$0xff]
        %v1798 = vld [vmem:[#allocation8 + $0x70] sm:$0xff]
        %v1799 = vld [vmem:[#allocation8 + $0x78] sm:$0xff]
        %v1800 = vld [vmem:[#allocation2 + $0x1] sm:$0xff]
        %v1801 = vld [vmem:[#allocation2 + $0x9] sm:$0xff]
        %v1802 = vld [vmem:[#allocation2 + $0x11] sm:$0xff]
        %v1803 = vld [vmem:[#allocation2 + $0x19] sm:$0xff]
        %v1804 = vld [vmem:[#allocation2 + $0x21] sm:$0xff]
        %v1805 = vld [vmem:[#allocation2 + $0x29] sm:$0xff]
        %v1806 = vld [vmem:[#allocation2 + $0x31] sm:$0xff]
        %v1807 = vld [vmem:[#allocation2 + $0x39] sm:$0xff]
        %v1808 = vld [vmem:[#allocation2 + $0x41] sm:$0xff]
        %v1809 = vld [vmem:[#allocation2 + $0x49] sm:$0xff]
        %v1810 = vld [vmem:[#allocation2 + $0x51] sm:$0xff]
        %v1811 = vld [vmem:[#allocation2 + $0x59] sm:$0xff]
        %v1812 = vld [vmem:[#allocation2 + $0x61] sm:$0xff]
        %v1813 = vld [vmem:[#allocation2 + $0x69] sm:$0xff]
        %v1814 = vld [vmem:[#allocation2 + $0x71] sm:$0xff]
        %v1815 = vld [vmem:[#allocation2 + $0x79] sm:$0xff]
        %v1816 = vld [vmem:[#allocation2 + $0x81] sm:$0xff]
        %v1817 = vld [vmem:[#allocation2 + $0x89] sm:$0xff]
        %v1818 = vld [vmem:[#allocation2 + $0x91] sm:$0xff]
        %v1819 = vld [vmem:[#allocation2 + $0x99] sm:$0xff]
        %v1820 = vld [vmem:[#allocation2 + $0xa1] sm:$0xff]
        %v1821 = vld [vmem:[#allocation2 + $0xa9] sm:$0xff]
        %v1822 = vld [vmem:[#allocation2 + $0xb1] sm:$0xff]
        %v1823 = vld [vmem:[#allocation2 + $0xb9] sm:$0xff]
        %v1824 = vld [vmem:[#allocation2 + $0xc1] sm:$0xff]
        %v1825 = vld [vmem:[#allocation2 + $0xc9] sm:$0xff]
        %v1826 = vld [vmem:[#allocation2 + $0xd1] sm:$0xff]
        %v1827 = vld [vmem:[#allocation2 + $0xd9] sm:$0xff]
        %v1828 = vld [vmem:[#allocation2 + $0xe1] sm:$0xff]
        %v1829 = vld [vmem:[#allocation2 + $0xe9] sm:$0xff]
        %v1830 = vld [vmem:[#allocation2 + $0xf1] sm:$0xff]
        %v1831 = vld [vmem:[#allocation2 + $0xf9] sm:$0xff]
        %v1832 = vld [vmem:[#allocation2 + $0x101] sm:$0xff]
        %v1833 = vld [vmem:[#allocation2 + $0x109] sm:$0xff]
        %v1834 = vld [vmem:[#allocation2 + $0x111] sm:$0xff]
        %v1835 = vld [vmem:[#allocation2 + $0x119] sm:$0xff]
        %v1836 = vld [vmem:[#allocation2 + $0x121] sm:$0xff]
        %v1837 = vld [vmem:[#allocation2 + $0x129] sm:$0xff]
        %v1838 = vld [vmem:[#allocation2 + $0x131] sm:$0xff]
        %v1839 = vld [vmem:[#allocation2 + $0x139] sm:$0xff]
        %v1840 = vld [vmem:[#allocation2 + $0x141] sm:$0xff]
        %v1841 = vld [vmem:[#allocation2 + $0x149] sm:$0xff]
        %v1842 = vld [vmem:[#allocation2 + $0x151] sm:$0xff]
        %v1843 = vld [vmem:[#allocation2 + $0x159] sm:$0xff]
        %v1844 = vld [vmem:[#allocation2 + $0x161] sm:$0xff]
        %v1845 = vld [vmem:[#allocation2 + $0x169] sm:$0xff]
        %v1846 = vld [vmem:[#allocation2 + $0x171] sm:$0xff]
        %v1847 = vld [vmem:[#allocation2 + $0x179] sm:$0xff]
        %s1848 = scalar_lea.vmem [#allocation8], 128
        %v1849 = vld [vmem:[%s1848] sm:$0xff]
        %v1850 = vld [vmem:[%s1848 + $0x8] sm:$0xff]
        %v1851 = vld [vmem:[%s1848 + $0x10] sm:$0xff]
        %v1852 = vld [vmem:[%s1848 + $0x18] sm:$0xff]
        %v1853 = vld [vmem:[%s1848 + $0x20] sm:$0xff]
        %v1854 = vld [vmem:[%s1848 + $0x28] sm:$0xff]
        %v1855 = vld [vmem:[%s1848 + $0x30] sm:$0xff]
        %v1856 = vld [vmem:[%s1848 + $0x38] sm:$0xff]
        %v1857 = vld [vmem:[%s1848 + $0x40] sm:$0xff]
        %v1858 = vld [vmem:[%s1848 + $0x48] sm:$0xff]
        %v1859 = vld [vmem:[%s1848 + $0x50] sm:$0xff]
        %v1860 = vld [vmem:[%s1848 + $0x58] sm:$0xff]
        %v1861 = vld [vmem:[%s1848 + $0x60] sm:$0xff]
        %v1862 = vld [vmem:[%s1848 + $0x68] sm:$0xff]
        %v1863 = vld [vmem:[%s1848 + $0x70] sm:$0xff]
        %v1864 = vld [vmem:[%s1848 + $0x78] sm:$0xff]
        %1865 = vmatprep.subr.mxu0 0.0
        %1866 = vmatpush1.msra.mxu0 %v1849
        %1867 = vmatprep.subr.mxu0 0.0
        %1868 = vmatpush1.msra.mxu0 %v1850
        %1869 = vmatprep.subr.mxu0 0.0
        %1870 = vmatpush1.msra.mxu0 %v1851
        %1871 = vmatprep.subr.mxu0 0.0
        %1872 = vmatpush1.msra.mxu0 %v1852
        %1873 = vmatprep.subr.mxu0 0.0
        %1874 = vmatpush1.msra.mxu0 %v1853
        %1875 = vmatprep.subr.mxu0 0.0
        %1876 = vmatpush1.msra.mxu0 %v1854
        %1877 = vmatprep.subr.mxu0 0.0
        %1878 = vmatpush1.msra.mxu0 %v1855
        %1879 = vmatprep.subr.mxu0 0.0
        %1880 = vmatpush1.msra.mxu0 %v1856
        %1881 = vmatprep.subr.mxu0 0.0
        %1882 = vmatpush1.msra.mxu0 %v1857
        %1883 = vmatprep.subr.mxu0 0.0
        %1884 = vmatpush1.msra.mxu0 %v1858
        %1885 = vmatprep.subr.mxu0 0.0
        %1886 = vmatpush1.msra.mxu0 %v1859
        %1887 = vmatprep.subr.mxu0 0.0
        %1888 = vmatpush1.msra.mxu0 %v1860
        %1889 = vmatprep.subr.mxu0 0.0
        %1890 = vmatpush1.msra.mxu0 %v1861
        %1891 = vmatprep.subr.mxu0 0.0
        %1892 = vmatpush1.msra.mxu0 %v1862
        %1893 = vmatprep.subr.mxu0 0.0
        %1894 = vmatpush1.msra.mxu0 %v1863
        %1895 = vmatprep.subr.mxu0 0.0
        %1896 = vmatpush1.msra.mxu0 %v1864
        %1897 = vmatprep.subr.mxu0 0.0
        %1898 = vmatpush1.msra.mxu0 0.0
        %1899 = vmatprep.subr.mxu0 0.0
        %1900 = vmatpush1.msra.mxu0 0.0
        %1901 = vmatprep.subr.mxu0 0.0
        %1902 = vmatpush1.msra.mxu0 0.0
        %1903 = vmatprep.subr.mxu0 0.0
        %1904 = vmatpush1.msra.mxu0 0.0
        %1905 = vmatprep.subr.mxu0 0.0
        %1906 = vmatpush1.msra.mxu0 0.0
        %1907 = vmatprep.subr.mxu0 0.0
        %1908 = vmatpush1.msra.mxu0 0.0
        %1909 = vmatprep.subr.mxu0 0.0
        %1910 = vmatpush1.msra.mxu0 0.0
        %1911 = vmatprep.subr.mxu0 0.0
        %1912 = vmatpush1.msra.mxu0 0.0
        %1913 = vmatprep.subr.mxu0 0.0
        %1914 = vmatpush1.msra.mxu0 0.0
        %1915 = vmatprep.subr.mxu0 0.0
        %1916 = vmatpush1.msra.mxu0 0.0
        %1917 = vmatprep.subr.mxu0 0.0
        %1918 = vmatpush1.msra.mxu0 0.0
        %1919 = vmatprep.subr.mxu0 0.0
        %1920 = vmatpush1.msra.mxu0 0.0
        %1921 = vmatprep.subr.mxu0 0.0
        %1922 = vmatpush1.msra.mxu0 0.0
        %1923 = vmatprep.subr.mxu0 0.0
        %1924 = vmatpush1.msra.mxu0 0.0
        %1925 = vmatprep.subr.mxu0 0.0
        %1926 = vmatpush1.msra.mxu0 0.0
        %1927 = vmatprep.subr.mxu0 0.0
        %1928 = vmatpush1.msra.mxu0 0.0
        %1929 = vmatprep.mubr.f32.mxu0 0.0
        %1930 = vmatmul.mubr.f32.gmra.mrb[0].mxu0 %v1800
        %v1931 = vpop.f32.mrb[0].mxu0
        %v1932 = vadd.f32 0.0, %v1931
        %v1933 = vpop.f32.mrb[0].mxu0
        %1934 = vmatprep.mubr.f32.mxu0 0.0
        %1935 = vmatmul.mubr.f32.gmra.mrb[0].mxu0 %v1801
        %v1936 = vpop.f32.mrb[0].mxu0
        %v1937 = vadd.f32 0.0, %v1936
        %v1938 = vpop.f32.mrb[0].mxu0
        %1939 = vmatprep.mubr.f32.mxu0 0.0
        %1940 = vmatmul.mubr.f32.gmra.mrb[0].mxu0 %v1802
        %v1941 = vpop.f32.mrb[0].mxu0
        %v1942 = vadd.f32 0.0, %v1941
        %v1943 = vpop.f32.mrb[0].mxu0
        %1944 = vmatprep.mubr.f32.mxu0 0.0
        %1945 = vmatmul.mubr.f32.gmra.mrb[0].mxu0 %v1803
        %v1946 = vpop.f32.mrb[0].mxu0
        %v1947 = vadd.f32 0.0, %v1946
        %v1948 = vpop.f32.mrb[0].mxu0
        %1949 = vmatprep.mubr.f32.mxu0 0.0
        %1950 = vmatmul.mubr.f32.gmra.mrb[0].mxu0 %v1804
        %v1951 = vpop.f32.mrb[0].mxu0
        %v1952 = vadd.f32 0.0, %v1951
        %v1953 = vpop.f32.mrb[0].mxu0
        %1954 = vmatprep.mubr.f32.mxu0 0.0
        %1955 = vmatmul.mubr.f32.gmra.mrb[0].mxu0 %v1805
        %v1956 = vpop.f32.mrb[0].mxu0
        %v1957 = vadd.f32 0.0, %v1956
        %v1958 = vpop.f32.mrb[0].mxu0
        %1959 = vmatprep.mubr.f32.mxu0 0.0
        %1960 = vmatmul.mubr.f32.gmra.mrb[0].mxu0 %v1806
        %v1961 = vpop.f32.mrb[0].mxu0
        %v1962 = vadd.f32 0.0, %v1961
        %v1963 = vpop.f32.mrb[0].mxu0
        %1964 = vmatprep.mubr.f32.mxu0 0.0
        %1965 = vmatmul.mubr.f32.gmra.mrb[0].mxu0 %v1807
        %v1966 = vpop.f32.mrb[0].mxu0
        %v1967 = vadd.f32 0.0, %v1966
        %v1968 = vpop.f32.mrb[0].mxu0
        %1969 = vmatprep.mubr.f32.mxu0 0.0
        %1970 = vmatmul.mubr.f32.gmra.mrb[0].mxu0 %v1808
        %v1971 = vpop.f32.mrb[0].mxu0
        %v1972 = vadd.f32 0.0, %v1971
        %v1973 = vpop.f32.mrb[0].mxu0
        %1974 = vmatprep.mubr.f32.mxu0 0.0
        %1975 = vmatmul.mubr.f32.gmra.mrb[0].mxu0 %v1809
        %v1976 = vpop.f32.mrb[0].mxu0
        %v1977 = vadd.f32 0.0, %v1976
        %v1978 = vpop.f32.mrb[0].mxu0
        %1979 = vmatprep.mubr.f32.mxu0 0.0
        %1980 = vmatmul.mubr.f32.gmra.mrb[0].mxu0 %v1810
        %v1981 = vpop.f32.mrb[0].mxu0
        %v1982 = vadd.f32 0.0, %v1981
        %v1983 = vpop.f32.mrb[0].mxu0
        %1984 = vmatprep.mubr.f32.mxu0 0.0
        %1985 = vmatmul.mubr.f32.gmra.mrb[0].mxu0 %v1811
        %v1986 = vpop.f32.mrb[0].mxu0
        %v1987 = vadd.f32 0.0, %v1986
        %v1988 = vpop.f32.mrb[0].mxu0
        %1989 = vmatprep.mubr.f32.mxu0 0.0
        %1990 = vmatmul.mubr.f32.gmra.mrb[0].mxu0 %v1812
        %v1991 = vpop.f32.mrb[0].mxu0
        %v1992 = vadd.f32 0.0, %v1991
        %v1993 = vpop.f32.mrb[0].mxu0
        %1994 = vmatprep.mubr.f32.mxu0 0.0
        %1995 = vmatmul.mubr.f32.gmra.mrb[0].mxu0 %v1813
        %v1996 = vpop.f32.mrb[0].mxu0
        %v1997 = vadd.f32 0.0, %v1996
        %v1998 = vpop.f32.mrb[0].mxu0
        %1999 = vmatprep.mubr.f32.mxu0 0.0
        %2000 = vmatmul.mubr.f32.gmra.mrb[0].mxu0 %v1814
        %v2001 = vpop.f32.mrb[0].mxu0
        %v2002 = vadd.f32 0.0, %v2001
        %v2003 = vpop.f32.mrb[0].mxu0
        %2004 = vmatprep.mubr.f32.mxu0 0.0
        %2005 = vmatmul.mubr.f32.gmra.mrb[0].mxu0 %v1815
        %v2006 = vpop.f32.mrb[0].mxu0
        %v2007 = vadd.f32 0.0, %v2006
        %v2008 = vpop.f32.mrb[0].mxu0
        %2009 = vmatprep.mubr.f32.mxu0 0.0
        %2010 = vmatmul.mubr.f32.gmra.mrb[0].mxu0 %v1816
        %v2011 = vpop.f32.mrb[0].mxu0
        %v2012 = vadd.f32 0.0, %v2011
        %v2013 = vpop.f32.mrb[0].mxu0
        %2014 = vmatprep.mubr.f32.mxu0 0.0
        %2015 = vmatmul.mubr.f32.gmra.mrb[0].mxu0 %v1817
        %v2016 = vpop.f32.mrb[0].mxu0
        %v2017 = vadd.f32 0.0, %v2016
        %v2018 = vpop.f32.mrb[0].mxu0
        %2019 = vmatprep.mubr.f32.mxu0 0.0
        %2020 = vmatmul.mubr.f32.gmra.mrb[0].mxu0 %v1818
        %v2021 = vpop.f32.mrb[0].mxu0
        %v2022 = vadd.f32 0.0, %v2021
        %v2023 = vpop.f32.mrb[0].mxu0
        %2024 = vmatprep.mubr.f32.mxu0 0.0
        %2025 = vmatmul.mubr.f32.gmra.mrb[0].mxu0 %v1819
        %v2026 = vpop.f32.mrb[0].mxu0
        %v2027 = vadd.f32 0.0, %v2026
        %v2028 = vpop.f32.mrb[0].mxu0
        %2029 = vmatprep.mubr.f32.mxu0 0.0
        %2030 = vmatmul.mubr.f32.gmra.mrb[0].mxu0 %v1820
        %v2031 = vpop.f32.mrb[0].mxu0
        %v2032 = vadd.f32 0.0, %v2031
        %v2033 = vpop.f32.mrb[0].mxu0
        %2034 = vmatprep.mubr.f32.mxu0 0.0
        %2035 = vmatmul.mubr.f32.gmra.mrb[0].mxu0 %v1821
        %v2036 = vpop.f32.mrb[0].mxu0
        %v2037 = vadd.f32 0.0, %v2036
        %v2038 = vpop.f32.mrb[0].mxu0
        %2039 = vmatprep.mubr.f32.mxu0 0.0
        %2040 = vmatmul.mubr.f32.gmra.mrb[0].mxu0 %v1822
        %v2041 = vpop.f32.mrb[0].mxu0
        %v2042 = vadd.f32 0.0, %v2041
        %v2043 = vpop.f32.mrb[0].mxu0
        %2044 = vmatprep.mubr.f32.mxu0 0.0
        %2045 = vmatmul.mubr.f32.gmra.mrb[0].mxu0 %v1823
        %v2046 = vpop.f32.mrb[0].mxu0
        %v2047 = vadd.f32 0.0, %v2046
        %v2048 = vpop.f32.mrb[0].mxu0
        %2049 = vmatprep.mubr.f32.mxu0 0.0
        %2050 = vmatmul.mubr.f32.gmra.mrb[0].mxu0 %v1824
        %v2051 = vpop.f32.mrb[0].mxu0
        %v2052 = vadd.f32 0.0, %v2051
        %v2053 = vpop.f32.mrb[0].mxu0
        %2054 = vmatprep.mubr.f32.mxu0 0.0
        %2055 = vmatmul.mubr.f32.gmra.mrb[0].mxu0 %v1825
        %v2056 = vpop.f32.mrb[0].mxu0
        %v2057 = vadd.f32 0.0, %v2056
        %v2058 = vpop.f32.mrb[0].mxu0
        %2059 = vmatprep.mubr.f32.mxu0 0.0
        %2060 = vmatmul.mubr.f32.gmra.mrb[0].mxu0 %v1826
        %v2061 = vpop.f32.mrb[0].mxu0
        %v2062 = vadd.f32 0.0, %v2061
        %v2063 = vpop.f32.mrb[0].mxu0
        %2064 = vmatprep.mubr.f32.mxu0 0.0
        %2065 = vmatmul.mubr.f32.gmra.mrb[0].mxu0 %v1827
        %v2066 = vpop.f32.mrb[0].mxu0
        %v2067 = vadd.f32 0.0, %v2066
        %v2068 = vpop.f32.mrb[0].mxu0
        %2069 = vmatprep.mubr.f32.mxu0 0.0
        %2070 = vmatmul.mubr.f32.gmra.mrb[0].mxu0 %v1828
        %v2071 = vpop.f32.mrb[0].mxu0
        %v2072 = vadd.f32 0.0, %v2071
        %v2073 = vpop.f32.mrb[0].mxu0
        %2074 = vmatprep.mubr.f32.mxu0 0.0
        %2075 = vmatmul.mubr.f32.gmra.mrb[0].mxu0 %v1829
        %v2076 = vpop.f32.mrb[0].mxu0
        %v2077 = vadd.f32 0.0, %v2076
        %v2078 = vpop.f32.mrb[0].mxu0
        %2079 = vmatprep.mubr.f32.mxu0 0.0
        %2080 = vmatmul.mubr.f32.gmra.mrb[0].mxu0 %v1830
        %v2081 = vpop.f32.mrb[0].mxu0
        %v2082 = vadd.f32 0.0, %v2081
        %v2083 = vpop.f32.mrb[0].mxu0
        %2084 = vmatprep.mubr.f32.mxu0 0.0
        %2085 = vmatmul.mubr.f32.gmra.mrb[0].mxu0 %v1831
        %v2086 = vpop.f32.mrb[0].mxu0
        %v2087 = vadd.f32 0.0, %v2086
        %v2088 = vpop.f32.mrb[0].mxu0
        %2089 = vmatprep.mubr.f32.mxu0 0.0
        %2090 = vmatmul.mubr.f32.gmra.mrb[0].mxu0 %v1832
        %v2091 = vpop.f32.mrb[0].mxu0
        %v2092 = vadd.f32 0.0, %v2091
        %v2093 = vpop.f32.mrb[0].mxu0
        %2094 = vmatprep.mubr.f32.mxu0 0.0
        %2095 = vmatmul.mubr.f32.gmra.mrb[0].mxu0 %v1833
        %v2096 = vpop.f32.mrb[0].mxu0
        %v2097 = vadd.f32 0.0, %v2096
        %v2098 = vpop.f32.mrb[0].mxu0
        %2099 = vmatprep.mubr.f32.mxu0 0.0
        %2100 = vmatmul.mubr.f32.gmra.mrb[0].mxu0 %v1834
        %v2101 = vpop.f32.mrb[0].mxu0
        %v2102 = vadd.f32 0.0, %v2101
        %v2103 = vpop.f32.mrb[0].mxu0
        %2104 = vmatprep.mubr.f32.mxu0 0.0
        %2105 = vmatmul.mubr.f32.gmra.mrb[0].mxu0 %v1835
        %v2106 = vpop.f32.mrb[0].mxu0
        %v2107 = vadd.f32 0.0, %v2106
        %v2108 = vpop.f32.mrb[0].mxu0
        %2109 = vmatprep.mubr.f32.mxu0 0.0
        %2110 = vmatmul.mubr.f32.gmra.mrb[0].mxu0 %v1836
        %v2111 = vpop.f32.mrb[0].mxu0
        %v2112 = vadd.f32 0.0, %v2111
        %v2113 = vpop.f32.mrb[0].mxu0
        %2114 = vmatprep.mubr.f32.mxu0 0.0
        %2115 = vmatmul.mubr.f32.gmra.mrb[0].mxu0 %v1837
        %v2116 = vpop.f32.mrb[0].mxu0
        %v2117 = vadd.f32 0.0, %v2116
        %v2118 = vpop.f32.mrb[0].mxu0
        %2119 = vmatprep.mubr.f32.mxu0 0.0
        %2120 = vmatmul.mubr.f32.gmra.mrb[0].mxu0 %v1838
        %v2121 = vpop.f32.mrb[0].mxu0
        %v2122 = vadd.f32 0.0, %v2121
        %v2123 = vpop.f32.mrb[0].mxu0
        %2124 = vmatprep.mubr.f32.mxu0 0.0
        %2125 = vmatmul.mubr.f32.gmra.mrb[0].mxu0 %v1839
        %v2126 = vpop.f32.mrb[0].mxu0
        %v2127 = vadd.f32 0.0, %v2126
        %v2128 = vpop.f32.mrb[0].mxu0
        %2129 = vmatprep.mubr.f32.mxu0 0.0
        %2130 = vmatmul.mubr.f32.gmra.mrb[0].mxu0 %v1840
        %v2131 = vpop.f32.mrb[0].mxu0
        %v2132 = vadd.f32 0.0, %v2131
        %v2133 = vpop.f32.mrb[0].mxu0
        %2134 = vmatprep.mubr.f32.mxu0 0.0
        %2135 = vmatmul.mubr.f32.gmra.mrb[0].mxu0 %v1841
        %v2136 = vpop.f32.mrb[0].mxu0
        %v2137 = vadd.f32 0.0, %v2136
        %v2138 = vpop.f32.mrb[0].mxu0
        %2139 = vmatprep.mubr.f32.mxu0 0.0
        %2140 = vmatmul.mubr.f32.gmra.mrb[0].mxu0 %v1842
        %v2141 = vpop.f32.mrb[0].mxu0
        %v2142 = vadd.f32 0.0, %v2141
        %v2143 = vpop.f32.mrb[0].mxu0
        %2144 = vmatprep.mubr.f32.mxu0 0.0
        %2145 = vmatmul.mubr.f32.gmra.mrb[0].mxu0 %v1843
        %v2146 = vpop.f32.mrb[0].mxu0
        %v2147 = vadd.f32 0.0, %v2146
        %v2148 = vpop.f32.mrb[0].mxu0
        %2149 = vmatprep.mubr.f32.mxu0 0.0
        %2150 = vmatmul.mubr.f32.gmra.mrb[0].mxu0 %v1844
        %v2151 = vpop.f32.mrb[0].mxu0
        %v2152 = vadd.f32 0.0, %v2151
        %v2153 = vpop.f32.mrb[0].mxu0
        %2154 = vmatprep.mubr.f32.mxu0 0.0
        %2155 = vmatmul.mubr.f32.gmra.mrb[0].mxu0 %v1845
        %v2156 = vpop.f32.mrb[0].mxu0
        %v2157 = vadd.f32 0.0, %v2156
        %v2158 = vpop.f32.mrb[0].mxu0
        %2159 = vmatprep.mubr.f32.mxu0 0.0
        %2160 = vmatmul.mubr.f32.gmra.mrb[0].mxu0 %v1846
        %v2161 = vpop.f32.mrb[0].mxu0
        %v2162 = vadd.f32 0.0, %v2161
        %v2163 = vpop.f32.mrb[0].mxu0
        %2164 = vmatprep.mubr.f32.mxu0 0.0
        %2165 = vmatmul.mubr.f32.gmra.mrb[0].mxu0 %v1847
        %v2166 = vpop.f32.mrb[0].mxu0
        %v2167 = vadd.f32 0.0, %v2166
        %v2168 = vpop.f32.mrb[0].mxu0
        %2169 = vdwg.mxu0
        %2170 = vmatprep.subr.mxu0 0.0
        %2171 = vmatpush1.msra.mxu0 %v1784
        %2172 = vmatprep.subr.mxu0 0.0
        %2173 = vmatpush1.msra.mxu0 %v1785
        %2174 = vmatprep.subr.mxu0 0.0
        %2175 = vmatpush1.msra.mxu0 %v1786
        %2176 = vmatprep.subr.mxu0 0.0
        %2177 = vmatpush1.msra.mxu0 %v1787
        %2178 = vmatprep.subr.mxu0 0.0
        %2179 = vmatpush1.msra.mxu0 %v1788
        %2180 = vmatprep.subr.mxu0 0.0
        %2181 = vmatpush1.msra.mxu0 %v1789
        %2182 = vmatprep.subr.mxu0 0.0
        %2183 = vmatpush1.msra.mxu0 %v1790
        %2184 = vmatprep.subr.mxu0 0.0
        %2185 = vmatpush1.msra.mxu0 %v1791
        %2186 = vmatprep.subr.mxu0 0.0
        %2187 = vmatpush1.msra.mxu0 %v1792
        %2188 = vmatprep.subr.mxu0 0.0
        %2189 = vmatpush1.msra.mxu0 %v1793
        %2190 = vmatprep.subr.mxu0 0.0
        %2191 = vmatpush1.msra.mxu0 %v1794
        %2192 = vmatprep.subr.mxu0 0.0
        %2193 = vmatpush1.msra.mxu0 %v1795
        %2194 = vmatprep.subr.mxu0 0.0
        %2195 = vmatpush1.msra.mxu0 %v1796
        %2196 = vmatprep.subr.mxu0 0.0
        %2197 = vmatpush1.msra.mxu0 %v1797
        %2198 = vmatprep.subr.mxu0 0.0
        %2199 = vmatpush1.msra.mxu0 %v1798
        %2200 = vmatprep.subr.mxu0 0.0
        %2201 = vmatpush1.msra.mxu0 %v1799
        %2202 = vmatprep.subr.mxu0 0.0
        %2203 = vmatpush1.msra.mxu0 0.0
        %2204 = vmatprep.subr.mxu0 0.0
        %2205 = vmatpush1.msra.mxu0 0.0
        %2206 = vmatprep.subr.mxu0 0.0
        %2207 = vmatpush1.msra.mxu0 0.0
        %2208 = vmatprep.subr.mxu0 0.0
        %2209 = vmatpush1.msra.mxu0 0.0
        %2210 = vmatprep.subr.mxu0 0.0
        %2211 = vmatpush1.msra.mxu0 0.0
        %2212 = vmatprep.subr.mxu0 0.0
        %2213 = vmatpush1.msra.mxu0 0.0
        %2214 = vmatprep.subr.mxu0 0.0
        %2215 = vmatpush1.msra.mxu0 0.0
        %2216 = vmatprep.subr.mxu0 0.0
        %2217 = vmatpush1.msra.mxu0 0.0
        %2218 = vmatprep.subr.mxu0 0.0
        %2219 = vmatpush1.msra.mxu0 0.0
        %2220 = vmatprep.subr.mxu0 0.0
        %2221 = vmatpush1.msra.mxu0 0.0
        %2222 = vmatprep.subr.mxu0 0.0
        %2223 = vmatpush1.msra.mxu0 0.0
        %2224 = vmatprep.subr.mxu0 0.0
        %2225 = vmatpush1.msra.mxu0 0.0
        %2226 = vmatprep.subr.mxu0 0.0
        %2227 = vmatpush1.msra.mxu0 0.0
        %2228 = vmatprep.subr.mxu0 0.0
        %2229 = vmatpush1.msra.mxu0 0.0
        %2230 = vmatprep.subr.mxu0 0.0
        %2231 = vmatpush1.msra.mxu0 0.0
        %2232 = vmatprep.subr.mxu0 0.0
        %2233 = vmatpush1.msra.mxu0 0.0
        %2234 = vmatprep.mubr.f32.mxu0 0.0
        %2235 = vmatmul.mubr.f32.gmra.mrb[0].mxu0 %v1736
        %v2236 = vpop.f32.mrb[0].mxu0
        %v2237 = vadd.f32 %v1932, %v2236
        %v2238 = vpop.f32.mrb[0].mxu0
        %2239 = vmatprep.mubr.f32.mxu0 0.0
        %2240 = vmatmul.mubr.f32.gmra.mrb[0].mxu0 %v1737
        %v2241 = vpop.f32.mrb[0].mxu0
        %v2242 = vadd.f32 %v1937, %v2241
        %v2243 = vpop.f32.mrb[0].mxu0
        %2244 = vmatprep.mubr.f32.mxu0 0.0
        %2245 = vmatmul.mubr.f32.gmra.mrb[0].mxu0 %v1738
        %v2246 = vpop.f32.mrb[0].mxu0
        %v2247 = vadd.f32 %v1942, %v2246
        %v2248 = vpop.f32.mrb[0].mxu0
        %2249 = vmatprep.mubr.f32.mxu0 0.0
        %2250 = vmatmul.mubr.f32.gmra.mrb[0].mxu0 %v1739
        %v2251 = vpop.f32.mrb[0].mxu0
        %v2252 = vadd.f32 %v1947, %v2251
        %v2253 = vpop.f32.mrb[0].mxu0
        %2254 = vmatprep.mubr.f32.mxu0 0.0
        %2255 = vmatmul.mubr.f32.gmra.mrb[0].mxu0 %v1740
        %v2256 = vpop.f32.mrb[0].mxu0
        %v2257 = vadd.f32 %v1952, %v2256
        %v2258 = vpop.f32.mrb[0].mxu0
        %2259 = vmatprep.mubr.f32.mxu0 0.0
        %2260 = vmatmul.mubr.f32.gmra.mrb[0].mxu0 %v1741
        %v2261 = vpop.f32.mrb[0].mxu0
        %v2262 = vadd.f32 %v1957, %v2261
        %v2263 = vpop.f32.mrb[0].mxu0
        %2264 = vmatprep.mubr.f32.mxu0 0.0
        %2265 = vmatmul.mubr.f32.gmra.mrb[0].mxu0 %v1742
        %v2266 = vpop.f32.mrb[0].mxu0
        %v2267 = vadd.f32 %v1962, %v2266
        %v2268 = vpop.f32.mrb[0].mxu0
        %2269 = vmatprep.mubr.f32.mxu0 0.0
        %2270 = vmatmul.mubr.f32.gmra.mrb[0].mxu0 %v1743
        %v2271 = vpop.f32.mrb[0].mxu0
        %v2272 = vadd.f32 %v1967, %v2271
        %v2273 = vpop.f32.mrb[0].mxu0
        %2274 = vmatprep.mubr.f32.mxu0 0.0
        %2275 = vmatmul.mubr.f32.gmra.mrb[0].mxu0 %v1744
        %v2276 = vpop.f32.mrb[0].mxu0
        %v2277 = vadd.f32 %v1972, %v2276
        %v2278 = vpop.f32.mrb[0].mxu0
        %2279 = vmatprep.mubr.f32.mxu0 0.0
        %2280 = vmatmul.mubr.f32.gmra.mrb[0].mxu0 %v1745
        %v2281 = vpop.f32.mrb[0].mxu0
        %v2282 = vadd.f32 %v1977, %v2281
        %v2283 = vpop.f32.mrb[0].mxu0
        %2284 = vmatprep.mubr.f32.mxu0 0.0
        %2285 = vmatmul.mubr.f32.gmra.mrb[0].mxu0 %v1746
        %v2286 = vpop.f32.mrb[0].mxu0
        %v2287 = vadd.f32 %v1982, %v2286
        %v2288 = vpop.f32.mrb[0].mxu0
        %2289 = vmatprep.mubr.f32.mxu0 0.0
        %2290 = vmatmul.mubr.f32.gmra.mrb[0].mxu0 %v1747
        %v2291 = vpop.f32.mrb[0].mxu0
        %v2292 = vadd.f32 %v1987, %v2291
        %v2293 = vpop.f32.mrb[0].mxu0
        %2294 = vmatprep.mubr.f32.mxu0 0.0
        %2295 = vmatmul.mubr.f32.gmra.mrb[0].mxu0 %v1748
        %v2296 = vpop.f32.mrb[0].mxu0
        %v2297 = vadd.f32 %v1992, %v2296
        %v2298 = vpop.f32.mrb[0].mxu0
        %2299 = vmatprep.mubr.f32.mxu0 0.0
        %2300 = vmatmul.mubr.f32.gmra.mrb[0].mxu0 %v1749
        %v2301 = vpop.f32.mrb[0].mxu0
        %v2302 = vadd.f32 %v1997, %v2301
        %v2303 = vpop.f32.mrb[0].mxu0
        %2304 = vmatprep.mubr.f32.mxu0 0.0
        %2305 = vmatmul.mubr.f32.gmra.mrb[0].mxu0 %v1750
        %v2306 = vpop.f32.mrb[0].mxu0
        %v2307 = vadd.f32 %v2002, %v2306
        %v2308 = vpop.f32.mrb[0].mxu0
        %2309 = vmatprep.mubr.f32.mxu0 0.0
        %2310 = vmatmul.mubr.f32.gmra.mrb[0].mxu0 %v1751
        %v2311 = vpop.f32.mrb[0].mxu0
        %v2312 = vadd.f32 %v2007, %v2311
        %v2313 = vpop.f32.mrb[0].mxu0
        %2314 = vmatprep.mubr.f32.mxu0 0.0
        %2315 = vmatmul.mubr.f32.gmra.mrb[0].mxu0 %v1752
        %v2316 = vpop.f32.mrb[0].mxu0
        %v2317 = vadd.f32 %v2012, %v2316
        %v2318 = vpop.f32.mrb[0].mxu0
        %2319 = vmatprep.mubr.f32.mxu0 0.0
        %2320 = vmatmul.mubr.f32.gmra.mrb[0].mxu0 %v1753
        %v2321 = vpop.f32.mrb[0].mxu0
        %v2322 = vadd.f32 %v2017, %v2321
        %v2323 = vpop.f32.mrb[0].mxu0
        %2324 = vmatprep.mubr.f32.mxu0 0.0
        %2325 = vmatmul.mubr.f32.gmra.mrb[0].mxu0 %v1754
        %v2326 = vpop.f32.mrb[0].mxu0
        %v2327 = vadd.f32 %v2022, %v2326
        %v2328 = vpop.f32.mrb[0].mxu0
        %2329 = vmatprep.mubr.f32.mxu0 0.0
        %2330 = vmatmul.mubr.f32.gmra.mrb[0].mxu0 %v1755
        %v2331 = vpop.f32.mrb[0].mxu0
        %v2332 = vadd.f32 %v2027, %v2331
        %v2333 = vpop.f32.mrb[0].mxu0
        %2334 = vmatprep.mubr.f32.mxu0 0.0
        %2335 = vmatmul.mubr.f32.gmra.mrb[0].mxu0 %v1756
        %v2336 = vpop.f32.mrb[0].mxu0
        %v2337 = vadd.f32 %v2032, %v2336
        %v2338 = vpop.f32.mrb[0].mxu0
        %2339 = vmatprep.mubr.f32.mxu0 0.0
        %2340 = vmatmul.mubr.f32.gmra.mrb[0].mxu0 %v1757
        %v2341 = vpop.f32.mrb[0].mxu0
        %v2342 = vadd.f32 %v2037, %v2341
        %v2343 = vpop.f32.mrb[0].mxu0
        %2344 = vmatprep.mubr.f32.mxu0 0.0
        %2345 = vmatmul.mubr.f32.gmra.mrb[0].mxu0 %v1758
        %v2346 = vpop.f32.mrb[0].mxu0
        %v2347 = vadd.f32 %v2042, %v2346
        %v2348 = vpop.f32.mrb[0].mxu0
        %2349 = vmatprep.mubr.f32.mxu0 0.0
        %2350 = vmatmul.mubr.f32.gmra.mrb[0].mxu0 %v1759
        %v2351 = vpop.f32.mrb[0].mxu0
        %v2352 = vadd.f32 %v2047, %v2351
        %v2353 = vpop.f32.mrb[0].mxu0
        %2354 = vmatprep.mubr.f32.mxu0 0.0
        %2355 = vmatmul.mubr.f32.gmra.mrb[0].mxu0 %v1760
        %v2356 = vpop.f32.mrb[0].mxu0
        %v2357 = vadd.f32 %v2052, %v2356
        %v2358 = vpop.f32.mrb[0].mxu0
        %2359 = vmatprep.mubr.f32.mxu0 0.0
        %2360 = vmatmul.mubr.f32.gmra.mrb[0].mxu0 %v1761
        %v2361 = vpop.f32.mrb[0].mxu0
        %v2362 = vadd.f32 %v2057, %v2361
        %v2363 = vpop.f32.mrb[0].mxu0
        %2364 = vmatprep.mubr.f32.mxu0 0.0
        %2365 = vmatmul.mubr.f32.gmra.mrb[0].mxu0 %v1762
        %v2366 = vpop.f32.mrb[0].mxu0
        %v2367 = vadd.f32 %v2062, %v2366
        %v2368 = vpop.f32.mrb[0].mxu0
        %2369 = vmatprep.mubr.f32.mxu0 0.0
        %2370 = vmatmul.mubr.f32.gmra.mrb[0].mxu0 %v1763
        %v2371 = vpop.f32.mrb[0].mxu0
        %v2372 = vadd.f32 %v2067, %v2371
        %v2373 = vpop.f32.mrb[0].mxu0
        %2374 = vmatprep.mubr.f32.mxu0 0.0
        %2375 = vmatmul.mubr.f32.gmra.mrb[0].mxu0 %v1764
        %v2376 = vpop.f32.mrb[0].mxu0
        %v2377 = vadd.f32 %v2072, %v2376
        %v2378 = vpop.f32.mrb[0].mxu0
        %2379 = vmatprep.mubr.f32.mxu0 0.0
        %2380 = vmatmul.mubr.f32.gmra.mrb[0].mxu0 %v1765
        %v2381 = vpop.f32.mrb[0].mxu0
        %v2382 = vadd.f32 %v2077, %v2381
        %v2383 = vpop.f32.mrb[0].mxu0
        %2384 = vmatprep.mubr.f32.mxu0 0.0
        %2385 = vmatmul.mubr.f32.gmra.mrb[0].mxu0 %v1766
        %v2386 = vpop.f32.mrb[0].mxu0
        %v2387 = vadd.f32 %v2082, %v2386
        %v2388 = vpop.f32.mrb[0].mxu0
        %2389 = vmatprep.mubr.f32.mxu0 0.0
        %2390 = vmatmul.mubr.f32.gmra.mrb[0].mxu0 %v1767
        %v2391 = vpop.f32.mrb[0].mxu0
        %v2392 = vadd.f32 %v2087, %v2391
        %v2393 = vpop.f32.mrb[0].mxu0
        %2394 = vmatprep.mubr.f32.mxu0 0.0
        %2395 = vmatmul.mubr.f32.gmra.mrb[0].mxu0 %v1768
        %v2396 = vpop.f32.mrb[0].mxu0
        %v2397 = vadd.f32 %v2092, %v2396
        %v2398 = vpop.f32.mrb[0].mxu0
        %2399 = vmatprep.mubr.f32.mxu0 0.0
        %2400 = vmatmul.mubr.f32.gmra.mrb[0].mxu0 %v1769
        %v2401 = vpop.f32.mrb[0].mxu0
        %v2402 = vadd.f32 %v2097, %v2401
        %v2403 = vpop.f32.mrb[0].mxu0
        %2404 = vmatprep.mubr.f32.mxu0 0.0
        %2405 = vmatmul.mubr.f32.gmra.mrb[0].mxu0 %v1770
        %v2406 = vpop.f32.mrb[0].mxu0
        %v2407 = vadd.f32 %v2102, %v2406
        %v2408 = vpop.f32.mrb[0].mxu0
        %2409 = vmatprep.mubr.f32.mxu0 0.0
        %2410 = vmatmul.mubr.f32.gmra.mrb[0].mxu0 %v1771
        %v2411 = vpop.f32.mrb[0].mxu0
        %v2412 = vadd.f32 %v2107, %v2411
        %v2413 = vpop.f32.mrb[0].mxu0
        %2414 = vmatprep.mubr.f32.mxu0 0.0
        %2415 = vmatmul.mubr.f32.gmra.mrb[0].mxu0 %v1772
        %v2416 = vpop.f32.mrb[0].mxu0
        %v2417 = vadd.f32 %v2112, %v2416
        %v2418 = vpop.f32.mrb[0].mxu0
        %2419 = vmatprep.mubr.f32.mxu0 0.0
        %2420 = vmatmul.mubr.f32.gmra.mrb[0].mxu0 %v1773
        %v2421 = vpop.f32.mrb[0].mxu0
        %v2422 = vadd.f32 %v2117, %v2421
        %v2423 = vpop.f32.mrb[0].mxu0
        %2424 = vmatprep.mubr.f32.mxu0 0.0
        %2425 = vmatmul.mubr.f32.gmra.mrb[0].mxu0 %v1774
        %v2426 = vpop.f32.mrb[0].mxu0
        %v2427 = vadd.f32 %v2122, %v2426
        %v2428 = vpop.f32.mrb[0].mxu0
        %2429 = vmatprep.mubr.f32.mxu0 0.0
        %2430 = vmatmul.mubr.f32.gmra.mrb[0].mxu0 %v1775
        %v2431 = vpop.f32.mrb[0].mxu0
        %v2432 = vadd.f32 %v2127, %v2431
        %v2433 = vpop.f32.mrb[0].mxu0
        %2434 = vmatprep.mubr.f32.mxu0 0.0
        %2435 = vmatmul.mubr.f32.gmra.mrb[0].mxu0 %v1776
        %v2436 = vpop.f32.mrb[0].mxu0
        %v2437 = vadd.f32 %v2132, %v2436
        %v2438 = vpop.f32.mrb[0].mxu0
        %2439 = vmatprep.mubr.f32.mxu0 0.0
        %2440 = vmatmul.mubr.f32.gmra.mrb[0].mxu0 %v1777
        %v2441 = vpop.f32.mrb[0].mxu0
        %v2442 = vadd.f32 %v2137, %v2441
        %v2443 = vpop.f32.mrb[0].mxu0
        %2444 = vmatprep.mubr.f32.mxu0 0.0
        %2445 = vmatmul.mubr.f32.gmra.mrb[0].mxu0 %v1778
        %v2446 = vpop.f32.mrb[0].mxu0
        %v2447 = vadd.f32 %v2142, %v2446
        %v2448 = vpop.f32.mrb[0].mxu0
        %2449 = vmatprep.mubr.f32.mxu0 0.0
        %2450 = vmatmul.mubr.f32.gmra.mrb[0].mxu0 %v1779
        %v2451 = vpop.f32.mrb[0].mxu0
        %v2452 = vadd.f32 %v2147, %v2451
        %v2453 = vpop.f32.mrb[0].mxu0
        %2454 = vmatprep.mubr.f32.mxu0 0.0
        %2455 = vmatmul.mubr.f32.gmra.mrb[0].mxu0 %v1780
        %v2456 = vpop.f32.mrb[0].mxu0
        %v2457 = vadd.f32 %v2152, %v2456
        %v2458 = vpop.f32.mrb[0].mxu0
        %2459 = vmatprep.mubr.f32.mxu0 0.0
        %2460 = vmatmul.mubr.f32.gmra.mrb[0].mxu0 %v1781
        %v2461 = vpop.f32.mrb[0].mxu0
        %v2462 = vadd.f32 %v2157, %v2461
        %v2463 = vpop.f32.mrb[0].mxu0
        %2464 = vmatprep.mubr.f32.mxu0 0.0
        %2465 = vmatmul.mubr.f32.gmra.mrb[0].mxu0 %v1782
        %v2466 = vpop.f32.mrb[0].mxu0
        %v2467 = vadd.f32 %v2162, %v2466
        %v2468 = vpop.f32.mrb[0].mxu0
        %2469 = vmatprep.mubr.f32.mxu0 0.0
        %2470 = vmatmul.mubr.f32.gmra.mrb[0].mxu0 %v1783
        %v2471 = vpop.f32.mrb[0].mxu0
        %v2472 = vadd.f32 %v2167, %v2471
        %v2473 = vpop.f32.mrb[0].mxu0
        %2474 = vdwg.mxu0
        %v2475 = vld [vmem:[#allocation2 + $0x2] sm:$0xff]
        %v2476 = vld [vmem:[#allocation2 + $0xa] sm:$0xff]
        %v2477 = vld [vmem:[#allocation2 + $0x12] sm:$0xff]
        %v2478 = vld [vmem:[#allocation2 + $0x1a] sm:$0xff]
        %v2479 = vld [vmem:[#allocation2 + $0x22] sm:$0xff]
        %v2480 = vld [vmem:[#allocation2 + $0x2a] sm:$0xff]
        %v2481 = vld [vmem:[#allocation2 + $0x32] sm:$0xff]
        %v2482 = vld [vmem:[#allocation2 + $0x3a] sm:$0xff]
        %v2483 = vld [vmem:[#allocation2 + $0x42] sm:$0xff]
        %v2484 = vld [vmem:[#allocation2 + $0x4a] sm:$0xff]
        %v2485 = vld [vmem:[#allocation2 + $0x52] sm:$0xff]
        %v2486 = vld [vmem:[#allocation2 + $0x5a] sm:$0xff]
        %v2487 = vld [vmem:[#allocation2 + $0x62] sm:$0xff]
        %v2488 = vld [vmem:[#allocation2 + $0x6a] sm:$0xff]
        %v2489 = vld [vmem:[#allocation2 + $0x72] sm:$0xff]
        %v2490 = vld [vmem:[#allocation2 + $0x7a] sm:$0xff]
        %v2491 = vld [vmem:[#allocation2 + $0x82] sm:$0xff]
        %v2492 = vld [vmem:[#allocation2 + $0x8a] sm:$0xff]
        %v2493 = vld [vmem:[#allocation2 + $0x92] sm:$0xff]
        %v2494 = vld [vmem:[#allocation2 + $0x9a] sm:$0xff]
        %v2495 = vld [vmem:[#allocation2 + $0xa2] sm:$0xff]
        %v2496 = vld [vmem:[#allocation2 + $0xaa] sm:$0xff]
        %v2497 = vld [vmem:[#allocation2 + $0xb2] sm:$0xff]
        %v2498 = vld [vmem:[#allocation2 + $0xba] sm:$0xff]
        %v2499 = vld [vmem:[#allocation2 + $0xc2] sm:$0xff]
        %v2500 = vld [vmem:[#allocation2 + $0xca] sm:$0xff]
        %v2501 = vld [vmem:[#allocation2 + $0xd2] sm:$0xff]
        %v2502 = vld [vmem:[#allocation2 + $0xda] sm:$0xff]
        %v2503 = vld [vmem:[#allocation2 + $0xe2] sm:$0xff]
        %v2504 = vld [vmem:[#allocation2 + $0xea] sm:$0xff]
        %v2505 = vld [vmem:[#allocation2 + $0xf2] sm:$0xff]
        %v2506 = vld [vmem:[#allocation2 + $0xfa] sm:$0xff]
        %v2507 = vld [vmem:[#allocation2 + $0x102] sm:$0xff]
        %v2508 = vld [vmem:[#allocation2 + $0x10a] sm:$0xff]
        %v2509 = vld [vmem:[#allocation2 + $0x112] sm:$0xff]
        %v2510 = vld [vmem:[#allocation2 + $0x11a] sm:$0xff]
        %v2511 = vld [vmem:[#allocation2 + $0x122] sm:$0xff]
        %v2512 = vld [vmem:[#allocation2 + $0x12a] sm:$0xff]
        %v2513 = vld [vmem:[#allocation2 + $0x132] sm:$0xff]
        %v2514 = vld [vmem:[#allocation2 + $0x13a] sm:$0xff]
        %v2515 = vld [vmem:[#allocation2 + $0x142] sm:$0xff]
        %v2516 = vld [vmem:[#allocation2 + $0x14a] sm:$0xff]
        %v2517 = vld [vmem:[#allocation2 + $0x152] sm:$0xff]
        %v2518 = vld [vmem:[#allocation2 + $0x15a] sm:$0xff]
        %v2519 = vld [vmem:[#allocation2 + $0x162] sm:$0xff]
        %v2520 = vld [vmem:[#allocation2 + $0x16a] sm:$0xff]
        %v2521 = vld [vmem:[#allocation2 + $0x172] sm:$0xff]
        %v2522 = vld [vmem:[#allocation2 + $0x17a] sm:$0xff]
        %s2523 = scalar_lea.vmem [#allocation8], 256
        %v2524 = vld [vmem:[%s2523] sm:$0xff]
        %v2525 = vld [vmem:[%s2523 + $0x8] sm:$0xff]
        %v2526 = vld [vmem:[%s2523 + $0x10] sm:$0xff]
        %v2527 = vld [vmem:[%s2523 + $0x18] sm:$0xff]
        %v2528 = vld [vmem:[%s2523 + $0x20] sm:$0xff]
        %v2529 = vld [vmem:[%s2523 + $0x28] sm:$0xff]
        %v2530 = vld [vmem:[%s2523 + $0x30] sm:$0xff]
        %v2531 = vld [vmem:[%s2523 + $0x38] sm:$0xff]
        %v2532 = vld [vmem:[%s2523 + $0x40] sm:$0xff]
        %v2533 = vld [vmem:[%s2523 + $0x48] sm:$0xff]
        %v2534 = vld [vmem:[%s2523 + $0x50] sm:$0xff]
        %v2535 = vld [vmem:[%s2523 + $0x58] sm:$0xff]
        %v2536 = vld [vmem:[%s2523 + $0x60] sm:$0xff]
        %v2537 = vld [vmem:[%s2523 + $0x68] sm:$0xff]
        %v2538 = vld [vmem:[%s2523 + $0x70] sm:$0xff]
        %v2539 = vld [vmem:[%s2523 + $0x78] sm:$0xff]
        %2540 = vmatprep.subr.mxu0 0.0
        %2541 = vmatpush1.msra.mxu0 %v2524
        %2542 = vmatprep.subr.mxu0 0.0
        %2543 = vmatpush1.msra.mxu0 %v2525
        %2544 = vmatprep.subr.mxu0 0.0
        %2545 = vmatpush1.msra.mxu0 %v2526
        %2546 = vmatprep.subr.mxu0 0.0
        %2547 = vmatpush1.msra.mxu0 %v2527
        %2548 = vmatprep.subr.mxu0 0.0
        %2549 = vmatpush1.msra.mxu0 %v2528
        %2550 = vmatprep.subr.mxu0 0.0
        %2551 = vmatpush1.msra.mxu0 %v2529
        %2552 = vmatprep.subr.mxu0 0.0
        %2553 = vmatpush1.msra.mxu0 %v2530
        %2554 = vmatprep.subr.mxu0 0.0
        %2555 = vmatpush1.msra.mxu0 %v2531
        %2556 = vmatprep.subr.mxu0 0.0
        %2557 = vmatpush1.msra.mxu0 %v2532
        %2558 = vmatprep.subr.mxu0 0.0
        %2559 = vmatpush1.msra.mxu0 %v2533
        %2560 = vmatprep.subr.mxu0 0.0
        %2561 = vmatpush1.msra.mxu0 %v2534
        %2562 = vmatprep.subr.mxu0 0.0
        %2563 = vmatpush1.msra.mxu0 %v2535
        %2564 = vmatprep.subr.mxu0 0.0
        %2565 = vmatpush1.msra.mxu0 %v2536
        %2566 = vmatprep.subr.mxu0 0.0
        %2567 = vmatpush1.msra.mxu0 %v2537
        %2568 = vmatprep.subr.mxu0 0.0
        %2569 = vmatpush1.msra.mxu0 %v2538
        %2570 = vmatprep.subr.mxu0 0.0
        %2571 = vmatpush1.msra.mxu0 %v2539
        %2572 = vmatprep.subr.mxu0 0.0
        %2573 = vmatpush1.msra.mxu0 0.0
        %2574 = vmatprep.subr.mxu0 0.0
        %2575 = vmatpush1.msra.mxu0 0.0
        %2576 = vmatprep.subr.mxu0 0.0
        %2577 = vmatpush1.msra.mxu0 0.0
        %2578 = vmatprep.subr.mxu0 0.0
        %2579 = vmatpush1.msra.mxu0 0.0
        %2580 = vmatprep.subr.mxu0 0.0
        %2581 = vmatpush1.msra.mxu0 0.0
        %2582 = vmatprep.subr.mxu0 0.0
        %2583 = vmatpush1.msra.mxu0 0.0
        %2584 = vmatprep.subr.mxu0 0.0
        %2585 = vmatpush1.msra.mxu0 0.0
        %2586 = vmatprep.subr.mxu0 0.0
        %2587 = vmatpush1.msra.mxu0 0.0
        %2588 = vmatprep.subr.mxu0 0.0
        %2589 = vmatpush1.msra.mxu0 0.0
        %2590 = vmatprep.subr.mxu0 0.0
        %2591 = vmatpush1.msra.mxu0 0.0
        %2592 = vmatprep.subr.mxu0 0.0
        %2593 = vmatpush1.msra.mxu0 0.0
        %2594 = vmatprep.subr.mxu0 0.0
        %2595 = vmatpush1.msra.mxu0 0.0
        %2596 = vmatprep.subr.mxu0 0.0
        %2597 = vmatpush1.msra.mxu0 0.0
        %2598 = vmatprep.subr.mxu0 0.0
        %2599 = vmatpush1.msra.mxu0 0.0
        %2600 = vmatprep.subr.mxu0 0.0
        %2601 = vmatpush1.msra.mxu0 0.0
        %2602 = vmatprep.subr.mxu0 0.0
        %2603 = vmatpush1.msra.mxu0 0.0
        %2604 = vmatprep.mubr.f32.mxu0 0.0
        %2605 = vmatmul.mubr.f32.gmra.mrb[0].mxu0 %v2475
        %v2606 = vpop.f32.mrb[0].mxu0
        %v2607 = vadd.f32 0.0, %v2606
        %v2608 = vpop.f32.mrb[0].mxu0
        %2609 = vmatprep.mubr.f32.mxu0 0.0
        %2610 = vmatmul.mubr.f32.gmra.mrb[0].mxu0 %v2476
        %v2611 = vpop.f32.mrb[0].mxu0
        %v2612 = vadd.f32 0.0, %v2611
        %v2613 = vpop.f32.mrb[0].mxu0
        %2614 = vmatprep.mubr.f32.mxu0 0.0
        %2615 = vmatmul.mubr.f32.gmra.mrb[0].mxu0 %v2477
        %v2616 = vpop.f32.mrb[0].mxu0
        %v2617 = vadd.f32 0.0, %v2616
        %v2618 = vpop.f32.mrb[0].mxu0
        %2619 = vmatprep.mubr.f32.mxu0 0.0
        %2620 = vmatmul.mubr.f32.gmra.mrb[0].mxu0 %v2478
        %v2621 = vpop.f32.mrb[0].mxu0
        %v2622 = vadd.f32 0.0, %v2621
        %v2623 = vpop.f32.mrb[0].mxu0
        %2624 = vmatprep.mubr.f32.mxu0 0.0
        %2625 = vmatmul.mubr.f32.gmra.mrb[0].mxu0 %v2479
        %v2626 = vpop.f32.mrb[0].mxu0
        %v2627 = vadd.f32 0.0, %v2626
        %v2628 = vpop.f32.mrb[0].mxu0
        %2629 = vmatprep.mubr.f32.mxu0 0.0
        %2630 = vmatmul.mubr.f32.gmra.mrb[0].mxu0 %v2480
        %v2631 = vpop.f32.mrb[0].mxu0
        %v2632 = vadd.f32 0.0, %v2631
        %v2633 = vpop.f32.mrb[0].mxu0
        %2634 = vmatprep.mubr.f32.mxu0 0.0
        %2635 = vmatmul.mubr.f32.gmra.mrb[0].mxu0 %v2481
        %v2636 = vpop.f32.mrb[0].mxu0
        %v2637 = vadd.f32 0.0, %v2636
        %v2638 = vpop.f32.mrb[0].mxu0
        %2639 = vmatprep.mubr.f32.mxu0 0.0
        %2640 = vmatmul.mubr.f32.gmra.mrb[0].mxu0 %v2482
        %v2641 = vpop.f32.mrb[0].mxu0
        %v2642 = vadd.f32 0.0, %v2641
        %v2643 = vpop.f32.mrb[0].mxu0
        %2644 = vmatprep.mubr.f32.mxu0 0.0
        %2645 = vmatmul.mubr.f32.gmra.mrb[0].mxu0 %v2483
        %v2646 = vpop.f32.mrb[0].mxu0
        %v2647 = vadd.f32 0.0, %v2646
        %v2648 = vpop.f32.mrb[0].mxu0
        %2649 = vmatprep.mubr.f32.mxu0 0.0
        %2650 = vmatmul.mubr.f32.gmra.mrb[0].mxu0 %v2484
        %v2651 = vpop.f32.mrb[0].mxu0
        %v2652 = vadd.f32 0.0, %v2651
        %v2653 = vpop.f32.mrb[0].mxu0
        %2654 = vmatprep.mubr.f32.mxu0 0.0
        %2655 = vmatmul.mubr.f32.gmra.mrb[0].mxu0 %v2485
        %v2656 = vpop.f32.mrb[0].mxu0
        %v2657 = vadd.f32 0.0, %v2656
        %v2658 = vpop.f32.mrb[0].mxu0
        %2659 = vmatprep.mubr.f32.mxu0 0.0
        %2660 = vmatmul.mubr.f32.gmra.mrb[0].mxu0 %v2486
        %v2661 = vpop.f32.mrb[0].mxu0
        %v2662 = vadd.f32 0.0, %v2661
        %v2663 = vpop.f32.mrb[0].mxu0
        %2664 = vmatprep.mubr.f32.mxu0 0.0
        %2665 = vmatmul.mubr.f32.gmra.mrb[0].mxu0 %v2487
        %v2666 = vpop.f32.mrb[0].mxu0
        %v2667 = vadd.f32 0.0, %v2666
        %v2668 = vpop.f32.mrb[0].mxu0
        %2669 = vmatprep.mubr.f32.mxu0 0.0
        %2670 = vmatmul.mubr.f32.gmra.mrb[0].mxu0 %v2488
        %v2671 = vpop.f32.mrb[0].mxu0
        %v2672 = vadd.f32 0.0, %v2671
        %v2673 = vpop.f32.mrb[0].mxu0
        %2674 = vmatprep.mubr.f32.mxu0 0.0
        %2675 = vmatmul.mubr.f32.gmra.mrb[0].mxu0 %v2489
        %v2676 = vpop.f32.mrb[0].mxu0
        %v2677 = vadd.f32 0.0, %v2676
        %v2678 = vpop.f32.mrb[0].mxu0
        %2679 = vmatprep.mubr.f32.mxu0 0.0
        %2680 = vmatmul.mubr.f32.gmra.mrb[0].mxu0 %v2490
        %v2681 = vpop.f32.mrb[0].mxu0
        %v2682 = vadd.f32 0.0, %v2681
        %v2683 = vpop.f32.mrb[0].mxu0
        %2684 = vmatprep.mubr.f32.mxu0 0.0
        %2685 = vmatmul.mubr.f32.gmra.mrb[0].mxu0 %v2491
        %v2686 = vpop.f32.mrb[0].mxu0
        %v2687 = vadd.f32 0.0, %v2686
        %v2688 = vpop.f32.mrb[0].mxu0
        %2689 = vmatprep.mubr.f32.mxu0 0.0
        %2690 = vmatmul.mubr.f32.gmra.mrb[0].mxu0 %v2492
        %v2691 = vpop.f32.mrb[0].mxu0
        %v2692 = vadd.f32 0.0, %v2691
        %v2693 = vpop.f32.mrb[0].mxu0
        %2694 = vmatprep.mubr.f32.mxu0 0.0
        %2695 = vmatmul.mubr.f32.gmra.mrb[0].mxu0 %v2493
        %v2696 = vpop.f32.mrb[0].mxu0
        %v2697 = vadd.f32 0.0, %v2696
        %v2698 = vpop.f32.mrb[0].mxu0
        %2699 = vmatprep.mubr.f32.mxu0 0.0
        %2700 = vmatmul.mubr.f32.gmra.mrb[0].mxu0 %v2494
        %v2701 = vpop.f32.mrb[0].mxu0
        %v2702 = vadd.f32 0.0, %v2701
        %v2703 = vpop.f32.mrb[0].mxu0
        %2704 = vmatprep.mubr.f32.mxu0 0.0
        %2705 = vmatmul.mubr.f32.gmra.mrb[0].mxu0 %v2495
        %v2706 = vpop.f32.mrb[0].mxu0
        %v2707 = vadd.f32 0.0, %v2706
        %v2708 = vpop.f32.mrb[0].mxu0
        %2709 = vmatprep.mubr.f32.mxu0 0.0
        %2710 = vmatmul.mubr.f32.gmra.mrb[0].mxu0 %v2496
        %v2711 = vpop.f32.mrb[0].mxu0
        %v2712 = vadd.f32 0.0, %v2711
        %v2713 = vpop.f32.mrb[0].mxu0
        %2714 = vmatprep.mubr.f32.mxu0 0.0
        %2715 = vmatmul.mubr.f32.gmra.mrb[0].mxu0 %v2497
        %v2716 = vpop.f32.mrb[0].mxu0
        %v2717 = vadd.f32 0.0, %v2716
        %v2718 = vpop.f32.mrb[0].mxu0
        %2719 = vmatprep.mubr.f32.mxu0 0.0
        %2720 = vmatmul.mubr.f32.gmra.mrb[0].mxu0 %v2498
        %v2721 = vpop.f32.mrb[0].mxu0
        %v2722 = vadd.f32 0.0, %v2721
        %v2723 = vpop.f32.mrb[0].mxu0
        %2724 = vmatprep.mubr.f32.mxu0 0.0
        %2725 = vmatmul.mubr.f32.gmra.mrb[0].mxu0 %v2499
        %v2726 = vpop.f32.mrb[0].mxu0
        %v2727 = vadd.f32 0.0, %v2726
        %v2728 = vpop.f32.mrb[0].mxu0
        %2729 = vmatprep.mubr.f32.mxu0 0.0
        %2730 = vmatmul.mubr.f32.gmra.mrb[0].mxu0 %v2500
        %v2731 = vpop.f32.mrb[0].mxu0
        %v2732 = vadd.f32 0.0, %v2731
        %v2733 = vpop.f32.mrb[0].mxu0
        %2734 = vmatprep.mubr.f32.mxu0 0.0
        %2735 = vmatmul.mubr.f32.gmra.mrb[0].mxu0 %v2501
        %v2736 = vpop.f32.mrb[0].mxu0
        %v2737 = vadd.f32 0.0, %v2736
        %v2738 = vpop.f32.mrb[0].mxu0
        %2739 = vmatprep.mubr.f32.mxu0 0.0
        %2740 = vmatmul.mubr.f32.gmra.mrb[0].mxu0 %v2502
        %v2741 = vpop.f32.mrb[0].mxu0
        %v2742 = vadd.f32 0.0, %v2741
        %v2743 = vpop.f32.mrb[0].mxu0
        %2744 = vmatprep.mubr.f32.mxu0 0.0
        %2745 = vmatmul.mubr.f32.gmra.mrb[0].mxu0 %v2503
        %v2746 = vpop.f32.mrb[0].mxu0
        %v2747 = vadd.f32 0.0, %v2746
        %v2748 = vpop.f32.mrb[0].mxu0
        %2749 = vmatprep.mubr.f32.mxu0 0.0
        %2750 = vmatmul.mubr.f32.gmra.mrb[0].mxu0 %v2504
        %v2751 = vpop.f32.mrb[0].mxu0
        %v2752 = vadd.f32 0.0, %v2751
        %v2753 = vpop.f32.mrb[0].mxu0
        %2754 = vmatprep.mubr.f32.mxu0 0.0
        %2755 = vmatmul.mubr.f32.gmra.mrb[0].mxu0 %v2505
        %v2756 = vpop.f32.mrb[0].mxu0
        %v2757 = vadd.f32 0.0, %v2756
        %v2758 = vpop.f32.mrb[0].mxu0
        %2759 = vmatprep.mubr.f32.mxu0 0.0
        %2760 = vmatmul.mubr.f32.gmra.mrb[0].mxu0 %v2506
        %v2761 = vpop.f32.mrb[0].mxu0
        %v2762 = vadd.f32 0.0, %v2761
        %v2763 = vpop.f32.mrb[0].mxu0
        %2764 = vmatprep.mubr.f32.mxu0 0.0
        %2765 = vmatmul.mubr.f32.gmra.mrb[0].mxu0 %v2507
        %v2766 = vpop.f32.mrb[0].mxu0
        %v2767 = vadd.f32 0.0, %v2766
        %v2768 = vpop.f32.mrb[0].mxu0
        %2769 = vmatprep.mubr.f32.mxu0 0.0
        %2770 = vmatmul.mubr.f32.gmra.mrb[0].mxu0 %v2508
        %v2771 = vpop.f32.mrb[0].mxu0
        %v2772 = vadd.f32 0.0, %v2771
        %v2773 = vpop.f32.mrb[0].mxu0
        %2774 = vmatprep.mubr.f32.mxu0 0.0
        %2775 = vmatmul.mubr.f32.gmra.mrb[0].mxu0 %v2509
        %v2776 = vpop.f32.mrb[0].mxu0
        %v2777 = vadd.f32 0.0, %v2776
        %v2778 = vpop.f32.mrb[0].mxu0
        %2779 = vmatprep.mubr.f32.mxu0 0.0
        %2780 = vmatmul.mubr.f32.gmra.mrb[0].mxu0 %v2510
        %v2781 = vpop.f32.mrb[0].mxu0
        %v2782 = vadd.f32 0.0, %v2781
        %v2783 = vpop.f32.mrb[0].mxu0
        %2784 = vmatprep.mubr.f32.mxu0 0.0
        %2785 = vmatmul.mubr.f32.gmra.mrb[0].mxu0 %v2511
        %v2786 = vpop.f32.mrb[0].mxu0
        %v2787 = vadd.f32 0.0, %v2786
        %v2788 = vpop.f32.mrb[0].mxu0
        %2789 = vmatprep.mubr.f32.mxu0 0.0
        %2790 = vmatmul.mubr.f32.gmra.mrb[0].mxu0 %v2512
        %v2791 = vpop.f32.mrb[0].mxu0
        %v2792 = vadd.f32 0.0, %v2791
        %v2793 = vpop.f32.mrb[0].mxu0
        %2794 = vmatprep.mubr.f32.mxu0 0.0
        %2795 = vmatmul.mubr.f32.gmra.mrb[0].mxu0 %v2513
        %v2796 = vpop.f32.mrb[0].mxu0
        %v2797 = vadd.f32 0.0, %v2796
        %v2798 = vpop.f32.mrb[0].mxu0
        %2799 = vmatprep.mubr.f32.mxu0 0.0
        %2800 = vmatmul.mubr.f32.gmra.mrb[0].mxu0 %v2514
        %v2801 = vpop.f32.mrb[0].mxu0
        %v2802 = vadd.f32 0.0, %v2801
        %v2803 = vpop.f32.mrb[0].mxu0
        %2804 = vmatprep.mubr.f32.mxu0 0.0
        %2805 = vmatmul.mubr.f32.gmra.mrb[0].mxu0 %v2515
        %v2806 = vpop.f32.mrb[0].mxu0
        %v2807 = vadd.f32 0.0, %v2806
        %v2808 = vpop.f32.mrb[0].mxu0
        %2809 = vmatprep.mubr.f32.mxu0 0.0
        %2810 = vmatmul.mubr.f32.gmra.mrb[0].mxu0 %v2516
        %v2811 = vpop.f32.mrb[0].mxu0
        %v2812 = vadd.f32 0.0, %v2811
        %v2813 = vpop.f32.mrb[0].mxu0
        %2814 = vmatprep.mubr.f32.mxu0 0.0
        %2815 = vmatmul.mubr.f32.gmra.mrb[0].mxu0 %v2517
        %v2816 = vpop.f32.mrb[0].mxu0
        %v2817 = vadd.f32 0.0, %v2816
        %v2818 = vpop.f32.mrb[0].mxu0
        %2819 = vmatprep.mubr.f32.mxu0 0.0
        %2820 = vmatmul.mubr.f32.gmra.mrb[0].mxu0 %v2518
        %v2821 = vpop.f32.mrb[0].mxu0
        %v2822 = vadd.f32 0.0, %v2821
        %v2823 = vpop.f32.mrb[0].mxu0
        %2824 = vmatprep.mubr.f32.mxu0 0.0
        %2825 = vmatmul.mubr.f32.gmra.mrb[0].mxu0 %v2519
        %v2826 = vpop.f32.mrb[0].mxu0
        %v2827 = vadd.f32 0.0, %v2826
        %v2828 = vpop.f32.mrb[0].mxu0
        %2829 = vmatprep.mubr.f32.mxu0 0.0
        %2830 = vmatmul.mubr.f32.gmra.mrb[0].mxu0 %v2520
        %v2831 = vpop.f32.mrb[0].mxu0
        %v2832 = vadd.f32 0.0, %v2831
        %v2833 = vpop.f32.mrb[0].mxu0
        %2834 = vmatprep.mubr.f32.mxu0 0.0
        %2835 = vmatmul.mubr.f32.gmra.mrb[0].mxu0 %v2521
        %v2836 = vpop.f32.mrb[0].mxu0
        %v2837 = vadd.f32 0.0, %v2836
        %v2838 = vpop.f32.mrb[0].mxu0
        %2839 = vmatprep.mubr.f32.mxu0 0.0
        %2840 = vmatmul.mubr.f32.gmra.mrb[0].mxu0 %v2522
        %v2841 = vpop.f32.mrb[0].mxu0
        %v2842 = vadd.f32 0.0, %v2841
        %v2843 = vpop.f32.mrb[0].mxu0
        %2844 = vdwg.mxu0
        %v2845 = vadd.f32 %v2237, %v2607
        %v2846 = vadd.f32 %v2242, %v2612
        %v2847 = vadd.f32 %v2247, %v2617
        %v2848 = vadd.f32 %v2252, %v2622
        %v2849 = vadd.f32 %v2257, %v2627
        %v2850 = vadd.f32 %v2262, %v2632
        %v2851 = vadd.f32 %v2267, %v2637
        %v2852 = vadd.f32 %v2272, %v2642
        %v2853 = vadd.f32 %v2277, %v2647
        %v2854 = vadd.f32 %v2282, %v2652
        %v2855 = vadd.f32 %v2287, %v2657
        %v2856 = vadd.f32 %v2292, %v2662
        %v2857 = vadd.f32 %v2297, %v2667
        %v2858 = vadd.f32 %v2302, %v2672
        %v2859 = vadd.f32 %v2307, %v2677
        %v2860 = vadd.f32 %v2312, %v2682
        %v2861 = vadd.f32 %v2317, %v2687
        %v2862 = vadd.f32 %v2322, %v2692
        %v2863 = vadd.f32 %v2327, %v2697
        %v2864 = vadd.f32 %v2332, %v2702
        %v2865 = vadd.f32 %v2337, %v2707
        %v2866 = vadd.f32 %v2342, %v2712
        %v2867 = vadd.f32 %v2347, %v2717
        %v2868 = vadd.f32 %v2352, %v2722
        %v2869 = vadd.f32 %v2357, %v2727
        %v2870 = vadd.f32 %v2362, %v2732
        %v2871 = vadd.f32 %v2367, %v2737
        %v2872 = vadd.f32 %v2372, %v2742
        %v2873 = vadd.f32 %v2377, %v2747
        %v2874 = vadd.f32 %v2382, %v2752
        %v2875 = vadd.f32 %v2387, %v2757
        %v2876 = vadd.f32 %v2392, %v2762
        %v2877 = vadd.f32 %v2397, %v2767
        %v2878 = vadd.f32 %v2402, %v2772
        %v2879 = vadd.f32 %v2407, %v2777
        %v2880 = vadd.f32 %v2412, %v2782
        %v2881 = vadd.f32 %v2417, %v2787
        %v2882 = vadd.f32 %v2422, %v2792
        %v2883 = vadd.f32 %v2427, %v2797
        %v2884 = vadd.f32 %v2432, %v2802
        %v2885 = vadd.f32 %v2437, %v2807
        %v2886 = vadd.f32 %v2442, %v2812
        %v2887 = vadd.f32 %v2447, %v2817
        %v2888 = vadd.f32 %v2452, %v2822
        %v2889 = vadd.f32 %v2457, %v2827
        %v2890 = vadd.f32 %v2462, %v2832
        %v2891 = vadd.f32 %v2467, %v2837
        %v2892 = vadd.f32 %v2472, %v2842
        %v2893 = vld [vmem:[#allocation2 + $0x18] sm:$0xff]
        %v2894 = vld [vmem:[#allocation2 + $0x20] sm:$0xff]
        %v2895 = vld [vmem:[#allocation2 + $0x28] sm:$0xff]
        %v2896 = vld [vmem:[#allocation2 + $0x30] sm:$0xff]
        %v2897 = vld [vmem:[#allocation2 + $0x38] sm:$0xff]
        %v2898 = vld [vmem:[#allocation2 + $0x40] sm:$0xff]
        %v2899 = vld [vmem:[#allocation2 + $0x48] sm:$0xff]
        %v2900 = vld [vmem:[#allocation2 + $0x50] sm:$0xff]
        %v2901 = vld [vmem:[#allocation2 + $0x58] sm:$0xff]
        %v2902 = vld [vmem:[#allocation2 + $0x60] sm:$0xff]
        %v2903 = vld [vmem:[#allocation2 + $0x68] sm:$0xff]
        %v2904 = vld [vmem:[#allocation2 + $0x70] sm:$0xff]
        %v2905 = vld [vmem:[#allocation2 + $0x78] sm:$0xff]
        %v2906 = vld [vmem:[#allocation2 + $0x80] sm:$0xff]
        %v2907 = vld [vmem:[#allocation2 + $0x88] sm:$0xff]
        %v2908 = vld [vmem:[#allocation2 + $0x90] sm:$0xff]
        %v2909 = vld [vmem:[#allocation2 + $0x98] sm:$0xff]
        %v2910 = vld [vmem:[#allocation2 + $0xa0] sm:$0xff]
        %v2911 = vld [vmem:[#allocation2 + $0xa8] sm:$0xff]
        %v2912 = vld [vmem:[#allocation2 + $0xb0] sm:$0xff]
        %v2913 = vld [vmem:[#allocation2 + $0xb8] sm:$0xff]
        %v2914 = vld [vmem:[#allocation2 + $0xc0] sm:$0xff]
        %v2915 = vld [vmem:[#allocation2 + $0xc8] sm:$0xff]
        %v2916 = vld [vmem:[#allocation2 + $0xd0] sm:$0xff]
        %v2917 = vld [vmem:[#allocation2 + $0xd8] sm:$0xff]
        %v2918 = vld [vmem:[#allocation2 + $0xe0] sm:$0xff]
        %v2919 = vld [vmem:[#allocation2 + $0xe8] sm:$0xff]
        %v2920 = vld [vmem:[#allocation2 + $0xf0] sm:$0xff]
        %v2921 = vld [vmem:[#allocation2 + $0xf8] sm:$0xff]
        %v2922 = vld [vmem:[#allocation2 + $0x100] sm:$0xff]
        %v2923 = vld [vmem:[#allocation2 + $0x108] sm:$0xff]
        %v2924 = vld [vmem:[#allocation2 + $0x110] sm:$0xff]
        %v2925 = vld [vmem:[#allocation2 + $0x118] sm:$0xff]
        %v2926 = vld [vmem:[#allocation2 + $0x120] sm:$0xff]
        %v2927 = vld [vmem:[#allocation2 + $0x128] sm:$0xff]
        %v2928 = vld [vmem:[#allocation2 + $0x130] sm:$0xff]
        %v2929 = vld [vmem:[#allocation2 + $0x138] sm:$0xff]
        %v2930 = vld [vmem:[#allocation2 + $0x140] sm:$0xff]
        %v2931 = vld [vmem:[#allocation2 + $0x148] sm:$0xff]
        %v2932 = vld [vmem:[#allocation2 + $0x150] sm:$0xff]
        %v2933 = vld [vmem:[#allocation2 + $0x158] sm:$0xff]
        %v2934 = vld [vmem:[#allocation2 + $0x160] sm:$0xff]
        %v2935 = vld [vmem:[#allocation2 + $0x168] sm:$0xff]
        %v2936 = vld [vmem:[#allocation2 + $0x170] sm:$0xff]
        %v2937 = vld [vmem:[#allocation2 + $0x178] sm:$0xff]
        %v2938 = vld [vmem:[#allocation2 + $0x180] sm:$0xff]
        %v2939 = vld [vmem:[#allocation2 + $0x188] sm:$0xff]
        %v2940 = vld [vmem:[#allocation2 + $0x190] sm:$0xff]
        %s2941 = scalar_lea.vmem [#allocation8], 384
        %v2942 = vld [vmem:[%s2941] sm:$0xff]
        %v2943 = vld [vmem:[%s2941 + $0x8] sm:$0xff]
        %v2944 = vld [vmem:[%s2941 + $0x10] sm:$0xff]
        %v2945 = vld [vmem:[%s2941 + $0x18] sm:$0xff]
        %v2946 = vld [vmem:[%s2941 + $0x20] sm:$0xff]
        %v2947 = vld [vmem:[%s2941 + $0x28] sm:$0xff]
        %v2948 = vld [vmem:[%s2941 + $0x30] sm:$0xff]
        %v2949 = vld [vmem:[%s2941 + $0x38] sm:$0xff]
        %v2950 = vld [vmem:[%s2941 + $0x40] sm:$0xff]
        %v2951 = vld [vmem:[%s2941 + $0x48] sm:$0xff]
        %v2952 = vld [vmem:[%s2941 + $0x50] sm:$0xff]
        %v2953 = vld [vmem:[%s2941 + $0x58] sm:$0xff]
        %v2954 = vld [vmem:[%s2941 + $0x60] sm:$0xff]
        %v2955 = vld [vmem:[%s2941 + $0x68] sm:$0xff]
        %v2956 = vld [vmem:[%s2941 + $0x70] sm:$0xff]
        %v2957 = vld [vmem:[%s2941 + $0x78] sm:$0xff]
        %2958 = vmatprep.subr.mxu0 0.0
        %2959 = vmatpush1.msra.mxu0 %v2942
        %2960 = vmatprep.subr.mxu0 0.0
        %2961 = vmatpush1.msra.mxu0 %v2943
        %2962 = vmatprep.subr.mxu0 0.0
        %2963 = vmatpush1.msra.mxu0 %v2944
        %2964 = vmatprep.subr.mxu0 0.0
        %2965 = vmatpush1.msra.mxu0 %v2945
        %2966 = vmatprep.subr.mxu0 0.0
        %2967 = vmatpush1.msra.mxu0 %v2946
        %2968 = vmatprep.subr.mxu0 0.0
        %2969 = vmatpush1.msra.mxu0 %v2947
        %2970 = vmatprep.subr.mxu0 0.0
        %2971 = vmatpush1.msra.mxu0 %v2948
        %2972 = vmatprep.subr.mxu0 0.0
        %2973 = vmatpush1.msra.mxu0 %v2949
        %2974 = vmatprep.subr.mxu0 0.0
        %2975 = vmatpush1.msra.mxu0 %v2950
        %2976 = vmatprep.subr.mxu0 0.0
        %2977 = vmatpush1.msra.mxu0 %v2951
        %2978 = vmatprep.subr.mxu0 0.0
        %2979 = vmatpush1.msra.mxu0 %v2952
        %2980 = vmatprep.subr.mxu0 0.0
        %2981 = vmatpush1.msra.mxu0 %v2953
        %2982 = vmatprep.subr.mxu0 0.0
        %2983 = vmatpush1.msra.mxu0 %v2954
        %2984 = vmatprep.subr.mxu0 0.0
        %2985 = vmatpush1.msra.mxu0 %v2955
        %2986 = vmatprep.subr.mxu0 0.0
        %2987 = vmatpush1.msra.mxu0 %v2956
        %2988 = vmatprep.subr.mxu0 0.0
        %2989 = vmatpush1.msra.mxu0 %v2957
        %2990 = vmatprep.subr.mxu0 0.0
        %2991 = vmatpush1.msra.mxu0 0.0
        %2992 = vmatprep.subr.mxu0 0.0
        %2993 = vmatpush1.msra.mxu0 0.0
        %2994 = vmatprep.subr.mxu0 0.0
        %2995 = vmatpush1.msra.mxu0 0.0
        %2996 = vmatprep.subr.mxu0 0.0
        %2997 = vmatpush1.msra.mxu0 0.0
        %2998 = vmatprep.subr.mxu0 0.0
        %2999 = vmatpush1.msra.mxu0 0.0
        %3000 = vmatprep.subr.mxu0 0.0
        %3001 = vmatpush1.msra.mxu0 0.0
        %3002 = vmatprep.subr.mxu0 0.0
        %3003 = vmatpush1.msra.mxu0 0.0
        %3004 = vmatprep.subr.mxu0 0.0
        %3005 = vmatpush1.msra.mxu0 0.0
        %3006 = vmatprep.subr.mxu0 0.0
        %3007 = vmatpush1.msra.mxu0 0.0
        %3008 = vmatprep.subr.mxu0 0.0
        %3009 = vmatpush1.msra.mxu0 0.0
        %3010 = vmatprep.subr.mxu0 0.0
        %3011 = vmatpush1.msra.mxu0 0.0
        %3012 = vmatprep.subr.mxu0 0.0
        %3013 = vmatpush1.msra.mxu0 0.0
        %3014 = vmatprep.subr.mxu0 0.0
        %3015 = vmatpush1.msra.mxu0 0.0
        %3016 = vmatprep.subr.mxu0 0.0
        %3017 = vmatpush1.msra.mxu0 0.0
        %3018 = vmatprep.subr.mxu0 0.0
        %3019 = vmatpush1.msra.mxu0 0.0
        %3020 = vmatprep.subr.mxu0 0.0
        %3021 = vmatpush1.msra.mxu0 0.0
        %3022 = vmatprep.mubr.f32.mxu0 0.0
        %3023 = vmatmul.mubr.f32.gmra.mrb[0].mxu0 %v2893
        %v3024 = vpop.f32.mrb[0].mxu0
        %v3025 = vadd.f32 0.0, %v3024
        %v3026 = vpop.f32.mrb[0].mxu0
        %3027 = vmatprep.mubr.f32.mxu0 0.0
        %3028 = vmatmul.mubr.f32.gmra.mrb[0].mxu0 %v2894
        %v3029 = vpop.f32.mrb[0].mxu0
        %v3030 = vadd.f32 0.0, %v3029
        %v3031 = vpop.f32.mrb[0].mxu0
        %3032 = vmatprep.mubr.f32.mxu0 0.0
        %3033 = vmatmul.mubr.f32.gmra.mrb[0].mxu0 %v2895
        %v3034 = vpop.f32.mrb[0].mxu0
        %v3035 = vadd.f32 0.0, %v3034
        %v3036 = vpop.f32.mrb[0].mxu0
        %3037 = vmatprep.mubr.f32.mxu0 0.0
        %3038 = vmatmul.mubr.f32.gmra.mrb[0].mxu0 %v2896
        %v3039 = vpop.f32.mrb[0].mxu0
        %v3040 = vadd.f32 0.0, %v3039
        %v3041 = vpop.f32.mrb[0].mxu0
        %3042 = vmatprep.mubr.f32.mxu0 0.0
        %3043 = vmatmul.mubr.f32.gmra.mrb[0].mxu0 %v2897
        %v3044 = vpop.f32.mrb[0].mxu0
        %v3045 = vadd.f32 0.0, %v3044
        %v3046 = vpop.f32.mrb[0].mxu0
        %3047 = vmatprep.mubr.f32.mxu0 0.0
        %3048 = vmatmul.mubr.f32.gmra.mrb[0].mxu0 %v2898
        %v3049 = vpop.f32.mrb[0].mxu0
        %v3050 = vadd.f32 0.0, %v3049
        %v3051 = vpop.f32.mrb[0].mxu0
        %3052 = vmatprep.mubr.f32.mxu0 0.0
        %3053 = vmatmul.mubr.f32.gmra.mrb[0].mxu0 %v2899
        %v3054 = vpop.f32.mrb[0].mxu0
        %v3055 = vadd.f32 0.0, %v3054
        %v3056 = vpop.f32.mrb[0].mxu0
        %3057 = vmatprep.mubr.f32.mxu0 0.0
        %3058 = vmatmul.mubr.f32.gmra.mrb[0].mxu0 %v2900
        %v3059 = vpop.f32.mrb[0].mxu0
        %v3060 = vadd.f32 0.0, %v3059
        %v3061 = vpop.f32.mrb[0].mxu0
        %3062 = vmatprep.mubr.f32.mxu0 0.0
        %3063 = vmatmul.mubr.f32.gmra.mrb[0].mxu0 %v2901
        %v3064 = vpop.f32.mrb[0].mxu0
        %v3065 = vadd.f32 0.0, %v3064
        %v3066 = vpop.f32.mrb[0].mxu0
        %3067 = vmatprep.mubr.f32.mxu0 0.0
        %3068 = vmatmul.mubr.f32.gmra.mrb[0].mxu0 %v2902
        %v3069 = vpop.f32.mrb[0].mxu0
        %v3070 = vadd.f32 0.0, %v3069
        %v3071 = vpop.f32.mrb[0].mxu0
        %3072 = vmatprep.mubr.f32.mxu0 0.0
        %3073 = vmatmul.mubr.f32.gmra.mrb[0].mxu0 %v2903
        %v3074 = vpop.f32.mrb[0].mxu0
        %v3075 = vadd.f32 0.0, %v3074
        %v3076 = vpop.f32.mrb[0].mxu0
        %3077 = vmatprep.mubr.f32.mxu0 0.0
        %3078 = vmatmul.mubr.f32.gmra.mrb[0].mxu0 %v2904
        %v3079 = vpop.f32.mrb[0].mxu0
        %v3080 = vadd.f32 0.0, %v3079
        %v3081 = vpop.f32.mrb[0].mxu0
        %3082 = vmatprep.mubr.f32.mxu0 0.0
        %3083 = vmatmul.mubr.f32.gmra.mrb[0].mxu0 %v2905
        %v3084 = vpop.f32.mrb[0].mxu0
        %v3085 = vadd.f32 0.0, %v3084
        %v3086 = vpop.f32.mrb[0].mxu0
        %3087 = vmatprep.mubr.f32.mxu0 0.0
        %3088 = vmatmul.mubr.f32.gmra.mrb[0].mxu0 %v2906
        %v3089 = vpop.f32.mrb[0].mxu0
        %v3090 = vadd.f32 0.0, %v3089
        %v3091 = vpop.f32.mrb[0].mxu0
        %3092 = vmatprep.mubr.f32.mxu0 0.0
        %3093 = vmatmul.mubr.f32.gmra.mrb[0].mxu0 %v2907
        %v3094 = vpop.f32.mrb[0].mxu0
        %v3095 = vadd.f32 0.0, %v3094
        %v3096 = vpop.f32.mrb[0].mxu0
        %3097 = vmatprep.mubr.f32.mxu0 0.0
        %3098 = vmatmul.mubr.f32.gmra.mrb[0].mxu0 %v2908
        %v3099 = vpop.f32.mrb[0].mxu0
        %v3100 = vadd.f32 0.0, %v3099
        %v3101 = vpop.f32.mrb[0].mxu0
        %3102 = vmatprep.mubr.f32.mxu0 0.0
        %3103 = vmatmul.mubr.f32.gmra.mrb[0].mxu0 %v2909
        %v3104 = vpop.f32.mrb[0].mxu0
        %v3105 = vadd.f32 0.0, %v3104
        %v3106 = vpop.f32.mrb[0].mxu0
        %3107 = vmatprep.mubr.f32.mxu0 0.0
        %3108 = vmatmul.mubr.f32.gmra.mrb[0].mxu0 %v2910
        %v3109 = vpop.f32.mrb[0].mxu0
        %v3110 = vadd.f32 0.0, %v3109
        %v3111 = vpop.f32.mrb[0].mxu0
        %3112 = vmatprep.mubr.f32.mxu0 0.0
        %3113 = vmatmul.mubr.f32.gmra.mrb[0].mxu0 %v2911
        %v3114 = vpop.f32.mrb[0].mxu0
        %v3115 = vadd.f32 0.0, %v3114
        %v3116 = vpop.f32.mrb[0].mxu0
        %3117 = vmatprep.mubr.f32.mxu0 0.0
        %3118 = vmatmul.mubr.f32.gmra.mrb[0].mxu0 %v2912
        %v3119 = vpop.f32.mrb[0].mxu0
        %v3120 = vadd.f32 0.0, %v3119
        %v3121 = vpop.f32.mrb[0].mxu0
        %3122 = vmatprep.mubr.f32.mxu0 0.0
        %3123 = vmatmul.mubr.f32.gmra.mrb[0].mxu0 %v2913
        %v3124 = vpop.f32.mrb[0].mxu0
        %v3125 = vadd.f32 0.0, %v3124
        %v3126 = vpop.f32.mrb[0].mxu0
        %3127 = vmatprep.mubr.f32.mxu0 0.0
        %3128 = vmatmul.mubr.f32.gmra.mrb[0].mxu0 %v2914
        %v3129 = vpop.f32.mrb[0].mxu0
        %v3130 = vadd.f32 0.0, %v3129
        %v3131 = vpop.f32.mrb[0].mxu0
        %3132 = vmatprep.mubr.f32.mxu0 0.0
        %3133 = vmatmul.mubr.f32.gmra.mrb[0].mxu0 %v2915
        %v3134 = vpop.f32.mrb[0].mxu0
        %v3135 = vadd.f32 0.0, %v3134
        %v3136 = vpop.f32.mrb[0].mxu0
        %3137 = vmatprep.mubr.f32.mxu0 0.0
        %3138 = vmatmul.mubr.f32.gmra.mrb[0].mxu0 %v2916
        %v3139 = vpop.f32.mrb[0].mxu0
        %v3140 = vadd.f32 0.0, %v3139
        %v3141 = vpop.f32.mrb[0].mxu0
        %3142 = vmatprep.mubr.f32.mxu0 0.0
        %3143 = vmatmul.mubr.f32.gmra.mrb[0].mxu0 %v2917
        %v3144 = vpop.f32.mrb[0].mxu0
        %v3145 = vadd.f32 0.0, %v3144
        %v3146 = vpop.f32.mrb[0].mxu0
        %3147 = vmatprep.mubr.f32.mxu0 0.0
        %3148 = vmatmul.mubr.f32.gmra.mrb[0].mxu0 %v2918
        %v3149 = vpop.f32.mrb[0].mxu0
        %v3150 = vadd.f32 0.0, %v3149
        %v3151 = vpop.f32.mrb[0].mxu0
        %3152 = vmatprep.mubr.f32.mxu0 0.0
        %3153 = vmatmul.mubr.f32.gmra.mrb[0].mxu0 %v2919
        %v3154 = vpop.f32.mrb[0].mxu0
        %v3155 = vadd.f32 0.0, %v3154
        %v3156 = vpop.f32.mrb[0].mxu0
        %3157 = vmatprep.mubr.f32.mxu0 0.0
        %3158 = vmatmul.mubr.f32.gmra.mrb[0].mxu0 %v2920
        %v3159 = vpop.f32.mrb[0].mxu0
        %v3160 = vadd.f32 0.0, %v3159
        %v3161 = vpop.f32.mrb[0].mxu0
        %3162 = vmatprep.mubr.f32.mxu0 0.0
        %3163 = vmatmul.mubr.f32.gmra.mrb[0].mxu0 %v2921
        %v3164 = vpop.f32.mrb[0].mxu0
        %v3165 = vadd.f32 0.0, %v3164
        %v3166 = vpop.f32.mrb[0].mxu0
        %3167 = vmatprep.mubr.f32.mxu0 0.0
        %3168 = vmatmul.mubr.f32.gmra.mrb[0].mxu0 %v2922
        %v3169 = vpop.f32.mrb[0].mxu0
        %v3170 = vadd.f32 0.0, %v3169
        %v3171 = vpop.f32.mrb[0].mxu0
        %3172 = vmatprep.mubr.f32.mxu0 0.0
        %3173 = vmatmul.mubr.f32.gmra.mrb[0].mxu0 %v2923
        %v3174 = vpop.f32.mrb[0].mxu0
        %v3175 = vadd.f32 0.0, %v3174
        %v3176 = vpop.f32.mrb[0].mxu0
        %3177 = vmatprep.mubr.f32.mxu0 0.0
        %3178 = vmatmul.mubr.f32.gmra.mrb[0].mxu0 %v2924
        %v3179 = vpop.f32.mrb[0].mxu0
        %v3180 = vadd.f32 0.0, %v3179
        %v3181 = vpop.f32.mrb[0].mxu0
        %3182 = vmatprep.mubr.f32.mxu0 0.0
        %3183 = vmatmul.mubr.f32.gmra.mrb[0].mxu0 %v2925
        %v3184 = vpop.f32.mrb[0].mxu0
        %v3185 = vadd.f32 0.0, %v3184
        %v3186 = vpop.f32.mrb[0].mxu0
        %3187 = vmatprep.mubr.f32.mxu0 0.0
        %3188 = vmatmul.mubr.f32.gmra.mrb[0].mxu0 %v2926
        %v3189 = vpop.f32.mrb[0].mxu0
        %v3190 = vadd.f32 0.0, %v3189
        %v3191 = vpop.f32.mrb[0].mxu0
        %3192 = vmatprep.mubr.f32.mxu0 0.0
        %3193 = vmatmul.mubr.f32.gmra.mrb[0].mxu0 %v2927
        %v3194 = vpop.f32.mrb[0].mxu0
        %v3195 = vadd.f32 0.0, %v3194
        %v3196 = vpop.f32.mrb[0].mxu0
        %3197 = vmatprep.mubr.f32.mxu0 0.0
        %3198 = vmatmul.mubr.f32.gmra.mrb[0].mxu0 %v2928
        %v3199 = vpop.f32.mrb[0].mxu0
        %v3200 = vadd.f32 0.0, %v3199
        %v3201 = vpop.f32.mrb[0].mxu0
        %3202 = vmatprep.mubr.f32.mxu0 0.0
        %3203 = vmatmul.mubr.f32.gmra.mrb[0].mxu0 %v2929
        %v3204 = vpop.f32.mrb[0].mxu0
        %v3205 = vadd.f32 0.0, %v3204
        %v3206 = vpop.f32.mrb[0].mxu0
        %3207 = vmatprep.mubr.f32.mxu0 0.0
        %3208 = vmatmul.mubr.f32.gmra.mrb[0].mxu0 %v2930
        %v3209 = vpop.f32.mrb[0].mxu0
        %v3210 = vadd.f32 0.0, %v3209
        %v3211 = vpop.f32.mrb[0].mxu0
        %3212 = vmatprep.mubr.f32.mxu0 0.0
        %3213 = vmatmul.mubr.f32.gmra.mrb[0].mxu0 %v2931
        %v3214 = vpop.f32.mrb[0].mxu0
        %v3215 = vadd.f32 0.0, %v3214
        %v3216 = vpop.f32.mrb[0].mxu0
        %3217 = vmatprep.mubr.f32.mxu0 0.0
        %3218 = vmatmul.mubr.f32.gmra.mrb[0].mxu0 %v2932
        %v3219 = vpop.f32.mrb[0].mxu0
        %v3220 = vadd.f32 0.0, %v3219
        %v3221 = vpop.f32.mrb[0].mxu0
        %3222 = vmatprep.mubr.f32.mxu0 0.0
        %3223 = vmatmul.mubr.f32.gmra.mrb[0].mxu0 %v2933
        %v3224 = vpop.f32.mrb[0].mxu0
        %v3225 = vadd.f32 0.0, %v3224
        %v3226 = vpop.f32.mrb[0].mxu0
        %3227 = vmatprep.mubr.f32.mxu0 0.0
        %3228 = vmatmul.mubr.f32.gmra.mrb[0].mxu0 %v2934
        %v3229 = vpop.f32.mrb[0].mxu0
        %v3230 = vadd.f32 0.0, %v3229
        %v3231 = vpop.f32.mrb[0].mxu0
        %3232 = vmatprep.mubr.f32.mxu0 0.0
        %3233 = vmatmul.mubr.f32.gmra.mrb[0].mxu0 %v2935
        %v3234 = vpop.f32.mrb[0].mxu0
        %v3235 = vadd.f32 0.0, %v3234
        %v3236 = vpop.f32.mrb[0].mxu0
        %3237 = vmatprep.mubr.f32.mxu0 0.0
        %3238 = vmatmul.mubr.f32.gmra.mrb[0].mxu0 %v2936
        %v3239 = vpop.f32.mrb[0].mxu0
        %v3240 = vadd.f32 0.0, %v3239
        %v3241 = vpop.f32.mrb[0].mxu0
        %3242 = vmatprep.mubr.f32.mxu0 0.0
        %3243 = vmatmul.mubr.f32.gmra.mrb[0].mxu0 %v2937
        %v3244 = vpop.f32.mrb[0].mxu0
        %v3245 = vadd.f32 0.0, %v3244
        %v3246 = vpop.f32.mrb[0].mxu0
        %3247 = vmatprep.mubr.f32.mxu0 0.0
        %3248 = vmatmul.mubr.f32.gmra.mrb[0].mxu0 %v2938
        %v3249 = vpop.f32.mrb[0].mxu0
        %v3250 = vadd.f32 0.0, %v3249
        %v3251 = vpop.f32.mrb[0].mxu0
        %3252 = vmatprep.mubr.f32.mxu0 0.0
        %3253 = vmatmul.mubr.f32.gmra.mrb[0].mxu0 %v2939
        %v3254 = vpop.f32.mrb[0].mxu0
        %v3255 = vadd.f32 0.0, %v3254
        %v3256 = vpop.f32.mrb[0].mxu0
        %3257 = vmatprep.mubr.f32.mxu0 0.0
        %3258 = vmatmul.mubr.f32.gmra.mrb[0].mxu0 %v2940
        %v3259 = vpop.f32.mrb[0].mxu0
        %v3260 = vadd.f32 0.0, %v3259
        %v3261 = vpop.f32.mrb[0].mxu0
        %3262 = vdwg.mxu0
        %v3263 = vadd.f32 %v2845, %v3025
        %v3264 = vadd.f32 %v2846, %v3030
        %v3265 = vadd.f32 %v2847, %v3035
        %v3266 = vadd.f32 %v2848, %v3040
        %v3267 = vadd.f32 %v2849, %v3045
        %v3268 = vadd.f32 %v2850, %v3050
        %v3269 = vadd.f32 %v2851, %v3055
        %v3270 = vadd.f32 %v2852, %v3060
        %v3271 = vadd.f32 %v2853, %v3065
        %v3272 = vadd.f32 %v2854, %v3070
        %v3273 = vadd.f32 %v2855, %v3075
        %v3274 = vadd.f32 %v2856, %v3080
        %v3275 = vadd.f32 %v2857, %v3085
        %v3276 = vadd.f32 %v2858, %v3090
        %v3277 = vadd.f32 %v2859, %v3095
        %v3278 = vadd.f32 %v2860, %v3100
        %v3279 = vadd.f32 %v2861, %v3105
        %v3280 = vadd.f32 %v2862, %v3110
        %v3281 = vadd.f32 %v2863, %v3115
        %v3282 = vadd.f32 %v2864, %v3120
        %v3283 = vadd.f32 %v2865, %v3125
        %v3284 = vadd.f32 %v2866, %v3130
        %v3285 = vadd.f32 %v2867, %v3135
        %v3286 = vadd.f32 %v2868, %v3140
        %v3287 = vadd.f32 %v2869, %v3145
        %v3288 = vadd.f32 %v2870, %v3150
        %v3289 = vadd.f32 %v2871, %v3155
        %v3290 = vadd.f32 %v2872, %v3160
        %v3291 = vadd.f32 %v2873, %v3165
        %v3292 = vadd.f32 %v2874, %v3170
        %v3293 = vadd.f32 %v2875, %v3175
        %v3294 = vadd.f32 %v2876, %v3180
        %v3295 = vadd.f32 %v2877, %v3185
        %v3296 = vadd.f32 %v2878, %v3190
        %v3297 = vadd.f32 %v2879, %v3195
        %v3298 = vadd.f32 %v2880, %v3200
        %v3299 = vadd.f32 %v2881, %v3205
        %v3300 = vadd.f32 %v2882, %v3210
        %v3301 = vadd.f32 %v2883, %v3215
        %v3302 = vadd.f32 %v2884, %v3220
        %v3303 = vadd.f32 %v2885, %v3225
        %v3304 = vadd.f32 %v2886, %v3230
        %v3305 = vadd.f32 %v2887, %v3235
        %v3306 = vadd.f32 %v2888, %v3240
        %v3307 = vadd.f32 %v2889, %v3245
        %v3308 = vadd.f32 %v2890, %v3250
        %v3309 = vadd.f32 %v2891, %v3255
        %v3310 = vadd.f32 %v2892, %v3260
        %v3311 = vld [vmem:[#allocation2 + $0x19] sm:$0xff]
        %v3312 = vld [vmem:[#allocation2 + $0x21] sm:$0xff]
        %v3313 = vld [vmem:[#allocation2 + $0x29] sm:$0xff]
        %v3314 = vld [vmem:[#allocation2 + $0x31] sm:$0xff]
        %v3315 = vld [vmem:[#allocation2 + $0x39] sm:$0xff]
        %v3316 = vld [vmem:[#allocation2 + $0x41] sm:$0xff]
        %v3317 = vld [vmem:[#allocation2 + $0x49] sm:$0xff]
        %v3318 = vld [vmem:[#allocation2 + $0x51] sm:$0xff]
        %v3319 = vld [vmem:[#allocation2 + $0x59] sm:$0xff]
        %v3320 = vld [vmem:[#allocation2 + $0x61] sm:$0xff]
        %v3321 = vld [vmem:[#allocation2 + $0x69] sm:$0xff]
        %v3322 = vld [vmem:[#allocation2 + $0x71] sm:$0xff]
        %v3323 = vld [vmem:[#allocation2 + $0x79] sm:$0xff]
        %v3324 = vld [vmem:[#allocation2 + $0x81] sm:$0xff]
        %v3325 = vld [vmem:[#allocation2 + $0x89] sm:$0xff]
        %v3326 = vld [vmem:[#allocation2 + $0x91] sm:$0xff]
        %v3327 = vld [vmem:[#allocation2 + $0x99] sm:$0xff]
        %v3328 = vld [vmem:[#allocation2 + $0xa1] sm:$0xff]
        %v3329 = vld [vmem:[#allocation2 + $0xa9] sm:$0xff]
        %v3330 = vld [vmem:[#allocation2 + $0xb1] sm:$0xff]
        %v3331 = vld [vmem:[#allocation2 + $0xb9] sm:$0xff]
        %v3332 = vld [vmem:[#allocation2 + $0xc1] sm:$0xff]
        %v3333 = vld [vmem:[#allocation2 + $0xc9] sm:$0xff]
        %v3334 = vld [vmem:[#allocation2 + $0xd1] sm:$0xff]
        %v3335 = vld [vmem:[#allocation2 + $0xd9] sm:$0xff]
        %v3336 = vld [vmem:[#allocation2 + $0xe1] sm:$0xff]
        %v3337 = vld [vmem:[#allocation2 + $0xe9] sm:$0xff]
        %v3338 = vld [vmem:[#allocation2 + $0xf1] sm:$0xff]
        %v3339 = vld [vmem:[#allocation2 + $0xf9] sm:$0xff]
        %v3340 = vld [vmem:[#allocation2 + $0x101] sm:$0xff]
        %v3341 = vld [vmem:[#allocation2 + $0x109] sm:$0xff]
        %v3342 = vld [vmem:[#allocation2 + $0x111] sm:$0xff]
        %v3343 = vld [vmem:[#allocation2 + $0x119] sm:$0xff]
        %v3344 = vld [vmem:[#allocation2 + $0x121] sm:$0xff]
        %v3345 = vld [vmem:[#allocation2 + $0x129] sm:$0xff]
        %v3346 = vld [vmem:[#allocation2 + $0x131] sm:$0xff]
        %v3347 = vld [vmem:[#allocation2 + $0x139] sm:$0xff]
        %v3348 = vld [vmem:[#allocation2 + $0x141] sm:$0xff]
        %v3349 = vld [vmem:[#allocation2 + $0x149] sm:$0xff]
        %v3350 = vld [vmem:[#allocation2 + $0x151] sm:$0xff]
        %v3351 = vld [vmem:[#allocation2 + $0x159] sm:$0xff]
        %v3352 = vld [vmem:[#allocation2 + $0x161] sm:$0xff]
        %v3353 = vld [vmem:[#allocation2 + $0x169] sm:$0xff]
        %v3354 = vld [vmem:[#allocation2 + $0x171] sm:$0xff]
        %v3355 = vld [vmem:[#allocation2 + $0x179] sm:$0xff]
        %v3356 = vld [vmem:[#allocation2 + $0x181] sm:$0xff]
        %v3357 = vld [vmem:[#allocation2 + $0x189] sm:$0xff]
        %v3358 = vld [vmem:[#allocation2 + $0x191] sm:$0xff]
        %s3359 = scalar_lea.vmem [#allocation8], 512
        %v3360 = vld [vmem:[%s3359] sm:$0xff]
        %v3361 = vld [vmem:[%s3359 + $0x8] sm:$0xff]
        %v3362 = vld [vmem:[%s3359 + $0x10] sm:$0xff]
        %v3363 = vld [vmem:[%s3359 + $0x18] sm:$0xff]
        %v3364 = vld [vmem:[%s3359 + $0x20] sm:$0xff]
        %v3365 = vld [vmem:[%s3359 + $0x28] sm:$0xff]
        %v3366 = vld [vmem:[%s3359 + $0x30] sm:$0xff]
        %v3367 = vld [vmem:[%s3359 + $0x38] sm:$0xff]
        %v3368 = vld [vmem:[%s3359 + $0x40] sm:$0xff]
        %v3369 = vld [vmem:[%s3359 + $0x48] sm:$0xff]
        %v3370 = vld [vmem:[%s3359 + $0x50] sm:$0xff]
        %v3371 = vld [vmem:[%s3359 + $0x58] sm:$0xff]
        %v3372 = vld [vmem:[%s3359 + $0x60] sm:$0xff]
        %v3373 = vld [vmem:[%s3359 + $0x68] sm:$0xff]
        %v3374 = vld [vmem:[%s3359 + $0x70] sm:$0xff]
        %v3375 = vld [vmem:[%s3359 + $0x78] sm:$0xff]
        %3376 = vmatprep.subr.mxu0 0.0
        %3377 = vmatpush1.msra.mxu0 %v3360
        %3378 = vmatprep.subr.mxu0 0.0
        %3379 = vmatpush1.msra.mxu0 %v3361
        %3380 = vmatprep.subr.mxu0 0.0
        %3381 = vmatpush1.msra.mxu0 %v3362
        %3382 = vmatprep.subr.mxu0 0.0
        %3383 = vmatpush1.msra.mxu0 %v3363
        %3384 = vmatprep.subr.mxu0 0.0
        %3385 = vmatpush1.msra.mxu0 %v3364
        %3386 = vmatprep.subr.mxu0 0.0
        %3387 = vmatpush1.msra.mxu0 %v3365
        %3388 = vmatprep.subr.mxu0 0.0
        %3389 = vmatpush1.msra.mxu0 %v3366
        %3390 = vmatprep.subr.mxu0 0.0
        %3391 = vmatpush1.msra.mxu0 %v3367
        %3392 = vmatprep.subr.mxu0 0.0
        %3393 = vmatpush1.msra.mxu0 %v3368
        %3394 = vmatprep.subr.mxu0 0.0
        %3395 = vmatpush1.msra.mxu0 %v3369
        %3396 = vmatprep.subr.mxu0 0.0
        %3397 = vmatpush1.msra.mxu0 %v3370
        %3398 = vmatprep.subr.mxu0 0.0
        %3399 = vmatpush1.msra.mxu0 %v3371
        %3400 = vmatprep.subr.mxu0 0.0
        %3401 = vmatpush1.msra.mxu0 %v3372
        %3402 = vmatprep.subr.mxu0 0.0
        %3403 = vmatpush1.msra.mxu0 %v3373
        %3404 = vmatprep.subr.mxu0 0.0
        %3405 = vmatpush1.msra.mxu0 %v3374
        %3406 = vmatprep.subr.mxu0 0.0
        %3407 = vmatpush1.msra.mxu0 %v3375
        %3408 = vmatprep.subr.mxu0 0.0
        %3409 = vmatpush1.msra.mxu0 0.0
        %3410 = vmatprep.subr.mxu0 0.0
        %3411 = vmatpush1.msra.mxu0 0.0
        %3412 = vmatprep.subr.mxu0 0.0
        %3413 = vmatpush1.msra.mxu0 0.0
        %3414 = vmatprep.subr.mxu0 0.0
        %3415 = vmatpush1.msra.mxu0 0.0
        %3416 = vmatprep.subr.mxu0 0.0
        %3417 = vmatpush1.msra.mxu0 0.0
        %3418 = vmatprep.subr.mxu0 0.0
        %3419 = vmatpush1.msra.mxu0 0.0
        %3420 = vmatprep.subr.mxu0 0.0
        %3421 = vmatpush1.msra.mxu0 0.0
        %3422 = vmatprep.subr.mxu0 0.0
        %3423 = vmatpush1.msra.mxu0 0.0
        %3424 = vmatprep.subr.mxu0 0.0
        %3425 = vmatpush1.msra.mxu0 0.0
        %3426 = vmatprep.subr.mxu0 0.0
        %3427 = vmatpush1.msra.mxu0 0.0
        %3428 = vmatprep.subr.mxu0 0.0
        %3429 = vmatpush1.msra.mxu0 0.0
        %3430 = vmatprep.subr.mxu0 0.0
        %3431 = vmatpush1.msra.mxu0 0.0
        %3432 = vmatprep.subr.mxu0 0.0
        %3433 = vmatpush1.msra.mxu0 0.0
        %3434 = vmatprep.subr.mxu0 0.0
        %3435 = vmatpush1.msra.mxu0 0.0
        %3436 = vmatprep.subr.mxu0 0.0
        %3437 = vmatpush1.msra.mxu0 0.0
        %3438 = vmatprep.subr.mxu0 0.0
        %3439 = vmatpush1.msra.mxu0 0.0
        %3440 = vmatprep.mubr.f32.mxu0 0.0
        %3441 = vmatmul.mubr.f32.gmra.mrb[0].mxu0 %v3311
        %v3442 = vpop.f32.mrb[0].mxu0
        %v3443 = vadd.f32 0.0, %v3442
        %v3444 = vpop.f32.mrb[0].mxu0
        %3445 = vmatprep.mubr.f32.mxu0 0.0
        %3446 = vmatmul.mubr.f32.gmra.mrb[0].mxu0 %v3312
        %v3447 = vpop.f32.mrb[0].mxu0
        %v3448 = vadd.f32 0.0, %v3447
        %v3449 = vpop.f32.mrb[0].mxu0
        %3450 = vmatprep.mubr.f32.mxu0 0.0
        %3451 = vmatmul.mubr.f32.gmra.mrb[0].mxu0 %v3313
        %v3452 = vpop.f32.mrb[0].mxu0
        %v3453 = vadd.f32 0.0, %v3452
        %v3454 = vpop.f32.mrb[0].mxu0
        %3455 = vmatprep.mubr.f32.mxu0 0.0
        %3456 = vmatmul.mubr.f32.gmra.mrb[0].mxu0 %v3314
        %v3457 = vpop.f32.mrb[0].mxu0
        %v3458 = vadd.f32 0.0, %v3457
        %v3459 = vpop.f32.mrb[0].mxu0
        %3460 = vmatprep.mubr.f32.mxu0 0.0
        %3461 = vmatmul.mubr.f32.gmra.mrb[0].mxu0 %v3315
        %v3462 = vpop.f32.mrb[0].mxu0
        %v3463 = vadd.f32 0.0, %v3462
        %v3464 = vpop.f32.mrb[0].mxu0
        %3465 = vmatprep.mubr.f32.mxu0 0.0
        %3466 = vmatmul.mubr.f32.gmra.mrb[0].mxu0 %v3316
        %v3467 = vpop.f32.mrb[0].mxu0
        %v3468 = vadd.f32 0.0, %v3467
        %v3469 = vpop.f32.mrb[0].mxu0
        %3470 = vmatprep.mubr.f32.mxu0 0.0
        %3471 = vmatmul.mubr.f32.gmra.mrb[0].mxu0 %v3317
        %v3472 = vpop.f32.mrb[0].mxu0
        %v3473 = vadd.f32 0.0, %v3472
        %v3474 = vpop.f32.mrb[0].mxu0
        %3475 = vmatprep.mubr.f32.mxu0 0.0
        %3476 = vmatmul.mubr.f32.gmra.mrb[0].mxu0 %v3318
        %v3477 = vpop.f32.mrb[0].mxu0
        %v3478 = vadd.f32 0.0, %v3477
        %v3479 = vpop.f32.mrb[0].mxu0
        %3480 = vmatprep.mubr.f32.mxu0 0.0
        %3481 = vmatmul.mubr.f32.gmra.mrb[0].mxu0 %v3319
        %v3482 = vpop.f32.mrb[0].mxu0
        %v3483 = vadd.f32 0.0, %v3482
        %v3484 = vpop.f32.mrb[0].mxu0
        %3485 = vmatprep.mubr.f32.mxu0 0.0
        %3486 = vmatmul.mubr.f32.gmra.mrb[0].mxu0 %v3320
        %v3487 = vpop.f32.mrb[0].mxu0
        %v3488 = vadd.f32 0.0, %v3487
        %v3489 = vpop.f32.mrb[0].mxu0
        %3490 = vmatprep.mubr.f32.mxu0 0.0
        %3491 = vmatmul.mubr.f32.gmra.mrb[0].mxu0 %v3321
        %v3492 = vpop.f32.mrb[0].mxu0
        %v3493 = vadd.f32 0.0, %v3492
        %v3494 = vpop.f32.mrb[0].mxu0
        %3495 = vmatprep.mubr.f32.mxu0 0.0
        %3496 = vmatmul.mubr.f32.gmra.mrb[0].mxu0 %v3322
        %v3497 = vpop.f32.mrb[0].mxu0
        %v3498 = vadd.f32 0.0, %v3497
        %v3499 = vpop.f32.mrb[0].mxu0
        %3500 = vmatprep.mubr.f32.mxu0 0.0
        %3501 = vmatmul.mubr.f32.gmra.mrb[0].mxu0 %v3323
        %v3502 = vpop.f32.mrb[0].mxu0
        %v3503 = vadd.f32 0.0, %v3502
        %v3504 = vpop.f32.mrb[0].mxu0
        %3505 = vmatprep.mubr.f32.mxu0 0.0
        %3506 = vmatmul.mubr.f32.gmra.mrb[0].mxu0 %v3324
        %v3507 = vpop.f32.mrb[0].mxu0
        %v3508 = vadd.f32 0.0, %v3507
        %v3509 = vpop.f32.mrb[0].mxu0
        %3510 = vmatprep.mubr.f32.mxu0 0.0
        %3511 = vmatmul.mubr.f32.gmra.mrb[0].mxu0 %v3325
        %v3512 = vpop.f32.mrb[0].mxu0
        %v3513 = vadd.f32 0.0, %v3512
        %v3514 = vpop.f32.mrb[0].mxu0
        %3515 = vmatprep.mubr.f32.mxu0 0.0
        %3516 = vmatmul.mubr.f32.gmra.mrb[0].mxu0 %v3326
        %v3517 = vpop.f32.mrb[0].mxu0
        %v3518 = vadd.f32 0.0, %v3517
        %v3519 = vpop.f32.mrb[0].mxu0
        %3520 = vmatprep.mubr.f32.mxu0 0.0
        %3521 = vmatmul.mubr.f32.gmra.mrb[0].mxu0 %v3327
        %v3522 = vpop.f32.mrb[0].mxu0
        %v3523 = vadd.f32 0.0, %v3522
        %v3524 = vpop.f32.mrb[0].mxu0
        %3525 = vmatprep.mubr.f32.mxu0 0.0
        %3526 = vmatmul.mubr.f32.gmra.mrb[0].mxu0 %v3328
        %v3527 = vpop.f32.mrb[0].mxu0
        %v3528 = vadd.f32 0.0, %v3527
        %v3529 = vpop.f32.mrb[0].mxu0
        %3530 = vmatprep.mubr.f32.mxu0 0.0
        %3531 = vmatmul.mubr.f32.gmra.mrb[0].mxu0 %v3329
        %v3532 = vpop.f32.mrb[0].mxu0
        %v3533 = vadd.f32 0.0, %v3532
        %v3534 = vpop.f32.mrb[0].mxu0
        %3535 = vmatprep.mubr.f32.mxu0 0.0
        %3536 = vmatmul.mubr.f32.gmra.mrb[0].mxu0 %v3330
        %v3537 = vpop.f32.mrb[0].mxu0
        %v3538 = vadd.f32 0.0, %v3537
        %v3539 = vpop.f32.mrb[0].mxu0
        %3540 = vmatprep.mubr.f32.mxu0 0.0
        %3541 = vmatmul.mubr.f32.gmra.mrb[0].mxu0 %v3331
        %v3542 = vpop.f32.mrb[0].mxu0
        %v3543 = vadd.f32 0.0, %v3542
        %v3544 = vpop.f32.mrb[0].mxu0
        %3545 = vmatprep.mubr.f32.mxu0 0.0
        %3546 = vmatmul.mubr.f32.gmra.mrb[0].mxu0 %v3332
        %v3547 = vpop.f32.mrb[0].mxu0
        %v3548 = vadd.f32 0.0, %v3547
        %v3549 = vpop.f32.mrb[0].mxu0
        %3550 = vmatprep.mubr.f32.mxu0 0.0
        %3551 = vmatmul.mubr.f32.gmra.mrb[0].mxu0 %v3333
        %v3552 = vpop.f32.mrb[0].mxu0
        %v3553 = vadd.f32 0.0, %v3552
        %v3554 = vpop.f32.mrb[0].mxu0
        %3555 = vmatprep.mubr.f32.mxu0 0.0
        %3556 = vmatmul.mubr.f32.gmra.mrb[0].mxu0 %v3334
        %v3557 = vpop.f32.mrb[0].mxu0
        %v3558 = vadd.f32 0.0, %v3557
        %v3559 = vpop.f32.mrb[0].mxu0
        %3560 = vmatprep.mubr.f32.mxu0 0.0
        %3561 = vmatmul.mubr.f32.gmra.mrb[0].mxu0 %v3335
        %v3562 = vpop.f32.mrb[0].mxu0
        %v3563 = vadd.f32 0.0, %v3562
        %v3564 = vpop.f32.mrb[0].mxu0
        %3565 = vmatprep.mubr.f32.mxu0 0.0
        %3566 = vmatmul.mubr.f32.gmra.mrb[0].mxu0 %v3336
        %v3567 = vpop.f32.mrb[0].mxu0
        %v3568 = vadd.f32 0.0, %v3567
        %v3569 = vpop.f32.mrb[0].mxu0
        %3570 = vmatprep.mubr.f32.mxu0 0.0
        %3571 = vmatmul.mubr.f32.gmra.mrb[0].mxu0 %v3337
        %v3572 = vpop.f32.mrb[0].mxu0
        %v3573 = vadd.f32 0.0, %v3572
        %v3574 = vpop.f32.mrb[0].mxu0
        %3575 = vmatprep.mubr.f32.mxu0 0.0
        %3576 = vmatmul.mubr.f32.gmra.mrb[0].mxu0 %v3338
        %v3577 = vpop.f32.mrb[0].mxu0
        %v3578 = vadd.f32 0.0, %v3577
        %v3579 = vpop.f32.mrb[0].mxu0
        %3580 = vmatprep.mubr.f32.mxu0 0.0
        %3581 = vmatmul.mubr.f32.gmra.mrb[0].mxu0 %v3339
        %v3582 = vpop.f32.mrb[0].mxu0
        %v3583 = vadd.f32 0.0, %v3582
        %v3584 = vpop.f32.mrb[0].mxu0
        %3585 = vmatprep.mubr.f32.mxu0 0.0
        %3586 = vmatmul.mubr.f32.gmra.mrb[0].mxu0 %v3340
        %v3587 = vpop.f32.mrb[0].mxu0
        %v3588 = vadd.f32 0.0, %v3587
        %v3589 = vpop.f32.mrb[0].mxu0
        %3590 = vmatprep.mubr.f32.mxu0 0.0
        %3591 = vmatmul.mubr.f32.gmra.mrb[0].mxu0 %v3341
        %v3592 = vpop.f32.mrb[0].mxu0
        %v3593 = vadd.f32 0.0, %v3592
        %v3594 = vpop.f32.mrb[0].mxu0
        %3595 = vmatprep.mubr.f32.mxu0 0.0
        %3596 = vmatmul.mubr.f32.gmra.mrb[0].mxu0 %v3342
        %v3597 = vpop.f32.mrb[0].mxu0
        %v3598 = vadd.f32 0.0, %v3597
        %v3599 = vpop.f32.mrb[0].mxu0
        %3600 = vmatprep.mubr.f32.mxu0 0.0
        %3601 = vmatmul.mubr.f32.gmra.mrb[0].mxu0 %v3343
        %v3602 = vpop.f32.mrb[0].mxu0
        %v3603 = vadd.f32 0.0, %v3602
        %v3604 = vpop.f32.mrb[0].mxu0
        %3605 = vmatprep.mubr.f32.mxu0 0.0
        %3606 = vmatmul.mubr.f32.gmra.mrb[0].mxu0 %v3344
        %v3607 = vpop.f32.mrb[0].mxu0
        %v3608 = vadd.f32 0.0, %v3607
        %v3609 = vpop.f32.mrb[0].mxu0
        %3610 = vmatprep.mubr.f32.mxu0 0.0
        %3611 = vmatmul.mubr.f32.gmra.mrb[0].mxu0 %v3345
        %v3612 = vpop.f32.mrb[0].mxu0
        %v3613 = vadd.f32 0.0, %v3612
        %v3614 = vpop.f32.mrb[0].mxu0
        %3615 = vmatprep.mubr.f32.mxu0 0.0
        %3616 = vmatmul.mubr.f32.gmra.mrb[0].mxu0 %v3346
        %v3617 = vpop.f32.mrb[0].mxu0
        %v3618 = vadd.f32 0.0, %v3617
        %v3619 = vpop.f32.mrb[0].mxu0
        %3620 = vmatprep.mubr.f32.mxu0 0.0
        %3621 = vmatmul.mubr.f32.gmra.mrb[0].mxu0 %v3347
        %v3622 = vpop.f32.mrb[0].mxu0
        %v3623 = vadd.f32 0.0, %v3622
        %v3624 = vpop.f32.mrb[0].mxu0
        %3625 = vmatprep.mubr.f32.mxu0 0.0
        %3626 = vmatmul.mubr.f32.gmra.mrb[0].mxu0 %v3348
        %v3627 = vpop.f32.mrb[0].mxu0
        %v3628 = vadd.f32 0.0, %v3627
        %v3629 = vpop.f32.mrb[0].mxu0
        %3630 = vmatprep.mubr.f32.mxu0 0.0
        %3631 = vmatmul.mubr.f32.gmra.mrb[0].mxu0 %v3349
        %v3632 = vpop.f32.mrb[0].mxu0
        %v3633 = vadd.f32 0.0, %v3632
        %v3634 = vpop.f32.mrb[0].mxu0
        %3635 = vmatprep.mubr.f32.mxu0 0.0
        %3636 = vmatmul.mubr.f32.gmra.mrb[0].mxu0 %v3350
        %v3637 = vpop.f32.mrb[0].mxu0
        %v3638 = vadd.f32 0.0, %v3637
        %v3639 = vpop.f32.mrb[0].mxu0
        %3640 = vmatprep.mubr.f32.mxu0 0.0
        %3641 = vmatmul.mubr.f32.gmra.mrb[0].mxu0 %v3351
        %v3642 = vpop.f32.mrb[0].mxu0
        %v3643 = vadd.f32 0.0, %v3642
        %v3644 = vpop.f32.mrb[0].mxu0
        %3645 = vmatprep.mubr.f32.mxu0 0.0
        %3646 = vmatmul.mubr.f32.gmra.mrb[0].mxu0 %v3352
        %v3647 = vpop.f32.mrb[0].mxu0
        %v3648 = vadd.f32 0.0, %v3647
        %v3649 = vpop.f32.mrb[0].mxu0
        %3650 = vmatprep.mubr.f32.mxu0 0.0
        %3651 = vmatmul.mubr.f32.gmra.mrb[0].mxu0 %v3353
        %v3652 = vpop.f32.mrb[0].mxu0
        %v3653 = vadd.f32 0.0, %v3652
        %v3654 = vpop.f32.mrb[0].mxu0
        %3655 = vmatprep.mubr.f32.mxu0 0.0
        %3656 = vmatmul.mubr.f32.gmra.mrb[0].mxu0 %v3354
        %v3657 = vpop.f32.mrb[0].mxu0
        %v3658 = vadd.f32 0.0, %v3657
        %v3659 = vpop.f32.mrb[0].mxu0
        %3660 = vmatprep.mubr.f32.mxu0 0.0
        %3661 = vmatmul.mubr.f32.gmra.mrb[0].mxu0 %v3355
        %v3662 = vpop.f32.mrb[0].mxu0
        %v3663 = vadd.f32 0.0, %v3662
        %v3664 = vpop.f32.mrb[0].mxu0
        %3665 = vmatprep.mubr.f32.mxu0 0.0
        %3666 = vmatmul.mubr.f32.gmra.mrb[0].mxu0 %v3356
        %v3667 = vpop.f32.mrb[0].mxu0
        %v3668 = vadd.f32 0.0, %v3667
        %v3669 = vpop.f32.mrb[0].mxu0
        %3670 = vmatprep.mubr.f32.mxu0 0.0
        %3671 = vmatmul.mubr.f32.gmra.mrb[0].mxu0 %v3357
        %v3672 = vpop.f32.mrb[0].mxu0
        %v3673 = vadd.f32 0.0, %v3672
        %v3674 = vpop.f32.mrb[0].mxu0
        %3675 = vmatprep.mubr.f32.mxu0 0.0
        %3676 = vmatmul.mubr.f32.gmra.mrb[0].mxu0 %v3358
        %v3677 = vpop.f32.mrb[0].mxu0
        %v3678 = vadd.f32 0.0, %v3677
        %v3679 = vpop.f32.mrb[0].mxu0
        %3680 = vdwg.mxu0
        %v3681 = vadd.f32 %v3263, %v3443
        %v3682 = vadd.f32 %v3264, %v3448
        %v3683 = vadd.f32 %v3265, %v3453
        %v3684 = vadd.f32 %v3266, %v3458
        %v3685 = vadd.f32 %v3267, %v3463
        %v3686 = vadd.f32 %v3268, %v3468
        %v3687 = vadd.f32 %v3269, %v3473
        %v3688 = vadd.f32 %v3270, %v3478
        %v3689 = vadd.f32 %v3271, %v3483
        %v3690 = vadd.f32 %v3272, %v3488
        %v3691 = vadd.f32 %v3273, %v3493
        %v3692 = vadd.f32 %v3274, %v3498
        %v3693 = vadd.f32 %v3275, %v3503
        %v3694 = vadd.f32 %v3276, %v3508
        %v3695 = vadd.f32 %v3277, %v3513
        %v3696 = vadd.f32 %v3278, %v3518
        %v3697 = vadd.f32 %v3279, %v3523
        %v3698 = vadd.f32 %v3280, %v3528
        %v3699 = vadd.f32 %v3281, %v3533
        %v3700 = vadd.f32 %v3282, %v3538
        %v3701 = vadd.f32 %v3283, %v3543
        %v3702 = vadd.f32 %v3284, %v3548
        %v3703 = vadd.f32 %v3285, %v3553
        %v3704 = vadd.f32 %v3286, %v3558
        %v3705 = vadd.f32 %v3287, %v3563
        %v3706 = vadd.f32 %v3288, %v3568
        %v3707 = vadd.f32 %v3289, %v3573
        %v3708 = vadd.f32 %v3290, %v3578
        %v3709 = vadd.f32 %v3291, %v3583
        %v3710 = vadd.f32 %v3292, %v3588
        %v3711 = vadd.f32 %v3293, %v3593
        %v3712 = vadd.f32 %v3294, %v3598
        %v3713 = vadd.f32 %v3295, %v3603
        %v3714 = vadd.f32 %v3296, %v3608
        %v3715 = vadd.f32 %v3297, %v3613
        %v3716 = vadd.f32 %v3298, %v3618
        %v3717 = vadd.f32 %v3299, %v3623
        %v3718 = vadd.f32 %v3300, %v3628
        %v3719 = vadd.f32 %v3301, %v3633
        %v3720 = vadd.f32 %v3302, %v3638
        %v3721 = vadd.f32 %v3303, %v3643
        %v3722 = vadd.f32 %v3304, %v3648
        %v3723 = vadd.f32 %v3305, %v3653
        %v3724 = vadd.f32 %v3306, %v3658
        %v3725 = vadd.f32 %v3307, %v3663
        %v3726 = vadd.f32 %v3308, %v3668
        %v3727 = vadd.f32 %v3309, %v3673
        %v3728 = vadd.f32 %v3310, %v3678
        %v3729 = vld [vmem:[#allocation2 + $0x1a] sm:$0xff]
        %v3730 = vld [vmem:[#allocation2 + $0x22] sm:$0xff]
        %v3731 = vld [vmem:[#allocation2 + $0x2a] sm:$0xff]
        %v3732 = vld [vmem:[#allocation2 + $0x32] sm:$0xff]
        %v3733 = vld [vmem:[#allocation2 + $0x3a] sm:$0xff]
        %v3734 = vld [vmem:[#allocation2 + $0x42] sm:$0xff]
        %v3735 = vld [vmem:[#allocation2 + $0x4a] sm:$0xff]
        %v3736 = vld [vmem:[#allocation2 + $0x52] sm:$0xff]
        %v3737 = vld [vmem:[#allocation2 + $0x5a] sm:$0xff]
        %v3738 = vld [vmem:[#allocation2 + $0x62] sm:$0xff]
        %v3739 = vld [vmem:[#allocation2 + $0x6a] sm:$0xff]
        %v3740 = vld [vmem:[#allocation2 + $0x72] sm:$0xff]
        %v3741 = vld [vmem:[#allocation2 + $0x7a] sm:$0xff]
        %v3742 = vld [vmem:[#allocation2 + $0x82] sm:$0xff]
        %v3743 = vld [vmem:[#allocation2 + $0x8a] sm:$0xff]
        %v3744 = vld [vmem:[#allocation2 + $0x92] sm:$0xff]
        %v3745 = vld [vmem:[#allocation2 + $0x9a] sm:$0xff]
        %v3746 = vld [vmem:[#allocation2 + $0xa2] sm:$0xff]
        %v3747 = vld [vmem:[#allocation2 + $0xaa] sm:$0xff]
        %v3748 = vld [vmem:[#allocation2 + $0xb2] sm:$0xff]
        %v3749 = vld [vmem:[#allocation2 + $0xba] sm:$0xff]
        %v3750 = vld [vmem:[#allocation2 + $0xc2] sm:$0xff]
        %v3751 = vld [vmem:[#allocation2 + $0xca] sm:$0xff]
        %v3752 = vld [vmem:[#allocation2 + $0xd2] sm:$0xff]
        %v3753 = vld [vmem:[#allocation2 + $0xda] sm:$0xff]
        %v3754 = vld [vmem:[#allocation2 + $0xe2] sm:$0xff]
        %v3755 = vld [vmem:[#allocation2 + $0xea] sm:$0xff]
        %v3756 = vld [vmem:[#allocation2 + $0xf2] sm:$0xff]
        %v3757 = vld [vmem:[#allocation2 + $0xfa] sm:$0xff]
        %v3758 = vld [vmem:[#allocation2 + $0x102] sm:$0xff]
        %v3759 = vld [vmem:[#allocation2 + $0x10a] sm:$0xff]
        %v3760 = vld [vmem:[#allocation2 + $0x112] sm:$0xff]
        %v3761 = vld [vmem:[#allocation2 + $0x11a] sm:$0xff]
        %v3762 = vld [vmem:[#allocation2 + $0x122] sm:$0xff]
        %v3763 = vld [vmem:[#allocation2 + $0x12a] sm:$0xff]
        %v3764 = vld [vmem:[#allocation2 + $0x132] sm:$0xff]
        %v3765 = vld [vmem:[#allocation2 + $0x13a] sm:$0xff]
        %v3766 = vld [vmem:[#allocation2 + $0x142] sm:$0xff]
        %v3767 = vld [vmem:[#allocation2 + $0x14a] sm:$0xff]
        %v3768 = vld [vmem:[#allocation2 + $0x152] sm:$0xff]
        %v3769 = vld [vmem:[#allocation2 + $0x15a] sm:$0xff]
        %v3770 = vld [vmem:[#allocation2 + $0x162] sm:$0xff]
        %v3771 = vld [vmem:[#allocation2 + $0x16a] sm:$0xff]
        %v3772 = vld [vmem:[#allocation2 + $0x172] sm:$0xff]
        %v3773 = vld [vmem:[#allocation2 + $0x17a] sm:$0xff]
        %v3774 = vld [vmem:[#allocation2 + $0x182] sm:$0xff]
        %v3775 = vld [vmem:[#allocation2 + $0x18a] sm:$0xff]
        %v3776 = vld [vmem:[#allocation2 + $0x192] sm:$0xff]
        %s3777 = scalar_lea.vmem [#allocation8], 640
        %v3778 = vld [vmem:[%s3777] sm:$0xff]
        %v3779 = vld [vmem:[%s3777 + $0x8] sm:$0xff]
        %v3780 = vld [vmem:[%s3777 + $0x10] sm:$0xff]
        %v3781 = vld [vmem:[%s3777 + $0x18] sm:$0xff]
        %v3782 = vld [vmem:[%s3777 + $0x20] sm:$0xff]
        %v3783 = vld [vmem:[%s3777 + $0x28] sm:$0xff]
        %v3784 = vld [vmem:[%s3777 + $0x30] sm:$0xff]
        %v3785 = vld [vmem:[%s3777 + $0x38] sm:$0xff]
        %v3786 = vld [vmem:[%s3777 + $0x40] sm:$0xff]
        %v3787 = vld [vmem:[%s3777 + $0x48] sm:$0xff]
        %v3788 = vld [vmem:[%s3777 + $0x50] sm:$0xff]
        %v3789 = vld [vmem:[%s3777 + $0x58] sm:$0xff]
        %v3790 = vld [vmem:[%s3777 + $0x60] sm:$0xff]
        %v3791 = vld [vmem:[%s3777 + $0x68] sm:$0xff]
        %v3792 = vld [vmem:[%s3777 + $0x70] sm:$0xff]
        %v3793 = vld [vmem:[%s3777 + $0x78] sm:$0xff]
        %3794 = vmatprep.subr.mxu0 0.0
        %3795 = vmatpush1.msra.mxu0 %v3778
        %3796 = vmatprep.subr.mxu0 0.0
        %3797 = vmatpush1.msra.mxu0 %v3779
        %3798 = vmatprep.subr.mxu0 0.0
        %3799 = vmatpush1.msra.mxu0 %v3780
        %3800 = vmatprep.subr.mxu0 0.0
        %3801 = vmatpush1.msra.mxu0 %v3781
        %3802 = vmatprep.subr.mxu0 0.0
        %3803 = vmatpush1.msra.mxu0 %v3782
        %3804 = vmatprep.subr.mxu0 0.0
        %3805 = vmatpush1.msra.mxu0 %v3783
        %3806 = vmatprep.subr.mxu0 0.0
        %3807 = vmatpush1.msra.mxu0 %v3784
        %3808 = vmatprep.subr.mxu0 0.0
        %3809 = vmatpush1.msra.mxu0 %v3785
        %3810 = vmatprep.subr.mxu0 0.0
        %3811 = vmatpush1.msra.mxu0 %v3786
        %3812 = vmatprep.subr.mxu0 0.0
        %3813 = vmatpush1.msra.mxu0 %v3787
        %3814 = vmatprep.subr.mxu0 0.0
        %3815 = vmatpush1.msra.mxu0 %v3788
        %3816 = vmatprep.subr.mxu0 0.0
        %3817 = vmatpush1.msra.mxu0 %v3789
        %3818 = vmatprep.subr.mxu0 0.0
        %3819 = vmatpush1.msra.mxu0 %v3790
        %3820 = vmatprep.subr.mxu0 0.0
        %3821 = vmatpush1.msra.mxu0 %v3791
        %3822 = vmatprep.subr.mxu0 0.0
        %3823 = vmatpush1.msra.mxu0 %v3792
        %3824 = vmatprep.subr.mxu0 0.0
        %3825 = vmatpush1.msra.mxu0 %v3793
        %3826 = vmatprep.subr.mxu0 0.0
        %3827 = vmatpush1.msra.mxu0 0.0
        %3828 = vmatprep.subr.mxu0 0.0
        %3829 = vmatpush1.msra.mxu0 0.0
        %3830 = vmatprep.subr.mxu0 0.0
        %3831 = vmatpush1.msra.mxu0 0.0
        %3832 = vmatprep.subr.mxu0 0.0
        %3833 = vmatpush1.msra.mxu0 0.0
        %3834 = vmatprep.subr.mxu0 0.0
        %3835 = vmatpush1.msra.mxu0 0.0
        %3836 = vmatprep.subr.mxu0 0.0
        %3837 = vmatpush1.msra.mxu0 0.0
        %3838 = vmatprep.subr.mxu0 0.0
        %3839 = vmatpush1.msra.mxu0 0.0
        %3840 = vmatprep.subr.mxu0 0.0
        %3841 = vmatpush1.msra.mxu0 0.0
        %3842 = vmatprep.subr.mxu0 0.0
        %3843 = vmatpush1.msra.mxu0 0.0
        %3844 = vmatprep.subr.mxu0 0.0
        %3845 = vmatpush1.msra.mxu0 0.0
        %3846 = vmatprep.subr.mxu0 0.0
        %3847 = vmatpush1.msra.mxu0 0.0
        %3848 = vmatprep.subr.mxu0 0.0
        %3849 = vmatpush1.msra.mxu0 0.0
        %3850 = vmatprep.subr.mxu0 0.0
        %3851 = vmatpush1.msra.mxu0 0.0
        %3852 = vmatprep.subr.mxu0 0.0
        %3853 = vmatpush1.msra.mxu0 0.0
        %3854 = vmatprep.subr.mxu0 0.0
        %3855 = vmatpush1.msra.mxu0 0.0
        %3856 = vmatprep.subr.mxu0 0.0
        %3857 = vmatpush1.msra.mxu0 0.0
        %3858 = vmatprep.mubr.f32.mxu0 0.0
        %3859 = vmatmul.mubr.f32.gmra.mrb[0].mxu0 %v3729
        %v3860 = vpop.f32.mrb[0].mxu0
        %v3861 = vadd.f32 0.0, %v3860
        %v3862 = vpop.f32.mrb[0].mxu0
        %3863 = vmatprep.mubr.f32.mxu0 0.0
        %3864 = vmatmul.mubr.f32.gmra.mrb[0].mxu0 %v3730
        %v3865 = vpop.f32.mrb[0].mxu0
        %v3866 = vadd.f32 0.0, %v3865
        %v3867 = vpop.f32.mrb[0].mxu0
        %3868 = vmatprep.mubr.f32.mxu0 0.0
        %3869 = vmatmul.mubr.f32.gmra.mrb[0].mxu0 %v3731
        %v3870 = vpop.f32.mrb[0].mxu0
        %v3871 = vadd.f32 0.0, %v3870
        %v3872 = vpop.f32.mrb[0].mxu0
        %3873 = vmatprep.mubr.f32.mxu0 0.0
        %3874 = vmatmul.mubr.f32.gmra.mrb[0].mxu0 %v3732
        %v3875 = vpop.f32.mrb[0].mxu0
        %v3876 = vadd.f32 0.0, %v3875
        %v3877 = vpop.f32.mrb[0].mxu0
        %3878 = vmatprep.mubr.f32.mxu0 0.0
        %3879 = vmatmul.mubr.f32.gmra.mrb[0].mxu0 %v3733
        %v3880 = vpop.f32.mrb[0].mxu0
        %v3881 = vadd.f32 0.0, %v3880
        %v3882 = vpop.f32.mrb[0].mxu0
        %3883 = vmatprep.mubr.f32.mxu0 0.0
        %3884 = vmatmul.mubr.f32.gmra.mrb[0].mxu0 %v3734
        %v3885 = vpop.f32.mrb[0].mxu0
        %v3886 = vadd.f32 0.0, %v3885
        %v3887 = vpop.f32.mrb[0].mxu0
        %3888 = vmatprep.mubr.f32.mxu0 0.0
        %3889 = vmatmul.mubr.f32.gmra.mrb[0].mxu0 %v3735
        %v3890 = vpop.f32.mrb[0].mxu0
        %v3891 = vadd.f32 0.0, %v3890
        %v3892 = vpop.f32.mrb[0].mxu0
        %3893 = vmatprep.mubr.f32.mxu0 0.0
        %3894 = vmatmul.mubr.f32.gmra.mrb[0].mxu0 %v3736
        %v3895 = vpop.f32.mrb[0].mxu0
        %v3896 = vadd.f32 0.0, %v3895
        %v3897 = vpop.f32.mrb[0].mxu0
        %3898 = vmatprep.mubr.f32.mxu0 0.0
        %3899 = vmatmul.mubr.f32.gmra.mrb[0].mxu0 %v3737
        %v3900 = vpop.f32.mrb[0].mxu0
        %v3901 = vadd.f32 0.0, %v3900
        %v3902 = vpop.f32.mrb[0].mxu0
        %3903 = vmatprep.mubr.f32.mxu0 0.0
        %3904 = vmatmul.mubr.f32.gmra.mrb[0].mxu0 %v3738
        %v3905 = vpop.f32.mrb[0].mxu0
        %v3906 = vadd.f32 0.0, %v3905
        %v3907 = vpop.f32.mrb[0].mxu0
        %3908 = vmatprep.mubr.f32.mxu0 0.0
        %3909 = vmatmul.mubr.f32.gmra.mrb[0].mxu0 %v3739
        %v3910 = vpop.f32.mrb[0].mxu0
        %v3911 = vadd.f32 0.0, %v3910
        %v3912 = vpop.f32.mrb[0].mxu0
        %3913 = vmatprep.mubr.f32.mxu0 0.0
        %3914 = vmatmul.mubr.f32.gmra.mrb[0].mxu0 %v3740
        %v3915 = vpop.f32.mrb[0].mxu0
        %v3916 = vadd.f32 0.0, %v3915
        %v3917 = vpop.f32.mrb[0].mxu0
        %3918 = vmatprep.mubr.f32.mxu0 0.0
        %3919 = vmatmul.mubr.f32.gmra.mrb[0].mxu0 %v3741
        %v3920 = vpop.f32.mrb[0].mxu0
        %v3921 = vadd.f32 0.0, %v3920
        %v3922 = vpop.f32.mrb[0].mxu0
        %3923 = vmatprep.mubr.f32.mxu0 0.0
        %3924 = vmatmul.mubr.f32.gmra.mrb[0].mxu0 %v3742
        %v3925 = vpop.f32.mrb[0].mxu0
        %v3926 = vadd.f32 0.0, %v3925
        %v3927 = vpop.f32.mrb[0].mxu0
        %3928 = vmatprep.mubr.f32.mxu0 0.0
        %3929 = vmatmul.mubr.f32.gmra.mrb[0].mxu0 %v3743
        %v3930 = vpop.f32.mrb[0].mxu0
        %v3931 = vadd.f32 0.0, %v3930
        %v3932 = vpop.f32.mrb[0].mxu0
        %3933 = vmatprep.mubr.f32.mxu0 0.0
        %3934 = vmatmul.mubr.f32.gmra.mrb[0].mxu0 %v3744
        %v3935 = vpop.f32.mrb[0].mxu0
        %v3936 = vadd.f32 0.0, %v3935
        %v3937 = vpop.f32.mrb[0].mxu0
        %3938 = vmatprep.mubr.f32.mxu0 0.0
        %3939 = vmatmul.mubr.f32.gmra.mrb[0].mxu0 %v3745
        %v3940 = vpop.f32.mrb[0].mxu0
        %v3941 = vadd.f32 0.0, %v3940
        %v3942 = vpop.f32.mrb[0].mxu0
        %3943 = vmatprep.mubr.f32.mxu0 0.0
        %3944 = vmatmul.mubr.f32.gmra.mrb[0].mxu0 %v3746
        %v3945 = vpop.f32.mrb[0].mxu0
        %v3946 = vadd.f32 0.0, %v3945
        %v3947 = vpop.f32.mrb[0].mxu0
        %3948 = vmatprep.mubr.f32.mxu0 0.0
        %3949 = vmatmul.mubr.f32.gmra.mrb[0].mxu0 %v3747
        %v3950 = vpop.f32.mrb[0].mxu0
        %v3951 = vadd.f32 0.0, %v3950
        %v3952 = vpop.f32.mrb[0].mxu0
        %3953 = vmatprep.mubr.f32.mxu0 0.0
        %3954 = vmatmul.mubr.f32.gmra.mrb[0].mxu0 %v3748
        %v3955 = vpop.f32.mrb[0].mxu0
        %v3956 = vadd.f32 0.0, %v3955
        %v3957 = vpop.f32.mrb[0].mxu0
        %3958 = vmatprep.mubr.f32.mxu0 0.0
        %3959 = vmatmul.mubr.f32.gmra.mrb[0].mxu0 %v3749
        %v3960 = vpop.f32.mrb[0].mxu0
        %v3961 = vadd.f32 0.0, %v3960
        %v3962 = vpop.f32.mrb[0].mxu0
        %3963 = vmatprep.mubr.f32.mxu0 0.0
        %3964 = vmatmul.mubr.f32.gmra.mrb[0].mxu0 %v3750
        %v3965 = vpop.f32.mrb[0].mxu0
        %v3966 = vadd.f32 0.0, %v3965
        %v3967 = vpop.f32.mrb[0].mxu0
        %3968 = vmatprep.mubr.f32.mxu0 0.0
        %3969 = vmatmul.mubr.f32.gmra.mrb[0].mxu0 %v3751
        %v3970 = vpop.f32.mrb[0].mxu0
        %v3971 = vadd.f32 0.0, %v3970
        %v3972 = vpop.f32.mrb[0].mxu0
        %3973 = vmatprep.mubr.f32.mxu0 0.0
        %3974 = vmatmul.mubr.f32.gmra.mrb[0].mxu0 %v3752
        %v3975 = vpop.f32.mrb[0].mxu0
        %v3976 = vadd.f32 0.0, %v3975
        %v3977 = vpop.f32.mrb[0].mxu0
        %3978 = vmatprep.mubr.f32.mxu0 0.0
        %3979 = vmatmul.mubr.f32.gmra.mrb[0].mxu0 %v3753
        %v3980 = vpop.f32.mrb[0].mxu0
        %v3981 = vadd.f32 0.0, %v3980
        %v3982 = vpop.f32.mrb[0].mxu0
        %3983 = vmatprep.mubr.f32.mxu0 0.0
        %3984 = vmatmul.mubr.f32.gmra.mrb[0].mxu0 %v3754
        %v3985 = vpop.f32.mrb[0].mxu0
        %v3986 = vadd.f32 0.0, %v3985
        %v3987 = vpop.f32.mrb[0].mxu0
        %3988 = vmatprep.mubr.f32.mxu0 0.0
        %3989 = vmatmul.mubr.f32.gmra.mrb[0].mxu0 %v3755
        %v3990 = vpop.f32.mrb[0].mxu0
        %v3991 = vadd.f32 0.0, %v3990
        %v3992 = vpop.f32.mrb[0].mxu0
        %3993 = vmatprep.mubr.f32.mxu0 0.0
        %3994 = vmatmul.mubr.f32.gmra.mrb[0].mxu0 %v3756
        %v3995 = vpop.f32.mrb[0].mxu0
        %v3996 = vadd.f32 0.0, %v3995
        %v3997 = vpop.f32.mrb[0].mxu0
        %3998 = vmatprep.mubr.f32.mxu0 0.0
        %3999 = vmatmul.mubr.f32.gmra.mrb[0].mxu0 %v3757
        %v4000 = vpop.f32.mrb[0].mxu0
        %v4001 = vadd.f32 0.0, %v4000
        %v4002 = vpop.f32.mrb[0].mxu0
        %4003 = vmatprep.mubr.f32.mxu0 0.0
        %4004 = vmatmul.mubr.f32.gmra.mrb[0].mxu0 %v3758
        %v4005 = vpop.f32.mrb[0].mxu0
        %v4006 = vadd.f32 0.0, %v4005
        %v4007 = vpop.f32.mrb[0].mxu0
        %4008 = vmatprep.mubr.f32.mxu0 0.0
        %4009 = vmatmul.mubr.f32.gmra.mrb[0].mxu0 %v3759
        %v4010 = vpop.f32.mrb[0].mxu0
        %v4011 = vadd.f32 0.0, %v4010
        %v4012 = vpop.f32.mrb[0].mxu0
        %4013 = vmatprep.mubr.f32.mxu0 0.0
        %4014 = vmatmul.mubr.f32.gmra.mrb[0].mxu0 %v3760
        %v4015 = vpop.f32.mrb[0].mxu0
        %v4016 = vadd.f32 0.0, %v4015
        %v4017 = vpop.f32.mrb[0].mxu0
        %4018 = vmatprep.mubr.f32.mxu0 0.0
        %4019 = vmatmul.mubr.f32.gmra.mrb[0].mxu0 %v3761
        %v4020 = vpop.f32.mrb[0].mxu0
        %v4021 = vadd.f32 0.0, %v4020
        %v4022 = vpop.f32.mrb[0].mxu0
        %4023 = vmatprep.mubr.f32.mxu0 0.0
        %4024 = vmatmul.mubr.f32.gmra.mrb[0].mxu0 %v3762
        %v4025 = vpop.f32.mrb[0].mxu0
        %v4026 = vadd.f32 0.0, %v4025
        %v4027 = vpop.f32.mrb[0].mxu0
        %4028 = vmatprep.mubr.f32.mxu0 0.0
        %4029 = vmatmul.mubr.f32.gmra.mrb[0].mxu0 %v3763
        %v4030 = vpop.f32.mrb[0].mxu0
        %v4031 = vadd.f32 0.0, %v4030
        %v4032 = vpop.f32.mrb[0].mxu0
        %4033 = vmatprep.mubr.f32.mxu0 0.0
        %4034 = vmatmul.mubr.f32.gmra.mrb[0].mxu0 %v3764
        %v4035 = vpop.f32.mrb[0].mxu0
        %v4036 = vadd.f32 0.0, %v4035
        %v4037 = vpop.f32.mrb[0].mxu0
        %4038 = vmatprep.mubr.f32.mxu0 0.0
        %4039 = vmatmul.mubr.f32.gmra.mrb[0].mxu0 %v3765
        %v4040 = vpop.f32.mrb[0].mxu0
        %v4041 = vadd.f32 0.0, %v4040
        %v4042 = vpop.f32.mrb[0].mxu0
        %4043 = vmatprep.mubr.f32.mxu0 0.0
        %4044 = vmatmul.mubr.f32.gmra.mrb[0].mxu0 %v3766
        %v4045 = vpop.f32.mrb[0].mxu0
        %v4046 = vadd.f32 0.0, %v4045
        %v4047 = vpop.f32.mrb[0].mxu0
        %4048 = vmatprep.mubr.f32.mxu0 0.0
        %4049 = vmatmul.mubr.f32.gmra.mrb[0].mxu0 %v3767
        %v4050 = vpop.f32.mrb[0].mxu0
        %v4051 = vadd.f32 0.0, %v4050
        %v4052 = vpop.f32.mrb[0].mxu0
        %4053 = vmatprep.mubr.f32.mxu0 0.0
        %4054 = vmatmul.mubr.f32.gmra.mrb[0].mxu0 %v3768
        %v4055 = vpop.f32.mrb[0].mxu0
        %v4056 = vadd.f32 0.0, %v4055
        %v4057 = vpop.f32.mrb[0].mxu0
        %4058 = vmatprep.mubr.f32.mxu0 0.0
        %4059 = vmatmul.mubr.f32.gmra.mrb[0].mxu0 %v3769
        %v4060 = vpop.f32.mrb[0].mxu0
        %v4061 = vadd.f32 0.0, %v4060
        %v4062 = vpop.f32.mrb[0].mxu0
        %4063 = vmatprep.mubr.f32.mxu0 0.0
        %4064 = vmatmul.mubr.f32.gmra.mrb[0].mxu0 %v3770
        %v4065 = vpop.f32.mrb[0].mxu0
        %v4066 = vadd.f32 0.0, %v4065
        %v4067 = vpop.f32.mrb[0].mxu0
        %4068 = vmatprep.mubr.f32.mxu0 0.0
        %4069 = vmatmul.mubr.f32.gmra.mrb[0].mxu0 %v3771
        %v4070 = vpop.f32.mrb[0].mxu0
        %v4071 = vadd.f32 0.0, %v4070
        %v4072 = vpop.f32.mrb[0].mxu0
        %4073 = vmatprep.mubr.f32.mxu0 0.0
        %4074 = vmatmul.mubr.f32.gmra.mrb[0].mxu0 %v3772
        %v4075 = vpop.f32.mrb[0].mxu0
        %v4076 = vadd.f32 0.0, %v4075
        %v4077 = vpop.f32.mrb[0].mxu0
        %4078 = vmatprep.mubr.f32.mxu0 0.0
        %4079 = vmatmul.mubr.f32.gmra.mrb[0].mxu0 %v3773
        %v4080 = vpop.f32.mrb[0].mxu0
        %v4081 = vadd.f32 0.0, %v4080
        %v4082 = vpop.f32.mrb[0].mxu0
        %4083 = vmatprep.mubr.f32.mxu0 0.0
        %4084 = vmatmul.mubr.f32.gmra.mrb[0].mxu0 %v3774
        %v4085 = vpop.f32.mrb[0].mxu0
        %v4086 = vadd.f32 0.0, %v4085
        %v4087 = vpop.f32.mrb[0].mxu0
        %4088 = vmatprep.mubr.f32.mxu0 0.0
        %4089 = vmatmul.mubr.f32.gmra.mrb[0].mxu0 %v3775
        %v4090 = vpop.f32.mrb[0].mxu0
        %v4091 = vadd.f32 0.0, %v4090
        %v4092 = vpop.f32.mrb[0].mxu0
        %4093 = vmatprep.mubr.f32.mxu0 0.0
        %4094 = vmatmul.mubr.f32.gmra.mrb[0].mxu0 %v3776
        %v4095 = vpop.f32.mrb[0].mxu0
        %v4096 = vadd.f32 0.0, %v4095
        %v4097 = vpop.f32.mrb[0].mxu0
        %4098 = vdwg.mxu0
        %v4099 = vadd.f32 %v3681, %v3861
        %v4100 = vadd.f32 %v3682, %v3866
        %v4101 = vadd.f32 %v3683, %v3871
        %v4102 = vadd.f32 %v3684, %v3876
        %v4103 = vadd.f32 %v3685, %v3881
        %v4104 = vadd.f32 %v3686, %v3886
        %v4105 = vadd.f32 %v3687, %v3891
        %v4106 = vadd.f32 %v3688, %v3896
        %v4107 = vadd.f32 %v3689, %v3901
        %v4108 = vadd.f32 %v3690, %v3906
        %v4109 = vadd.f32 %v3691, %v3911
        %v4110 = vadd.f32 %v3692, %v3916
        %v4111 = vadd.f32 %v3693, %v3921
        %v4112 = vadd.f32 %v3694, %v3926
        %v4113 = vadd.f32 %v3695, %v3931
        %v4114 = vadd.f32 %v3696, %v3936
        %v4115 = vadd.f32 %v3697, %v3941
        %v4116 = vadd.f32 %v3698, %v3946
        %v4117 = vadd.f32 %v3699, %v3951
        %v4118 = vadd.f32 %v3700, %v3956
        %v4119 = vadd.f32 %v3701, %v3961
        %v4120 = vadd.f32 %v3702, %v3966
        %v4121 = vadd.f32 %v3703, %v3971
        %v4122 = vadd.f32 %v3704, %v3976
        %v4123 = vadd.f32 %v3705, %v3981
        %v4124 = vadd.f32 %v3706, %v3986
        %v4125 = vadd.f32 %v3707, %v3991
        %v4126 = vadd.f32 %v3708, %v3996
        %v4127 = vadd.f32 %v3709, %v4001
        %v4128 = vadd.f32 %v3710, %v4006
        %v4129 = vadd.f32 %v3711, %v4011
        %v4130 = vadd.f32 %v3712, %v4016
        %v4131 = vadd.f32 %v3713, %v4021
        %v4132 = vadd.f32 %v3714, %v4026
        %v4133 = vadd.f32 %v3715, %v4031
        %v4134 = vadd.f32 %v3716, %v4036
        %v4135 = vadd.f32 %v3717, %v4041
        %v4136 = vadd.f32 %v3718, %v4046
        %v4137 = vadd.f32 %v3719, %v4051
        %v4138 = vadd.f32 %v3720, %v4056
        %v4139 = vadd.f32 %v3721, %v4061
        %v4140 = vadd.f32 %v3722, %v4066
        %v4141 = vadd.f32 %v3723, %v4071
        %v4142 = vadd.f32 %v3724, %v4076
        %v4143 = vadd.f32 %v3725, %v4081
        %v4144 = vadd.f32 %v3726, %v4086
        %v4145 = vadd.f32 %v3727, %v4091
        %v4146 = vadd.f32 %v3728, %v4096
        %v4147 = vld [vmem:[#allocation2 + $0x30] sm:$0xff]
        %v4148 = vld [vmem:[#allocation2 + $0x38] sm:$0xff]
        %v4149 = vld [vmem:[#allocation2 + $0x40] sm:$0xff]
        %v4150 = vld [vmem:[#allocation2 + $0x48] sm:$0xff]
        %v4151 = vld [vmem:[#allocation2 + $0x50] sm:$0xff]
        %v4152 = vld [vmem:[#allocation2 + $0x58] sm:$0xff]
        %v4153 = vld [vmem:[#allocation2 + $0x60] sm:$0xff]
        %v4154 = vld [vmem:[#allocation2 + $0x68] sm:$0xff]
        %v4155 = vld [vmem:[#allocation2 + $0x70] sm:$0xff]
        %v4156 = vld [vmem:[#allocation2 + $0x78] sm:$0xff]
        %v4157 = vld [vmem:[#allocation2 + $0x80] sm:$0xff]
        %v4158 = vld [vmem:[#allocation2 + $0x88] sm:$0xff]
        %v4159 = vld [vmem:[#allocation2 + $0x90] sm:$0xff]
        %v4160 = vld [vmem:[#allocation2 + $0x98] sm:$0xff]
        %v4161 = vld [vmem:[#allocation2 + $0xa0] sm:$0xff]
        %v4162 = vld [vmem:[#allocation2 + $0xa8] sm:$0xff]
        %v4163 = vld [vmem:[#allocation2 + $0xb0] sm:$0xff]
        %v4164 = vld [vmem:[#allocation2 + $0xb8] sm:$0xff]
        %v4165 = vld [vmem:[#allocation2 + $0xc0] sm:$0xff]
        %v4166 = vld [vmem:[#allocation2 + $0xc8] sm:$0xff]
        %v4167 = vld [vmem:[#allocation2 + $0xd0] sm:$0xff]
        %v4168 = vld [vmem:[#allocation2 + $0xd8] sm:$0xff]
        %v4169 = vld [vmem:[#allocation2 + $0xe0] sm:$0xff]
        %v4170 = vld [vmem:[#allocation2 + $0xe8] sm:$0xff]
        %v4171 = vld [vmem:[#allocation2 + $0xf0] sm:$0xff]
        %v4172 = vld [vmem:[#allocation2 + $0xf8] sm:$0xff]
        %v4173 = vld [vmem:[#allocation2 + $0x100] sm:$0xff]
        %v4174 = vld [vmem:[#allocation2 + $0x108] sm:$0xff]
        %v4175 = vld [vmem:[#allocation2 + $0x110] sm:$0xff]
        %v4176 = vld [vmem:[#allocation2 + $0x118] sm:$0xff]
        %v4177 = vld [vmem:[#allocation2 + $0x120] sm:$0xff]
        %v4178 = vld [vmem:[#allocation2 + $0x128] sm:$0xff]
        %v4179 = vld [vmem:[#allocation2 + $0x130] sm:$0xff]
        %v4180 = vld [vmem:[#allocation2 + $0x138] sm:$0xff]
        %v4181 = vld [vmem:[#allocation2 + $0x140] sm:$0xff]
        %v4182 = vld [vmem:[#allocation2 + $0x148] sm:$0xff]
        %v4183 = vld [vmem:[#allocation2 + $0x150] sm:$0xff]
        %v4184 = vld [vmem:[#allocation2 + $0x158] sm:$0xff]
        %v4185 = vld [vmem:[#allocation2 + $0x160] sm:$0xff]
        %v4186 = vld [vmem:[#allocation2 + $0x168] sm:$0xff]
        %v4187 = vld [vmem:[#allocation2 + $0x170] sm:$0xff]
        %v4188 = vld [vmem:[#allocation2 + $0x178] sm:$0xff]
        %v4189 = vld [vmem:[#allocation2 + $0x180] sm:$0xff]
        %v4190 = vld [vmem:[#allocation2 + $0x188] sm:$0xff]
        %v4191 = vld [vmem:[#allocation2 + $0x190] sm:$0xff]
        %v4192 = vld [vmem:[#allocation2 + $0x198] sm:$0xff]
        %v4193 = vld [vmem:[#allocation2 + $0x1a0] sm:$0xff]
        %v4194 = vld [vmem:[#allocation2 + $0x1a8] sm:$0xff]
        %s4195 = scalar_lea.vmem [#allocation8], 768
        %v4196 = vld [vmem:[%s4195] sm:$0xff]
        %v4197 = vld [vmem:[%s4195 + $0x8] sm:$0xff]
        %v4198 = vld [vmem:[%s4195 + $0x10] sm:$0xff]
        %v4199 = vld [vmem:[%s4195 + $0x18] sm:$0xff]
        %v4200 = vld [vmem:[%s4195 + $0x20] sm:$0xff]
        %v4201 = vld [vmem:[%s4195 + $0x28] sm:$0xff]
        %v4202 = vld [vmem:[%s4195 + $0x30] sm:$0xff]
        %v4203 = vld [vmem:[%s4195 + $0x38] sm:$0xff]
        %v4204 = vld [vmem:[%s4195 + $0x40] sm:$0xff]
        %v4205 = vld [vmem:[%s4195 + $0x48] sm:$0xff]
        %v4206 = vld [vmem:[%s4195 + $0x50] sm:$0xff]
        %v4207 = vld [vmem:[%s4195 + $0x58] sm:$0xff]
        %v4208 = vld [vmem:[%s4195 + $0x60] sm:$0xff]
        %v4209 = vld [vmem:[%s4195 + $0x68] sm:$0xff]
        %v4210 = vld [vmem:[%s4195 + $0x70] sm:$0xff]
        %v4211 = vld [vmem:[%s4195 + $0x78] sm:$0xff]
        %4212 = vmatprep.subr.mxu0 0.0
        %4213 = vmatpush1.msra.mxu0 %v4196
        %4214 = vmatprep.subr.mxu0 0.0
        %4215 = vmatpush1.msra.mxu0 %v4197
        %4216 = vmatprep.subr.mxu0 0.0
        %4217 = vmatpush1.msra.mxu0 %v4198
        %4218 = vmatprep.subr.mxu0 0.0
        %4219 = vmatpush1.msra.mxu0 %v4199
        %4220 = vmatprep.subr.mxu0 0.0
        %4221 = vmatpush1.msra.mxu0 %v4200
        %4222 = vmatprep.subr.mxu0 0.0
        %4223 = vmatpush1.msra.mxu0 %v4201
        %4224 = vmatprep.subr.mxu0 0.0
        %4225 = vmatpush1.msra.mxu0 %v4202
        %4226 = vmatprep.subr.mxu0 0.0
        %4227 = vmatpush1.msra.mxu0 %v4203
        %4228 = vmatprep.subr.mxu0 0.0
        %4229 = vmatpush1.msra.mxu0 %v4204
        %4230 = vmatprep.subr.mxu0 0.0
        %4231 = vmatpush1.msra.mxu0 %v4205
        %4232 = vmatprep.subr.mxu0 0.0
        %4233 = vmatpush1.msra.mxu0 %v4206
        %4234 = vmatprep.subr.mxu0 0.0
        %4235 = vmatpush1.msra.mxu0 %v4207
        %4236 = vmatprep.subr.mxu0 0.0
        %4237 = vmatpush1.msra.mxu0 %v4208
        %4238 = vmatprep.subr.mxu0 0.0
        %4239 = vmatpush1.msra.mxu0 %v4209
        %4240 = vmatprep.subr.mxu0 0.0
        %4241 = vmatpush1.msra.mxu0 %v4210
        %4242 = vmatprep.subr.mxu0 0.0
        %4243 = vmatpush1.msra.mxu0 %v4211
        %4244 = vmatprep.subr.mxu0 0.0
        %4245 = vmatpush1.msra.mxu0 0.0
        %4246 = vmatprep.subr.mxu0 0.0
        %4247 = vmatpush1.msra.mxu0 0.0
        %4248 = vmatprep.subr.mxu0 0.0
        %4249 = vmatpush1.msra.mxu0 0.0
        %4250 = vmatprep.subr.mxu0 0.0
        %4251 = vmatpush1.msra.mxu0 0.0
        %4252 = vmatprep.subr.mxu0 0.0
        %4253 = vmatpush1.msra.mxu0 0.0
        %4254 = vmatprep.subr.mxu0 0.0
        %4255 = vmatpush1.msra.mxu0 0.0
        %4256 = vmatprep.subr.mxu0 0.0
        %4257 = vmatpush1.msra.mxu0 0.0
        %4258 = vmatprep.subr.mxu0 0.0
        %4259 = vmatpush1.msra.mxu0 0.0
        %4260 = vmatprep.subr.mxu0 0.0
        %4261 = vmatpush1.msra.mxu0 0.0
        %4262 = vmatprep.subr.mxu0 0.0
        %4263 = vmatpush1.msra.mxu0 0.0
        %4264 = vmatprep.subr.mxu0 0.0
        %4265 = vmatpush1.msra.mxu0 0.0
        %4266 = vmatprep.subr.mxu0 0.0
        %4267 = vmatpush1.msra.mxu0 0.0
        %4268 = vmatprep.subr.mxu0 0.0
        %4269 = vmatpush1.msra.mxu0 0.0
        %4270 = vmatprep.subr.mxu0 0.0
        %4271 = vmatpush1.msra.mxu0 0.0
        %4272 = vmatprep.subr.mxu0 0.0
        %4273 = vmatpush1.msra.mxu0 0.0
        %4274 = vmatprep.subr.mxu0 0.0
        %4275 = vmatpush1.msra.mxu0 0.0
        %4276 = vmatprep.mubr.f32.mxu0 0.0
        %4277 = vmatmul.mubr.f32.gmra.mrb[0].mxu0 %v4147
        %v4278 = vpop.f32.mrb[0].mxu0
        %v4279 = vadd.f32 0.0, %v4278
        %v4280 = vpop.f32.mrb[0].mxu0
        %4281 = vmatprep.mubr.f32.mxu0 0.0
        %4282 = vmatmul.mubr.f32.gmra.mrb[0].mxu0 %v4148
        %v4283 = vpop.f32.mrb[0].mxu0
        %v4284 = vadd.f32 0.0, %v4283
        %v4285 = vpop.f32.mrb[0].mxu0
        %4286 = vmatprep.mubr.f32.mxu0 0.0
        %4287 = vmatmul.mubr.f32.gmra.mrb[0].mxu0 %v4149
        %v4288 = vpop.f32.mrb[0].mxu0
        %v4289 = vadd.f32 0.0, %v4288
        %v4290 = vpop.f32.mrb[0].mxu0
        %4291 = vmatprep.mubr.f32.mxu0 0.0
        %4292 = vmatmul.mubr.f32.gmra.mrb[0].mxu0 %v4150
        %v4293 = vpop.f32.mrb[0].mxu0
        %v4294 = vadd.f32 0.0, %v4293
        %v4295 = vpop.f32.mrb[0].mxu0
        %4296 = vmatprep.mubr.f32.mxu0 0.0
        %4297 = vmatmul.mubr.f32.gmra.mrb[0].mxu0 %v4151
        %v4298 = vpop.f32.mrb[0].mxu0
        %v4299 = vadd.f32 0.0, %v4298
        %v4300 = vpop.f32.mrb[0].mxu0
        %4301 = vmatprep.mubr.f32.mxu0 0.0
        %4302 = vmatmul.mubr.f32.gmra.mrb[0].mxu0 %v4152
        %v4303 = vpop.f32.mrb[0].mxu0
        %v4304 = vadd.f32 0.0, %v4303
        %v4305 = vpop.f32.mrb[0].mxu0
        %4306 = vmatprep.mubr.f32.mxu0 0.0
        %4307 = vmatmul.mubr.f32.gmra.mrb[0].mxu0 %v4153
        %v4308 = vpop.f32.mrb[0].mxu0
        %v4309 = vadd.f32 0.0, %v4308
        %v4310 = vpop.f32.mrb[0].mxu0
        %4311 = vmatprep.mubr.f32.mxu0 0.0
        %4312 = vmatmul.mubr.f32.gmra.mrb[0].mxu0 %v4154
        %v4313 = vpop.f32.mrb[0].mxu0
        %v4314 = vadd.f32 0.0, %v4313
        %v4315 = vpop.f32.mrb[0].mxu0
        %4316 = vmatprep.mubr.f32.mxu0 0.0
        %4317 = vmatmul.mubr.f32.gmra.mrb[0].mxu0 %v4155
        %v4318 = vpop.f32.mrb[0].mxu0
        %v4319 = vadd.f32 0.0, %v4318
        %v4320 = vpop.f32.mrb[0].mxu0
        %4321 = vmatprep.mubr.f32.mxu0 0.0
        %4322 = vmatmul.mubr.f32.gmra.mrb[0].mxu0 %v4156
        %v4323 = vpop.f32.mrb[0].mxu0
        %v4324 = vadd.f32 0.0, %v4323
        %v4325 = vpop.f32.mrb[0].mxu0
        %4326 = vmatprep.mubr.f32.mxu0 0.0
        %4327 = vmatmul.mubr.f32.gmra.mrb[0].mxu0 %v4157
        %v4328 = vpop.f32.mrb[0].mxu0
        %v4329 = vadd.f32 0.0, %v4328
        %v4330 = vpop.f32.mrb[0].mxu0
        %4331 = vmatprep.mubr.f32.mxu0 0.0
        %4332 = vmatmul.mubr.f32.gmra.mrb[0].mxu0 %v4158
        %v4333 = vpop.f32.mrb[0].mxu0
        %v4334 = vadd.f32 0.0, %v4333
        %v4335 = vpop.f32.mrb[0].mxu0
        %4336 = vmatprep.mubr.f32.mxu0 0.0
        %4337 = vmatmul.mubr.f32.gmra.mrb[0].mxu0 %v4159
        %v4338 = vpop.f32.mrb[0].mxu0
        %v4339 = vadd.f32 0.0, %v4338
        %v4340 = vpop.f32.mrb[0].mxu0
        %4341 = vmatprep.mubr.f32.mxu0 0.0
        %4342 = vmatmul.mubr.f32.gmra.mrb[0].mxu0 %v4160
        %v4343 = vpop.f32.mrb[0].mxu0
        %v4344 = vadd.f32 0.0, %v4343
        %v4345 = vpop.f32.mrb[0].mxu0
        %4346 = vmatprep.mubr.f32.mxu0 0.0
        %4347 = vmatmul.mubr.f32.gmra.mrb[0].mxu0 %v4161
        %v4348 = vpop.f32.mrb[0].mxu0
        %v4349 = vadd.f32 0.0, %v4348
        %v4350 = vpop.f32.mrb[0].mxu0
        %4351 = vmatprep.mubr.f32.mxu0 0.0
        %4352 = vmatmul.mubr.f32.gmra.mrb[0].mxu0 %v4162
        %v4353 = vpop.f32.mrb[0].mxu0
        %v4354 = vadd.f32 0.0, %v4353
        %v4355 = vpop.f32.mrb[0].mxu0
        %4356 = vmatprep.mubr.f32.mxu0 0.0
        %4357 = vmatmul.mubr.f32.gmra.mrb[0].mxu0 %v4163
        %v4358 = vpop.f32.mrb[0].mxu0
        %v4359 = vadd.f32 0.0, %v4358
        %v4360 = vpop.f32.mrb[0].mxu0
        %4361 = vmatprep.mubr.f32.mxu0 0.0
        %4362 = vmatmul.mubr.f32.gmra.mrb[0].mxu0 %v4164
        %v4363 = vpop.f32.mrb[0].mxu0
        %v4364 = vadd.f32 0.0, %v4363
        %v4365 = vpop.f32.mrb[0].mxu0
        %4366 = vmatprep.mubr.f32.mxu0 0.0
        %4367 = vmatmul.mubr.f32.gmra.mrb[0].mxu0 %v4165
        %v4368 = vpop.f32.mrb[0].mxu0
        %v4369 = vadd.f32 0.0, %v4368
        %v4370 = vpop.f32.mrb[0].mxu0
        %4371 = vmatprep.mubr.f32.mxu0 0.0
        %4372 = vmatmul.mubr.f32.gmra.mrb[0].mxu0 %v4166
        %v4373 = vpop.f32.mrb[0].mxu0
        %v4374 = vadd.f32 0.0, %v4373
        %v4375 = vpop.f32.mrb[0].mxu0
        %4376 = vmatprep.mubr.f32.mxu0 0.0
        %4377 = vmatmul.mubr.f32.gmra.mrb[0].mxu0 %v4167
        %v4378 = vpop.f32.mrb[0].mxu0
        %v4379 = vadd.f32 0.0, %v4378
        %v4380 = vpop.f32.mrb[0].mxu0
        %4381 = vmatprep.mubr.f32.mxu0 0.0
        %4382 = vmatmul.mubr.f32.gmra.mrb[0].mxu0 %v4168
        %v4383 = vpop.f32.mrb[0].mxu0
        %v4384 = vadd.f32 0.0, %v4383
        %v4385 = vpop.f32.mrb[0].mxu0
        %4386 = vmatprep.mubr.f32.mxu0 0.0
        %4387 = vmatmul.mubr.f32.gmra.mrb[0].mxu0 %v4169
        %v4388 = vpop.f32.mrb[0].mxu0
        %v4389 = vadd.f32 0.0, %v4388
        %v4390 = vpop.f32.mrb[0].mxu0
        %4391 = vmatprep.mubr.f32.mxu0 0.0
        %4392 = vmatmul.mubr.f32.gmra.mrb[0].mxu0 %v4170
        %v4393 = vpop.f32.mrb[0].mxu0
        %v4394 = vadd.f32 0.0, %v4393
        %v4395 = vpop.f32.mrb[0].mxu0
        %4396 = vmatprep.mubr.f32.mxu0 0.0
        %4397 = vmatmul.mubr.f32.gmra.mrb[0].mxu0 %v4171
        %v4398 = vpop.f32.mrb[0].mxu0
        %v4399 = vadd.f32 0.0, %v4398
        %v4400 = vpop.f32.mrb[0].mxu0
        %4401 = vmatprep.mubr.f32.mxu0 0.0
        %4402 = vmatmul.mubr.f32.gmra.mrb[0].mxu0 %v4172
        %v4403 = vpop.f32.mrb[0].mxu0
        %v4404 = vadd.f32 0.0, %v4403
        %v4405 = vpop.f32.mrb[0].mxu0
        %4406 = vmatprep.mubr.f32.mxu0 0.0
        %4407 = vmatmul.mubr.f32.gmra.mrb[0].mxu0 %v4173
        %v4408 = vpop.f32.mrb[0].mxu0
        %v4409 = vadd.f32 0.0, %v4408
        %v4410 = vpop.f32.mrb[0].mxu0
        %4411 = vmatprep.mubr.f32.mxu0 0.0
        %4412 = vmatmul.mubr.f32.gmra.mrb[0].mxu0 %v4174
        %v4413 = vpop.f32.mrb[0].mxu0
        %v4414 = vadd.f32 0.0, %v4413
        %v4415 = vpop.f32.mrb[0].mxu0
        %4416 = vmatprep.mubr.f32.mxu0 0.0
        %4417 = vmatmul.mubr.f32.gmra.mrb[0].mxu0 %v4175
        %v4418 = vpop.f32.mrb[0].mxu0
        %v4419 = vadd.f32 0.0, %v4418
        %v4420 = vpop.f32.mrb[0].mxu0
        %4421 = vmatprep.mubr.f32.mxu0 0.0
        %4422 = vmatmul.mubr.f32.gmra.mrb[0].mxu0 %v4176
        %v4423 = vpop.f32.mrb[0].mxu0
        %v4424 = vadd.f32 0.0, %v4423
        %v4425 = vpop.f32.mrb[0].mxu0
        %4426 = vmatprep.mubr.f32.mxu0 0.0
        %4427 = vmatmul.mubr.f32.gmra.mrb[0].mxu0 %v4177
        %v4428 = vpop.f32.mrb[0].mxu0
        %v4429 = vadd.f32 0.0, %v4428
        %v4430 = vpop.f32.mrb[0].mxu0
        %4431 = vmatprep.mubr.f32.mxu0 0.0
        %4432 = vmatmul.mubr.f32.gmra.mrb[0].mxu0 %v4178
        %v4433 = vpop.f32.mrb[0].mxu0
        %v4434 = vadd.f32 0.0, %v4433
        %v4435 = vpop.f32.mrb[0].mxu0
        %4436 = vmatprep.mubr.f32.mxu0 0.0
        %4437 = vmatmul.mubr.f32.gmra.mrb[0].mxu0 %v4179
        %v4438 = vpop.f32.mrb[0].mxu0
        %v4439 = vadd.f32 0.0, %v4438
        %v4440 = vpop.f32.mrb[0].mxu0
        %4441 = vmatprep.mubr.f32.mxu0 0.0
        %4442 = vmatmul.mubr.f32.gmra.mrb[0].mxu0 %v4180
        %v4443 = vpop.f32.mrb[0].mxu0
        %v4444 = vadd.f32 0.0, %v4443
        %v4445 = vpop.f32.mrb[0].mxu0
        %4446 = vmatprep.mubr.f32.mxu0 0.0
        %4447 = vmatmul.mubr.f32.gmra.mrb[0].mxu0 %v4181
        %v4448 = vpop.f32.mrb[0].mxu0
        %v4449 = vadd.f32 0.0, %v4448
        %v4450 = vpop.f32.mrb[0].mxu0
        %4451 = vmatprep.mubr.f32.mxu0 0.0
        %4452 = vmatmul.mubr.f32.gmra.mrb[0].mxu0 %v4182
        %v4453 = vpop.f32.mrb[0].mxu0
        %v4454 = vadd.f32 0.0, %v4453
        %v4455 = vpop.f32.mrb[0].mxu0
        %4456 = vmatprep.mubr.f32.mxu0 0.0
        %4457 = vmatmul.mubr.f32.gmra.mrb[0].mxu0 %v4183
        %v4458 = vpop.f32.mrb[0].mxu0
        %v4459 = vadd.f32 0.0, %v4458
        %v4460 = vpop.f32.mrb[0].mxu0
        %4461 = vmatprep.mubr.f32.mxu0 0.0
        %4462 = vmatmul.mubr.f32.gmra.mrb[0].mxu0 %v4184
        %v4463 = vpop.f32.mrb[0].mxu0
        %v4464 = vadd.f32 0.0, %v4463
        %v4465 = vpop.f32.mrb[0].mxu0
        %4466 = vmatprep.mubr.f32.mxu0 0.0
        %4467 = vmatmul.mubr.f32.gmra.mrb[0].mxu0 %v4185
        %v4468 = vpop.f32.mrb[0].mxu0
        %v4469 = vadd.f32 0.0, %v4468
        %v4470 = vpop.f32.mrb[0].mxu0
        %4471 = vmatprep.mubr.f32.mxu0 0.0
        %4472 = vmatmul.mubr.f32.gmra.mrb[0].mxu0 %v4186
        %v4473 = vpop.f32.mrb[0].mxu0
        %v4474 = vadd.f32 0.0, %v4473
        %v4475 = vpop.f32.mrb[0].mxu0
        %4476 = vmatprep.mubr.f32.mxu0 0.0
        %4477 = vmatmul.mubr.f32.gmra.mrb[0].mxu0 %v4187
        %v4478 = vpop.f32.mrb[0].mxu0
        %v4479 = vadd.f32 0.0, %v4478
        %v4480 = vpop.f32.mrb[0].mxu0
        %4481 = vmatprep.mubr.f32.mxu0 0.0
        %4482 = vmatmul.mubr.f32.gmra.mrb[0].mxu0 %v4188
        %v4483 = vpop.f32.mrb[0].mxu0
        %v4484 = vadd.f32 0.0, %v4483
        %v4485 = vpop.f32.mrb[0].mxu0
        %4486 = vmatprep.mubr.f32.mxu0 0.0
        %4487 = vmatmul.mubr.f32.gmra.mrb[0].mxu0 %v4189
        %v4488 = vpop.f32.mrb[0].mxu0
        %v4489 = vadd.f32 0.0, %v4488
        %v4490 = vpop.f32.mrb[0].mxu0
        %4491 = vmatprep.mubr.f32.mxu0 0.0
        %4492 = vmatmul.mubr.f32.gmra.mrb[0].mxu0 %v4190
        %v4493 = vpop.f32.mrb[0].mxu0
        %v4494 = vadd.f32 0.0, %v4493
        %v4495 = vpop.f32.mrb[0].mxu0
        %4496 = vmatprep.mubr.f32.mxu0 0.0
        %4497 = vmatmul.mubr.f32.gmra.mrb[0].mxu0 %v4191
        %v4498 = vpop.f32.mrb[0].mxu0
        %v4499 = vadd.f32 0.0, %v4498
        %v4500 = vpop.f32.mrb[0].mxu0
        %4501 = vmatprep.mubr.f32.mxu0 0.0
        %4502 = vmatmul.mubr.f32.gmra.mrb[0].mxu0 %v4192
        %v4503 = vpop.f32.mrb[0].mxu0
        %v4504 = vadd.f32 0.0, %v4503
        %v4505 = vpop.f32.mrb[0].mxu0
        %4506 = vmatprep.mubr.f32.mxu0 0.0
        %4507 = vmatmul.mubr.f32.gmra.mrb[0].mxu0 %v4193
        %v4508 = vpop.f32.mrb[0].mxu0
        %v4509 = vadd.f32 0.0, %v4508
        %v4510 = vpop.f32.mrb[0].mxu0
        %4511 = vmatprep.mubr.f32.mxu0 0.0
        %4512 = vmatmul.mubr.f32.gmra.mrb[0].mxu0 %v4194
        %v4513 = vpop.f32.mrb[0].mxu0
        %v4514 = vadd.f32 0.0, %v4513
        %v4515 = vpop.f32.mrb[0].mxu0
        %4516 = vdwg.mxu0
        %v4517 = vadd.f32 %v4099, %v4279
        %v4518 = vadd.f32 %v4100, %v4284
        %v4519 = vadd.f32 %v4101, %v4289
        %v4520 = vadd.f32 %v4102, %v4294
        %v4521 = vadd.f32 %v4103, %v4299
        %v4522 = vadd.f32 %v4104, %v4304
        %v4523 = vadd.f32 %v4105, %v4309
        %v4524 = vadd.f32 %v4106, %v4314
        %v4525 = vadd.f32 %v4107, %v4319
        %v4526 = vadd.f32 %v4108, %v4324
        %v4527 = vadd.f32 %v4109, %v4329
        %v4528 = vadd.f32 %v4110, %v4334
        %v4529 = vadd.f32 %v4111, %v4339
        %v4530 = vadd.f32 %v4112, %v4344
        %v4531 = vadd.f32 %v4113, %v4349
        %v4532 = vadd.f32 %v4114, %v4354
        %v4533 = vadd.f32 %v4115, %v4359
        %v4534 = vadd.f32 %v4116, %v4364
        %v4535 = vadd.f32 %v4117, %v4369
        %v4536 = vadd.f32 %v4118, %v4374
        %v4537 = vadd.f32 %v4119, %v4379
        %v4538 = vadd.f32 %v4120, %v4384
        %v4539 = vadd.f32 %v4121, %v4389
        %v4540 = vadd.f32 %v4122, %v4394
        %v4541 = vadd.f32 %v4123, %v4399
        %v4542 = vadd.f32 %v4124, %v4404
        %v4543 = vadd.f32 %v4125, %v4409
        %v4544 = vadd.f32 %v4126, %v4414
        %v4545 = vadd.f32 %v4127, %v4419
        %v4546 = vadd.f32 %v4128, %v4424
        %v4547 = vadd.f32 %v4129, %v4429
        %v4548 = vadd.f32 %v4130, %v4434
        %v4549 = vadd.f32 %v4131, %v4439
        %v4550 = vadd.f32 %v4132, %v4444
        %v4551 = vadd.f32 %v4133, %v4449
        %v4552 = vadd.f32 %v4134, %v4454
        %v4553 = vadd.f32 %v4135, %v4459
        %v4554 = vadd.f32 %v4136, %v4464
        %v4555 = vadd.f32 %v4137, %v4469
        %v4556 = vadd.f32 %v4138, %v4474
        %v4557 = vadd.f32 %v4139, %v4479
        %v4558 = vadd.f32 %v4140, %v4484
        %v4559 = vadd.f32 %v4141, %v4489
        %v4560 = vadd.f32 %v4142, %v4494
        %v4561 = vadd.f32 %v4143, %v4499
        %v4562 = vadd.f32 %v4144, %v4504
        %v4563 = vadd.f32 %v4145, %v4509
        %v4564 = vadd.f32 %v4146, %v4514
        %v4565 = vld [vmem:[#allocation2 + $0x31] sm:$0xff]
        %v4566 = vld [vmem:[#allocation2 + $0x39] sm:$0xff]
        %v4567 = vld [vmem:[#allocation2 + $0x41] sm:$0xff]
        %v4568 = vld [vmem:[#allocation2 + $0x49] sm:$0xff]
        %v4569 = vld [vmem:[#allocation2 + $0x51] sm:$0xff]
        %v4570 = vld [vmem:[#allocation2 + $0x59] sm:$0xff]
        %v4571 = vld [vmem:[#allocation2 + $0x61] sm:$0xff]
        %v4572 = vld [vmem:[#allocation2 + $0x69] sm:$0xff]
        %v4573 = vld [vmem:[#allocation2 + $0x71] sm:$0xff]
        %v4574 = vld [vmem:[#allocation2 + $0x79] sm:$0xff]
        %v4575 = vld [vmem:[#allocation2 + $0x81] sm:$0xff]
        %v4576 = vld [vmem:[#allocation2 + $0x89] sm:$0xff]
        %v4577 = vld [vmem:[#allocation2 + $0x91] sm:$0xff]
        %v4578 = vld [vmem:[#allocation2 + $0x99] sm:$0xff]
        %v4579 = vld [vmem:[#allocation2 + $0xa1] sm:$0xff]
        %v4580 = vld [vmem:[#allocation2 + $0xa9] sm:$0xff]
        %v4581 = vld [vmem:[#allocation2 + $0xb1] sm:$0xff]
        %v4582 = vld [vmem:[#allocation2 + $0xb9] sm:$0xff]
        %v4583 = vld [vmem:[#allocation2 + $0xc1] sm:$0xff]
        %v4584 = vld [vmem:[#allocation2 + $0xc9] sm:$0xff]
        %v4585 = vld [vmem:[#allocation2 + $0xd1] sm:$0xff]
        %v4586 = vld [vmem:[#allocation2 + $0xd9] sm:$0xff]
        %v4587 = vld [vmem:[#allocation2 + $0xe1] sm:$0xff]
        %v4588 = vld [vmem:[#allocation2 + $0xe9] sm:$0xff]
        %v4589 = vld [vmem:[#allocation2 + $0xf1] sm:$0xff]
        %v4590 = vld [vmem:[#allocation2 + $0xf9] sm:$0xff]
        %v4591 = vld [vmem:[#allocation2 + $0x101] sm:$0xff]
        %v4592 = vld [vmem:[#allocation2 + $0x109] sm:$0xff]
        %v4593 = vld [vmem:[#allocation2 + $0x111] sm:$0xff]
        %v4594 = vld [vmem:[#allocation2 + $0x119] sm:$0xff]
        %v4595 = vld [vmem:[#allocation2 + $0x121] sm:$0xff]
        %v4596 = vld [vmem:[#allocation2 + $0x129] sm:$0xff]
        %v4597 = vld [vmem:[#allocation2 + $0x131] sm:$0xff]
        %v4598 = vld [vmem:[#allocation2 + $0x139] sm:$0xff]
        %v4599 = vld [vmem:[#allocation2 + $0x141] sm:$0xff]
        %v4600 = vld [vmem:[#allocation2 + $0x149] sm:$0xff]
        %v4601 = vld [vmem:[#allocation2 + $0x151] sm:$0xff]
        %v4602 = vld [vmem:[#allocation2 + $0x159] sm:$0xff]
        %v4603 = vld [vmem:[#allocation2 + $0x161] sm:$0xff]
        %v4604 = vld [vmem:[#allocation2 + $0x169] sm:$0xff]
        %v4605 = vld [vmem:[#allocation2 + $0x171] sm:$0xff]
        %v4606 = vld [vmem:[#allocation2 + $0x179] sm:$0xff]
        %v4607 = vld [vmem:[#allocation2 + $0x181] sm:$0xff]
        %v4608 = vld [vmem:[#allocation2 + $0x189] sm:$0xff]
        %v4609 = vld [vmem:[#allocation2 + $0x191] sm:$0xff]
        %v4610 = vld [vmem:[#allocation2 + $0x199] sm:$0xff]
        %v4611 = vld [vmem:[#allocation2 + $0x1a1] sm:$0xff]
        %v4612 = vld [vmem:[#allocation2 + $0x1a9] sm:$0xff]
        %s4613 = scalar_lea.vmem [#allocation8], 896
        %v4614 = vld [vmem:[%s4613] sm:$0xff]
        %v4615 = vld [vmem:[%s4613 + $0x8] sm:$0xff]
        %v4616 = vld [vmem:[%s4613 + $0x10] sm:$0xff]
        %v4617 = vld [vmem:[%s4613 + $0x18] sm:$0xff]
        %v4618 = vld [vmem:[%s4613 + $0x20] sm:$0xff]
        %v4619 = vld [vmem:[%s4613 + $0x28] sm:$0xff]
        %v4620 = vld [vmem:[%s4613 + $0x30] sm:$0xff]
        %v4621 = vld [vmem:[%s4613 + $0x38] sm:$0xff]
        %v4622 = vld [vmem:[%s4613 + $0x40] sm:$0xff]
        %v4623 = vld [vmem:[%s4613 + $0x48] sm:$0xff]
        %v4624 = vld [vmem:[%s4613 + $0x50] sm:$0xff]
        %v4625 = vld [vmem:[%s4613 + $0x58] sm:$0xff]
        %v4626 = vld [vmem:[%s4613 + $0x60] sm:$0xff]
        %v4627 = vld [vmem:[%s4613 + $0x68] sm:$0xff]
        %v4628 = vld [vmem:[%s4613 + $0x70] sm:$0xff]
        %v4629 = vld [vmem:[%s4613 + $0x78] sm:$0xff]
        %4630 = vmatprep.subr.mxu0 0.0
        %4631 = vmatpush1.msra.mxu0 %v4614
        %4632 = vmatprep.subr.mxu0 0.0
        %4633 = vmatpush1.msra.mxu0 %v4615
        %4634 = vmatprep.subr.mxu0 0.0
        %4635 = vmatpush1.msra.mxu0 %v4616
        %4636 = vmatprep.subr.mxu0 0.0
        %4637 = vmatpush1.msra.mxu0 %v4617
        %4638 = vmatprep.subr.mxu0 0.0
        %4639 = vmatpush1.msra.mxu0 %v4618
        %4640 = vmatprep.subr.mxu0 0.0
        %4641 = vmatpush1.msra.mxu0 %v4619
        %4642 = vmatprep.subr.mxu0 0.0
        %4643 = vmatpush1.msra.mxu0 %v4620
        %4644 = vmatprep.subr.mxu0 0.0
        %4645 = vmatpush1.msra.mxu0 %v4621
        %4646 = vmatprep.subr.mxu0 0.0
        %4647 = vmatpush1.msra.mxu0 %v4622
        %4648 = vmatprep.subr.mxu0 0.0
        %4649 = vmatpush1.msra.mxu0 %v4623
        %4650 = vmatprep.subr.mxu0 0.0
        %4651 = vmatpush1.msra.mxu0 %v4624
        %4652 = vmatprep.subr.mxu0 0.0
        %4653 = vmatpush1.msra.mxu0 %v4625
        %4654 = vmatprep.subr.mxu0 0.0
        %4655 = vmatpush1.msra.mxu0 %v4626
        %4656 = vmatprep.subr.mxu0 0.0
        %4657 = vmatpush1.msra.mxu0 %v4627
        %4658 = vmatprep.subr.mxu0 0.0
        %4659 = vmatpush1.msra.mxu0 %v4628
        %4660 = vmatprep.subr.mxu0 0.0
        %4661 = vmatpush1.msra.mxu0 %v4629
        %4662 = vmatprep.subr.mxu0 0.0
        %4663 = vmatpush1.msra.mxu0 0.0
        %4664 = vmatprep.subr.mxu0 0.0
        %4665 = vmatpush1.msra.mxu0 0.0
        %4666 = vmatprep.subr.mxu0 0.0
        %4667 = vmatpush1.msra.mxu0 0.0
        %4668 = vmatprep.subr.mxu0 0.0
        %4669 = vmatpush1.msra.mxu0 0.0
        %4670 = vmatprep.subr.mxu0 0.0
        %4671 = vmatpush1.msra.mxu0 0.0
        %4672 = vmatprep.subr.mxu0 0.0
        %4673 = vmatpush1.msra.mxu0 0.0
        %4674 = vmatprep.subr.mxu0 0.0
        %4675 = vmatpush1.msra.mxu0 0.0
        %4676 = vmatprep.subr.mxu0 0.0
        %4677 = vmatpush1.msra.mxu0 0.0
        %4678 = vmatprep.subr.mxu0 0.0
        %4679 = vmatpush1.msra.mxu0 0.0
        %4680 = vmatprep.subr.mxu0 0.0
        %4681 = vmatpush1.msra.mxu0 0.0
        %4682 = vmatprep.subr.mxu0 0.0
        %4683 = vmatpush1.msra.mxu0 0.0
        %4684 = vmatprep.subr.mxu0 0.0
        %4685 = vmatpush1.msra.mxu0 0.0
        %4686 = vmatprep.subr.mxu0 0.0
        %4687 = vmatpush1.msra.mxu0 0.0
        %4688 = vmatprep.subr.mxu0 0.0
        %4689 = vmatpush1.msra.mxu0 0.0
        %4690 = vmatprep.subr.mxu0 0.0
        %4691 = vmatpush1.msra.mxu0 0.0
        %4692 = vmatprep.subr.mxu0 0.0
        %4693 = vmatpush1.msra.mxu0 0.0
        %4694 = vmatprep.mubr.f32.mxu0 0.0
        %4695 = vmatmul.mubr.f32.gmra.mrb[0].mxu0 %v4565
        %v4696 = vpop.f32.mrb[0].mxu0
        %v4697 = vadd.f32 0.0, %v4696
        %v4698 = vpop.f32.mrb[0].mxu0
        %4699 = vmatprep.mubr.f32.mxu0 0.0
        %4700 = vmatmul.mubr.f32.gmra.mrb[0].mxu0 %v4566
        %v4701 = vpop.f32.mrb[0].mxu0
        %v4702 = vadd.f32 0.0, %v4701
        %v4703 = vpop.f32.mrb[0].mxu0
        %4704 = vmatprep.mubr.f32.mxu0 0.0
        %4705 = vmatmul.mubr.f32.gmra.mrb[0].mxu0 %v4567
        %v4706 = vpop.f32.mrb[0].mxu0
        %v4707 = vadd.f32 0.0, %v4706
        %v4708 = vpop.f32.mrb[0].mxu0
        %4709 = vmatprep.mubr.f32.mxu0 0.0
        %4710 = vmatmul.mubr.f32.gmra.mrb[0].mxu0 %v4568
        %v4711 = vpop.f32.mrb[0].mxu0
        %v4712 = vadd.f32 0.0, %v4711
        %v4713 = vpop.f32.mrb[0].mxu0
        %4714 = vmatprep.mubr.f32.mxu0 0.0
        %4715 = vmatmul.mubr.f32.gmra.mrb[0].mxu0 %v4569
        %v4716 = vpop.f32.mrb[0].mxu0
        %v4717 = vadd.f32 0.0, %v4716
        %v4718 = vpop.f32.mrb[0].mxu0
        %4719 = vmatprep.mubr.f32.mxu0 0.0
        %4720 = vmatmul.mubr.f32.gmra.mrb[0].mxu0 %v4570
        %v4721 = vpop.f32.mrb[0].mxu0
        %v4722 = vadd.f32 0.0, %v4721
        %v4723 = vpop.f32.mrb[0].mxu0
        %4724 = vmatprep.mubr.f32.mxu0 0.0
        %4725 = vmatmul.mubr.f32.gmra.mrb[0].mxu0 %v4571
        %v4726 = vpop.f32.mrb[0].mxu0
        %v4727 = vadd.f32 0.0, %v4726
        %v4728 = vpop.f32.mrb[0].mxu0
        %4729 = vmatprep.mubr.f32.mxu0 0.0
        %4730 = vmatmul.mubr.f32.gmra.mrb[0].mxu0 %v4572
        %v4731 = vpop.f32.mrb[0].mxu0
        %v4732 = vadd.f32 0.0, %v4731
        %v4733 = vpop.f32.mrb[0].mxu0
        %4734 = vmatprep.mubr.f32.mxu0 0.0
        %4735 = vmatmul.mubr.f32.gmra.mrb[0].mxu0 %v4573
        %v4736 = vpop.f32.mrb[0].mxu0
        %v4737 = vadd.f32 0.0, %v4736
        %v4738 = vpop.f32.mrb[0].mxu0
        %4739 = vmatprep.mubr.f32.mxu0 0.0
        %4740 = vmatmul.mubr.f32.gmra.mrb[0].mxu0 %v4574
        %v4741 = vpop.f32.mrb[0].mxu0
        %v4742 = vadd.f32 0.0, %v4741
        %v4743 = vpop.f32.mrb[0].mxu0
        %4744 = vmatprep.mubr.f32.mxu0 0.0
        %4745 = vmatmul.mubr.f32.gmra.mrb[0].mxu0 %v4575
        %v4746 = vpop.f32.mrb[0].mxu0
        %v4747 = vadd.f32 0.0, %v4746
        %v4748 = vpop.f32.mrb[0].mxu0
        %4749 = vmatprep.mubr.f32.mxu0 0.0
        %4750 = vmatmul.mubr.f32.gmra.mrb[0].mxu0 %v4576
        %v4751 = vpop.f32.mrb[0].mxu0
        %v4752 = vadd.f32 0.0, %v4751
        %v4753 = vpop.f32.mrb[0].mxu0
        %4754 = vmatprep.mubr.f32.mxu0 0.0
        %4755 = vmatmul.mubr.f32.gmra.mrb[0].mxu0 %v4577
        %v4756 = vpop.f32.mrb[0].mxu0
        %v4757 = vadd.f32 0.0, %v4756
        %v4758 = vpop.f32.mrb[0].mxu0
        %4759 = vmatprep.mubr.f32.mxu0 0.0
        %4760 = vmatmul.mubr.f32.gmra.mrb[0].mxu0 %v4578
        %v4761 = vpop.f32.mrb[0].mxu0
        %v4762 = vadd.f32 0.0, %v4761
        %v4763 = vpop.f32.mrb[0].mxu0
        %4764 = vmatprep.mubr.f32.mxu0 0.0
        %4765 = vmatmul.mubr.f32.gmra.mrb[0].mxu0 %v4579
        %v4766 = vpop.f32.mrb[0].mxu0
        %v4767 = vadd.f32 0.0, %v4766
        %v4768 = vpop.f32.mrb[0].mxu0
        %4769 = vmatprep.mubr.f32.mxu0 0.0
        %4770 = vmatmul.mubr.f32.gmra.mrb[0].mxu0 %v4580
        %v4771 = vpop.f32.mrb[0].mxu0
        %v4772 = vadd.f32 0.0, %v4771
        %v4773 = vpop.f32.mrb[0].mxu0
        %4774 = vmatprep.mubr.f32.mxu0 0.0
        %4775 = vmatmul.mubr.f32.gmra.mrb[0].mxu0 %v4581
        %v4776 = vpop.f32.mrb[0].mxu0
        %v4777 = vadd.f32 0.0, %v4776
        %v4778 = vpop.f32.mrb[0].mxu0
        %4779 = vmatprep.mubr.f32.mxu0 0.0
        %4780 = vmatmul.mubr.f32.gmra.mrb[0].mxu0 %v4582
        %v4781 = vpop.f32.mrb[0].mxu0
        %v4782 = vadd.f32 0.0, %v4781
        %v4783 = vpop.f32.mrb[0].mxu0
        %4784 = vmatprep.mubr.f32.mxu0 0.0
        %4785 = vmatmul.mubr.f32.gmra.mrb[0].mxu0 %v4583
        %v4786 = vpop.f32.mrb[0].mxu0
        %v4787 = vadd.f32 0.0, %v4786
        %v4788 = vpop.f32.mrb[0].mxu0
        %4789 = vmatprep.mubr.f32.mxu0 0.0
        %4790 = vmatmul.mubr.f32.gmra.mrb[0].mxu0 %v4584
        %v4791 = vpop.f32.mrb[0].mxu0
        %v4792 = vadd.f32 0.0, %v4791
        %v4793 = vpop.f32.mrb[0].mxu0
        %4794 = vmatprep.mubr.f32.mxu0 0.0
        %4795 = vmatmul.mubr.f32.gmra.mrb[0].mxu0 %v4585
        %v4796 = vpop.f32.mrb[0].mxu0
        %v4797 = vadd.f32 0.0, %v4796
        %v4798 = vpop.f32.mrb[0].mxu0
        %4799 = vmatprep.mubr.f32.mxu0 0.0
        %4800 = vmatmul.mubr.f32.gmra.mrb[0].mxu0 %v4586
        %v4801 = vpop.f32.mrb[0].mxu0
        %v4802 = vadd.f32 0.0, %v4801
        %v4803 = vpop.f32.mrb[0].mxu0
        %4804 = vmatprep.mubr.f32.mxu0 0.0
        %4805 = vmatmul.mubr.f32.gmra.mrb[0].mxu0 %v4587
        %v4806 = vpop.f32.mrb[0].mxu0
        %v4807 = vadd.f32 0.0, %v4806
        %v4808 = vpop.f32.mrb[0].mxu0
        %4809 = vmatprep.mubr.f32.mxu0 0.0
        %4810 = vmatmul.mubr.f32.gmra.mrb[0].mxu0 %v4588
        %v4811 = vpop.f32.mrb[0].mxu0
        %v4812 = vadd.f32 0.0, %v4811
        %v4813 = vpop.f32.mrb[0].mxu0
        %4814 = vmatprep.mubr.f32.mxu0 0.0
        %4815 = vmatmul.mubr.f32.gmra.mrb[0].mxu0 %v4589
        %v4816 = vpop.f32.mrb[0].mxu0
        %v4817 = vadd.f32 0.0, %v4816
        %v4818 = vpop.f32.mrb[0].mxu0
        %4819 = vmatprep.mubr.f32.mxu0 0.0
        %4820 = vmatmul.mubr.f32.gmra.mrb[0].mxu0 %v4590
        %v4821 = vpop.f32.mrb[0].mxu0
        %v4822 = vadd.f32 0.0, %v4821
        %v4823 = vpop.f32.mrb[0].mxu0
        %4824 = vmatprep.mubr.f32.mxu0 0.0
        %4825 = vmatmul.mubr.f32.gmra.mrb[0].mxu0 %v4591
        %v4826 = vpop.f32.mrb[0].mxu0
        %v4827 = vadd.f32 0.0, %v4826
        %v4828 = vpop.f32.mrb[0].mxu0
        %4829 = vmatprep.mubr.f32.mxu0 0.0
        %4830 = vmatmul.mubr.f32.gmra.mrb[0].mxu0 %v4592
        %v4831 = vpop.f32.mrb[0].mxu0
        %v4832 = vadd.f32 0.0, %v4831
        %v4833 = vpop.f32.mrb[0].mxu0
        %4834 = vmatprep.mubr.f32.mxu0 0.0
        %4835 = vmatmul.mubr.f32.gmra.mrb[0].mxu0 %v4593
        %v4836 = vpop.f32.mrb[0].mxu0
        %v4837 = vadd.f32 0.0, %v4836
        %v4838 = vpop.f32.mrb[0].mxu0
        %4839 = vmatprep.mubr.f32.mxu0 0.0
        %4840 = vmatmul.mubr.f32.gmra.mrb[0].mxu0 %v4594
        %v4841 = vpop.f32.mrb[0].mxu0
        %v4842 = vadd.f32 0.0, %v4841
        %v4843 = vpop.f32.mrb[0].mxu0
        %4844 = vmatprep.mubr.f32.mxu0 0.0
        %4845 = vmatmul.mubr.f32.gmra.mrb[0].mxu0 %v4595
        %v4846 = vpop.f32.mrb[0].mxu0
        %v4847 = vadd.f32 0.0, %v4846
        %v4848 = vpop.f32.mrb[0].mxu0
        %4849 = vmatprep.mubr.f32.mxu0 0.0
        %4850 = vmatmul.mubr.f32.gmra.mrb[0].mxu0 %v4596
        %v4851 = vpop.f32.mrb[0].mxu0
        %v4852 = vadd.f32 0.0, %v4851
        %v4853 = vpop.f32.mrb[0].mxu0
        %4854 = vmatprep.mubr.f32.mxu0 0.0
        %4855 = vmatmul.mubr.f32.gmra.mrb[0].mxu0 %v4597
        %v4856 = vpop.f32.mrb[0].mxu0
        %v4857 = vadd.f32 0.0, %v4856
        %v4858 = vpop.f32.mrb[0].mxu0
        %4859 = vmatprep.mubr.f32.mxu0 0.0
        %4860 = vmatmul.mubr.f32.gmra.mrb[0].mxu0 %v4598
        %v4861 = vpop.f32.mrb[0].mxu0
        %v4862 = vadd.f32 0.0, %v4861
        %v4863 = vpop.f32.mrb[0].mxu0
        %4864 = vmatprep.mubr.f32.mxu0 0.0
        %4865 = vmatmul.mubr.f32.gmra.mrb[0].mxu0 %v4599
        %v4866 = vpop.f32.mrb[0].mxu0
        %v4867 = vadd.f32 0.0, %v4866
        %v4868 = vpop.f32.mrb[0].mxu0
        %4869 = vmatprep.mubr.f32.mxu0 0.0
        %4870 = vmatmul.mubr.f32.gmra.mrb[0].mxu0 %v4600
        %v4871 = vpop.f32.mrb[0].mxu0
        %v4872 = vadd.f32 0.0, %v4871
        %v4873 = vpop.f32.mrb[0].mxu0
        %4874 = vmatprep.mubr.f32.mxu0 0.0
        %4875 = vmatmul.mubr.f32.gmra.mrb[0].mxu0 %v4601
        %v4876 = vpop.f32.mrb[0].mxu0
        %v4877 = vadd.f32 0.0, %v4876
        %v4878 = vpop.f32.mrb[0].mxu0
        %4879 = vmatprep.mubr.f32.mxu0 0.0
        %4880 = vmatmul.mubr.f32.gmra.mrb[0].mxu0 %v4602
        %v4881 = vpop.f32.mrb[0].mxu0
        %v4882 = vadd.f32 0.0, %v4881
        %v4883 = vpop.f32.mrb[0].mxu0
        %4884 = vmatprep.mubr.f32.mxu0 0.0
        %4885 = vmatmul.mubr.f32.gmra.mrb[0].mxu0 %v4603
        %v4886 = vpop.f32.mrb[0].mxu0
        %v4887 = vadd.f32 0.0, %v4886
        %v4888 = vpop.f32.mrb[0].mxu0
        %4889 = vmatprep.mubr.f32.mxu0 0.0
        %4890 = vmatmul.mubr.f32.gmra.mrb[0].mxu0 %v4604
        %v4891 = vpop.f32.mrb[0].mxu0
        %v4892 = vadd.f32 0.0, %v4891
        %v4893 = vpop.f32.mrb[0].mxu0
        %4894 = vmatprep.mubr.f32.mxu0 0.0
        %4895 = vmatmul.mubr.f32.gmra.mrb[0].mxu0 %v4605
        %v4896 = vpop.f32.mrb[0].mxu0
        %v4897 = vadd.f32 0.0, %v4896
        %v4898 = vpop.f32.mrb[0].mxu0
        %4899 = vmatprep.mubr.f32.mxu0 0.0
        %4900 = vmatmul.mubr.f32.gmra.mrb[0].mxu0 %v4606
        %v4901 = vpop.f32.mrb[0].mxu0
        %v4902 = vadd.f32 0.0, %v4901
        %v4903 = vpop.f32.mrb[0].mxu0
        %4904 = vmatprep.mubr.f32.mxu0 0.0
        %4905 = vmatmul.mubr.f32.gmra.mrb[0].mxu0 %v4607
        %v4906 = vpop.f32.mrb[0].mxu0
        %v4907 = vadd.f32 0.0, %v4906
        %v4908 = vpop.f32.mrb[0].mxu0
        %4909 = vmatprep.mubr.f32.mxu0 0.0
        %4910 = vmatmul.mubr.f32.gmra.mrb[0].mxu0 %v4608
        %v4911 = vpop.f32.mrb[0].mxu0
        %v4912 = vadd.f32 0.0, %v4911
        %v4913 = vpop.f32.mrb[0].mxu0
        %4914 = vmatprep.mubr.f32.mxu0 0.0
        %4915 = vmatmul.mubr.f32.gmra.mrb[0].mxu0 %v4609
        %v4916 = vpop.f32.mrb[0].mxu0
        %v4917 = vadd.f32 0.0, %v4916
        %v4918 = vpop.f32.mrb[0].mxu0
        %4919 = vmatprep.mubr.f32.mxu0 0.0
        %4920 = vmatmul.mubr.f32.gmra.mrb[0].mxu0 %v4610
        %v4921 = vpop.f32.mrb[0].mxu0
        %v4922 = vadd.f32 0.0, %v4921
        %v4923 = vpop.f32.mrb[0].mxu0
        %4924 = vmatprep.mubr.f32.mxu0 0.0
        %4925 = vmatmul.mubr.f32.gmra.mrb[0].mxu0 %v4611
        %v4926 = vpop.f32.mrb[0].mxu0
        %v4927 = vadd.f32 0.0, %v4926
        %v4928 = vpop.f32.mrb[0].mxu0
        %4929 = vmatprep.mubr.f32.mxu0 0.0
        %4930 = vmatmul.mubr.f32.gmra.mrb[0].mxu0 %v4612
        %v4931 = vpop.f32.mrb[0].mxu0
        %v4932 = vadd.f32 0.0, %v4931
        %v4933 = vpop.f32.mrb[0].mxu0
        %4934 = vdwg.mxu0
        %v4935 = vadd.f32 %v4517, %v4697
        %v4936 = vadd.f32 %v4518, %v4702
        %v4937 = vadd.f32 %v4519, %v4707
        %v4938 = vadd.f32 %v4520, %v4712
        %v4939 = vadd.f32 %v4521, %v4717
        %v4940 = vadd.f32 %v4522, %v4722
        %v4941 = vadd.f32 %v4523, %v4727
        %v4942 = vadd.f32 %v4524, %v4732
        %v4943 = vadd.f32 %v4525, %v4737
        %v4944 = vadd.f32 %v4526, %v4742
        %v4945 = vadd.f32 %v4527, %v4747
        %v4946 = vadd.f32 %v4528, %v4752
        %v4947 = vadd.f32 %v4529, %v4757
        %v4948 = vadd.f32 %v4530, %v4762
        %v4949 = vadd.f32 %v4531, %v4767
        %v4950 = vadd.f32 %v4532, %v4772
        %v4951 = vadd.f32 %v4533, %v4777
        %v4952 = vadd.f32 %v4534, %v4782
        %v4953 = vadd.f32 %v4535, %v4787
        %v4954 = vadd.f32 %v4536, %v4792
        %v4955 = vadd.f32 %v4537, %v4797
        %v4956 = vadd.f32 %v4538, %v4802
        %v4957 = vadd.f32 %v4539, %v4807
        %v4958 = vadd.f32 %v4540, %v4812
        %v4959 = vadd.f32 %v4541, %v4817
        %v4960 = vadd.f32 %v4542, %v4822
        %v4961 = vadd.f32 %v4543, %v4827
        %v4962 = vadd.f32 %v4544, %v4832
        %v4963 = vadd.f32 %v4545, %v4837
        %v4964 = vadd.f32 %v4546, %v4842
        %v4965 = vadd.f32 %v4547, %v4847
        %v4966 = vadd.f32 %v4548, %v4852
        %v4967 = vadd.f32 %v4549, %v4857
        %v4968 = vadd.f32 %v4550, %v4862
        %v4969 = vadd.f32 %v4551, %v4867
        %v4970 = vadd.f32 %v4552, %v4872
        %v4971 = vadd.f32 %v4553, %v4877
        %v4972 = vadd.f32 %v4554, %v4882
        %v4973 = vadd.f32 %v4555, %v4887
        %v4974 = vadd.f32 %v4556, %v4892
        %v4975 = vadd.f32 %v4557, %v4897
        %v4976 = vadd.f32 %v4558, %v4902
        %v4977 = vadd.f32 %v4559, %v4907
        %v4978 = vadd.f32 %v4560, %v4912
        %v4979 = vadd.f32 %v4561, %v4917
        %v4980 = vadd.f32 %v4562, %v4922
        %v4981 = vadd.f32 %v4563, %v4927
        %v4982 = vadd.f32 %v4564, %v4932
        %v4983 = vld [vmem:[#allocation2 + $0x32] sm:$0xff]
        %v4984 = vld [vmem:[#allocation2 + $0x3a] sm:$0xff]
        %v4985 = vld [vmem:[#allocation2 + $0x42] sm:$0xff]
        %v4986 = vld [vmem:[#allocation2 + $0x4a] sm:$0xff]
        %v4987 = vld [vmem:[#allocation2 + $0x52] sm:$0xff]
        %v4988 = vld [vmem:[#allocation2 + $0x5a] sm:$0xff]
        %v4989 = vld [vmem:[#allocation2 + $0x62] sm:$0xff]
        %v4990 = vld [vmem:[#allocation2 + $0x6a] sm:$0xff]
        %v4991 = vld [vmem:[#allocation2 + $0x72] sm:$0xff]
        %v4992 = vld [vmem:[#allocation2 + $0x7a] sm:$0xff]
        %v4993 = vld [vmem:[#allocation2 + $0x82] sm:$0xff]
        %v4994 = vld [vmem:[#allocation2 + $0x8a] sm:$0xff]
        %v4995 = vld [vmem:[#allocation2 + $0x92] sm:$0xff]
        %v4996 = vld [vmem:[#allocation2 + $0x9a] sm:$0xff]
        %v4997 = vld [vmem:[#allocation2 + $0xa2] sm:$0xff]
        %v4998 = vld [vmem:[#allocation2 + $0xaa] sm:$0xff]
        %v4999 = vld [vmem:[#allocation2 + $0xb2] sm:$0xff]
        %v5000 = vld [vmem:[#allocation2 + $0xba] sm:$0xff]
        %v5001 = vld [vmem:[#allocation2 + $0xc2] sm:$0xff]
        %v5002 = vld [vmem:[#allocation2 + $0xca] sm:$0xff]
        %v5003 = vld [vmem:[#allocation2 + $0xd2] sm:$0xff]
        %v5004 = vld [vmem:[#allocation2 + $0xda] sm:$0xff]
        %v5005 = vld [vmem:[#allocation2 + $0xe2] sm:$0xff]
        %v5006 = vld [vmem:[#allocation2 + $0xea] sm:$0xff]
        %v5007 = vld [vmem:[#allocation2 + $0xf2] sm:$0xff]
        %v5008 = vld [vmem:[#allocation2 + $0xfa] sm:$0xff]
        %v5009 = vld [vmem:[#allocation2 + $0x102] sm:$0xff]
        %v5010 = vld [vmem:[#allocation2 + $0x10a] sm:$0xff]
        %v5011 = vld [vmem:[#allocation2 + $0x112] sm:$0xff]
        %v5012 = vld [vmem:[#allocation2 + $0x11a] sm:$0xff]
        %v5013 = vld [vmem:[#allocation2 + $0x122] sm:$0xff]
        %v5014 = vld [vmem:[#allocation2 + $0x12a] sm:$0xff]
        %v5015 = vld [vmem:[#allocation2 + $0x132] sm:$0xff]
        %v5016 = vld [vmem:[#allocation2 + $0x13a] sm:$0xff]
        %v5017 = vld [vmem:[#allocation2 + $0x142] sm:$0xff]
        %v5018 = vld [vmem:[#allocation2 + $0x14a] sm:$0xff]
        %v5019 = vld [vmem:[#allocation2 + $0x152] sm:$0xff]
        %v5020 = vld [vmem:[#allocation2 + $0x15a] sm:$0xff]
        %v5021 = vld [vmem:[#allocation2 + $0x162] sm:$0xff]
        %v5022 = vld [vmem:[#allocation2 + $0x16a] sm:$0xff]
        %v5023 = vld [vmem:[#allocation2 + $0x172] sm:$0xff]
        %v5024 = vld [vmem:[#allocation2 + $0x17a] sm:$0xff]
        %v5025 = vld [vmem:[#allocation2 + $0x182] sm:$0xff]
        %v5026 = vld [vmem:[#allocation2 + $0x18a] sm:$0xff]
        %v5027 = vld [vmem:[#allocation2 + $0x192] sm:$0xff]
        %v5028 = vld [vmem:[#allocation2 + $0x19a] sm:$0xff]
        %v5029 = vld [vmem:[#allocation2 + $0x1a2] sm:$0xff]
        %v5030 = vld [vmem:[#allocation2 + $0x1aa] sm:$0xff]
        %s5031 = scalar_lea.vmem [#allocation8], 1024
        %v5032 = vld [vmem:[%s5031] sm:$0xff]
        %v5033 = vld [vmem:[%s5031 + $0x8] sm:$0xff]
        %v5034 = vld [vmem:[%s5031 + $0x10] sm:$0xff]
        %v5035 = vld [vmem:[%s5031 + $0x18] sm:$0xff]
        %v5036 = vld [vmem:[%s5031 + $0x20] sm:$0xff]
        %v5037 = vld [vmem:[%s5031 + $0x28] sm:$0xff]
        %v5038 = vld [vmem:[%s5031 + $0x30] sm:$0xff]
        %v5039 = vld [vmem:[%s5031 + $0x38] sm:$0xff]
        %v5040 = vld [vmem:[%s5031 + $0x40] sm:$0xff]
        %v5041 = vld [vmem:[%s5031 + $0x48] sm:$0xff]
        %v5042 = vld [vmem:[%s5031 + $0x50] sm:$0xff]
        %v5043 = vld [vmem:[%s5031 + $0x58] sm:$0xff]
        %v5044 = vld [vmem:[%s5031 + $0x60] sm:$0xff]
        %v5045 = vld [vmem:[%s5031 + $0x68] sm:$0xff]
        %v5046 = vld [vmem:[%s5031 + $0x70] sm:$0xff]
        %v5047 = vld [vmem:[%s5031 + $0x78] sm:$0xff]
        %5048 = vmatprep.subr.mxu0 0.0
        %5049 = vmatpush1.msra.mxu0 %v5032
        %5050 = vmatprep.subr.mxu0 0.0
        %5051 = vmatpush1.msra.mxu0 %v5033
        %5052 = vmatprep.subr.mxu0 0.0
        %5053 = vmatpush1.msra.mxu0 %v5034
        %5054 = vmatprep.subr.mxu0 0.0
        %5055 = vmatpush1.msra.mxu0 %v5035
        %5056 = vmatprep.subr.mxu0 0.0
        %5057 = vmatpush1.msra.mxu0 %v5036
        %5058 = vmatprep.subr.mxu0 0.0
        %5059 = vmatpush1.msra.mxu0 %v5037
        %5060 = vmatprep.subr.mxu0 0.0
        %5061 = vmatpush1.msra.mxu0 %v5038
        %5062 = vmatprep.subr.mxu0 0.0
        %5063 = vmatpush1.msra.mxu0 %v5039
        %5064 = vmatprep.subr.mxu0 0.0
        %5065 = vmatpush1.msra.mxu0 %v5040
        %5066 = vmatprep.subr.mxu0 0.0
        %5067 = vmatpush1.msra.mxu0 %v5041
        %5068 = vmatprep.subr.mxu0 0.0
        %5069 = vmatpush1.msra.mxu0 %v5042
        %5070 = vmatprep.subr.mxu0 0.0
        %5071 = vmatpush1.msra.mxu0 %v5043
        %5072 = vmatprep.subr.mxu0 0.0
        %5073 = vmatpush1.msra.mxu0 %v5044
        %5074 = vmatprep.subr.mxu0 0.0
        %5075 = vmatpush1.msra.mxu0 %v5045
        %5076 = vmatprep.subr.mxu0 0.0
        %5077 = vmatpush1.msra.mxu0 %v5046
        %5078 = vmatprep.subr.mxu0 0.0
        %5079 = vmatpush1.msra.mxu0 %v5047
        %5080 = vmatprep.subr.mxu0 0.0
        %5081 = vmatpush1.msra.mxu0 0.0
        %5082 = vmatprep.subr.mxu0 0.0
        %5083 = vmatpush1.msra.mxu0 0.0
        %5084 = vmatprep.subr.mxu0 0.0
        %5085 = vmatpush1.msra.mxu0 0.0
        %5086 = vmatprep.subr.mxu0 0.0
        %5087 = vmatpush1.msra.mxu0 0.0
        %5088 = vmatprep.subr.mxu0 0.0
        %5089 = vmatpush1.msra.mxu0 0.0
        %5090 = vmatprep.subr.mxu0 0.0
        %5091 = vmatpush1.msra.mxu0 0.0
        %5092 = vmatprep.subr.mxu0 0.0
        %5093 = vmatpush1.msra.mxu0 0.0
        %5094 = vmatprep.subr.mxu0 0.0
        %5095 = vmatpush1.msra.mxu0 0.0
        %5096 = vmatprep.subr.mxu0 0.0
        %5097 = vmatpush1.msra.mxu0 0.0
        %5098 = vmatprep.subr.mxu0 0.0
        %5099 = vmatpush1.msra.mxu0 0.0
        %5100 = vmatprep.subr.mxu0 0.0
        %5101 = vmatpush1.msra.mxu0 0.0
        %5102 = vmatprep.subr.mxu0 0.0
        %5103 = vmatpush1.msra.mxu0 0.0
        %5104 = vmatprep.subr.mxu0 0.0
        %5105 = vmatpush1.msra.mxu0 0.0
        %5106 = vmatprep.subr.mxu0 0.0
        %5107 = vmatpush1.msra.mxu0 0.0
        %5108 = vmatprep.subr.mxu0 0.0
        %5109 = vmatpush1.msra.mxu0 0.0
        %5110 = vmatprep.subr.mxu0 0.0
        %5111 = vmatpush1.msra.mxu0 0.0
        %5112 = vmatprep.mubr.f32.mxu0 0.0
        %5113 = vmatmul.mubr.f32.gmra.mrb[0].mxu0 %v4983
        %v5114 = vpop.f32.mrb[0].mxu0
        %v5115 = vadd.f32 0.0, %v5114
        %v5116 = vpop.f32.mrb[0].mxu0
        %5117 = vmatprep.mubr.f32.mxu0 0.0
        %5118 = vmatmul.mubr.f32.gmra.mrb[0].mxu0 %v4984
        %v5119 = vpop.f32.mrb[0].mxu0
        %v5120 = vadd.f32 0.0, %v5119
        %v5121 = vpop.f32.mrb[0].mxu0
        %5122 = vmatprep.mubr.f32.mxu0 0.0
        %5123 = vmatmul.mubr.f32.gmra.mrb[0].mxu0 %v4985
        %v5124 = vpop.f32.mrb[0].mxu0
        %v5125 = vadd.f32 0.0, %v5124
        %v5126 = vpop.f32.mrb[0].mxu0
        %5127 = vmatprep.mubr.f32.mxu0 0.0
        %5128 = vmatmul.mubr.f32.gmra.mrb[0].mxu0 %v4986
        %v5129 = vpop.f32.mrb[0].mxu0
        %v5130 = vadd.f32 0.0, %v5129
        %v5131 = vpop.f32.mrb[0].mxu0
        %5132 = vmatprep.mubr.f32.mxu0 0.0
        %5133 = vmatmul.mubr.f32.gmra.mrb[0].mxu0 %v4987
        %v5134 = vpop.f32.mrb[0].mxu0
        %v5135 = vadd.f32 0.0, %v5134
        %v5136 = vpop.f32.mrb[0].mxu0
        %5137 = vmatprep.mubr.f32.mxu0 0.0
        %5138 = vmatmul.mubr.f32.gmra.mrb[0].mxu0 %v4988
        %v5139 = vpop.f32.mrb[0].mxu0
        %v5140 = vadd.f32 0.0, %v5139
        %v5141 = vpop.f32.mrb[0].mxu0
        %5142 = vmatprep.mubr.f32.mxu0 0.0
        %5143 = vmatmul.mubr.f32.gmra.mrb[0].mxu0 %v4989
        %v5144 = vpop.f32.mrb[0].mxu0
        %v5145 = vadd.f32 0.0, %v5144
        %v5146 = vpop.f32.mrb[0].mxu0
        %5147 = vmatprep.mubr.f32.mxu0 0.0
        %5148 = vmatmul.mubr.f32.gmra.mrb[0].mxu0 %v4990
        %v5149 = vpop.f32.mrb[0].mxu0
        %v5150 = vadd.f32 0.0, %v5149
        %v5151 = vpop.f32.mrb[0].mxu0
        %5152 = vmatprep.mubr.f32.mxu0 0.0
        %5153 = vmatmul.mubr.f32.gmra.mrb[0].mxu0 %v4991
        %v5154 = vpop.f32.mrb[0].mxu0
        %v5155 = vadd.f32 0.0, %v5154
        %v5156 = vpop.f32.mrb[0].mxu0
        %5157 = vmatprep.mubr.f32.mxu0 0.0
        %5158 = vmatmul.mubr.f32.gmra.mrb[0].mxu0 %v4992
        %v5159 = vpop.f32.mrb[0].mxu0
        %v5160 = vadd.f32 0.0, %v5159
        %v5161 = vpop.f32.mrb[0].mxu0
        %5162 = vmatprep.mubr.f32.mxu0 0.0
        %5163 = vmatmul.mubr.f32.gmra.mrb[0].mxu0 %v4993
        %v5164 = vpop.f32.mrb[0].mxu0
        %v5165 = vadd.f32 0.0, %v5164
        %v5166 = vpop.f32.mrb[0].mxu0
        %5167 = vmatprep.mubr.f32.mxu0 0.0
        %5168 = vmatmul.mubr.f32.gmra.mrb[0].mxu0 %v4994
        %v5169 = vpop.f32.mrb[0].mxu0
        %v5170 = vadd.f32 0.0, %v5169
        %v5171 = vpop.f32.mrb[0].mxu0
        %5172 = vmatprep.mubr.f32.mxu0 0.0
        %5173 = vmatmul.mubr.f32.gmra.mrb[0].mxu0 %v4995
        %v5174 = vpop.f32.mrb[0].mxu0
        %v5175 = vadd.f32 0.0, %v5174
        %v5176 = vpop.f32.mrb[0].mxu0
        %5177 = vmatprep.mubr.f32.mxu0 0.0
        %5178 = vmatmul.mubr.f32.gmra.mrb[0].mxu0 %v4996
        %v5179 = vpop.f32.mrb[0].mxu0
        %v5180 = vadd.f32 0.0, %v5179
        %v5181 = vpop.f32.mrb[0].mxu0
        %5182 = vmatprep.mubr.f32.mxu0 0.0
        %5183 = vmatmul.mubr.f32.gmra.mrb[0].mxu0 %v4997
        %v5184 = vpop.f32.mrb[0].mxu0
        %v5185 = vadd.f32 0.0, %v5184
        %v5186 = vpop.f32.mrb[0].mxu0
        %5187 = vmatprep.mubr.f32.mxu0 0.0
        %5188 = vmatmul.mubr.f32.gmra.mrb[0].mxu0 %v4998
        %v5189 = vpop.f32.mrb[0].mxu0
        %v5190 = vadd.f32 0.0, %v5189
        %v5191 = vpop.f32.mrb[0].mxu0
        %5192 = vmatprep.mubr.f32.mxu0 0.0
        %5193 = vmatmul.mubr.f32.gmra.mrb[0].mxu0 %v4999
        %v5194 = vpop.f32.mrb[0].mxu0
        %v5195 = vadd.f32 0.0, %v5194
        %v5196 = vpop.f32.mrb[0].mxu0
        %5197 = vmatprep.mubr.f32.mxu0 0.0
        %5198 = vmatmul.mubr.f32.gmra.mrb[0].mxu0 %v5000
        %v5199 = vpop.f32.mrb[0].mxu0
        %v5200 = vadd.f32 0.0, %v5199
        %v5201 = vpop.f32.mrb[0].mxu0
        %5202 = vmatprep.mubr.f32.mxu0 0.0
        %5203 = vmatmul.mubr.f32.gmra.mrb[0].mxu0 %v5001
        %v5204 = vpop.f32.mrb[0].mxu0
        %v5205 = vadd.f32 0.0, %v5204
        %v5206 = vpop.f32.mrb[0].mxu0
        %5207 = vmatprep.mubr.f32.mxu0 0.0
        %5208 = vmatmul.mubr.f32.gmra.mrb[0].mxu0 %v5002
        %v5209 = vpop.f32.mrb[0].mxu0
        %v5210 = vadd.f32 0.0, %v5209
        %v5211 = vpop.f32.mrb[0].mxu0
        %5212 = vmatprep.mubr.f32.mxu0 0.0
        %5213 = vmatmul.mubr.f32.gmra.mrb[0].mxu0 %v5003
        %v5214 = vpop.f32.mrb[0].mxu0
        %v5215 = vadd.f32 0.0, %v5214
        %v5216 = vpop.f32.mrb[0].mxu0
        %5217 = vmatprep.mubr.f32.mxu0 0.0
        %5218 = vmatmul.mubr.f32.gmra.mrb[0].mxu0 %v5004
        %v5219 = vpop.f32.mrb[0].mxu0
        %v5220 = vadd.f32 0.0, %v5219
        %v5221 = vpop.f32.mrb[0].mxu0
        %5222 = vmatprep.mubr.f32.mxu0 0.0
        %5223 = vmatmul.mubr.f32.gmra.mrb[0].mxu0 %v5005
        %v5224 = vpop.f32.mrb[0].mxu0
        %v5225 = vadd.f32 0.0, %v5224
        %v5226 = vpop.f32.mrb[0].mxu0
        %5227 = vmatprep.mubr.f32.mxu0 0.0
        %5228 = vmatmul.mubr.f32.gmra.mrb[0].mxu0 %v5006
        %v5229 = vpop.f32.mrb[0].mxu0
        %v5230 = vadd.f32 0.0, %v5229
        %v5231 = vpop.f32.mrb[0].mxu0
        %5232 = vmatprep.mubr.f32.mxu0 0.0
        %5233 = vmatmul.mubr.f32.gmra.mrb[0].mxu0 %v5007
        %v5234 = vpop.f32.mrb[0].mxu0
        %v5235 = vadd.f32 0.0, %v5234
        %v5236 = vpop.f32.mrb[0].mxu0
        %5237 = vmatprep.mubr.f32.mxu0 0.0
        %5238 = vmatmul.mubr.f32.gmra.mrb[0].mxu0 %v5008
        %v5239 = vpop.f32.mrb[0].mxu0
        %v5240 = vadd.f32 0.0, %v5239
        %v5241 = vpop.f32.mrb[0].mxu0
        %5242 = vmatprep.mubr.f32.mxu0 0.0
        %5243 = vmatmul.mubr.f32.gmra.mrb[0].mxu0 %v5009
        %v5244 = vpop.f32.mrb[0].mxu0
        %v5245 = vadd.f32 0.0, %v5244
        %v5246 = vpop.f32.mrb[0].mxu0
        %5247 = vmatprep.mubr.f32.mxu0 0.0
        %5248 = vmatmul.mubr.f32.gmra.mrb[0].mxu0 %v5010
        %v5249 = vpop.f32.mrb[0].mxu0
        %v5250 = vadd.f32 0.0, %v5249
        %v5251 = vpop.f32.mrb[0].mxu0
        %5252 = vmatprep.mubr.f32.mxu0 0.0
        %5253 = vmatmul.mubr.f32.gmra.mrb[0].mxu0 %v5011
        %v5254 = vpop.f32.mrb[0].mxu0
        %v5255 = vadd.f32 0.0, %v5254
        %v5256 = vpop.f32.mrb[0].mxu0
        %5257 = vmatprep.mubr.f32.mxu0 0.0
        %5258 = vmatmul.mubr.f32.gmra.mrb[0].mxu0 %v5012
        %v5259 = vpop.f32.mrb[0].mxu0
        %v5260 = vadd.f32 0.0, %v5259
        %v5261 = vpop.f32.mrb[0].mxu0
        %5262 = vmatprep.mubr.f32.mxu0 0.0
        %5263 = vmatmul.mubr.f32.gmra.mrb[0].mxu0 %v5013
        %v5264 = vpop.f32.mrb[0].mxu0
        %v5265 = vadd.f32 0.0, %v5264
        %v5266 = vpop.f32.mrb[0].mxu0
        %5267 = vmatprep.mubr.f32.mxu0 0.0
        %5268 = vmatmul.mubr.f32.gmra.mrb[0].mxu0 %v5014
        %v5269 = vpop.f32.mrb[0].mxu0
        %v5270 = vadd.f32 0.0, %v5269
        %v5271 = vpop.f32.mrb[0].mxu0
        %5272 = vmatprep.mubr.f32.mxu0 0.0
        %5273 = vmatmul.mubr.f32.gmra.mrb[0].mxu0 %v5015
        %v5274 = vpop.f32.mrb[0].mxu0
        %v5275 = vadd.f32 0.0, %v5274
        %v5276 = vpop.f32.mrb[0].mxu0
        %5277 = vmatprep.mubr.f32.mxu0 0.0
        %5278 = vmatmul.mubr.f32.gmra.mrb[0].mxu0 %v5016
        %v5279 = vpop.f32.mrb[0].mxu0
        %v5280 = vadd.f32 0.0, %v5279
        %v5281 = vpop.f32.mrb[0].mxu0
        %5282 = vmatprep.mubr.f32.mxu0 0.0
        %5283 = vmatmul.mubr.f32.gmra.mrb[0].mxu0 %v5017
        %v5284 = vpop.f32.mrb[0].mxu0
        %v5285 = vadd.f32 0.0, %v5284
        %v5286 = vpop.f32.mrb[0].mxu0
        %5287 = vmatprep.mubr.f32.mxu0 0.0
        %5288 = vmatmul.mubr.f32.gmra.mrb[0].mxu0 %v5018
        %v5289 = vpop.f32.mrb[0].mxu0
        %v5290 = vadd.f32 0.0, %v5289
        %v5291 = vpop.f32.mrb[0].mxu0
        %5292 = vmatprep.mubr.f32.mxu0 0.0
        %5293 = vmatmul.mubr.f32.gmra.mrb[0].mxu0 %v5019
        %v5294 = vpop.f32.mrb[0].mxu0
        %v5295 = vadd.f32 0.0, %v5294
        %v5296 = vpop.f32.mrb[0].mxu0
        %5297 = vmatprep.mubr.f32.mxu0 0.0
        %5298 = vmatmul.mubr.f32.gmra.mrb[0].mxu0 %v5020
        %v5299 = vpop.f32.mrb[0].mxu0
        %v5300 = vadd.f32 0.0, %v5299
        %v5301 = vpop.f32.mrb[0].mxu0
        %5302 = vmatprep.mubr.f32.mxu0 0.0
        %5303 = vmatmul.mubr.f32.gmra.mrb[0].mxu0 %v5021
        %v5304 = vpop.f32.mrb[0].mxu0
        %v5305 = vadd.f32 0.0, %v5304
        %v5306 = vpop.f32.mrb[0].mxu0
        %5307 = vmatprep.mubr.f32.mxu0 0.0
        %5308 = vmatmul.mubr.f32.gmra.mrb[0].mxu0 %v5022
        %v5309 = vpop.f32.mrb[0].mxu0
        %v5310 = vadd.f32 0.0, %v5309
        %v5311 = vpop.f32.mrb[0].mxu0
        %5312 = vmatprep.mubr.f32.mxu0 0.0
        %5313 = vmatmul.mubr.f32.gmra.mrb[0].mxu0 %v5023
        %v5314 = vpop.f32.mrb[0].mxu0
        %v5315 = vadd.f32 0.0, %v5314
        %v5316 = vpop.f32.mrb[0].mxu0
        %5317 = vmatprep.mubr.f32.mxu0 0.0
        %5318 = vmatmul.mubr.f32.gmra.mrb[0].mxu0 %v5024
        %v5319 = vpop.f32.mrb[0].mxu0
        %v5320 = vadd.f32 0.0, %v5319
        %v5321 = vpop.f32.mrb[0].mxu0
        %5322 = vmatprep.mubr.f32.mxu0 0.0
        %5323 = vmatmul.mubr.f32.gmra.mrb[0].mxu0 %v5025
        %v5324 = vpop.f32.mrb[0].mxu0
        %v5325 = vadd.f32 0.0, %v5324
        %v5326 = vpop.f32.mrb[0].mxu0
        %5327 = vmatprep.mubr.f32.mxu0 0.0
        %5328 = vmatmul.mubr.f32.gmra.mrb[0].mxu0 %v5026
        %v5329 = vpop.f32.mrb[0].mxu0
        %v5330 = vadd.f32 0.0, %v5329
        %v5331 = vpop.f32.mrb[0].mxu0
        %5332 = vmatprep.mubr.f32.mxu0 0.0
        %5333 = vmatmul.mubr.f32.gmra.mrb[0].mxu0 %v5027
        %v5334 = vpop.f32.mrb[0].mxu0
        %v5335 = vadd.f32 0.0, %v5334
        %v5336 = vpop.f32.mrb[0].mxu0
        %5337 = vmatprep.mubr.f32.mxu0 0.0
        %5338 = vmatmul.mubr.f32.gmra.mrb[0].mxu0 %v5028
        %v5339 = vpop.f32.mrb[0].mxu0
        %v5340 = vadd.f32 0.0, %v5339
        %v5341 = vpop.f32.mrb[0].mxu0
        %5342 = vmatprep.mubr.f32.mxu0 0.0
        %5343 = vmatmul.mubr.f32.gmra.mrb[0].mxu0 %v5029
        %v5344 = vpop.f32.mrb[0].mxu0
        %v5345 = vadd.f32 0.0, %v5344
        %v5346 = vpop.f32.mrb[0].mxu0
        %5347 = vmatprep.mubr.f32.mxu0 0.0
        %5348 = vmatmul.mubr.f32.gmra.mrb[0].mxu0 %v5030
        %v5349 = vpop.f32.mrb[0].mxu0
        %v5350 = vadd.f32 0.0, %v5349
        %v5351 = vpop.f32.mrb[0].mxu0
        %5352 = vdwg.mxu0
        %v5353 = vadd.f32 %v4935, %v5115
        %v5354 = vadd.f32 %v4936, %v5120
        %v5355 = vadd.f32 %v4937, %v5125
        %v5356 = vadd.f32 %v4938, %v5130
        %v5357 = vadd.f32 %v4939, %v5135
        %v5358 = vadd.f32 %v4940, %v5140
        %v5359 = vadd.f32 %v4941, %v5145
        %v5360 = vadd.f32 %v4942, %v5150
        %v5361 = vadd.f32 %v4943, %v5155
        %v5362 = vadd.f32 %v4944, %v5160
        %v5363 = vadd.f32 %v4945, %v5165
        %v5364 = vadd.f32 %v4946, %v5170
        %v5365 = vadd.f32 %v4947, %v5175
        %v5366 = vadd.f32 %v4948, %v5180
        %v5367 = vadd.f32 %v4949, %v5185
        %v5368 = vadd.f32 %v4950, %v5190
        %v5369 = vadd.f32 %v4951, %v5195
        %v5370 = vadd.f32 %v4952, %v5200
        %v5371 = vadd.f32 %v4953, %v5205
        %v5372 = vadd.f32 %v4954, %v5210
        %v5373 = vadd.f32 %v4955, %v5215
        %v5374 = vadd.f32 %v4956, %v5220
        %v5375 = vadd.f32 %v4957, %v5225
        %v5376 = vadd.f32 %v4958, %v5230
        %v5377 = vadd.f32 %v4959, %v5235
        %v5378 = vadd.f32 %v4960, %v5240
        %v5379 = vadd.f32 %v4961, %v5245
        %v5380 = vadd.f32 %v4962, %v5250
        %v5381 = vadd.f32 %v4963, %v5255
        %v5382 = vadd.f32 %v4964, %v5260
        %v5383 = vadd.f32 %v4965, %v5265
        %v5384 = vadd.f32 %v4966, %v5270
        %v5385 = vadd.f32 %v4967, %v5275
        %v5386 = vadd.f32 %v4968, %v5280
        %v5387 = vadd.f32 %v4969, %v5285
        %v5388 = vadd.f32 %v4970, %v5290
        %v5389 = vadd.f32 %v4971, %v5295
        %v5390 = vadd.f32 %v4972, %v5300
        %v5391 = vadd.f32 %v4973, %v5305
        %v5392 = vadd.f32 %v4974, %v5310
        %v5393 = vadd.f32 %v4975, %v5315
        %v5394 = vadd.f32 %v4976, %v5320
        %v5395 = vadd.f32 %v4977, %v5325
        %v5396 = vadd.f32 %v4978, %v5330
        %v5397 = vadd.f32 %v4979, %v5335
        %v5398 = vadd.f32 %v4980, %v5340
        %v5399 = vadd.f32 %v4981, %v5345
        %v5400 = vadd.f32 %v4982, %v5350
        %v5401 = vld [vmem:[%s4] sm:$0x1]
        %v5403 = vlaneseq
        %v5404 = vshrl.u32 %v5403, 7
        %v5405 = vsub.s32 0, %v5404
        %v5406 = vrot.slane %v5401, %v5405
        %v5408 = vadd.f32 %v5353, %v5406
        %v5409 = vadd.f32 %v5354, %v5406
        %v5410 = vadd.f32 %v5355, %v5406
        %v5411 = vadd.f32 %v5356, %v5406
        %v5412 = vadd.f32 %v5357, %v5406
        %v5413 = vadd.f32 %v5358, %v5406
        %v5414 = vadd.f32 %v5359, %v5406
        %v5415 = vadd.f32 %v5360, %v5406
        %v5416 = vadd.f32 %v5361, %v5406
        %v5417 = vadd.f32 %v5362, %v5406
        %v5418 = vadd.f32 %v5363, %v5406
        %v5419 = vadd.f32 %v5364, %v5406
        %v5420 = vadd.f32 %v5365, %v5406
        %v5421 = vadd.f32 %v5366, %v5406
        %v5422 = vadd.f32 %v5367, %v5406
        %v5423 = vadd.f32 %v5368, %v5406
        %v5424 = vadd.f32 %v5369, %v5406
        %v5425 = vadd.f32 %v5370, %v5406
        %v5426 = vadd.f32 %v5371, %v5406
        %v5427 = vadd.f32 %v5372, %v5406
        %v5428 = vadd.f32 %v5373, %v5406
        %v5429 = vadd.f32 %v5374, %v5406
        %v5430 = vadd.f32 %v5375, %v5406
        %v5431 = vadd.f32 %v5376, %v5406
        %v5432 = vadd.f32 %v5377, %v5406
        %v5433 = vadd.f32 %v5378, %v5406
        %v5434 = vadd.f32 %v5379, %v5406
        %v5435 = vadd.f32 %v5380, %v5406
        %v5436 = vadd.f32 %v5381, %v5406
        %v5437 = vadd.f32 %v5382, %v5406
        %v5438 = vadd.f32 %v5383, %v5406
        %v5439 = vadd.f32 %v5384, %v5406
        %v5440 = vadd.f32 %v5385, %v5406
        %v5441 = vadd.f32 %v5386, %v5406
        %v5442 = vadd.f32 %v5387, %v5406
        %v5443 = vadd.f32 %v5388, %v5406
        %v5444 = vadd.f32 %v5389, %v5406
        %v5445 = vadd.f32 %v5390, %v5406
        %v5446 = vadd.f32 %v5391, %v5406
        %v5447 = vadd.f32 %v5392, %v5406
        %v5448 = vadd.f32 %v5393, %v5406
        %v5449 = vadd.f32 %v5394, %v5406
        %v5450 = vadd.f32 %v5395, %v5406
        %v5451 = vadd.f32 %v5396, %v5406
        %v5452 = vadd.f32 %v5397, %v5406
        %v5453 = vadd.f32 %v5398, %v5406
        %v5454 = vadd.f32 %v5399, %v5406
        %v5455 = vadd.f32 %v5400, %v5406
        %v5456 = vmax.f32 %v5408, 0.0
        %v5457 = vmax.f32 %v5409, 0.0
        %v5458 = vmax.f32 %v5410, 0.0
        %v5459 = vmax.f32 %v5411, 0.0
        %v5460 = vmax.f32 %v5412, 0.0
        %v5461 = vmax.f32 %v5413, 0.0
        %v5462 = vmax.f32 %v5414, 0.0
        %v5463 = vmax.f32 %v5415, 0.0
        %v5464 = vmax.f32 %v5416, 0.0
        %v5465 = vmax.f32 %v5417, 0.0
        %v5466 = vmax.f32 %v5418, 0.0
        %v5467 = vmax.f32 %v5419, 0.0
        %v5468 = vmax.f32 %v5420, 0.0
        %v5469 = vmax.f32 %v5421, 0.0
        %v5470 = vmax.f32 %v5422, 0.0
        %v5471 = vmax.f32 %v5423, 0.0
        %v5472 = vmax.f32 %v5424, 0.0
        %v5473 = vmax.f32 %v5425, 0.0
        %v5474 = vmax.f32 %v5426, 0.0
        %v5475 = vmax.f32 %v5427, 0.0
        %v5476 = vmax.f32 %v5428, 0.0
        %v5477 = vmax.f32 %v5429, 0.0
        %v5478 = vmax.f32 %v5430, 0.0
        %v5479 = vmax.f32 %v5431, 0.0
        %v5480 = vmax.f32 %v5432, 0.0
        %v5481 = vmax.f32 %v5433, 0.0
        %v5482 = vmax.f32 %v5434, 0.0
        %v5483 = vmax.f32 %v5435, 0.0
        %v5484 = vmax.f32 %v5436, 0.0
        %v5485 = vmax.f32 %v5437, 0.0
        %v5486 = vmax.f32 %v5438, 0.0
        %v5487 = vmax.f32 %v5439, 0.0
        %v5488 = vmax.f32 %v5440, 0.0
        %v5489 = vmax.f32 %v5441, 0.0
        %v5490 = vmax.f32 %v5442, 0.0
        %v5491 = vmax.f32 %v5443, 0.0
        %v5492 = vmax.f32 %v5444, 0.0
        %v5493 = vmax.f32 %v5445, 0.0
        %v5494 = vmax.f32 %v5446, 0.0
        %v5495 = vmax.f32 %v5447, 0.0
        %v5496 = vmax.f32 %v5448, 0.0
        %v5497 = vmax.f32 %v5449, 0.0
        %v5498 = vmax.f32 %v5450, 0.0
        %v5499 = vmax.f32 %v5451, 0.0
        %v5500 = vmax.f32 %v5452, 0.0
        %v5501 = vmax.f32 %v5453, 0.0
        %v5502 = vmax.f32 %v5454, 0.0
        %v5503 = vmax.f32 %v5455, 0.0
        %v5504 = vld [vmem:[#allocation9] sm:$0xff]
        %v5505 = vld [vmem:[#allocation9 + $0x8] sm:$0xff]
        %v5506 = vld [vmem:[#allocation9 + $0x10] sm:$0xff]
        %v5507 = vld [vmem:[#allocation9 + $0x18] sm:$0xff]
        %v5508 = vld [vmem:[#allocation9 + $0x20] sm:$0xff]
        %v5509 = vld [vmem:[#allocation9 + $0x28] sm:$0xff]
        %v5510 = vld [vmem:[#allocation9 + $0x30] sm:$0xff]
        %v5511 = vld [vmem:[#allocation9 + $0x38] sm:$0xff]
        %v5512 = vld [vmem:[#allocation9 + $0x40] sm:$0xff]
        %v5513 = vld [vmem:[#allocation9 + $0x48] sm:$0xff]
        %v5514 = vld [vmem:[#allocation9 + $0x50] sm:$0xff]
        %v5515 = vld [vmem:[#allocation9 + $0x58] sm:$0xff]
        %v5516 = vld [vmem:[#allocation9 + $0x60] sm:$0xff]
        %v5517 = vld [vmem:[#allocation9 + $0x68] sm:$0xff]
        %v5518 = vld [vmem:[#allocation9 + $0x70] sm:$0xff]
        %v5519 = vld [vmem:[#allocation9 + $0x78] sm:$0xff]
        %v5520 = vld [vmem:[%s6] sm:$0x1]
        %v5522 = vlaneseq
        %v5523 = vshrl.u32 %v5522, 7
        %v5524 = vsub.s32 0, %v5523
        %v5525 = vrot.slane %v5520, %v5524
        %5527 = vmatprep.subr.mxu0 0.0
        %5528 = vmatpush1.msra.mxu0 %v5504
        %5529 = vmatprep.subr.mxu0 0.0
        %5530 = vmatpush1.msra.mxu0 %v5505
        %5531 = vmatprep.subr.mxu0 0.0
        %5532 = vmatpush1.msra.mxu0 %v5506
        %5533 = vmatprep.subr.mxu0 0.0
        %5534 = vmatpush1.msra.mxu0 %v5507
        %5535 = vmatprep.subr.mxu0 0.0
        %5536 = vmatpush1.msra.mxu0 %v5508
        %5537 = vmatprep.subr.mxu0 0.0
        %5538 = vmatpush1.msra.mxu0 %v5509
        %5539 = vmatprep.subr.mxu0 0.0
        %5540 = vmatpush1.msra.mxu0 %v5510
        %5541 = vmatprep.subr.mxu0 0.0
        %5542 = vmatpush1.msra.mxu0 %v5511
        %5543 = vmatprep.subr.mxu0 0.0
        %5544 = vmatpush1.msra.mxu0 %v5512
        %5545 = vmatprep.subr.mxu0 0.0
        %5546 = vmatpush1.msra.mxu0 %v5513
        %5547 = vmatprep.subr.mxu0 0.0
        %5548 = vmatpush1.msra.mxu0 %v5514
        %5549 = vmatprep.subr.mxu0 0.0
        %5550 = vmatpush1.msra.mxu0 %v5515
        %5551 = vmatprep.subr.mxu0 0.0
        %5552 = vmatpush1.msra.mxu0 %v5516
        %5553 = vmatprep.subr.mxu0 0.0
        %5554 = vmatpush1.msra.mxu0 %v5517
        %5555 = vmatprep.subr.mxu0 0.0
        %5556 = vmatpush1.msra.mxu0 %v5518
        %5557 = vmatprep.subr.mxu0 0.0
        %5558 = vmatpush1.msra.mxu0 %v5519
        %5559 = vmatprep.subr.mxu0 0.0
        %5560 = vmatpush1.msra.mxu0 0.0
        %5561 = vmatprep.subr.mxu0 0.0
        %5562 = vmatpush1.msra.mxu0 0.0
        %5563 = vmatprep.subr.mxu0 0.0
        %5564 = vmatpush1.msra.mxu0 0.0
        %5565 = vmatprep.subr.mxu0 0.0
        %5566 = vmatpush1.msra.mxu0 0.0
        %5567 = vmatprep.subr.mxu0 0.0
        %5568 = vmatpush1.msra.mxu0 0.0
        %5569 = vmatprep.subr.mxu0 0.0
        %5570 = vmatpush1.msra.mxu0 0.0
        %5571 = vmatprep.subr.mxu0 0.0
        %5572 = vmatpush1.msra.mxu0 0.0
        %5573 = vmatprep.subr.mxu0 0.0
        %5574 = vmatpush1.msra.mxu0 0.0
        %5575 = vmatprep.subr.mxu0 0.0
        %5576 = vmatpush1.msra.mxu0 0.0
        %5577 = vmatprep.subr.mxu0 0.0
        %5578 = vmatpush1.msra.mxu0 0.0
        %5579 = vmatprep.subr.mxu0 0.0
        %5580 = vmatpush1.msra.mxu0 0.0
        %5581 = vmatprep.subr.mxu0 0.0
        %5582 = vmatpush1.msra.mxu0 0.0
        %5583 = vmatprep.subr.mxu0 0.0
        %5584 = vmatpush1.msra.mxu0 0.0
        %5585 = vmatprep.subr.mxu0 0.0
        %5586 = vmatpush1.msra.mxu0 0.0
        %5587 = vmatprep.subr.mxu0 0.0
        %5588 = vmatpush1.msra.mxu0 0.0
        %5589 = vmatprep.subr.mxu0 0.0
        %5590 = vmatpush1.msra.mxu0 0.0
        %5591 = vmatprep.mubr.f32.mxu0 0.0
        %5592 = vmatmul.mubr.f32.gmra.mrb[0].mxu0 %v5456
        %v5593 = vpop.f32.mrb[0].mxu0
        %v5594 = vadd.f32 %v5525, %v5593
        %v5595 = vpop.f32.mrb[0].mxu0
        %5596 = vmatprep.mubr.f32.mxu0 0.0
        %5597 = vmatmul.mubr.f32.gmra.mrb[0].mxu0 %v5457
        %v5598 = vpop.f32.mrb[0].mxu0
        %v5599 = vadd.f32 %v5525, %v5598
        %v5600 = vpop.f32.mrb[0].mxu0
        %5601 = vmatprep.mubr.f32.mxu0 0.0
        %5602 = vmatmul.mubr.f32.gmra.mrb[0].mxu0 %v5458
        %v5603 = vpop.f32.mrb[0].mxu0
        %v5604 = vadd.f32 %v5525, %v5603
        %v5605 = vpop.f32.mrb[0].mxu0
        %5606 = vmatprep.mubr.f32.mxu0 0.0
        %5607 = vmatmul.mubr.f32.gmra.mrb[0].mxu0 %v5459
        %v5608 = vpop.f32.mrb[0].mxu0
        %v5609 = vadd.f32 %v5525, %v5608
        %v5610 = vpop.f32.mrb[0].mxu0
        %5611 = vmatprep.mubr.f32.mxu0 0.0
        %5612 = vmatmul.mubr.f32.gmra.mrb[0].mxu0 %v5460
        %v5613 = vpop.f32.mrb[0].mxu0
        %v5614 = vadd.f32 %v5525, %v5613
        %v5615 = vpop.f32.mrb[0].mxu0
        %5616 = vmatprep.mubr.f32.mxu0 0.0
        %5617 = vmatmul.mubr.f32.gmra.mrb[0].mxu0 %v5461
        %v5618 = vpop.f32.mrb[0].mxu0
        %v5619 = vadd.f32 %v5525, %v5618
        %v5620 = vpop.f32.mrb[0].mxu0
        %5621 = vmatprep.mubr.f32.mxu0 0.0
        %5622 = vmatmul.mubr.f32.gmra.mrb[0].mxu0 %v5462
        %v5623 = vpop.f32.mrb[0].mxu0
        %v5624 = vadd.f32 %v5525, %v5623
        %v5625 = vpop.f32.mrb[0].mxu0
        %5626 = vmatprep.mubr.f32.mxu0 0.0
        %5627 = vmatmul.mubr.f32.gmra.mrb[0].mxu0 %v5463
        %v5628 = vpop.f32.mrb[0].mxu0
        %v5629 = vadd.f32 %v5525, %v5628
        %v5630 = vpop.f32.mrb[0].mxu0
        %5631 = vmatprep.mubr.f32.mxu0 0.0
        %5632 = vmatmul.mubr.f32.gmra.mrb[0].mxu0 %v5464
        %v5633 = vpop.f32.mrb[0].mxu0
        %v5634 = vadd.f32 %v5525, %v5633
        %v5635 = vpop.f32.mrb[0].mxu0
        %5636 = vmatprep.mubr.f32.mxu0 0.0
        %5637 = vmatmul.mubr.f32.gmra.mrb[0].mxu0 %v5465
        %v5638 = vpop.f32.mrb[0].mxu0
        %v5639 = vadd.f32 %v5525, %v5638
        %v5640 = vpop.f32.mrb[0].mxu0
        %5641 = vmatprep.mubr.f32.mxu0 0.0
        %5642 = vmatmul.mubr.f32.gmra.mrb[0].mxu0 %v5466
        %v5643 = vpop.f32.mrb[0].mxu0
        %v5644 = vadd.f32 %v5525, %v5643
        %v5645 = vpop.f32.mrb[0].mxu0
        %5646 = vmatprep.mubr.f32.mxu0 0.0
        %5647 = vmatmul.mubr.f32.gmra.mrb[0].mxu0 %v5467
        %v5648 = vpop.f32.mrb[0].mxu0
        %v5649 = vadd.f32 %v5525, %v5648
        %v5650 = vpop.f32.mrb[0].mxu0
        %5651 = vmatprep.mubr.f32.mxu0 0.0
        %5652 = vmatmul.mubr.f32.gmra.mrb[0].mxu0 %v5468
        %v5653 = vpop.f32.mrb[0].mxu0
        %v5654 = vadd.f32 %v5525, %v5653
        %v5655 = vpop.f32.mrb[0].mxu0
        %5656 = vmatprep.mubr.f32.mxu0 0.0
        %5657 = vmatmul.mubr.f32.gmra.mrb[0].mxu0 %v5469
        %v5658 = vpop.f32.mrb[0].mxu0
        %v5659 = vadd.f32 %v5525, %v5658
        %v5660 = vpop.f32.mrb[0].mxu0
        %5661 = vmatprep.mubr.f32.mxu0 0.0
        %5662 = vmatmul.mubr.f32.gmra.mrb[0].mxu0 %v5470
        %v5663 = vpop.f32.mrb[0].mxu0
        %v5664 = vadd.f32 %v5525, %v5663
        %v5665 = vpop.f32.mrb[0].mxu0
        %5666 = vmatprep.mubr.f32.mxu0 0.0
        %5667 = vmatmul.mubr.f32.gmra.mrb[0].mxu0 %v5471
        %v5668 = vpop.f32.mrb[0].mxu0
        %v5669 = vadd.f32 %v5525, %v5668
        %v5670 = vpop.f32.mrb[0].mxu0
        %5671 = vmatprep.mubr.f32.mxu0 0.0
        %5672 = vmatmul.mubr.f32.gmra.mrb[0].mxu0 %v5472
        %v5673 = vpop.f32.mrb[0].mxu0
        %v5674 = vadd.f32 %v5525, %v5673
        %v5675 = vpop.f32.mrb[0].mxu0
        %5676 = vmatprep.mubr.f32.mxu0 0.0
        %5677 = vmatmul.mubr.f32.gmra.mrb[0].mxu0 %v5473
        %v5678 = vpop.f32.mrb[0].mxu0
        %v5679 = vadd.f32 %v5525, %v5678
        %v5680 = vpop.f32.mrb[0].mxu0
        %5681 = vmatprep.mubr.f32.mxu0 0.0
        %5682 = vmatmul.mubr.f32.gmra.mrb[0].mxu0 %v5474
        %v5683 = vpop.f32.mrb[0].mxu0
        %v5684 = vadd.f32 %v5525, %v5683
        %v5685 = vpop.f32.mrb[0].mxu0
        %5686 = vmatprep.mubr.f32.mxu0 0.0
        %5687 = vmatmul.mubr.f32.gmra.mrb[0].mxu0 %v5475
        %v5688 = vpop.f32.mrb[0].mxu0
        %v5689 = vadd.f32 %v5525, %v5688
        %v5690 = vpop.f32.mrb[0].mxu0
        %5691 = vmatprep.mubr.f32.mxu0 0.0
        %5692 = vmatmul.mubr.f32.gmra.mrb[0].mxu0 %v5476
        %v5693 = vpop.f32.mrb[0].mxu0
        %v5694 = vadd.f32 %v5525, %v5693
        %v5695 = vpop.f32.mrb[0].mxu0
        %5696 = vmatprep.mubr.f32.mxu0 0.0
        %5697 = vmatmul.mubr.f32.gmra.mrb[0].mxu0 %v5477
        %v5698 = vpop.f32.mrb[0].mxu0
        %v5699 = vadd.f32 %v5525, %v5698
        %v5700 = vpop.f32.mrb[0].mxu0
        %5701 = vmatprep.mubr.f32.mxu0 0.0
        %5702 = vmatmul.mubr.f32.gmra.mrb[0].mxu0 %v5478
        %v5703 = vpop.f32.mrb[0].mxu0
        %v5704 = vadd.f32 %v5525, %v5703
        %v5705 = vpop.f32.mrb[0].mxu0
        %5706 = vmatprep.mubr.f32.mxu0 0.0
        %5707 = vmatmul.mubr.f32.gmra.mrb[0].mxu0 %v5479
        %v5708 = vpop.f32.mrb[0].mxu0
        %v5709 = vadd.f32 %v5525, %v5708
        %v5710 = vpop.f32.mrb[0].mxu0
        %5711 = vmatprep.mubr.f32.mxu0 0.0
        %5712 = vmatmul.mubr.f32.gmra.mrb[0].mxu0 %v5480
        %v5713 = vpop.f32.mrb[0].mxu0
        %v5714 = vadd.f32 %v5525, %v5713
        %v5715 = vpop.f32.mrb[0].mxu0
        %5716 = vmatprep.mubr.f32.mxu0 0.0
        %5717 = vmatmul.mubr.f32.gmra.mrb[0].mxu0 %v5481
        %v5718 = vpop.f32.mrb[0].mxu0
        %v5719 = vadd.f32 %v5525, %v5718
        %v5720 = vpop.f32.mrb[0].mxu0
        %5721 = vmatprep.mubr.f32.mxu0 0.0
        %5722 = vmatmul.mubr.f32.gmra.mrb[0].mxu0 %v5482
        %v5723 = vpop.f32.mrb[0].mxu0
        %v5724 = vadd.f32 %v5525, %v5723
        %v5725 = vpop.f32.mrb[0].mxu0
        %5726 = vmatprep.mubr.f32.mxu0 0.0
        %5727 = vmatmul.mubr.f32.gmra.mrb[0].mxu0 %v5483
        %v5728 = vpop.f32.mrb[0].mxu0
        %v5729 = vadd.f32 %v5525, %v5728
        %v5730 = vpop.f32.mrb[0].mxu0
        %5731 = vmatprep.mubr.f32.mxu0 0.0
        %5732 = vmatmul.mubr.f32.gmra.mrb[0].mxu0 %v5484
        %v5733 = vpop.f32.mrb[0].mxu0
        %v5734 = vadd.f32 %v5525, %v5733
        %v5735 = vpop.f32.mrb[0].mxu0
        %5736 = vmatprep.mubr.f32.mxu0 0.0
        %5737 = vmatmul.mubr.f32.gmra.mrb[0].mxu0 %v5485
        %v5738 = vpop.f32.mrb[0].mxu0
        %v5739 = vadd.f32 %v5525, %v5738
        %v5740 = vpop.f32.mrb[0].mxu0
        %5741 = vmatprep.mubr.f32.mxu0 0.0
        %5742 = vmatmul.mubr.f32.gmra.mrb[0].mxu0 %v5486
        %v5743 = vpop.f32.mrb[0].mxu0
        %v5744 = vadd.f32 %v5525, %v5743
        %v5745 = vpop.f32.mrb[0].mxu0
        %5746 = vmatprep.mubr.f32.mxu0 0.0
        %5747 = vmatmul.mubr.f32.gmra.mrb[0].mxu0 %v5487
        %v5748 = vpop.f32.mrb[0].mxu0
        %v5749 = vadd.f32 %v5525, %v5748
        %v5750 = vpop.f32.mrb[0].mxu0
        %5751 = vmatprep.mubr.f32.mxu0 0.0
        %5752 = vmatmul.mubr.f32.gmra.mrb[0].mxu0 %v5488
        %v5753 = vpop.f32.mrb[0].mxu0
        %v5754 = vadd.f32 %v5525, %v5753
        %v5755 = vpop.f32.mrb[0].mxu0
        %5756 = vmatprep.mubr.f32.mxu0 0.0
        %5757 = vmatmul.mubr.f32.gmra.mrb[0].mxu0 %v5489
        %v5758 = vpop.f32.mrb[0].mxu0
        %v5759 = vadd.f32 %v5525, %v5758
        %v5760 = vpop.f32.mrb[0].mxu0
        %5761 = vmatprep.mubr.f32.mxu0 0.0
        %5762 = vmatmul.mubr.f32.gmra.mrb[0].mxu0 %v5490
        %v5763 = vpop.f32.mrb[0].mxu0
        %v5764 = vadd.f32 %v5525, %v5763
        %v5765 = vpop.f32.mrb[0].mxu0
        %5766 = vmatprep.mubr.f32.mxu0 0.0
        %5767 = vmatmul.mubr.f32.gmra.mrb[0].mxu0 %v5491
        %v5768 = vpop.f32.mrb[0].mxu0
        %v5769 = vadd.f32 %v5525, %v5768
        %v5770 = vpop.f32.mrb[0].mxu0
        %5771 = vmatprep.mubr.f32.mxu0 0.0
        %5772 = vmatmul.mubr.f32.gmra.mrb[0].mxu0 %v5492
        %v5773 = vpop.f32.mrb[0].mxu0
        %v5774 = vadd.f32 %v5525, %v5773
        %v5775 = vpop.f32.mrb[0].mxu0
        %5776 = vmatprep.mubr.f32.mxu0 0.0
        %5777 = vmatmul.mubr.f32.gmra.mrb[0].mxu0 %v5493
        %v5778 = vpop.f32.mrb[0].mxu0
        %v5779 = vadd.f32 %v5525, %v5778
        %v5780 = vpop.f32.mrb[0].mxu0
        %5781 = vmatprep.mubr.f32.mxu0 0.0
        %5782 = vmatmul.mubr.f32.gmra.mrb[0].mxu0 %v5494
        %v5783 = vpop.f32.mrb[0].mxu0
        %v5784 = vadd.f32 %v5525, %v5783
        %v5785 = vpop.f32.mrb[0].mxu0
        %5786 = vmatprep.mubr.f32.mxu0 0.0
        %5787 = vmatmul.mubr.f32.gmra.mrb[0].mxu0 %v5495
        %v5788 = vpop.f32.mrb[0].mxu0
        %v5789 = vadd.f32 %v5525, %v5788
        %v5790 = vpop.f32.mrb[0].mxu0
        %5791 = vmatprep.mubr.f32.mxu0 0.0
        %5792 = vmatmul.mubr.f32.gmra.mrb[0].mxu0 %v5496
        %v5793 = vpop.f32.mrb[0].mxu0
        %v5794 = vadd.f32 %v5525, %v5793
        %v5795 = vpop.f32.mrb[0].mxu0
        %5796 = vmatprep.mubr.f32.mxu0 0.0
        %5797 = vmatmul.mubr.f32.gmra.mrb[0].mxu0 %v5497
        %v5798 = vpop.f32.mrb[0].mxu0
        %v5799 = vadd.f32 %v5525, %v5798
        %v5800 = vpop.f32.mrb[0].mxu0
        %5801 = vmatprep.mubr.f32.mxu0 0.0
        %5802 = vmatmul.mubr.f32.gmra.mrb[0].mxu0 %v5498
        %v5803 = vpop.f32.mrb[0].mxu0
        %v5804 = vadd.f32 %v5525, %v5803
        %v5805 = vpop.f32.mrb[0].mxu0
        %5806 = vmatprep.mubr.f32.mxu0 0.0
        %5807 = vmatmul.mubr.f32.gmra.mrb[0].mxu0 %v5499
        %v5808 = vpop.f32.mrb[0].mxu0
        %v5809 = vadd.f32 %v5525, %v5808
        %v5810 = vpop.f32.mrb[0].mxu0
        %5811 = vmatprep.mubr.f32.mxu0 0.0
        %5812 = vmatmul.mubr.f32.gmra.mrb[0].mxu0 %v5500
        %v5813 = vpop.f32.mrb[0].mxu0
        %v5814 = vadd.f32 %v5525, %v5813
        %v5815 = vpop.f32.mrb[0].mxu0
        %5816 = vmatprep.mubr.f32.mxu0 0.0
        %5817 = vmatmul.mubr.f32.gmra.mrb[0].mxu0 %v5501
        %v5818 = vpop.f32.mrb[0].mxu0
        %v5819 = vadd.f32 %v5525, %v5818
        %v5820 = vpop.f32.mrb[0].mxu0
        %5821 = vmatprep.mubr.f32.mxu0 0.0
        %5822 = vmatmul.mubr.f32.gmra.mrb[0].mxu0 %v5502
        %v5823 = vpop.f32.mrb[0].mxu0
        %v5824 = vadd.f32 %v5525, %v5823
        %v5825 = vpop.f32.mrb[0].mxu0
        %5826 = vmatprep.mubr.f32.mxu0 0.0
        %5827 = vmatmul.mubr.f32.gmra.mrb[0].mxu0 %v5503
        %v5828 = vpop.f32.mrb[0].mxu0
        %v5829 = vadd.f32 %v5525, %v5828
        %v5830 = vpop.f32.mrb[0].mxu0
        %5831 = vdwg.mxu0
        %v5832 = vadd.f32 %v5594, %v341
        %v5833 = vadd.f32 %v5599, %v342
        %v5834 = vadd.f32 %v5604, %v343
        %v5835 = vadd.f32 %v5609, %v344
        %v5836 = vadd.f32 %v5614, %v345
        %v5837 = vadd.f32 %v5619, %v346
        %v5838 = vadd.f32 %v5624, %v347
        %v5839 = vadd.f32 %v5629, %v348
        %v5840 = vadd.f32 %v5634, %v349
        %v5841 = vadd.f32 %v5639, %v350
        %v5842 = vadd.f32 %v5644, %v351
        %v5843 = vadd.f32 %v5649, %v352
        %v5844 = vadd.f32 %v5654, %v353
        %v5845 = vadd.f32 %v5659, %v354
        %v5846 = vadd.f32 %v5664, %v355
        %v5847 = vadd.f32 %v5669, %v356
        %v5848 = vadd.f32 %v5674, %v357
        %v5849 = vadd.f32 %v5679, %v358
        %v5850 = vadd.f32 %v5684, %v359
        %v5851 = vadd.f32 %v5689, %v360
        %v5852 = vadd.f32 %v5694, %v361
        %v5853 = vadd.f32 %v5699, %v362
        %v5854 = vadd.f32 %v5704, %v363
        %v5855 = vadd.f32 %v5709, %v364
        %v5856 = vadd.f32 %v5714, %v365
        %v5857 = vadd.f32 %v5719, %v366
        %v5858 = vadd.f32 %v5724, %v367
        %v5859 = vadd.f32 %v5729, %v368
        %v5860 = vadd.f32 %v5734, %v369
        %v5861 = vadd.f32 %v5739, %v370
        %v5862 = vadd.f32 %v5744, %v371
        %v5863 = vadd.f32 %v5749, %v372
        %v5864 = vadd.f32 %v5754, %v373
        %v5865 = vadd.f32 %v5759, %v374
        %v5866 = vadd.f32 %v5764, %v375
        %v5867 = vadd.f32 %v5769, %v376
        %v5868 = vadd.f32 %v5774, %v377
        %v5869 = vadd.f32 %v5779, %v378
        %v5870 = vadd.f32 %v5784, %v379
        %v5871 = vadd.f32 %v5789, %v380
        %v5872 = vadd.f32 %v5794, %v381
        %v5873 = vadd.f32 %v5799, %v382
        %v5874 = vadd.f32 %v5804, %v383
        %v5875 = vadd.f32 %v5809, %v384
        %v5876 = vadd.f32 %v5814, %v385
        %v5877 = vadd.f32 %v5819, %v386
        %v5878 = vadd.f32 %v5824, %v387
        %v5879 = vadd.f32 %v5829, %v388
        %v5880 = vmax.f32 %v5832, 0.0
        %v5881 = vmax.f32 %v5833, 0.0
        %v5882 = vmax.f32 %v5834, 0.0
        %v5883 = vmax.f32 %v5835, 0.0
        %v5884 = vmax.f32 %v5836, 0.0
        %v5885 = vmax.f32 %v5837, 0.0
        %v5886 = vmax.f32 %v5838, 0.0
        %v5887 = vmax.f32 %v5839, 0.0
        %v5888 = vmax.f32 %v5840, 0.0
        %v5889 = vmax.f32 %v5841, 0.0
        %v5890 = vmax.f32 %v5842, 0.0
        %v5891 = vmax.f32 %v5843, 0.0
        %v5892 = vmax.f32 %v5844, 0.0
        %v5893 = vmax.f32 %v5845, 0.0
        %v5894 = vmax.f32 %v5846, 0.0
        %v5895 = vmax.f32 %v5847, 0.0
        %v5896 = vmax.f32 %v5848, 0.0
        %v5897 = vmax.f32 %v5849, 0.0
        %v5898 = vmax.f32 %v5850, 0.0
        %v5899 = vmax.f32 %v5851, 0.0
        %v5900 = vmax.f32 %v5852, 0.0
        %v5901 = vmax.f32 %v5853, 0.0
        %v5902 = vmax.f32 %v5854, 0.0
        %v5903 = vmax.f32 %v5855, 0.0
        %v5904 = vmax.f32 %v5856, 0.0
        %v5905 = vmax.f32 %v5857, 0.0
        %v5906 = vmax.f32 %v5858, 0.0
        %v5907 = vmax.f32 %v5859, 0.0
        %v5908 = vmax.f32 %v5860, 0.0
        %v5909 = vmax.f32 %v5861, 0.0
        %v5910 = vmax.f32 %v5862, 0.0
        %v5911 = vmax.f32 %v5863, 0.0
        %v5912 = vmax.f32 %v5864, 0.0
        %v5913 = vmax.f32 %v5865, 0.0
        %v5914 = vmax.f32 %v5866, 0.0
        %v5915 = vmax.f32 %v5867, 0.0
        %v5916 = vmax.f32 %v5868, 0.0
        %v5917 = vmax.f32 %v5869, 0.0
        %v5918 = vmax.f32 %v5870, 0.0
        %v5919 = vmax.f32 %v5871, 0.0
        %v5920 = vmax.f32 %v5872, 0.0
        %v5921 = vmax.f32 %v5873, 0.0
        %v5922 = vmax.f32 %v5874, 0.0
        %v5923 = vmax.f32 %v5875, 0.0
        %v5924 = vmax.f32 %v5876, 0.0
        %v5925 = vmax.f32 %v5877, 0.0
        %v5926 = vmax.f32 %v5878, 0.0
        %v5927 = vmax.f32 %v5879, 0.0
        %5928 = vst [vmem:[%s340] sm:$0xff] %v5880
        %5929 = vst [vmem:[%s340 + $0x8] sm:$0xff] %v5881
        %5930 = vst [vmem:[%s340 + $0x10] sm:$0xff] %v5882
        %5931 = vst [vmem:[%s340 + $0x18] sm:$0xff] %v5883
        %5932 = vst [vmem:[%s340 + $0x20] sm:$0xff] %v5884
        %5933 = vst [vmem:[%s340 + $0x28] sm:$0xff] %v5885
        %5934 = vst [vmem:[%s340 + $0x30] sm:$0xff] %v5886
        %5935 = vst [vmem:[%s340 + $0x38] sm:$0xff] %v5887
        %5936 = vst [vmem:[%s340 + $0x40] sm:$0xff] %v5888
        %5937 = vst [vmem:[%s340 + $0x48] sm:$0xff] %v5889
        %5938 = vst [vmem:[%s340 + $0x50] sm:$0xff] %v5890
        %5939 = vst [vmem:[%s340 + $0x58] sm:$0xff] %v5891
        %5940 = vst [vmem:[%s340 + $0x60] sm:$0xff] %v5892
        %5941 = vst [vmem:[%s340 + $0x68] sm:$0xff] %v5893
        %5942 = vst [vmem:[%s340 + $0x70] sm:$0xff] %v5894
        %5943 = vst [vmem:[%s340 + $0x78] sm:$0xff] %v5895
        %5944 = vst [vmem:[%s340 + $0x80] sm:$0xff] %v5896
        %5945 = vst [vmem:[%s340 + $0x88] sm:$0xff] %v5897
        %5946 = vst [vmem:[%s340 + $0x90] sm:$0xff] %v5898
        %5947 = vst [vmem:[%s340 + $0x98] sm:$0xff] %v5899
        %5948 = vst [vmem:[%s340 + $0xa0] sm:$0xff] %v5900
        %5949 = vst [vmem:[%s340 + $0xa8] sm:$0xff] %v5901
        %5950 = vst [vmem:[%s340 + $0xb0] sm:$0xff] %v5902
        %5951 = vst [vmem:[%s340 + $0xb8] sm:$0xff] %v5903
        %5952 = vst [vmem:[%s340 + $0xc0] sm:$0xff] %v5904
        %5953 = vst [vmem:[%s340 + $0xc8] sm:$0xff] %v5905
        %5954 = vst [vmem:[%s340 + $0xd0] sm:$0xff] %v5906
        %5955 = vst [vmem:[%s340 + $0xd8] sm:$0xff] %v5907
        %5956 = vst [vmem:[%s340 + $0xe0] sm:$0xff] %v5908
        %5957 = vst [vmem:[%s340 + $0xe8] sm:$0xff] %v5909
        %5958 = vst [vmem:[%s340 + $0xf0] sm:$0xff] %v5910
        %5959 = vst [vmem:[%s340 + $0xf8] sm:$0xff] %v5911
        %5960 = vst [vmem:[%s340 + $0x100] sm:$0xff] %v5912
        %5961 = vst [vmem:[%s340 + $0x108] sm:$0xff] %v5913
        %5962 = vst [vmem:[%s340 + $0x110] sm:$0xff] %v5914
        %5963 = vst [vmem:[%s340 + $0x118] sm:$0xff] %v5915
        %5964 = vst [vmem:[%s340 + $0x120] sm:$0xff] %v5916
        %5965 = vst [vmem:[%s340 + $0x128] sm:$0xff] %v5917
        %5966 = vst [vmem:[%s340 + $0x130] sm:$0xff] %v5918
        %5967 = vst [vmem:[%s340 + $0x138] sm:$0xff] %v5919
        %5968 = vst [vmem:[%s340 + $0x140] sm:$0xff] %v5920
        %5969 = vst [vmem:[%s340 + $0x148] sm:$0xff] %v5921
        %5970 = vst [vmem:[%s340 + $0x150] sm:$0xff] %v5922
        %5971 = vst [vmem:[%s340 + $0x158] sm:$0xff] %v5923
        %5972 = vst [vmem:[%s340 + $0x160] sm:$0xff] %v5924
        %5973 = vst [vmem:[%s340 + $0x168] sm:$0xff] %v5925
        %5974 = vst [vmem:[%s340 + $0x170] sm:$0xff] %v5926
        %5975 = vst [vmem:[%s340 + $0x178] sm:$0xff] %v5927
        %s5976 = sand.u32 %s186, 1
        %s5977 = scalar_lea.sflag [#allocation5], %s5976
        %s5978 = sand.u32 %s186, 1
        %s5979 = smul.addr %s5978, 384
        %s5980 = scalar_lea.vmem [#allocation11], %s5979
        // Predicated region
        $region65: #{tpu_custom_call.1} parent=47 // pred_check
          %p5981 = pneg %p196
        $region66: #{tpu_custom_call.1} parent=47 // pred_check_branch
          %5983 = sbr.rel (%p5981) target = $region68
        $region67: #{tpu_custom_call.1} parent=47 // pred_region
          %s5985 = ssub.s32 6144, 6144
          %5986 = vsyncadd %s5977, %s5985
          %s5987 = smul.addr %s26, 48
          %s5988 = smul.addr %s5987, 128
          %s5989 = scalar_lea.hbm %s7, %s5988
          %s5990 = sshll.u32 %s5980, 4
          %s5991 = int_to_ptr.vmem [resolvable:$true] %s5990
          %5996 = dma.vmem_to_hbm [thread:$0]  %s5991, 6144, %s5989, %s5977, 128, 128, 8
        $region68: #{tpu_custom_call.1} parent=47 // pred_fallthru
          _
      $region48: #{tpu_custom_call.1} parent=5 // pred_fallthru
        _
      %p5997 = scmp.le.s32.totalorder 2, %s21
      // Predicated region
      $region69: #{tpu_custom_call.1} parent=5 // pred_check
        %p5998 = pneg %p5997
      $region70: #{tpu_custom_call.1} parent=5 // pred_check_branch
        %6000 = sbr.rel (%p5998) target = $region72
      $region71: #{tpu_custom_call.1} parent=5 // pred_region
        %s6001 = ssub.s32 %s21, 2
        // Predicated region
        $region73: #{tpu_custom_call.1} parent=71 // pred_check
          %p6002 = pneg %p202
        $region74: #{tpu_custom_call.1} parent=71 // pred_check_branch
          %6004 = sbr.rel (%p6002) target = $region76
        $region75: #{tpu_custom_call.1} parent=71 // pred_region
          %s6005 = sand.u32 %s187, 1
          %s6006 = scalar_lea.sflag [#allocation5], %s6005
          %s6007 = sand.u32 %s187, 1
          %s6008 = smul.addr %s6007, 384
          %s6009 = scalar_lea.vmem [#allocation11], %s6008
          %6010 = dma.done %s6006, 6144
        $region76: #{tpu_custom_call.1} parent=71 // pred_fallthru
          _
      $region72: #{tpu_custom_call.1} parent=5 // pred_fallthru
        _
    $region6: #{tpu_custom_call.1} parent=1 // loop_footer
      %s25 = sadd.s32 1, %s21
    $region7: #{tpu_custom_call.1} parent=1 // loop_footer_branch
      %20 = sbr.rel target = $region3
    $region8: #{tpu_custom_call.1} parent=1 // loop_exit
      _
    %6011 = vsyncpa [#allocation4], 1
    %s6012 = scalar_lea.sflag [#allocation4], 1
    %6013 = vsyncpa %s6012, 1
    %6014 = vsyncpa [#allocation7], 1
    %6015 = vsyncpa [#allocation10], 1
    %6016 = vsyncpa [#allocation5], 1
    %s6017 = scalar_lea.sflag [#allocation5], 1
    %6018 = vsyncpa %s6017, 1

</llo_original>
